<compile_context>
chip_gen: v7x
topology: tpu7x:2x2x1
jax: 0.10.0
libtpu: 0.0.40
codegen_flags: <defaults>
</compile_context>

<pallas_src>
import functools

import jax
import jax.numpy as jnp
from jax import lax
from jax.experimental import pallas as pl
from jax.experimental.pallas import tpu as pltpu

GROUPS = 32
EPS = 1e-5


# --------------------------------------------------------------------------------------
# Kernel
# --------------------------------------------------------------------------------------
def _resblock_kernel(x_ref, g1_ref, be1_ref, w1_ref, b1_ref,
                     g2_ref, be2_ref, w2_ref, b2_ref,
                     red_in_ref, bc_in_ref, red_out_ref, bc_out_ref,
                     mask_ref, *rest, H, W, nb, has_res_conv):
    if has_res_conv:
        wr_ref, br_ref, o_ref = rest
    else:
        (o_ref,) = rest

    Cin = x_ref.shape[3]
    Cout = o_ref.shape[3]
    HW = H * W
    M = nb * HW

    masks = mask_ref[...]                                        # (M, 9) f32 in {0, 1}

    def group_norm(v, red_ref, bc_ref, gamma_ref, beta_ref):
        # v: (nb, HW, C) f32.  red: (C, G) scaled group-membership matrix (group reduce +
        # 1/(HW*C/G) scaling in one matmul); bc: (G, C) broadcast-back matrix.
        s1 = jnp.sum(v, axis=1)                                  # (nb, C)
        s2 = jnp.sum(v * v, axis=1)                              # (nb, C)
        mean_g = jnp.dot(s1, red_ref[...], preferred_element_type=jnp.float32)  # (nb, G)
        ex2_g = jnp.dot(s2, red_ref[...], preferred_element_type=jnp.float32)
        var_g = jnp.maximum(ex2_g - mean_g * mean_g, 0.0)        # clamp cancellation
        inv_g = lax.rsqrt(var_g + EPS)
        mean_c = jnp.dot(mean_g, bc_ref[...], preferred_element_type=jnp.float32)  # (nb, C)
        inv_c = jnp.dot(inv_g, bc_ref[...], preferred_element_type=jnp.float32)
        gamma = gamma_ref[...].astype(jnp.float32)               # (1, C)
        beta = beta_ref[...].astype(jnp.float32)
        return ((v - mean_c[:, None, :]) * inv_c[:, None, :]) * gamma[None] + beta[None]

    def silu(v):
        return v * jax.nn.sigmoid(v)

    def conv3x3(v, w_ref_, b_ref_, Ci):
        # v: (M, Ci) f32.  w_ref_: (9*Ci, Co) bf16, tap-major (ky, kx, ci).
        # Nine per-tap MXU matmuls accumulated in f32 -- no im2col concatenate.
        acc = None
        t = 0
        for oy in (-1, 0, 1):
            for ox in (-1, 0, 1):
                d = oy * W + ox
                if d == 0:
                    piece = v
                else:
                    rolled = pltpu.roll(v, shift=(-d) % M, axis=0)   # rolled[r] = v[r + d]
                    piece = rolled * masks[:, t:t + 1]               # zero out-of-image taps
                contrib = jnp.dot(piece.astype(jnp.bfloat16),
                                  w_ref_[t * Ci:(t + 1) * Ci, :],
                                  preferred_element_type=jnp.float32)
                acc = contrib if acc is None else acc + contrib
                t += 1
        return acc + b_ref_[...].astype(jnp.float32)

    x = x_ref[...].astype(jnp.float32).reshape(nb, HW, Cin)
    h = group_norm(x, red_in_ref, bc_in_ref, g1_ref, be1_ref)
    h = silu(h)
    h = conv3x3(h.reshape(M, Cin), w1_ref, b1_ref, Cin)          # (M, Cout) f32
    h = group_norm(h.reshape(nb, HW, Cout), red_out_ref, bc_out_ref, g2_ref, be2_ref)
    h = silu(h)
    h = conv3x3(h.reshape(M, Cout), w2_ref, b2_ref, Cout)        # (M, Cout) f32

    # Residual path: re-read the input block (already resident in VMEM) so no f32 copy of
    # x stays live across both convs.
    if has_res_conv:
        xr = x_ref[...].reshape(M, Cin).astype(jnp.bfloat16)
        res = (jnp.dot(xr, wr_ref[...], preferred_element_type=jnp.float32)
               + br_ref[...].astype(jnp.float32))
    else:
        res = x_ref[...].astype(jnp.float32).reshape(M, Cin)     # identity residual (exact)

    o_ref[...] = (h + res).reshape(nb, H, W, Cout).astype(o_ref.dtype)


# --------------------------------------------------------------------------------------
# Host-side constant builders and sizing heuristics
# --------------------------------------------------------------------------------------
def build_group_matrices(C, HW, groups=GROUPS):
    """(C, G) scaled reduce matrix and (G, C) broadcast matrix for GroupNorm statistics."""
    cg = C // groups
    member = (jnp.arange(C)[:, None] // cg == jnp.arange(groups)[None, :]).astype(jnp.float32)
    reduce_m = member / float(HW * cg)          # s1 @ reduce_m -> per-group mean
    bcast_m = member.T                          # per-group stat @ bcast_m -> per-channel
    return reduce_m, bcast_m


def build_tap_masks(nb, H, W):
    """(M, 9) {0,1} masks: column t=(oy+1)*3+(ox+1) is 1 iff the (oy, ox) tap of that row's
    pixel lies inside its image (also kills cross-image wrap-around of the stacked roll)."""
    HW = H * W
    pix = jnp.arange(nb * HW, dtype=jnp.int32) % HW
    ii = pix // W
    jj = pix % W
    cols = []
    for oy in (-1, 0, 1):
        for ox in (-1, 0, 1):
            ok = (ii + oy >= 0) & (ii + oy < H) & (jj + ox >= 0) & (jj + ox < W)
            cols.append(ok.astype(jnp.float32))
    return jnp.stack(cols, axis=1)


def _vmem_limit_bytes():
    """Per-generation scoped-VMEM budget (~70% of physical VMEM, capped at 96 MiB)."""
    cap = 64 * 1024 * 1024                       # conservative default (v7x per-core VMEM)
    try:
        cap = int(pltpu.get_tpu_info().vmem_capacity_bytes)
    except Exception:
        pass
    return min(int(cap * 0.72), 96 * 1024 * 1024)


def _step_vmem_bytes(nb, HW, Cin, Cout):
    """Rough per-grid-step VMEM estimate: double-buffered IO blocks + f32 intermediates +
    bf16 weights + GN / mask constants."""
    M = nb * HW
    C = max(Cin, Cout)
    io = 2 * M * Cin * 4 + 2 * M * Cout * 4
    act = 3 * M * C * 4 + M * Cout * 4
    wts = 2 * (9 * Cin * Cout + 9 * Cout * Cout + Cin * Cout) * 2
    cst = M * 9 * 4 + 8 * (Cin + Cout) * GROUPS
    return io + act + wts + cst


def _auto_nb(N, HW, Cin, Cout, budget_bytes, target_rows):
    """Largest divisor of N that (a) keeps the per-step working set under the VMEM budget,
    (b) keeps M = nb*HW near target_rows, and (c) leaves the grid with >= 2 steps when
    N >= 2 (so both v7x TensorCores get work)."""
    cap_rows = max(target_rows, HW)
    best = None
    for cand in range(1, N + 1):
        if N % cand:
            continue
        if cand * HW > cap_rows or _step_vmem_bytes(cand, HW, Cin, Cout) > budget_bytes:
            continue
        if N >= 2 and cand > N // 2 and best is not None:
            continue                              # keep >= 2 grid steps
        best = cand
    if best is None:
        # TODO(synk): a single image exceeds the VMEM budget at this resolution; needs
        # row-chunk spatial tiling with a two-pass GroupNorm (not implemented here).
        best = 1
    return best


# --------------------------------------------------------------------------------------
# Wrappers
# --------------------------------------------------------------------------------------
def vae_residual_block_nhwc(x_nhwc, params, nb=None):
    """Core NHWC entry point (no layout transposes)."""
    N, H, W, Cin = x_nhwc.shape
    Cout = params["b1"].shape[0]
    HW = H * W
    vmem_limit = _vmem_limit_bytes()
    if nb is None:
        target_rows = 1024 if vmem_limit > 64 * 1024 * 1024 else 512
        nb = _auto_nb(N, HW, Cin, Cout, int(vmem_limit * 0.7), target_rows)
    assert N % nb == 0, "nb must divide the batch size"
    has_res_conv = not params["identity_residual"]

    red_in, bc_in = build_group_matrices(Cin, HW)
    red_out, bc_out = build_group_matrices(Cout, HW)
    masks = build_tap_masks(nb, H, W)

    kernel = functools.partial(_resblock_kernel, H=H, W=W, nb=nb,
                               has_res_conv=has_res_conv)

    args = [
        x_nhwc,
        params["gn1_w"].reshape(1, Cin), params["gn1_b"].reshape(1, Cin),
        params["w1_k"], params["b1"].reshape(1, Cout),
        params["gn2_w"].reshape(1, Cout), params["gn2_b"].reshape(1, Cout),
        params["w2_k"], params["b2"].reshape(1, Cout),
        red_in, bc_in, red_out, bc_out,
        masks,
    ]
    if has_res_conv:
        args += [params["wr_k"], params["br"].reshape(1, Cout)]

    def run(single_buffer_consts):
        def cspec(shape):
            # Constants reuse the same block every grid step; single-buffer them when the
            # jax version supports BlockSpec(pipeline_mode=...).
            if single_buffer_consts:
                return pl.BlockSpec(shape, lambda n: (0, 0),
                                    pipeline_mode=pl.Buffered(1))
            return pl.BlockSpec(shape, lambda n: (0, 0))

        in_specs = [pl.BlockSpec((nb, H, W, Cin), lambda n: (n, 0, 0, 0))]
        in_specs += [cspec(tuple(a.shape)) for a in args[1:]]

        return pl.pallas_call(
            kernel,
            out_shape=jax.ShapeDtypeStruct((N, H, W, Cout), x_nhwc.dtype),
            grid_spec=pltpu.PrefetchScalarGridSpec(
                num_scalar_prefetch=0,
                grid=(N // nb,),
                in_specs=in_specs,
                out_specs=pl.BlockSpec((nb, H, W, Cout), lambda n: (n, 0, 0, 0)),
            ),
            compiler_params=pltpu.CompilerParams(
                dimension_semantics=("parallel",),
                vmem_limit_bytes=vmem_limit,
            ),
        )(*args)

    try:
        return run(single_buffer_consts=True)
    except Exception:
        # Fallback for jax versions without pipeline_mode / Buffered(1) support.
        return run(single_buffer_consts=False)


def vae_residual_block(x_nchw, params, nb=None):
    """NCHW wrapper for PyTorch-layout parity; an NHWC model should call *_nhwc directly."""
    x = jnp.transpose(x_nchw, (0, 2, 3, 1))
    y = vae_residual_block_nhwc(x, params, nb=nb)
    return jnp.transpose(y, (0, 3, 1, 2))


def init_params(key, Cin, Cout):
    ks = jax.random.split(key, 10)
    w1_oihw = 0.05 * jax.random.normal(ks[0], (Cout, Cin, 3, 3), jnp.float32)
    b1 = 0.05 * jax.random.normal(ks[1], (Cout,), jnp.float32)
    w2_oihw = 0.05 * jax.random.normal(ks[2], (Cout, Cout, 3, 3), jnp.float32)
    b2 = 0.05 * jax.random.normal(ks[3], (Cout,), jnp.float32)
    gn1_w = 1.0 + 0.1 * jax.random.normal(ks[4], (Cin,), jnp.float32)
    gn1_b = 0.1 * jax.random.normal(ks[5], (Cin,), jnp.float32)
    gn2_w = 1.0 + 0.1 * jax.random.normal(ks[6], (Cout,), jnp.float32)
    gn2_b = 0.1 * jax.random.normal(ks[7], (Cout,), jnp.float32)

    params = {
        "w1_oihw": w1_oihw, "b1": b1,
        "w2_oihw": w2_oihw, "b2": b2,
        "gn1_w": gn1_w, "gn1_b": gn1_b,
        "gn2_w": gn2_w, "gn2_b": gn2_b,
        "identity_residual": Cin == Cout,
        # kernel-side layouts: HWIO reshaped tap-major to (9*Ci, Co), stored in bf16
        "w1_k": jnp.transpose(w1_oihw, (2, 3, 1, 0)).reshape(9 * Cin, Cout).astype(jnp.bfloat16),
        "w2_k": jnp.transpose(w2_oihw, (2, 3, 1, 0)).reshape(9 * Cout, Cout).astype(jnp.bfloat16),
    }
    if Cin != Cout:
        wr_oihw = 0.05 * jax.random.normal(ks[8], (Cout, Cin, 1, 1), jnp.float32)
        br = 0.05 * jax.random.normal(ks[9], (Cout,), jnp.float32)
        params["wr_oihw"] = wr_oihw
        params["br"] = br
        params["wr_k"] = jnp.transpose(wr_oihw[:, :, 0, 0], (1, 0)).astype(jnp.bfloat16)
    return params


# --------------------------------------------------------------------------------------
# Pure-JAX f32 reference (mirrors the PyTorch forward, NCHW) + check
# --------------------------------------------------------------------------------------
def _group_norm_ref(x, gamma, beta):
    N, C, H, W = x.shape
    xg = x.reshape(N, GROUPS, C // GROUPS, H, W)
    mean = jnp.mean(xg, axis=(2, 3, 4), keepdims=True)
    var = jnp.var(xg, axis=(2, 3, 4), keepdims=True)
    xn = ((xg - mean) / jnp.sqrt(var + EPS)).reshape(N, C, H, W)
    return xn * gamma.reshape(1, C, 1, 1) + beta.reshape(1, C, 1, 1)


def _conv2d_ref(x, w_oihw, b, padding):
    y = lax.conv_general_dilated(
        x, w_oihw, window_strides=(1, 1), padding=padding,
        dimension_numbers=("NCHW", "OIHW", "NCHW"),
        precision=lax.Precision.HIGHEST)
    return y + b.reshape(1, -1, 1, 1)


def reference_forward(x, p):
    h = _group_norm_ref(x, p["gn1_w"], p["gn1_b"])
    h = h * jax.nn.sigmoid(h)
    h = _conv2d_ref(h, p["w1_oihw"], p["b1"], ((1, 1), (1, 1)))
    h = _group_norm_ref(h, p["gn2_w"], p["gn2_b"])
    h = h * jax.nn.sigmoid(h)
    h = _conv2d_ref(h, p["w2_oihw"], p["b2"], ((1, 1), (1, 1)))
    if p["identity_residual"]:
        res = x
    else:
        res = _conv2d_ref(x, p["wr_oihw"], p["br"], ((0, 0), (0, 0)))
    return h + res


def _check(name, out, ref):
    max_err = float(jnp.max(jnp.abs(out - ref)))
    # bf16 MXU operands (f32 accumulate) -> relaxed but still meaningful tolerance
    if not bool(jnp.allclose(out, ref, atol=5e-2, rtol=5e-2)):
        raise AssertionError(f"{name}: kernel/reference mismatch, max abs err = {max_err}")


if __name__ == "__main__":
    key = jax.random.PRNGKey(0)
    k1, k2, k3, k4 = jax.random.split(key, 4)

    # Config A: Cin != Cout -> 1x1-conv residual path (GroupNorm(32, C) needs C % 32 == 0).
    N, Cin, Cout, H, W = 2, 64, 128, 8, 8
    x = jax.random.normal(k1, (N, Cin, H, W), jnp.float32)
    params = init_params(k2, Cin, Cout)
    out = jax.block_until_ready(vae_residual_block(x, params))
    assert out.shape == (N, Cout, H, W)
    _check("conv-residual", out, reference_forward(x, params))

    # Config B: Cin == Cout -> identity residual; nb=2 gives a 2-step "parallel" grid.
    N2, C2 = 4, 64
    x2 = jax.random.normal(k3, (N2, C2, H, W), jnp.float32)
    params2 = init_params(k4, C2, C2)
    out2 = jax.block_until_ready(vae_residual_block(x2, params2, nb=2))
    assert out2.shape == (N2, C2, H, W)
    _check("identity-residual", out2, reference_forward(x2, params2))

    print("KERNEL_OK")
</pallas_src>

<mosaic_0001>
module attributes {stable_mosaic.version = 11 : i64} {
  func.func @_resblock_kernel(%arg0: i32, %arg1: memref<1x8x8x64xf32, #tpu.memory_space<vmem>>, %arg2: memref<1x64xf32, #tpu.memory_space<vmem>>, %arg3: memref<1x64xf32, #tpu.memory_space<vmem>>, %arg4: memref<576x128xbf16, #tpu.memory_space<vmem>>, %arg5: memref<1x128xf32, #tpu.memory_space<vmem>>, %arg6: memref<1x128xf32, #tpu.memory_space<vmem>>, %arg7: memref<1x128xf32, #tpu.memory_space<vmem>>, %arg8: memref<1152x128xbf16, #tpu.memory_space<vmem>>, %arg9: memref<1x128xf32, #tpu.memory_space<vmem>>, %arg10: memref<64x32xf32, #tpu.memory_space<vmem>>, %arg11: memref<32x64xf32, #tpu.memory_space<vmem>>, %arg12: memref<128x32xf32, #tpu.memory_space<vmem>>, %arg13: memref<32x128xf32, #tpu.memory_space<vmem>>, %arg14: memref<64x9xf32, #tpu.memory_space<vmem>>, %arg15: memref<64x128xbf16, #tpu.memory_space<vmem>>, %arg16: memref<1x128xf32, #tpu.memory_space<vmem>>, %arg17: memref<1x8x8x128xf32, #tpu.memory_space<vmem>>) attributes {dimension_semantics = [#tpu.dimension_semantics<parallel>], iteration_bounds = array<i64: 2>, scalar_prefetch = 0 : i64, scratch_operands = 0 : i64, tpu.core_type = #tpu.core_type<tc>, window_params = [{transform_indices = @transform_0, window_bounds = array<i64: 1, 8, 8, 64>}, {pipeline_mode = #tpu.pipeline_mode<synchronous>, transform_indices = @transform_1, window_bounds = array<i64: 1, 64>}, {pipeline_mode = #tpu.pipeline_mode<synchronous>, transform_indices = @transform_2, window_bounds = array<i64: 1, 64>}, {pipeline_mode = #tpu.pipeline_mode<synchronous>, transform_indices = @transform_3, window_bounds = array<i64: 576, 128>}, {pipeline_mode = #tpu.pipeline_mode<synchronous>, transform_indices = @transform_4, window_bounds = array<i64: 1, 128>}, {pipeline_mode = #tpu.pipeline_mode<synchronous>, transform_indices = @transform_5, window_bounds = array<i64: 1, 128>}, {pipeline_mode = #tpu.pipeline_mode<synchronous>, transform_indices = @transform_6, window_bounds = array<i64: 1, 128>}, {pipeline_mode = #tpu.pipeline_mode<synchronous>, transform_indices = @transform_7, window_bounds = array<i64: 1152, 128>}, {pipeline_mode = #tpu.pipeline_mode<synchronous>, transform_indices = @transform_8, window_bounds = array<i64: 1, 128>}, {pipeline_mode = #tpu.pipeline_mode<synchronous>, transform_indices = @transform_9, window_bounds = array<i64: 64, 32>}, {pipeline_mode = #tpu.pipeline_mode<synchronous>, transform_indices = @transform_10, window_bounds = array<i64: 32, 64>}, {pipeline_mode = #tpu.pipeline_mode<synchronous>, transform_indices = @transform_11, window_bounds = array<i64: 128, 32>}, {pipeline_mode = #tpu.pipeline_mode<synchronous>, transform_indices = @transform_12, window_bounds = array<i64: 32, 128>}, {pipeline_mode = #tpu.pipeline_mode<synchronous>, transform_indices = @transform_13, window_bounds = array<i64: 64, 9>}, {pipeline_mode = #tpu.pipeline_mode<synchronous>, transform_indices = @transform_14, window_bounds = array<i64: 64, 128>}, {pipeline_mode = #tpu.pipeline_mode<synchronous>, transform_indices = @transform_15, window_bounds = array<i64: 1, 128>}, {transform_indices = @transform_16, window_bounds = array<i64: 1, 8, 8, 128>}]} {
    %c0 = arith.constant 0 : index
    %c0_0 = arith.constant 0 : index
    %0 = vector.load %arg14[%c0, %c0_0] : memref<64x9xf32, #tpu.memory_space<vmem>>, vector<64x9xf32>
    %c0_1 = arith.constant 0 : index
    %c0_2 = arith.constant 0 : index
    %c0_3 = arith.constant 0 : index
    %c0_4 = arith.constant 0 : index
    %1 = vector.load %arg1[%c0_1, %c0_2, %c0_3, %c0_4] : memref<1x8x8x64xf32, #tpu.memory_space<vmem>>, vector<1x8x8x64xf32>
    %2 = vector.shape_cast %1 : vector<1x8x8x64xf32> to vector<1x64x64xf32>
    %cst = arith.constant dense<0.000000e+00> : vector<1x64xf32>
    %3 = vector.multi_reduction <add>, %2, %cst [1] : vector<1x64x64xf32> to vector<1x64xf32>
    %4 = arith.mulf %2, %2 : vector<1x64x64xf32>
    %cst_5 = arith.constant dense<0.000000e+00> : vector<1x64xf32>
    %5 = vector.multi_reduction <add>, %4, %cst_5 [1] : vector<1x64x64xf32> to vector<1x64xf32>
    %c0_6 = arith.constant 0 : index
    %c0_7 = arith.constant 0 : index
    %6 = vector.load %arg10[%c0_6, %c0_7] : memref<64x32xf32, #tpu.memory_space<vmem>>, vector<64x32xf32>
    %cst_8 = arith.constant dense<0.000000e+00> : vector<1x32xf32>
    %7 = tpu.matmul %3, %6, %cst_8 {dimension_numbers = #tpu.dot_dimension_numbers<[1], [0], [0], [1], [0, 0, 1, 1], [], []>} : vector<1x64xf32>, vector<64x32xf32>, vector<1x32xf32> -> vector<1x32xf32>
    %c0_9 = arith.constant 0 : index
    %c0_10 = arith.constant 0 : index
    %8 = vector.load %arg10[%c0_9, %c0_10] : memref<64x32xf32, #tpu.memory_space<vmem>>, vector<64x32xf32>
    %cst_11 = arith.constant dense<0.000000e+00> : vector<1x32xf32>
    %9 = tpu.matmul %5, %8, %cst_11 {dimension_numbers = #tpu.dot_dimension_numbers<[1], [0], [0], [1], [0, 0, 1, 1], [], []>} : vector<1x64xf32>, vector<64x32xf32>, vector<1x32xf32> -> vector<1x32xf32>
    %10 = arith.mulf %7, %7 : vector<1x32xf32>
    %11 = arith.subf %9, %10 : vector<1x32xf32>
    %cst_12 = arith.constant 0.000000e+00 : f32
    %12 = vector.broadcast %cst_12 : f32 to vector<1x32xf32>
    %13 = arith.maximumf %11, %12 : vector<1x32xf32>
    %cst_13 = arith.constant 9.99999974E-6 : f32
    %14 = vector.broadcast %cst_13 : f32 to vector<1x32xf32>
    %15 = arith.addf %13, %14 : vector<1x32xf32>
    %16 = math.rsqrt %15 : vector<1x32xf32>
    %c0_14 = arith.constant 0 : index
    %c0_15 = arith.constant 0 : index
    %17 = vector.load %arg11[%c0_14, %c0_15] : memref<32x64xf32, #tpu.memory_space<vmem>>, vector<32x64xf32>
    %cst_16 = arith.constant dense<0.000000e+00> : vector<1x64xf32>
    %18 = tpu.matmul %7, %17, %cst_16 {dimension_numbers = #tpu.dot_dimension_numbers<[1], [0], [0], [1], [0, 0, 1, 1], [], []>} : vector<1x32xf32>, vector<32x64xf32>, vector<1x64xf32> -> vector<1x64xf32>
    %c0_17 = arith.constant 0 : index
    %c0_18 = arith.constant 0 : index
    %19 = vector.load %arg11[%c0_17, %c0_18] : memref<32x64xf32, #tpu.memory_space<vmem>>, vector<32x64xf32>
    %cst_19 = arith.constant dense<0.000000e+00> : vector<1x64xf32>
    %20 = tpu.matmul %16, %19, %cst_19 {dimension_numbers = #tpu.dot_dimension_numbers<[1], [0], [0], [1], [0, 0, 1, 1], [], []>} : vector<1x32xf32>, vector<32x64xf32>, vector<1x64xf32> -> vector<1x64xf32>
    %c0_20 = arith.constant 0 : index
    %c0_21 = arith.constant 0 : index
    %21 = vector.load %arg2[%c0_20, %c0_21] : memref<1x64xf32, #tpu.memory_space<vmem>>, vector<1x64xf32>
    %c0_22 = arith.constant 0 : index
    %c0_23 = arith.constant 0 : index
    %22 = vector.load %arg3[%c0_22, %c0_23] : memref<1x64xf32, #tpu.memory_space<vmem>>, vector<1x64xf32>
    %23 = vector.shape_cast %18 : vector<1x64xf32> to vector<1x1x64xf32>
    %24 = vector.broadcast %23 : vector<1x1x64xf32> to vector<1x64x64xf32>
    %25 = arith.subf %2, %24 : vector<1x64x64xf32>
    %26 = vector.shape_cast %20 : vector<1x64xf32> to vector<1x1x64xf32>
    %27 = vector.broadcast %26 : vector<1x1x64xf32> to vector<1x64x64xf32>
    %28 = arith.mulf %25, %27 : vector<1x64x64xf32>
    %29 = vector.shape_cast %21 : vector<1x64xf32> to vector<1x1x64xf32>
    %30 = vector.broadcast %29 : vector<1x1x64xf32> to vector<1x64x64xf32>
    %31 = arith.mulf %28, %30 : vector<1x64x64xf32>
    %32 = vector.shape_cast %22 : vector<1x64xf32> to vector<1x1x64xf32>
    %33 = vector.broadcast %32 : vector<1x1x64xf32> to vector<1x64x64xf32>
    %34 = arith.addf %31, %33 : vector<1x64x64xf32>
    %35 = arith.negf %34 : vector<1x64x64xf32>
    %36 = math.exp %35 : vector<1x64x64xf32>
    %cst_24 = arith.constant 1.000000e+00 : f32
    %37 = vector.broadcast %cst_24 : f32 to vector<1x64x64xf32>
    %38 = arith.addf %37, %36 : vector<1x64x64xf32>
    %39 = arith.divf %37, %38 : vector<1x64x64xf32>
    %40 = arith.mulf %34, %39 : vector<1x64x64xf32>
    %41 = vector.shape_cast %40 : vector<1x64x64xf32> to vector<64x64xf32>
    %c9_i32 = arith.constant 9 : i32
    %42 = tpu.dynamic_rotate %41 by %c9_i32 dim 0 : vector<64x64xf32>, i32 -> vector<64x64xf32>
    %43 = vector.extract_strided_slice %0 {offsets = [0, 0], sizes = [64, 1], strides = [1, 1]} : vector<64x9xf32> to vector<64x1xf32>
    %44 = vector.broadcast %43 : vector<64x1xf32> to vector<64x64xf32>
    %45 = arith.mulf %42, %44 : vector<64x64xf32>
    %46 = arith.truncf %45 : vector<64x64xf32> to vector<64x64xbf16>
    %c0_25 = arith.constant 0 : index
    %c0_26 = arith.constant 0 : index
    %47 = vector.load %arg4[%c0_25, %c0_26] : memref<576x128xbf16, #tpu.memory_space<vmem>>, vector<64x128xbf16>
    %cst_27 = arith.constant dense<0.000000e+00> : vector<64x128xf32>
    %48 = tpu.matmul %46, %47, %cst_27 {dimension_numbers = #tpu.dot_dimension_numbers<[1], [0], [0], [1], [0, 0, 1, 1], [], []>} : vector<64x64xbf16>, vector<64x128xbf16>, vector<64x128xf32> -> vector<64x128xf32>
    %c8_i32 = arith.constant 8 : i32
    %49 = tpu.dynamic_rotate %41 by %c8_i32 dim 0 : vector<64x64xf32>, i32 -> vector<64x64xf32>
    %50 = vector.extract_strided_slice %0 {offsets = [0, 1], sizes = [64, 1], strides = [1, 1]} : vector<64x9xf32> to vector<64x1xf32>
    %51 = vector.broadcast %50 : vector<64x1xf32> to vector<64x64xf32>
    %52 = arith.mulf %49, %51 : vector<64x64xf32>
    %53 = arith.truncf %52 : vector<64x64xf32> to vector<64x64xbf16>
    %c64 = arith.constant 64 : index
    %c0_28 = arith.constant 0 : index
    %54 = vector.load %arg4[%c64, %c0_28] : memref<576x128xbf16, #tpu.memory_space<vmem>>, vector<64x128xbf16>
    %cst_29 = arith.constant dense<0.000000e+00> : vector<64x128xf32>
    %55 = tpu.matmul %53, %54, %cst_29 {dimension_numbers = #tpu.dot_dimension_numbers<[1], [0], [0], [1], [0, 0, 1, 1], [], []>} : vector<64x64xbf16>, vector<64x128xbf16>, vector<64x128xf32> -> vector<64x128xf32>
    %56 = arith.addf %48, %55 : vector<64x128xf32>
    %c7_i32 = arith.constant 7 : i32
    %57 = tpu.dynamic_rotate %41 by %c7_i32 dim 0 : vector<64x64xf32>, i32 -> vector<64x64xf32>
    %58 = vector.extract_strided_slice %0 {offsets = [0, 2], sizes = [64, 1], strides = [1, 1]} : vector<64x9xf32> to vector<64x1xf32>
    %59 = vector.broadcast %58 : vector<64x1xf32> to vector<64x64xf32>
    %60 = arith.mulf %57, %59 : vector<64x64xf32>
    %61 = arith.truncf %60 : vector<64x64xf32> to vector<64x64xbf16>
    %c128 = arith.constant 128 : index
    %c0_30 = arith.constant 0 : index
    %62 = vector.load %arg4[%c128, %c0_30] : memref<576x128xbf16, #tpu.memory_space<vmem>>, vector<64x128xbf16>
    %cst_31 = arith.constant dense<0.000000e+00> : vector<64x128xf32>
    %63 = tpu.matmul %61, %62, %cst_31 {dimension_numbers = #tpu.dot_dimension_numbers<[1], [0], [0], [1], [0, 0, 1, 1], [], []>} : vector<64x64xbf16>, vector<64x128xbf16>, vector<64x128xf32> -> vector<64x128xf32>
    %64 = arith.addf %56, %63 : vector<64x128xf32>
    %c1_i32 = arith.constant 1 : i32
    %65 = tpu.dynamic_rotate %41 by %c1_i32 dim 0 : vector<64x64xf32>, i32 -> vector<64x64xf32>
    %66 = vector.extract_strided_slice %0 {offsets = [0, 3], sizes = [64, 1], strides = [1, 1]} : vector<64x9xf32> to vector<64x1xf32>
    %67 = vector.broadcast %66 : vector<64x1xf32> to vector<64x64xf32>
    %68 = arith.mulf %65, %67 : vector<64x64xf32>
    %69 = arith.truncf %68 : vector<64x64xf32> to vector<64x64xbf16>
    %c192 = arith.constant 192 : index
    %c0_32 = arith.constant 0 : index
    %70 = vector.load %arg4[%c192, %c0_32] : memref<576x128xbf16, #tpu.memory_space<vmem>>, vector<64x128xbf16>
    %cst_33 = arith.constant dense<0.000000e+00> : vector<64x128xf32>
    %71 = tpu.matmul %69, %70, %cst_33 {dimension_numbers = #tpu.dot_dimension_numbers<[1], [0], [0], [1], [0, 0, 1, 1], [], []>} : vector<64x64xbf16>, vector<64x128xbf16>, vector<64x128xf32> -> vector<64x128xf32>
    %72 = arith.addf %64, %71 : vector<64x128xf32>
    %73 = arith.truncf %41 : vector<64x64xf32> to vector<64x64xbf16>
    %c256 = arith.constant 256 : index
    %c0_34 = arith.constant 0 : index
    %74 = vector.load %arg4[%c256, %c0_34] : memref<576x128xbf16, #tpu.memory_space<vmem>>, vector<64x128xbf16>
    %cst_35 = arith.constant dense<0.000000e+00> : vector<64x128xf32>
    %75 = tpu.matmul %73, %74, %cst_35 {dimension_numbers = #tpu.dot_dimension_numbers<[1], [0], [0], [1], [0, 0, 1, 1], [], []>} : vector<64x64xbf16>, vector<64x128xbf16>, vector<64x128xf32> -> vector<64x128xf32>
    %76 = arith.addf %72, %75 : vector<64x128xf32>
    %c63_i32 = arith.constant 63 : i32
    %77 = tpu.dynamic_rotate %41 by %c63_i32 dim 0 : vector<64x64xf32>, i32 -> vector<64x64xf32>
    %78 = vector.extract_strided_slice %0 {offsets = [0, 5], sizes = [64, 1], strides = [1, 1]} : vector<64x9xf32> to vector<64x1xf32>
    %79 = vector.broadcast %78 : vector<64x1xf32> to vector<64x64xf32>
    %80 = arith.mulf %77, %79 : vector<64x64xf32>
    %81 = arith.truncf %80 : vector<64x64xf32> to vector<64x64xbf16>
    %c320 = arith.constant 320 : index
    %c0_36 = arith.constant 0 : index
    %82 = vector.load %arg4[%c320, %c0_36] : memref<576x128xbf16, #tpu.memory_space<vmem>>, vector<64x128xbf16>
    %cst_37 = arith.constant dense<0.000000e+00> : vector<64x128xf32>
    %83 = tpu.matmul %81, %82, %cst_37 {dimension_numbers = #tpu.dot_dimension_numbers<[1], [0], [0], [1], [0, 0, 1, 1], [], []>} : vector<64x64xbf16>, vector<64x128xbf16>, vector<64x128xf32> -> vector<64x128xf32>
    %84 = arith.addf %76, %83 : vector<64x128xf32>
    %c57_i32 = arith.constant 57 : i32
    %85 = tpu.dynamic_rotate %41 by %c57_i32 dim 0 : vector<64x64xf32>, i32 -> vector<64x64xf32>
    %86 = vector.extract_strided_slice %0 {offsets = [0, 6], sizes = [64, 1], strides = [1, 1]} : vector<64x9xf32> to vector<64x1xf32>
    %87 = vector.broadcast %86 : vector<64x1xf32> to vector<64x64xf32>
    %88 = arith.mulf %85, %87 : vector<64x64xf32>
    %89 = arith.truncf %88 : vector<64x64xf32> to vector<64x64xbf16>
    %c384 = arith.constant 384 : index
    %c0_38 = arith.constant 0 : index
    %90 = vector.load %arg4[%c384, %c0_38] : memref<576x128xbf16, #tpu.memory_space<vmem>>, vector<64x128xbf16>
    %cst_39 = arith.constant dense<0.000000e+00> : vector<64x128xf32>
    %91 = tpu.matmul %89, %90, %cst_39 {dimension_numbers = #tpu.dot_dimension_numbers<[1], [0], [0], [1], [0, 0, 1, 1], [], []>} : vector<64x64xbf16>, vector<64x128xbf16>, vector<64x128xf32> -> vector<64x128xf32>
    %92 = arith.addf %84, %91 : vector<64x128xf32>
    %c56_i32 = arith.constant 56 : i32
    %93 = tpu.dynamic_rotate %41 by %c56_i32 dim 0 : vector<64x64xf32>, i32 -> vector<64x64xf32>
    %94 = vector.extract_strided_slice %0 {offsets = [0, 7], sizes = [64, 1], strides = [1, 1]} : vector<64x9xf32> to vector<64x1xf32>
    %95 = vector.broadcast %94 : vector<64x1xf32> to vector<64x64xf32>
    %96 = arith.mulf %93, %95 : vector<64x64xf32>
    %97 = arith.truncf %96 : vector<64x64xf32> to vector<64x64xbf16>
    %c448 = arith.constant 448 : index
    %c0_40 = arith.constant 0 : index
    %98 = vector.load %arg4[%c448, %c0_40] : memref<576x128xbf16, #tpu.memory_space<vmem>>, vector<64x128xbf16>
    %cst_41 = arith.constant dense<0.000000e+00> : vector<64x128xf32>
    %99 = tpu.matmul %97, %98, %cst_41 {dimension_numbers = #tpu.dot_dimension_numbers<[1], [0], [0], [1], [0, 0, 1, 1], [], []>} : vector<64x64xbf16>, vector<64x128xbf16>, vector<64x128xf32> -> vector<64x128xf32>
    %100 = arith.addf %92, %99 : vector<64x128xf32>
    %c55_i32 = arith.constant 55 : i32
    %101 = tpu.dynamic_rotate %41 by %c55_i32 dim 0 : vector<64x64xf32>, i32 -> vector<64x64xf32>
    %102 = vector.extract_strided_slice %0 {offsets = [0, 8], sizes = [64, 1], strides = [1, 1]} : vector<64x9xf32> to vector<64x1xf32>
    %103 = vector.broadcast %102 : vector<64x1xf32> to vector<64x64xf32>
    %104 = arith.mulf %101, %103 : vector<64x64xf32>
    %105 = arith.truncf %104 : vector<64x64xf32> to vector<64x64xbf16>
    %c512 = arith.constant 512 : index
    %c0_42 = arith.constant 0 : index
    %106 = vector.load %arg4[%c512, %c0_42] : memref<576x128xbf16, #tpu.memory_space<vmem>>, vector<64x128xbf16>
    %cst_43 = arith.constant dense<0.000000e+00> : vector<64x128xf32>
    %107 = tpu.matmul %105, %106, %cst_43 {dimension_numbers = #tpu.dot_dimension_numbers<[1], [0], [0], [1], [0, 0, 1, 1], [], []>} : vector<64x64xbf16>, vector<64x128xbf16>, vector<64x128xf32> -> vector<64x128xf32>
    %108 = arith.addf %100, %107 : vector<64x128xf32>
    %c0_44 = arith.constant 0 : index
    %c0_45 = arith.constant 0 : index
    %109 = vector.load %arg5[%c0_44, %c0_45] : memref<1x128xf32, #tpu.memory_space<vmem>>, vector<1x128xf32>
    %110 = vector.broadcast %109 : vector<1x128xf32> to vector<64x128xf32>
    %111 = arith.addf %108, %110 : vector<64x128xf32>
    %112 = vector.shape_cast %111 : vector<64x128xf32> to vector<1x64x128xf32>
    %cst_46 = arith.constant dense<0.000000e+00> : vector<1x128xf32>
    %113 = vector.multi_reduction <add>, %112, %cst_46 [1] : vector<1x64x128xf32> to vector<1x128xf32>
    %114 = arith.mulf %112, %112 : vector<1x64x128xf32>
    %cst_47 = arith.constant dense<0.000000e+00> : vector<1x128xf32>
    %115 = vector.multi_reduction <add>, %114, %cst_47 [1] : vector<1x64x128xf32> to vector<1x128xf32>
    %c0_48 = arith.constant 0 : index
    %c0_49 = arith.constant 0 : index
    %116 = vector.load %arg12[%c0_48, %c0_49] : memref<128x32xf32, #tpu.memory_space<vmem>>, vector<128x32xf32>
    %cst_50 = arith.constant dense<0.000000e+00> : vector<1x32xf32>
    %117 = tpu.matmul %113, %116, %cst_50 {dimension_numbers = #tpu.dot_dimension_numbers<[1], [0], [0], [1], [0, 0, 1, 1], [], []>} : vector<1x128xf32>, vector<128x32xf32>, vector<1x32xf32> -> vector<1x32xf32>
    %c0_51 = arith.constant 0 : index
    %c0_52 = arith.constant 0 : index
    %118 = vector.load %arg12[%c0_51, %c0_52] : memref<128x32xf32, #tpu.memory_space<vmem>>, vector<128x32xf32>
    %cst_53 = arith.constant dense<0.000000e+00> : vector<1x32xf32>
    %119 = tpu.matmul %115, %118, %cst_53 {dimension_numbers = #tpu.dot_dimension_numbers<[1], [0], [0], [1], [0, 0, 1, 1], [], []>} : vector<1x128xf32>, vector<128x32xf32>, vector<1x32xf32> -> vector<1x32xf32>
    %120 = arith.mulf %117, %117 : vector<1x32xf32>
    %121 = arith.subf %119, %120 : vector<1x32xf32>
    %cst_54 = arith.constant 0.000000e+00 : f32
    %122 = vector.broadcast %cst_54 : f32 to vector<1x32xf32>
    %123 = arith.maximumf %121, %122 : vector<1x32xf32>
    %cst_55 = arith.constant 9.99999974E-6 : f32
    %124 = vector.broadcast %cst_55 : f32 to vector<1x32xf32>
    %125 = arith.addf %123, %124 : vector<1x32xf32>
    %126 = math.rsqrt %125 : vector<1x32xf32>
    %c0_56 = arith.constant 0 : index
    %c0_57 = arith.constant 0 : index
    %127 = vector.load %arg13[%c0_56, %c0_57] : memref<32x128xf32, #tpu.memory_space<vmem>>, vector<32x128xf32>
    %cst_58 = arith.constant dense<0.000000e+00> : vector<1x128xf32>
    %128 = tpu.matmul %117, %127, %cst_58 {dimension_numbers = #tpu.dot_dimension_numbers<[1], [0], [0], [1], [0, 0, 1, 1], [], []>} : vector<1x32xf32>, vector<32x128xf32>, vector<1x128xf32> -> vector<1x128xf32>
    %c0_59 = arith.constant 0 : index
    %c0_60 = arith.constant 0 : index
    %129 = vector.load %arg13[%c0_59, %c0_60] : memref<32x128xf32, #tpu.memory_space<vmem>>, vector<32x128xf32>
    %cst_61 = arith.constant dense<0.000000e+00> : vector<1x128xf32>
    %130 = tpu.matmul %126, %129, %cst_61 {dimension_numbers = #tpu.dot_dimension_numbers<[1], [0], [0], [1], [0, 0, 1, 1], [], []>} : vector<1x32xf32>, vector<32x128xf32>, vector<1x128xf32> -> vector<1x128xf32>
    %c0_62 = arith.constant 0 : index
    %c0_63 = arith.constant 0 : index
    %131 = vector.load %arg6[%c0_62, %c0_63] : memref<1x128xf32, #tpu.memory_space<vmem>>, vector<1x128xf32>
    %c0_64 = arith.constant 0 : index
    %c0_65 = arith.constant 0 : index
    %132 = vector.load %arg7[%c0_64, %c0_65] : memref<1x128xf32, #tpu.memory_space<vmem>>, vector<1x128xf32>
    %133 = vector.shape_cast %128 : vector<1x128xf32> to vector<1x1x128xf32>
    %134 = vector.broadcast %133 : vector<1x1x128xf32> to vector<1x64x128xf32>
    %135 = arith.subf %112, %134 : vector<1x64x128xf32>
    %136 = vector.shape_cast %130 : vector<1x128xf32> to vector<1x1x128xf32>
    %137 = vector.broadcast %136 : vector<1x1x128xf32> to vector<1x64x128xf32>
    %138 = arith.mulf %135, %137 : vector<1x64x128xf32>
    %139 = vector.shape_cast %131 : vector<1x128xf32> to vector<1x1x128xf32>
    %140 = vector.broadcast %139 : vector<1x1x128xf32> to vector<1x64x128xf32>
    %141 = arith.mulf %138, %140 : vector<1x64x128xf32>
    %142 = vector.shape_cast %132 : vector<1x128xf32> to vector<1x1x128xf32>
    %143 = vector.broadcast %142 : vector<1x1x128xf32> to vector<1x64x128xf32>
    %144 = arith.addf %141, %143 : vector<1x64x128xf32>
    %145 = arith.negf %144 : vector<1x64x128xf32>
    %146 = math.exp %145 : vector<1x64x128xf32>
    %cst_66 = arith.constant 1.000000e+00 : f32
    %147 = vector.broadcast %cst_66 : f32 to vector<1x64x128xf32>
    %148 = arith.addf %147, %146 : vector<1x64x128xf32>
    %149 = arith.divf %147, %148 : vector<1x64x128xf32>
    %150 = arith.mulf %144, %149 : vector<1x64x128xf32>
    %151 = vector.shape_cast %150 : vector<1x64x128xf32> to vector<64x128xf32>
    %c9_i32_67 = arith.constant 9 : i32
    %152 = tpu.dynamic_rotate %151 by %c9_i32_67 dim 0 : vector<64x128xf32>, i32 -> vector<64x128xf32>
    %153 = vector.extract_strided_slice %0 {offsets = [0, 0], sizes = [64, 1], strides = [1, 1]} : vector<64x9xf32> to vector<64x1xf32>
    %154 = vector.broadcast %153 : vector<64x1xf32> to vector<64x128xf32>
    %155 = arith.mulf %152, %154 : vector<64x128xf32>
    %156 = arith.truncf %155 : vector<64x128xf32> to vector<64x128xbf16>
    %c0_68 = arith.constant 0 : index
    %c0_69 = arith.constant 0 : index
    %157 = vector.load %arg8[%c0_68, %c0_69] : memref<1152x128xbf16, #tpu.memory_space<vmem>>, vector<128x128xbf16>
    %cst_70 = arith.constant dense<0.000000e+00> : vector<64x128xf32>
    %158 = tpu.matmul %156, %157, %cst_70 {dimension_numbers = #tpu.dot_dimension_numbers<[1], [0], [0], [1], [0, 0, 1, 1], [], []>} : vector<64x128xbf16>, vector<128x128xbf16>, vector<64x128xf32> -> vector<64x128xf32>
    %c8_i32_71 = arith.constant 8 : i32
    %159 = tpu.dynamic_rotate %151 by %c8_i32_71 dim 0 : vector<64x128xf32>, i32 -> vector<64x128xf32>
    %160 = vector.extract_strided_slice %0 {offsets = [0, 1], sizes = [64, 1], strides = [1, 1]} : vector<64x9xf32> to vector<64x1xf32>
    %161 = vector.broadcast %160 : vector<64x1xf32> to vector<64x128xf32>
    %162 = arith.mulf %159, %161 : vector<64x128xf32>
    %163 = arith.truncf %162 : vector<64x128xf32> to vector<64x128xbf16>
    %c128_72 = arith.constant 128 : index
    %c0_73 = arith.constant 0 : index
    %164 = vector.load %arg8[%c128_72, %c0_73] : memref<1152x128xbf16, #tpu.memory_space<vmem>>, vector<128x128xbf16>
    %cst_74 = arith.constant dense<0.000000e+00> : vector<64x128xf32>
    %165 = tpu.matmul %163, %164, %cst_74 {dimension_numbers = #tpu.dot_dimension_numbers<[1], [0], [0], [1], [0, 0, 1, 1], [], []>} : vector<64x128xbf16>, vector<128x128xbf16>, vector<64x128xf32> -> vector<64x128xf32>
    %166 = arith.addf %158, %165 : vector<64x128xf32>
    %c7_i32_75 = arith.constant 7 : i32
    %167 = tpu.dynamic_rotate %151 by %c7_i32_75 dim 0 : vector<64x128xf32>, i32 -> vector<64x128xf32>
    %168 = vector.extract_strided_slice %0 {offsets = [0, 2], sizes = [64, 1], strides = [1, 1]} : vector<64x9xf32> to vector<64x1xf32>
    %169 = vector.broadcast %168 : vector<64x1xf32> to vector<64x128xf32>
    %170 = arith.mulf %167, %169 : vector<64x128xf32>
    %171 = arith.truncf %170 : vector<64x128xf32> to vector<64x128xbf16>
    %c256_76 = arith.constant 256 : index
    %c0_77 = arith.constant 0 : index
    %172 = vector.load %arg8[%c256_76, %c0_77] : memref<1152x128xbf16, #tpu.memory_space<vmem>>, vector<128x128xbf16>
    %cst_78 = arith.constant dense<0.000000e+00> : vector<64x128xf32>
    %173 = tpu.matmul %171, %172, %cst_78 {dimension_numbers = #tpu.dot_dimension_numbers<[1], [0], [0], [1], [0, 0, 1, 1], [], []>} : vector<64x128xbf16>, vector<128x128xbf16>, vector<64x128xf32> -> vector<64x128xf32>
    %174 = arith.addf %166, %173 : vector<64x128xf32>
    %c1_i32_79 = arith.constant 1 : i32
    %175 = tpu.dynamic_rotate %151 by %c1_i32_79 dim 0 : vector<64x128xf32>, i32 -> vector<64x128xf32>
    %176 = vector.extract_strided_slice %0 {offsets = [0, 3], sizes = [64, 1], strides = [1, 1]} : vector<64x9xf32> to vector<64x1xf32>
    %177 = vector.broadcast %176 : vector<64x1xf32> to vector<64x128xf32>
    %178 = arith.mulf %175, %177 : vector<64x128xf32>
    %179 = arith.truncf %178 : vector<64x128xf32> to vector<64x128xbf16>
    %c384_80 = arith.constant 384 : index
    %c0_81 = arith.constant 0 : index
    %180 = vector.load %arg8[%c384_80, %c0_81] : memref<1152x128xbf16, #tpu.memory_space<vmem>>, vector<128x128xbf16>
    %cst_82 = arith.constant dense<0.000000e+00> : vector<64x128xf32>
    %181 = tpu.matmul %179, %180, %cst_82 {dimension_numbers = #tpu.dot_dimension_numbers<[1], [0], [0], [1], [0, 0, 1, 1], [], []>} : vector<64x128xbf16>, vector<128x128xbf16>, vector<64x128xf32> -> vector<64x128xf32>
    %182 = arith.addf %174, %181 : vector<64x128xf32>
    %183 = arith.truncf %151 : vector<64x128xf32> to vector<64x128xbf16>
    %c512_83 = arith.constant 512 : index
    %c0_84 = arith.constant 0 : index
    %184 = vector.load %arg8[%c512_83, %c0_84] : memref<1152x128xbf16, #tpu.memory_space<vmem>>, vector<128x128xbf16>
    %cst_85 = arith.constant dense<0.000000e+00> : vector<64x128xf32>
    %185 = tpu.matmul %183, %184, %cst_85 {dimension_numbers = #tpu.dot_dimension_numbers<[1], [0], [0], [1], [0, 0, 1, 1], [], []>} : vector<64x128xbf16>, vector<128x128xbf16>, vector<64x128xf32> -> vector<64x128xf32>
    %186 = arith.addf %182, %185 : vector<64x128xf32>
    %c63_i32_86 = arith.constant 63 : i32
    %187 = tpu.dynamic_rotate %151 by %c63_i32_86 dim 0 : vector<64x128xf32>, i32 -> vector<64x128xf32>
    %188 = vector.extract_strided_slice %0 {offsets = [0, 5], sizes = [64, 1], strides = [1, 1]} : vector<64x9xf32> to vector<64x1xf32>
    %189 = vector.broadcast %188 : vector<64x1xf32> to vector<64x128xf32>
    %190 = arith.mulf %187, %189 : vector<64x128xf32>
    %191 = arith.truncf %190 : vector<64x128xf32> to vector<64x128xbf16>
    %c640 = arith.constant 640 : index
    %c0_87 = arith.constant 0 : index
    %192 = vector.load %arg8[%c640, %c0_87] : memref<1152x128xbf16, #tpu.memory_space<vmem>>, vector<128x128xbf16>
    %cst_88 = arith.constant dense<0.000000e+00> : vector<64x128xf32>
    %193 = tpu.matmul %191, %192, %cst_88 {dimension_numbers = #tpu.dot_dimension_numbers<[1], [0], [0], [1], [0, 0, 1, 1], [], []>} : vector<64x128xbf16>, vector<128x128xbf16>, vector<64x128xf32> -> vector<64x128xf32>
    %194 = arith.addf %186, %193 : vector<64x128xf32>
    %c57_i32_89 = arith.constant 57 : i32
    %195 = tpu.dynamic_rotate %151 by %c57_i32_89 dim 0 : vector<64x128xf32>, i32 -> vector<64x128xf32>
    %196 = vector.extract_strided_slice %0 {offsets = [0, 6], sizes = [64, 1], strides = [1, 1]} : vector<64x9xf32> to vector<64x1xf32>
    %197 = vector.broadcast %196 : vector<64x1xf32> to vector<64x128xf32>
    %198 = arith.mulf %195, %197 : vector<64x128xf32>
    %199 = arith.truncf %198 : vector<64x128xf32> to vector<64x128xbf16>
    %c768 = arith.constant 768 : index
    %c0_90 = arith.constant 0 : index
    %200 = vector.load %arg8[%c768, %c0_90] : memref<1152x128xbf16, #tpu.memory_space<vmem>>, vector<128x128xbf16>
    %cst_91 = arith.constant dense<0.000000e+00> : vector<64x128xf32>
    %201 = tpu.matmul %199, %200, %cst_91 {dimension_numbers = #tpu.dot_dimension_numbers<[1], [0], [0], [1], [0, 0, 1, 1], [], []>} : vector<64x128xbf16>, vector<128x128xbf16>, vector<64x128xf32> -> vector<64x128xf32>
    %202 = arith.addf %194, %201 : vector<64x128xf32>
    %c56_i32_92 = arith.constant 56 : i32
    %203 = tpu.dynamic_rotate %151 by %c56_i32_92 dim 0 : vector<64x128xf32>, i32 -> vector<64x128xf32>
    %204 = vector.extract_strided_slice %0 {offsets = [0, 7], sizes = [64, 1], strides = [1, 1]} : vector<64x9xf32> to vector<64x1xf32>
    %205 = vector.broadcast %204 : vector<64x1xf32> to vector<64x128xf32>
    %206 = arith.mulf %203, %205 : vector<64x128xf32>
    %207 = arith.truncf %206 : vector<64x128xf32> to vector<64x128xbf16>
    %c896 = arith.constant 896 : index
    %c0_93 = arith.constant 0 : index
    %208 = vector.load %arg8[%c896, %c0_93] : memref<1152x128xbf16, #tpu.memory_space<vmem>>, vector<128x128xbf16>
    %cst_94 = arith.constant dense<0.000000e+00> : vector<64x128xf32>
    %209 = tpu.matmul %207, %208, %cst_94 {dimension_numbers = #tpu.dot_dimension_numbers<[1], [0], [0], [1], [0, 0, 1, 1], [], []>} : vector<64x128xbf16>, vector<128x128xbf16>, vector<64x128xf32> -> vector<64x128xf32>
    %210 = arith.addf %202, %209 : vector<64x128xf32>
    %c55_i32_95 = arith.constant 55 : i32
    %211 = tpu.dynamic_rotate %151 by %c55_i32_95 dim 0 : vector<64x128xf32>, i32 -> vector<64x128xf32>
    %212 = vector.extract_strided_slice %0 {offsets = [0, 8], sizes = [64, 1], strides = [1, 1]} : vector<64x9xf32> to vector<64x1xf32>
    %213 = vector.broadcast %212 : vector<64x1xf32> to vector<64x128xf32>
    %214 = arith.mulf %211, %213 : vector<64x128xf32>
    %215 = arith.truncf %214 : vector<64x128xf32> to vector<64x128xbf16>
    %c1024 = arith.constant 1024 : index
    %c0_96 = arith.constant 0 : index
    %216 = vector.load %arg8[%c1024, %c0_96] : memref<1152x128xbf16, #tpu.memory_space<vmem>>, vector<128x128xbf16>
    %cst_97 = arith.constant dense<0.000000e+00> : vector<64x128xf32>
    %217 = tpu.matmul %215, %216, %cst_97 {dimension_numbers = #tpu.dot_dimension_numbers<[1], [0], [0], [1], [0, 0, 1, 1], [], []>} : vector<64x128xbf16>, vector<128x128xbf16>, vector<64x128xf32> -> vector<64x128xf32>
    %218 = arith.addf %210, %217 : vector<64x128xf32>
    %c0_98 = arith.constant 0 : index
    %c0_99 = arith.constant 0 : index
    %219 = vector.load %arg9[%c0_98, %c0_99] : memref<1x128xf32, #tpu.memory_space<vmem>>, vector<1x128xf32>
    %220 = vector.broadcast %219 : vector<1x128xf32> to vector<64x128xf32>
    %221 = arith.addf %218, %220 : vector<64x128xf32>
    %c0_100 = arith.constant 0 : index
    %c0_101 = arith.constant 0 : index
    %c0_102 = arith.constant 0 : index
    %c0_103 = arith.constant 0 : index
    %222 = vector.load %arg1[%c0_100, %c0_101, %c0_102, %c0_103] : memref<1x8x8x64xf32, #tpu.memory_space<vmem>>, vector<1x8x8x64xf32>
    %223 = vector.shape_cast %222 : vector<1x8x8x64xf32> to vector<64x64xf32>
    %224 = arith.truncf %223 : vector<64x64xf32> to vector<64x64xbf16>
    %c0_104 = arith.constant 0 : index
    %c0_105 = arith.constant 0 : index
    %225 = vector.load %arg15[%c0_104, %c0_105] : memref<64x128xbf16, #tpu.memory_space<vmem>>, vector<64x128xbf16>
    %cst_106 = arith.constant dense<0.000000e+00> : vector<64x128xf32>
    %226 = tpu.matmul %224, %225, %cst_106 {dimension_numbers = #tpu.dot_dimension_numbers<[1], [0], [0], [1], [0, 0, 1, 1], [], []>} : vector<64x64xbf16>, vector<64x128xbf16>, vector<64x128xf32> -> vector<64x128xf32>
    %c0_107 = arith.constant 0 : index
    %c0_108 = arith.constant 0 : index
    %227 = vector.load %arg16[%c0_107, %c0_108] : memref<1x128xf32, #tpu.memory_space<vmem>>, vector<1x128xf32>
    %228 = vector.broadcast %227 : vector<1x128xf32> to vector<64x128xf32>
    %229 = arith.addf %226, %228 : vector<64x128xf32>
    %230 = arith.addf %221, %229 : vector<64x128xf32>
    %231 = vector.shape_cast %230 : vector<64x128xf32> to vector<1x8x8x128xf32>
    %c0_109 = arith.constant 0 : index
    %c0_110 = arith.constant 0 : index
    %c0_111 = arith.constant 0 : index
    %c0_112 = arith.constant 0 : index
    %232 = vector.load %arg17[%c0_109, %c0_110, %c0_111, %c0_112] : memref<1x8x8x128xf32, #tpu.memory_space<vmem>>, vector<1x8x8x128xf32>
    tpu.vector_store %arg17[%c0_109, %c0_110, %c0_111, %c0_112], %231 {strides = array<i32>} : memref<1x8x8x128xf32, #tpu.memory_space<vmem>>, vector<1x8x8x128xf32>,
    return
  }
  func.func @transform_0(%arg0: i32) -> (i32, i32, i32, i32) {
    %c0_i32 = arith.constant 0 : i32
    %c0_i32_0 = arith.constant 0 : i32
    %c0_i32_1 = arith.constant 0 : i32
    %c0_i32_2 = arith.constant 0 : i32
    return %arg0, %c0_i32, %c0_i32_0, %c0_i32_1 : i32, i32, i32, i32
  }
  func.func @transform_1(%arg0: i32) -> (i32, i32) {
    %c0_i32 = arith.constant 0 : i32
    %c0_i32_0 = arith.constant 0 : i32
    %c0_i32_1 = arith.constant 0 : i32
    return %c0_i32, %c0_i32_0 : i32, i32
  }
  func.func @transform_2(%arg0: i32) -> (i32, i32) {
    %c0_i32 = arith.constant 0 : i32
    %c0_i32_0 = arith.constant 0 : i32
    %c0_i32_1 = arith.constant 0 : i32
    return %c0_i32, %c0_i32_0 : i32, i32
  }
  func.func @transform_3(%arg0: i32) -> (i32, i32) {
    %c0_i32 = arith.constant 0 : i32
    %c0_i32_0 = arith.constant 0 : i32
    %c0_i32_1 = arith.constant 0 : i32
    return %c0_i32, %c0_i32_0 : i32, i32
  }
  func.func @transform_4(%arg0: i32) -> (i32, i32) {
    %c0_i32 = arith.constant 0 : i32
    %c0_i32_0 = arith.constant 0 : i32
    %c0_i32_1 = arith.constant 0 : i32
    return %c0_i32, %c0_i32_0 : i32, i32
  }
  func.func @transform_5(%arg0: i32) -> (i32, i32) {
    %c0_i32 = arith.constant 0 : i32
    %c0_i32_0 = arith.constant 0 : i32
    %c0_i32_1 = arith.constant 0 : i32
    return %c0_i32, %c0_i32_0 : i32, i32
  }
  func.func @transform_6(%arg0: i32) -> (i32, i32) {
    %c0_i32 = arith.constant 0 : i32
    %c0_i32_0 = arith.constant 0 : i32
    %c0_i32_1 = arith.constant 0 : i32
    return %c0_i32, %c0_i32_0 : i32, i32
  }
  func.func @transform_7(%arg0: i32) -> (i32, i32) {
    %c0_i32 = arith.constant 0 : i32
    %c0_i32_0 = arith.constant 0 : i32
    %c0_i32_1 = arith.constant 0 : i32
    return %c0_i32, %c0_i32_0 : i32, i32
  }
  func.func @transform_8(%arg0: i32) -> (i32, i32) {
    %c0_i32 = arith.constant 0 : i32
    %c0_i32_0 = arith.constant 0 : i32
    %c0_i32_1 = arith.constant 0 : i32
    return %c0_i32, %c0_i32_0 : i32, i32
  }
  func.func @transform_9(%arg0: i32) -> (i32, i32) {
    %c0_i32 = arith.constant 0 : i32
    %c0_i32_0 = arith.constant 0 : i32
    %c0_i32_1 = arith.constant 0 : i32
    return %c0_i32, %c0_i32_0 : i32, i32
  }
  func.func @transform_10(%arg0: i32) -> (i32, i32) {
    %c0_i32 = arith.constant 0 : i32
    %c0_i32_0 = arith.constant 0 : i32
    %c0_i32_1 = arith.constant 0 : i32
    return %c0_i32, %c0_i32_0 : i32, i32
  }
  func.func @transform_11(%arg0: i32) -> (i32, i32) {
    %c0_i32 = arith.constant 0 : i32
    %c0_i32_0 = arith.constant 0 : i32
    %c0_i32_1 = arith.constant 0 : i32
    return %c0_i32, %c0_i32_0 : i32, i32
  }
  func.func @transform_12(%arg0: i32) -> (i32, i32) {
    %c0_i32 = arith.constant 0 : i32
    %c0_i32_0 = arith.constant 0 : i32
    %c0_i32_1 = arith.constant 0 : i32
    return %c0_i32, %c0_i32_0 : i32, i32
  }
  func.func @transform_13(%arg0: i32) -> (i32, i32) {
    %c0_i32 = arith.constant 0 : i32
    %c0_i32_0 = arith.constant 0 : i32
    %c0_i32_1 = arith.constant 0 : i32
    return %c0_i32, %c0_i32_0 : i32, i32
  }
  func.func @transform_14(%arg0: i32) -> (i32, i32) {
    %c0_i32 = arith.constant 0 : i32
    %c0_i32_0 = arith.constant 0 : i32
    %c0_i32_1 = arith.constant 0 : i32
    return %c0_i32, %c0_i32_0 : i32, i32
  }
  func.func @transform_15(%arg0: i32) -> (i32, i32) {
    %c0_i32 = arith.constant 0 : i32
    %c0_i32_0 = arith.constant 0 : i32
    %c0_i32_1 = arith.constant 0 : i32
    return %c0_i32, %c0_i32_0 : i32, i32
  }
  func.func @transform_16(%arg0: i32) -> (i32, i32, i32, i32) {
    %c0_i32 = arith.constant 0 : i32
    %c0_i32_0 = arith.constant 0 : i32
    %c0_i32_1 = arith.constant 0 : i32
    %c0_i32_2 = arith.constant 0 : i32
    return %arg0, %c0_i32, %c0_i32_0, %c0_i32_1 : i32, i32, i32, i32
  }
}

module attributes {stable_mosaic.version = 11 : i64} {
  func.func @_resblock_kernel(%arg0: i32, %arg1: memref<1x8x8x64xf32, #tpu.memory_space<vmem>>, %arg2: memref<1x64xf32, #tpu.memory_space<vmem>>, %arg3: memref<1x64xf32, #tpu.memory_space<vmem>>, %arg4: memref<576x128xbf16, #tpu.memory_space<vmem>>, %arg5: memref<1x128xf32, #tpu.memory_space<vmem>>, %arg6: memref<1x128xf32, #tpu.memory_space<vmem>>, %arg7: memref<1x128xf32, #tpu.memory_space<vmem>>, %arg8: memref<1152x128xbf16, #tpu.memory_space<vmem>>, %arg9: memref<1x128xf32, #tpu.memory_space<vmem>>, %arg10: memref<64x32xf32, #tpu.memory_space<vmem>>, %arg11: memref<32x64xf32, #tpu.memory_space<vmem>>, %arg12: memref<128x32xf32, #tpu.memory_space<vmem>>, %arg13: memref<32x128xf32, #tpu.memory_space<vmem>>, %arg14: memref<64x9xf32, #tpu.memory_space<vmem>>, %arg15: memref<64x128xbf16, #tpu.memory_space<vmem>>, %arg16: memref<1x128xf32, #tpu.memory_space<vmem>>, %arg17: memref<1x8x8x128xf32, #tpu.memory_space<vmem>>) attributes {dimension_semantics = [#tpu.dimension_semantics<parallel>], iteration_bounds = array<i64: 2>, scalar_prefetch = 0 : i64, scratch_operands = 0 : i64, tpu.core_type = #tpu.core_type<tc>, window_params = [{transform_indices = @transform_0, window_bounds = array<i64: 1, 8, 8, 64>}, {pipeline_mode = #tpu.pipeline_mode<synchronous>, transform_indices = @transform_1, window_bounds = array<i64: 1, 64>}, {pipeline_mode = #tpu.pipeline_mode<synchronous>, transform_indices = @transform_2, window_bounds = array<i64: 1, 64>}, {pipeline_mode = #tpu.pipeline_mode<synchronous>, transform_indices = @transform_3, window_bounds = array<i64: 576, 128>}, {pipeline_mode = #tpu.pipeline_mode<synchronous>, transform_indices = @transform_4, window_bounds = array<i64: 1, 128>}, {pipeline_mode = #tpu.pipeline_mode<synchronous>, transform_indices = @transform_5, window_bounds = array<i64: 1, 128>}, {pipeline_mode = #tpu.pipeline_mode<synchronous>, transform_indices = @transform_6, window_bounds = array<i64: 1, 128>}, {pipeline_mode = #tpu.pipeline_mode<synchronous>, transform_indices = @transform_7, window_bounds = array<i64: 1152, 128>}, {pipeline_mode = #tpu.pipeline_mode<synchronous>, transform_indices = @transform_8, window_bounds = array<i64: 1, 128>}, {pipeline_mode = #tpu.pipeline_mode<synchronous>, transform_indices = @transform_9, window_bounds = array<i64: 64, 32>}, {pipeline_mode = #tpu.pipeline_mode<synchronous>, transform_indices = @transform_10, window_bounds = array<i64: 32, 64>}, {pipeline_mode = #tpu.pipeline_mode<synchronous>, transform_indices = @transform_11, window_bounds = array<i64: 128, 32>}, {pipeline_mode = #tpu.pipeline_mode<synchronous>, transform_indices = @transform_12, window_bounds = array<i64: 32, 128>}, {pipeline_mode = #tpu.pipeline_mode<synchronous>, transform_indices = @transform_13, window_bounds = array<i64: 64, 9>}, {pipeline_mode = #tpu.pipeline_mode<synchronous>, transform_indices = @transform_14, window_bounds = array<i64: 64, 128>}, {pipeline_mode = #tpu.pipeline_mode<synchronous>, transform_indices = @transform_15, window_bounds = array<i64: 1, 128>}, {transform_indices = @transform_16, window_bounds = array<i64: 1, 8, 8, 128>}]} {
    %c0 = arith.constant 0 : index
    %c0_0 = arith.constant 0 : index
    %0 = vector.load %arg14[%c0, %c0_0] : memref<64x9xf32, #tpu.memory_space<vmem>>, vector<64x9xf32>
    %c0_1 = arith.constant 0 : index
    %c0_2 = arith.constant 0 : index
    %c0_3 = arith.constant 0 : index
    %c0_4 = arith.constant 0 : index
    %1 = vector.load %arg1[%c0_1, %c0_2, %c0_3, %c0_4] : memref<1x8x8x64xf32, #tpu.memory_space<vmem>>, vector<1x8x8x64xf32>
    %2 = vector.shape_cast %1 : vector<1x8x8x64xf32> to vector<1x64x64xf32>
    %cst = arith.constant dense<0.000000e+00> : vector<1x64xf32>
    %3 = vector.multi_reduction <add>, %2, %cst [1] : vector<1x64x64xf32> to vector<1x64xf32>
    %4 = arith.mulf %2, %2 : vector<1x64x64xf32>
    %cst_5 = arith.constant dense<0.000000e+00> : vector<1x64xf32>
    %5 = vector.multi_reduction <add>, %4, %cst_5 [1] : vector<1x64x64xf32> to vector<1x64xf32>
    %c0_6 = arith.constant 0 : index
    %c0_7 = arith.constant 0 : index
    %6 = vector.load %arg10[%c0_6, %c0_7] : memref<64x32xf32, #tpu.memory_space<vmem>>, vector<64x32xf32>
    %cst_8 = arith.constant dense<0.000000e+00> : vector<1x32xf32>
    %7 = tpu.matmul %3, %6, %cst_8 {dimension_numbers = #tpu.dot_dimension_numbers<[1], [0], [0], [1], [0, 0, 1, 1], [], []>} : vector<1x64xf32>, vector<64x32xf32>, vector<1x32xf32> -> vector<1x32xf32>
    %c0_9 = arith.constant 0 : index
    %c0_10 = arith.constant 0 : index
    %8 = vector.load %arg10[%c0_9, %c0_10] : memref<64x32xf32, #tpu.memory_space<vmem>>, vector<64x32xf32>
    %cst_11 = arith.constant dense<0.000000e+00> : vector<1x32xf32>
    %9 = tpu.matmul %5, %8, %cst_11 {dimension_numbers = #tpu.dot_dimension_numbers<[1], [0], [0], [1], [0, 0, 1, 1], [], []>} : vector<1x64xf32>, vector<64x32xf32>, vector<1x32xf32> -> vector<1x32xf32>
    %10 = arith.mulf %7, %7 : vector<1x32xf32>
    %11 = arith.subf %9, %10 : vector<1x32xf32>
    %cst_12 = arith.constant 0.000000e+00 : f32
    %12 = vector.broadcast %cst_12 : f32 to vector<1x32xf32>
    %13 = arith.maximumf %11, %12 : vector<1x32xf32>
    %cst_13 = arith.constant 9.99999974E-6 : f32
    %14 = vector.broadcast %cst_13 : f32 to vector<1x32xf32>
    %15 = arith.addf %13, %14 : vector<1x32xf32>
    %16 = math.rsqrt %15 : vector<1x32xf32>
    %c0_14 = arith.constant 0 : index
    %c0_15 = arith.constant 0 : index
    %17 = vector.load %arg11[%c0_14, %c0_15] : memref<32x64xf32, #tpu.memory_space<vmem>>, vector<32x64xf32>
    %cst_16 = arith.constant dense<0.000000e+00> : vector<1x64xf32>
    %18 = tpu.matmul %7, %17, %cst_16 {dimension_numbers = #tpu.dot_dimension_numbers<[1], [0], [0], [1], [0, 0, 1, 1], [], []>} : vector<1x32xf32>, vector<32x64xf32>, vector<1x64xf32> -> vector<1x64xf32>
    %c0_17 = arith.constant 0 : index
    %c0_18 = arith.constant 0 : index
    %19 = vector.load %arg11[%c0_17, %c0_18] : memref<32x64xf32, #tpu.memory_space<vmem>>, vector<32x64xf32>
    %cst_19 = arith.constant dense<0.000000e+00> : vector<1x64xf32>
    %20 = tpu.matmul %16, %19, %cst_19 {dimension_numbers = #tpu.dot_dimension_numbers<[1], [0], [0], [1], [0, 0, 1, 1], [], []>} : vector<1x32xf32>, vector<32x64xf32>, vector<1x64xf32> -> vector<1x64xf32>
    %c0_20 = arith.constant 0 : index
    %c0_21 = arith.constant 0 : index
    %21 = vector.load %arg2[%c0_20, %c0_21] : memref<1x64xf32, #tpu.memory_space<vmem>>, vector<1x64xf32>
    %c0_22 = arith.constant 0 : index
    %c0_23 = arith.constant 0 : index
    %22 = vector.load %arg3[%c0_22, %c0_23] : memref<1x64xf32, #tpu.memory_space<vmem>>, vector<1x64xf32>
    %23 = vector.shape_cast %18 : vector<1x64xf32> to vector<1x1x64xf32>
    %24 = vector.broadcast %23 : vector<1x1x64xf32> to vector<1x64x64xf32>
    %25 = arith.subf %2, %24 : vector<1x64x64xf32>
    %26 = vector.shape_cast %20 : vector<1x64xf32> to vector<1x1x64xf32>
    %27 = vector.broadcast %26 : vector<1x1x64xf32> to vector<1x64x64xf32>
    %28 = arith.mulf %25, %27 : vector<1x64x64xf32>
    %29 = vector.shape_cast %21 : vector<1x64xf32> to vector<1x1x64xf32>
    %30 = vector.broadcast %29 : vector<1x1x64xf32> to vector<1x64x64xf32>
    %31 = arith.mulf %28, %30 : vector<1x64x64xf32>
    %32 = vector.shape_cast %22 : vector<1x64xf32> to vector<1x1x64xf32>
    %33 = vector.broadcast %32 : vector<1x1x64xf32> to vector<1x64x64xf32>
    %34 = arith.addf %31, %33 : vector<1x64x64xf32>
    %35 = arith.negf %34 : vector<1x64x64xf32>
    %36 = math.exp %35 : vector<1x64x64xf32>
    %cst_24 = arith.constant 1.000000e+00 : f32
    %37 = vector.broadcast %cst_24 : f32 to vector<1x64x64xf32>
    %38 = arith.addf %37, %36 : vector<1x64x64xf32>
    %39 = arith.divf %37, %38 : vector<1x64x64xf32>
    %40 = arith.mulf %34, %39 : vector<1x64x64xf32>
    %41 = vector.shape_cast %40 : vector<1x64x64xf32> to vector<64x64xf32>
    %c9_i32 = arith.constant 9 : i32
    %42 = tpu.dynamic_rotate %41 by %c9_i32 dim 0 : vector<64x64xf32>, i32 -> vector<64x64xf32>
    %43 = vector.extract_strided_slice %0 {offsets = [0, 0], sizes = [64, 1], strides = [1, 1]} : vector<64x9xf32> to vector<64x1xf32>
    %44 = vector.broadcast %43 : vector<64x1xf32> to vector<64x64xf32>
    %45 = arith.mulf %42, %44 : vector<64x64xf32>
    %46 = arith.truncf %45 : vector<64x64xf32> to vector<64x64xbf16>
    %c0_25 = arith.constant 0 : index
    %c0_26 = arith.constant 0 : index
    %47 = vector.load %arg4[%c0_25, %c0_26] : memref<576x128xbf16, #tpu.memory_space<vmem>>, vector<64x128xbf16>
    %cst_27 = arith.constant dense<0.000000e+00> : vector<64x128xf32>
    %48 = tpu.matmul %46, %47, %cst_27 {dimension_numbers = #tpu.dot_dimension_numbers<[1], [0], [0], [1], [0, 0, 1, 1], [], []>} : vector<64x64xbf16>, vector<64x128xbf16>, vector<64x128xf32> -> vector<64x128xf32>
    %c8_i32 = arith.constant 8 : i32
    %49 = tpu.dynamic_rotate %41 by %c8_i32 dim 0 : vector<64x64xf32>, i32 -> vector<64x64xf32>
    %50 = vector.extract_strided_slice %0 {offsets = [0, 1], sizes = [64, 1], strides = [1, 1]} : vector<64x9xf32> to vector<64x1xf32>
    %51 = vector.broadcast %50 : vector<64x1xf32> to vector<64x64xf32>
    %52 = arith.mulf %49, %51 : vector<64x64xf32>
    %53 = arith.truncf %52 : vector<64x64xf32> to vector<64x64xbf16>
    %c64 = arith.constant 64 : index
    %c0_28 = arith.constant 0 : index
    %54 = vector.load %arg4[%c64, %c0_28] : memref<576x128xbf16, #tpu.memory_space<vmem>>, vector<64x128xbf16>
    %cst_29 = arith.constant dense<0.000000e+00> : vector<64x128xf32>
    %55 = tpu.matmul %53, %54, %cst_29 {dimension_numbers = #tpu.dot_dimension_numbers<[1], [0], [0], [1], [0, 0, 1, 1], [], []>} : vector<64x64xbf16>, vector<64x128xbf16>, vector<64x128xf32> -> vector<64x128xf32>
    %56 = arith.addf %48, %55 : vector<64x128xf32>
    %c7_i32 = arith.constant 7 : i32
    %57 = tpu.dynamic_rotate %41 by %c7_i32 dim 0 : vector<64x64xf32>, i32 -> vector<64x64xf32>
    %58 = vector.extract_strided_slice %0 {offsets = [0, 2], sizes = [64, 1], strides = [1, 1]} : vector<64x9xf32> to vector<64x1xf32>
    %59 = vector.broadcast %58 : vector<64x1xf32> to vector<64x64xf32>
    %60 = arith.mulf %57, %59 : vector<64x64xf32>
    %61 = arith.truncf %60 : vector<64x64xf32> to vector<64x64xbf16>
    %c128 = arith.constant 128 : index
    %c0_30 = arith.constant 0 : index
    %62 = vector.load %arg4[%c128, %c0_30] : memref<576x128xbf16, #tpu.memory_space<vmem>>, vector<64x128xbf16>
    %cst_31 = arith.constant dense<0.000000e+00> : vector<64x128xf32>
    %63 = tpu.matmul %61, %62, %cst_31 {dimension_numbers = #tpu.dot_dimension_numbers<[1], [0], [0], [1], [0, 0, 1, 1], [], []>} : vector<64x64xbf16>, vector<64x128xbf16>, vector<64x128xf32> -> vector<64x128xf32>
    %64 = arith.addf %56, %63 : vector<64x128xf32>
    %c1_i32 = arith.constant 1 : i32
    %65 = tpu.dynamic_rotate %41 by %c1_i32 dim 0 : vector<64x64xf32>, i32 -> vector<64x64xf32>
    %66 = vector.extract_strided_slice %0 {offsets = [0, 3], sizes = [64, 1], strides = [1, 1]} : vector<64x9xf32> to vector<64x1xf32>
    %67 = vector.broadcast %66 : vector<64x1xf32> to vector<64x64xf32>
    %68 = arith.mulf %65, %67 : vector<64x64xf32>
    %69 = arith.truncf %68 : vector<64x64xf32> to vector<64x64xbf16>
    %c192 = arith.constant 192 : index
    %c0_32 = arith.constant 0 : index
    %70 = vector.load %arg4[%c192, %c0_32] : memref<576x128xbf16, #tpu.memory_space<vmem>>, vector<64x128xbf16>
    %cst_33 = arith.constant dense<0.000000e+00> : vector<64x128xf32>
    %71 = tpu.matmul %69, %70, %cst_33 {dimension_numbers = #tpu.dot_dimension_numbers<[1], [0], [0], [1], [0, 0, 1, 1], [], []>} : vector<64x64xbf16>, vector<64x128xbf16>, vector<64x128xf32> -> vector<64x128xf32>
    %72 = arith.addf %64, %71 : vector<64x128xf32>
    %73 = arith.truncf %41 : vector<64x64xf32> to vector<64x64xbf16>
    %c256 = arith.constant 256 : index
    %c0_34 = arith.constant 0 : index
    %74 = vector.load %arg4[%c256, %c0_34] : memref<576x128xbf16, #tpu.memory_space<vmem>>, vector<64x128xbf16>
    %cst_35 = arith.constant dense<0.000000e+00> : vector<64x128xf32>
    %75 = tpu.matmul %73, %74, %cst_35 {dimension_numbers = #tpu.dot_dimension_numbers<[1], [0], [0], [1], [0, 0, 1, 1], [], []>} : vector<64x64xbf16>, vector<64x128xbf16>, vector<64x128xf32> -> vector<64x128xf32>
    %76 = arith.addf %72, %75 : vector<64x128xf32>
    %c63_i32 = arith.constant 63 : i32
    %77 = tpu.dynamic_rotate %41 by %c63_i32 dim 0 : vector<64x64xf32>, i32 -> vector<64x64xf32>
    %78 = vector.extract_strided_slice %0 {offsets = [0, 5], sizes = [64, 1], strides = [1, 1]} : vector<64x9xf32> to vector<64x1xf32>
    %79 = vector.broadcast %78 : vector<64x1xf32> to vector<64x64xf32>
    %80 = arith.mulf %77, %79 : vector<64x64xf32>
    %81 = arith.truncf %80 : vector<64x64xf32> to vector<64x64xbf16>
    %c320 = arith.constant 320 : index
    %c0_36 = arith.constant 0 : index
    %82 = vector.load %arg4[%c320, %c0_36] : memref<576x128xbf16, #tpu.memory_space<vmem>>, vector<64x128xbf16>
    %cst_37 = arith.constant dense<0.000000e+00> : vector<64x128xf32>
    %83 = tpu.matmul %81, %82, %cst_37 {dimension_numbers = #tpu.dot_dimension_numbers<[1], [0], [0], [1], [0, 0, 1, 1], [], []>} : vector<64x64xbf16>, vector<64x128xbf16>, vector<64x128xf32> -> vector<64x128xf32>
    %84 = arith.addf %76, %83 : vector<64x128xf32>
    %c57_i32 = arith.constant 57 : i32
    %85 = tpu.dynamic_rotate %41 by %c57_i32 dim 0 : vector<64x64xf32>, i32 -> vector<64x64xf32>
    %86 = vector.extract_strided_slice %0 {offsets = [0, 6], sizes = [64, 1], strides = [1, 1]} : vector<64x9xf32> to vector<64x1xf32>
    %87 = vector.broadcast %86 : vector<64x1xf32> to vector<64x64xf32>
    %88 = arith.mulf %85, %87 : vector<64x64xf32>
    %89 = arith.truncf %88 : vector<64x64xf32> to vector<64x64xbf16>
    %c384 = arith.constant 384 : index
    %c0_38 = arith.constant 0 : index
    %90 = vector.load %arg4[%c384, %c0_38] : memref<576x128xbf16, #tpu.memory_space<vmem>>, vector<64x128xbf16>
    %cst_39 = arith.constant dense<0.000000e+00> : vector<64x128xf32>
    %91 = tpu.matmul %89, %90, %cst_39 {dimension_numbers = #tpu.dot_dimension_numbers<[1], [0], [0], [1], [0, 0, 1, 1], [], []>} : vector<64x64xbf16>, vector<64x128xbf16>, vector<64x128xf32> -> vector<64x128xf32>
    %92 = arith.addf %84, %91 : vector<64x128xf32>
    %c56_i32 = arith.constant 56 : i32
    %93 = tpu.dynamic_rotate %41 by %c56_i32 dim 0 : vector<64x64xf32>, i32 -> vector<64x64xf32>
    %94 = vector.extract_strided_slice %0 {offsets = [0, 7], sizes = [64, 1], strides = [1, 1]} : vector<64x9xf32> to vector<64x1xf32>
    %95 = vector.broadcast %94 : vector<64x1xf32> to vector<64x64xf32>
    %96 = arith.mulf %93, %95 : vector<64x64xf32>
    %97 = arith.truncf %96 : vector<64x64xf32> to vector<64x64xbf16>
    %c448 = arith.constant 448 : index
    %c0_40 = arith.constant 0 : index
    %98 = vector.load %arg4[%c448, %c0_40] : memref<576x128xbf16, #tpu.memory_space<vmem>>, vector<64x128xbf16>
    %cst_41 = arith.constant dense<0.000000e+00> : vector<64x128xf32>
    %99 = tpu.matmul %97, %98, %cst_41 {dimension_numbers = #tpu.dot_dimension_numbers<[1], [0], [0], [1], [0, 0, 1, 1], [], []>} : vector<64x64xbf16>, vector<64x128xbf16>, vector<64x128xf32> -> vector<64x128xf32>
    %100 = arith.addf %92, %99 : vector<64x128xf32>
    %c55_i32 = arith.constant 55 : i32
    %101 = tpu.dynamic_rotate %41 by %c55_i32 dim 0 : vector<64x64xf32>, i32 -> vector<64x64xf32>
    %102 = vector.extract_strided_slice %0 {offsets = [0, 8], sizes = [64, 1], strides = [1, 1]} : vector<64x9xf32> to vector<64x1xf32>
    %103 = vector.broadcast %102 : vector<64x1xf32> to vector<64x64xf32>
    %104 = arith.mulf %101, %103 : vector<64x64xf32>
    %105 = arith.truncf %104 : vector<64x64xf32> to vector<64x64xbf16>
    %c512 = arith.constant 512 : index
    %c0_42 = arith.constant 0 : index
    %106 = vector.load %arg4[%c512, %c0_42] : memref<576x128xbf16, #tpu.memory_space<vmem>>, vector<64x128xbf16>
    %cst_43 = arith.constant dense<0.000000e+00> : vector<64x128xf32>
    %107 = tpu.matmul %105, %106, %cst_43 {dimension_numbers = #tpu.dot_dimension_numbers<[1], [0], [0], [1], [0, 0, 1, 1], [], []>} : vector<64x64xbf16>, vector<64x128xbf16>, vector<64x128xf32> -> vector<64x128xf32>
    %108 = arith.addf %100, %107 : vector<64x128xf32>
    %c0_44 = arith.constant 0 : index
    %c0_45 = arith.constant 0 : index
    %109 = vector.load %arg5[%c0_44, %c0_45] : memref<1x128xf32, #tpu.memory_space<vmem>>, vector<1x128xf32>
    %110 = vector.broadcast %109 : vector<1x128xf32> to vector<64x128xf32>
    %111 = arith.addf %108, %110 : vector<64x128xf32>
    %112 = vector.shape_cast %111 : vector<64x128xf32> to vector<1x64x128xf32>
    %cst_46 = arith.constant dense<0.000000e+00> : vector<1x128xf32>
    %113 = vector.multi_reduction <add>, %112, %cst_46 [1] : vector<1x64x128xf32> to vector<1x128xf32>
    %114 = arith.mulf %112, %112 : vector<1x64x128xf32>
    %cst_47 = arith.constant dense<0.000000e+00> : vector<1x128xf32>
    %115 = vector.multi_reduction <add>, %114, %cst_47 [1] : vector<1x64x128xf32> to vector<1x128xf32>
    %c0_48 = arith.constant 0 : index
    %c0_49 = arith.constant 0 : index
    %116 = vector.load %arg12[%c0_48, %c0_49] : memref<128x32xf32, #tpu.memory_space<vmem>>, vector<128x32xf32>
    %cst_50 = arith.constant dense<0.000000e+00> : vector<1x32xf32>
    %117 = tpu.matmul %113, %116, %cst_50 {dimension_numbers = #tpu.dot_dimension_numbers<[1], [0], [0], [1], [0, 0, 1, 1], [], []>} : vector<1x128xf32>, vector<128x32xf32>, vector<1x32xf32> -> vector<1x32xf32>
    %c0_51 = arith.constant 0 : index
    %c0_52 = arith.constant 0 : index
    %118 = vector.load %arg12[%c0_51, %c0_52] : memref<128x32xf32, #tpu.memory_space<vmem>>, vector<128x32xf32>
    %cst_53 = arith.constant dense<0.000000e+00> : vector<1x32xf32>
    %119 = tpu.matmul %115, %118, %cst_53 {dimension_numbers = #tpu.dot_dimension_numbers<[1], [0], [0], [1], [0, 0, 1, 1], [], []>} : vector<1x128xf32>, vector<128x32xf32>, vector<1x32xf32> -> vector<1x32xf32>
    %120 = arith.mulf %117, %117 : vector<1x32xf32>
    %121 = arith.subf %119, %120 : vector<1x32xf32>
    %cst_54 = arith.constant 0.000000e+00 : f32
    %122 = vector.broadcast %cst_54 : f32 to vector<1x32xf32>
    %123 = arith.maximumf %121, %122 : vector<1x32xf32>
    %cst_55 = arith.constant 9.99999974E-6 : f32
    %124 = vector.broadcast %cst_55 : f32 to vector<1x32xf32>
    %125 = arith.addf %123, %124 : vector<1x32xf32>
    %126 = math.rsqrt %125 : vector<1x32xf32>
    %c0_56 = arith.constant 0 : index
    %c0_57 = arith.constant 0 : index
    %127 = vector.load %arg13[%c0_56, %c0_57] : memref<32x128xf32, #tpu.memory_space<vmem>>, vector<32x128xf32>
    %cst_58 = arith.constant dense<0.000000e+00> : vector<1x128xf32>
    %128 = tpu.matmul %117, %127, %cst_58 {dimension_numbers = #tpu.dot_dimension_numbers<[1], [0], [0], [1], [0, 0, 1, 1], [], []>} : vector<1x32xf32>, vector<32x128xf32>, vector<1x128xf32> -> vector<1x128xf32>
    %c0_59 = arith.constant 0 : index
    %c0_60 = arith.constant 0 : index
    %129 = vector.load %arg13[%c0_59, %c0_60] : memref<32x128xf32, #tpu.memory_space<vmem>>, vector<32x128xf32>
    %cst_61 = arith.constant dense<0.000000e+00> : vector<1x128xf32>
    %130 = tpu.matmul %126, %129, %cst_61 {dimension_numbers = #tpu.dot_dimension_numbers<[1], [0], [0], [1], [0, 0, 1, 1], [], []>} : vector<1x32xf32>, vector<32x128xf32>, vector<1x128xf32> -> vector<1x128xf32>
    %c0_62 = arith.constant 0 : index
    %c0_63 = arith.constant 0 : index
    %131 = vector.load %arg6[%c0_62, %c0_63] : memref<1x128xf32, #tpu.memory_space<vmem>>, vector<1x128xf32>
    %c0_64 = arith.constant 0 : index
    %c0_65 = arith.constant 0 : index
    %132 = vector.load %arg7[%c0_64, %c0_65] : memref<1x128xf32, #tpu.memory_space<vmem>>, vector<1x128xf32>
    %133 = vector.shape_cast %128 : vector<1x128xf32> to vector<1x1x128xf32>
    %134 = vector.broadcast %133 : vector<1x1x128xf32> to vector<1x64x128xf32>
    %135 = arith.subf %112, %134 : vector<1x64x128xf32>
    %136 = vector.shape_cast %130 : vector<1x128xf32> to vector<1x1x128xf32>
    %137 = vector.broadcast %136 : vector<1x1x128xf32> to vector<1x64x128xf32>
    %138 = arith.mulf %135, %137 : vector<1x64x128xf32>
    %139 = vector.shape_cast %131 : vector<1x128xf32> to vector<1x1x128xf32>
    %140 = vector.broadcast %139 : vector<1x1x128xf32> to vector<1x64x128xf32>
    %141 = arith.mulf %138, %140 : vector<1x64x128xf32>
    %142 = vector.shape_cast %132 : vector<1x128xf32> to vector<1x1x128xf32>
    %143 = vector.broadcast %142 : vector<1x1x128xf32> to vector<1x64x128xf32>
    %144 = arith.addf %141, %143 : vector<1x64x128xf32>
    %145 = arith.negf %144 : vector<1x64x128xf32>
    %146 = math.exp %145 : vector<1x64x128xf32>
    %cst_66 = arith.constant 1.000000e+00 : f32
    %147 = vector.broadcast %cst_66 : f32 to vector<1x64x128xf32>
    %148 = arith.addf %147, %146 : vector<1x64x128xf32>
    %149 = arith.divf %147, %148 : vector<1x64x128xf32>
    %150 = arith.mulf %144, %149 : vector<1x64x128xf32>
    %151 = vector.shape_cast %150 : vector<1x64x128xf32> to vector<64x128xf32>
    %c9_i32_67 = arith.constant 9 : i32
    %152 = tpu.dynamic_rotate %151 by %c9_i32_67 dim 0 : vector<64x128xf32>, i32 -> vector<64x128xf32>
    %153 = vector.extract_strided_slice %0 {offsets = [0, 0], sizes = [64, 1], strides = [1, 1]} : vector<64x9xf32> to vector<64x1xf32>
    %154 = vector.broadcast %153 : vector<64x1xf32> to vector<64x128xf32>
    %155 = arith.mulf %152, %154 : vector<64x128xf32>
    %156 = arith.truncf %155 : vector<64x128xf32> to vector<64x128xbf16>
    %c0_68 = arith.constant 0 : index
    %c0_69 = arith.constant 0 : index
    %157 = vector.load %arg8[%c0_68, %c0_69] : memref<1152x128xbf16, #tpu.memory_space<vmem>>, vector<128x128xbf16>
    %cst_70 = arith.constant dense<0.000000e+00> : vector<64x128xf32>
    %158 = tpu.matmul %156, %157, %cst_70 {dimension_numbers = #tpu.dot_dimension_numbers<[1], [0], [0], [1], [0, 0, 1, 1], [], []>} : vector<64x128xbf16>, vector<128x128xbf16>, vector<64x128xf32> -> vector<64x128xf32>
    %c8_i32_71 = arith.constant 8 : i32
    %159 = tpu.dynamic_rotate %151 by %c8_i32_71 dim 0 : vector<64x128xf32>, i32 -> vector<64x128xf32>
    %160 = vector.extract_strided_slice %0 {offsets = [0, 1], sizes = [64, 1], strides = [1, 1]} : vector<64x9xf32> to vector<64x1xf32>
    %161 = vector.broadcast %160 : vector<64x1xf32> to vector<64x128xf32>
    %162 = arith.mulf %159, %161 : vector<64x128xf32>
    %163 = arith.truncf %162 : vector<64x128xf32> to vector<64x128xbf16>
    %c128_72 = arith.constant 128 : index
    %c0_73 = arith.constant 0 : index
    %164 = vector.load %arg8[%c128_72, %c0_73] : memref<1152x128xbf16, #tpu.memory_space<vmem>>, vector<128x128xbf16>
    %cst_74 = arith.constant dense<0.000000e+00> : vector<64x128xf32>
    %165 = tpu.matmul %163, %164, %cst_74 {dimension_numbers = #tpu.dot_dimension_numbers<[1], [0], [0], [1], [0, 0, 1, 1], [], []>} : vector<64x128xbf16>, vector<128x128xbf16>, vector<64x128xf32> -> vector<64x128xf32>
    %166 = arith.addf %158, %165 : vector<64x128xf32>
    %c7_i32_75 = arith.constant 7 : i32
    %167 = tpu.dynamic_rotate %151 by %c7_i32_75 dim 0 : vector<64x128xf32>, i32 -> vector<64x128xf32>
    %168 = vector.extract_strided_slice %0 {offsets = [0, 2], sizes = [64, 1], strides = [1, 1]} : vector<64x9xf32> to vector<64x1xf32>
    %169 = vector.broadcast %168 : vector<64x1xf32> to vector<64x128xf32>
    %170 = arith.mulf %167, %169 : vector<64x128xf32>
    %171 = arith.truncf %170 : vector<64x128xf32> to vector<64x128xbf16>
    %c256_76 = arith.constant 256 : index
    %c0_77 = arith.constant 0 : index
    %172 = vector.load %arg8[%c256_76, %c0_77] : memref<1152x128xbf16, #tpu.memory_space<vmem>>, vector<128x128xbf16>
    %cst_78 = arith.constant dense<0.000000e+00> : vector<64x128xf32>
    %173 = tpu.matmul %171, %172, %cst_78 {dimension_numbers = #tpu.dot_dimension_numbers<[1], [0], [0], [1], [0, 0, 1, 1], [], []>} : vector<64x128xbf16>, vector<128x128xbf16>, vector<64x128xf32> -> vector<64x128xf32>
    %174 = arith.addf %166, %173 : vector<64x128xf32>
    %c1_i32_79 = arith.constant 1 : i32
    %175 = tpu.dynamic_rotate %151 by %c1_i32_79 dim 0 : vector<64x128xf32>, i32 -> vector<64x128xf32>
    %176 = vector.extract_strided_slice %0 {offsets = [0, 3], sizes = [64, 1], strides = [1, 1]} : vector<64x9xf32> to vector<64x1xf32>
    %177 = vector.broadcast %176 : vector<64x1xf32> to vector<64x128xf32>
    %178 = arith.mulf %175, %177 : vector<64x128xf32>
    %179 = arith.truncf %178 : vector<64x128xf32> to vector<64x128xbf16>
    %c384_80 = arith.constant 384 : index
    %c0_81 = arith.constant 0 : index
    %180 = vector.load %arg8[%c384_80, %c0_81] : memref<1152x128xbf16, #tpu.memory_space<vmem>>, vector<128x128xbf16>
    %cst_82 = arith.constant dense<0.000000e+00> : vector<64x128xf32>
    %181 = tpu.matmul %179, %180, %cst_82 {dimension_numbers = #tpu.dot_dimension_numbers<[1], [0], [0], [1], [0, 0, 1, 1], [], []>} : vector<64x128xbf16>, vector<128x128xbf16>, vector<64x128xf32> -> vector<64x128xf32>
    %182 = arith.addf %174, %181 : vector<64x128xf32>
    %183 = arith.truncf %151 : vector<64x128xf32> to vector<64x128xbf16>
    %c512_83 = arith.constant 512 : index
    %c0_84 = arith.constant 0 : index
    %184 = vector.load %arg8[%c512_83, %c0_84] : memref<1152x128xbf16, #tpu.memory_space<vmem>>, vector<128x128xbf16>
    %cst_85 = arith.constant dense<0.000000e+00> : vector<64x128xf32>
    %185 = tpu.matmul %183, %184, %cst_85 {dimension_numbers = #tpu.dot_dimension_numbers<[1], [0], [0], [1], [0, 0, 1, 1], [], []>} : vector<64x128xbf16>, vector<128x128xbf16>, vector<64x128xf32> -> vector<64x128xf32>
    %186 = arith.addf %182, %185 : vector<64x128xf32>
    %c63_i32_86 = arith.constant 63 : i32
    %187 = tpu.dynamic_rotate %151 by %c63_i32_86 dim 0 : vector<64x128xf32>, i32 -> vector<64x128xf32>
    %188 = vector.extract_strided_slice %0 {offsets = [0, 5], sizes = [64, 1], strides = [1, 1]} : vector<64x9xf32> to vector<64x1xf32>
    %189 = vector.broadcast %188 : vector<64x1xf32> to vector<64x128xf32>
    %190 = arith.mulf %187, %189 : vector<64x128xf32>
    %191 = arith.truncf %190 : vector<64x128xf32> to vector<64x128xbf16>
    %c640 = arith.constant 640 : index
    %c0_87 = arith.constant 0 : index
    %192 = vector.load %arg8[%c640, %c0_87] : memref<1152x128xbf16, #tpu.memory_space<vmem>>, vector<128x128xbf16>
    %cst_88 = arith.constant dense<0.000000e+00> : vector<64x128xf32>
    %193 = tpu.matmul %191, %192, %cst_88 {dimension_numbers = #tpu.dot_dimension_numbers<[1], [0], [0], [1], [0, 0, 1, 1], [], []>} : vector<64x128xbf16>, vector<128x128xbf16>, vector<64x128xf32> -> vector<64x128xf32>
    %194 = arith.addf %186, %193 : vector<64x128xf32>
    %c57_i32_89 = arith.constant 57 : i32
    %195 = tpu.dynamic_rotate %151 by %c57_i32_89 dim 0 : vector<64x128xf32>, i32 -> vector<64x128xf32>
    %196 = vector.extract_strided_slice %0 {offsets = [0, 6], sizes = [64, 1], strides = [1, 1]} : vector<64x9xf32> to vector<64x1xf32>
    %197 = vector.broadcast %196 : vector<64x1xf32> to vector<64x128xf32>
    %198 = arith.mulf %195, %197 : vector<64x128xf32>
    %199 = arith.truncf %198 : vector<64x128xf32> to vector<64x128xbf16>
    %c768 = arith.constant 768 : index
    %c0_90 = arith.constant 0 : index
    %200 = vector.load %arg8[%c768, %c0_90] : memref<1152x128xbf16, #tpu.memory_space<vmem>>, vector<128x128xbf16>
    %cst_91 = arith.constant dense<0.000000e+00> : vector<64x128xf32>
    %201 = tpu.matmul %199, %200, %cst_91 {dimension_numbers = #tpu.dot_dimension_numbers<[1], [0], [0], [1], [0, 0, 1, 1], [], []>} : vector<64x128xbf16>, vector<128x128xbf16>, vector<64x128xf32> -> vector<64x128xf32>
    %202 = arith.addf %194, %201 : vector<64x128xf32>
    %c56_i32_92 = arith.constant 56 : i32
    %203 = tpu.dynamic_rotate %151 by %c56_i32_92 dim 0 : vector<64x128xf32>, i32 -> vector<64x128xf32>
    %204 = vector.extract_strided_slice %0 {offsets = [0, 7], sizes = [64, 1], strides = [1, 1]} : vector<64x9xf32> to vector<64x1xf32>
    %205 = vector.broadcast %204 : vector<64x1xf32> to vector<64x128xf32>
    %206 = arith.mulf %203, %205 : vector<64x128xf32>
    %207 = arith.truncf %206 : vector<64x128xf32> to vector<64x128xbf16>
    %c896 = arith.constant 896 : index
    %c0_93 = arith.constant 0 : index
    %208 = vector.load %arg8[%c896, %c0_93] : memref<1152x128xbf16, #tpu.memory_space<vmem>>, vector<128x128xbf16>
    %cst_94 = arith.constant dense<0.000000e+00> : vector<64x128xf32>
    %209 = tpu.matmul %207, %208, %cst_94 {dimension_numbers = #tpu.dot_dimension_numbers<[1], [0], [0], [1], [0, 0, 1, 1], [], []>} : vector<64x128xbf16>, vector<128x128xbf16>, vector<64x128xf32> -> vector<64x128xf32>
    %210 = arith.addf %202, %209 : vector<64x128xf32>
    %c55_i32_95 = arith.constant 55 : i32
    %211 = tpu.dynamic_rotate %151 by %c55_i32_95 dim 0 : vector<64x128xf32>, i32 -> vector<64x128xf32>
    %212 = vector.extract_strided_slice %0 {offsets = [0, 8], sizes = [64, 1], strides = [1, 1]} : vector<64x9xf32> to vector<64x1xf32>
    %213 = vector.broadcast %212 : vector<64x1xf32> to vector<64x128xf32>
    %214 = arith.mulf %211, %213 : vector<64x128xf32>
    %215 = arith.truncf %214 : vector<64x128xf32> to vector<64x128xbf16>
    %c1024 = arith.constant 1024 : index
    %c0_96 = arith.constant 0 : index
    %216 = vector.load %arg8[%c1024, %c0_96] : memref<1152x128xbf16, #tpu.memory_space<vmem>>, vector<128x128xbf16>
    %cst_97 = arith.constant dense<0.000000e+00> : vector<64x128xf32>
    %217 = tpu.matmul %215, %216, %cst_97 {dimension_numbers = #tpu.dot_dimension_numbers<[1], [0], [0], [1], [0, 0, 1, 1], [], []>} : vector<64x128xbf16>, vector<128x128xbf16>, vector<64x128xf32> -> vector<64x128xf32>
    %218 = arith.addf %210, %217 : vector<64x128xf32>
    %c0_98 = arith.constant 0 : index
    %c0_99 = arith.constant 0 : index
    %219 = vector.load %arg9[%c0_98, %c0_99] : memref<1x128xf32, #tpu.memory_space<vmem>>, vector<1x128xf32>
    %220 = vector.broadcast %219 : vector<1x128xf32> to vector<64x128xf32>
    %221 = arith.addf %218, %220 : vector<64x128xf32>
    %c0_100 = arith.constant 0 : index
    %c0_101 = arith.constant 0 : index
    %c0_102 = arith.constant 0 : index
    %c0_103 = arith.constant 0 : index
    %222 = vector.load %arg1[%c0_100, %c0_101, %c0_102, %c0_103] : memref<1x8x8x64xf32, #tpu.memory_space<vmem>>, vector<1x8x8x64xf32>
    %223 = vector.shape_cast %222 : vector<1x8x8x64xf32> to vector<64x64xf32>
    %224 = arith.truncf %223 : vector<64x64xf32> to vector<64x64xbf16>
    %c0_104 = arith.constant 0 : index
    %c0_105 = arith.constant 0 : index
    %225 = vector.load %arg15[%c0_104, %c0_105] : memref<64x128xbf16, #tpu.memory_space<vmem>>, vector<64x128xbf16>
    %cst_106 = arith.constant dense<0.000000e+00> : vector<64x128xf32>
    %226 = tpu.matmul %224, %225, %cst_106 {dimension_numbers = #tpu.dot_dimension_numbers<[1], [0], [0], [1], [0, 0, 1, 1], [], []>} : vector<64x64xbf16>, vector<64x128xbf16>, vector<64x128xf32> -> vector<64x128xf32>
    %c0_107 = arith.constant 0 : index
    %c0_108 = arith.constant 0 : index
    %227 = vector.load %arg16[%c0_107, %c0_108] : memref<1x128xf32, #tpu.memory_space<vmem>>, vector<1x128xf32>
    %228 = vector.broadcast %227 : vector<1x128xf32> to vector<64x128xf32>
    %229 = arith.addf %226, %228 : vector<64x128xf32>
    %230 = arith.addf %221, %229 : vector<64x128xf32>
    %231 = vector.shape_cast %230 : vector<64x128xf32> to vector<1x8x8x128xf32>
    %c0_109 = arith.constant 0 : index
    %c0_110 = arith.constant 0 : index
    %c0_111 = arith.constant 0 : index
    %c0_112 = arith.constant 0 : index
    %232 = vector.load %arg17[%c0_109, %c0_110, %c0_111, %c0_112] : memref<1x8x8x128xf32, #tpu.memory_space<vmem>>, vector<1x8x8x128xf32>
    tpu.vector_store %arg17[%c0_109, %c0_110, %c0_111, %c0_112], %231 {strides = array<i32>} : memref<1x8x8x128xf32, #tpu.memory_space<vmem>>, vector<1x8x8x128xf32>,
    return
  }
  func.func @transform_0(%arg0: i32) -> (i32, i32, i32, i32) {
    %c0_i32 = arith.constant 0 : i32
    %c0_i32_0 = arith.constant 0 : i32
    %c0_i32_1 = arith.constant 0 : i32
    %c0_i32_2 = arith.constant 0 : i32
    return %arg0, %c0_i32, %c0_i32_0, %c0_i32_1 : i32, i32, i32, i32
  }
  func.func @transform_1(%arg0: i32) -> (i32, i32) {
    %c0_i32 = arith.constant 0 : i32
    %c0_i32_0 = arith.constant 0 : i32
    %c0_i32_1 = arith.constant 0 : i32
    return %c0_i32, %c0_i32_0 : i32, i32
  }
  func.func @transform_2(%arg0: i32) -> (i32, i32) {
    %c0_i32 = arith.constant 0 : i32
    %c0_i32_0 = arith.constant 0 : i32
    %c0_i32_1 = arith.constant 0 : i32
    return %c0_i32, %c0_i32_0 : i32, i32
  }
  func.func @transform_3(%arg0: i32) -> (i32, i32) {
    %c0_i32 = arith.constant 0 : i32
    %c0_i32_0 = arith.constant 0 : i32
    %c0_i32_1 = arith.constant 0 : i32
    return %c0_i32, %c0_i32_0 : i32, i32
  }
  func.func @transform_4(%arg0: i32) -> (i32, i32) {
    %c0_i32 = arith.constant 0 : i32
    %c0_i32_0 = arith.constant 0 : i32
    %c0_i32_1 = arith.constant 0 : i32
    return %c0_i32, %c0_i32_0 : i32, i32
  }
  func.func @transform_5(%arg0: i32) -> (i32, i32) {
    %c0_i32 = arith.constant 0 : i32
    %c0_i32_0 = arith.constant 0 : i32
    %c0_i32_1 = arith.constant 0 : i32
    return %c0_i32, %c0_i32_0 : i32, i32
  }
  func.func @transform_6(%arg0: i32) -> (i32, i32) {
    %c0_i32 = arith.constant 0 : i32
    %c0_i32_0 = arith.constant 0 : i32
    %c0_i32_1 = arith.constant 0 : i32
    return %c0_i32, %c0_i32_0 : i32, i32
  }
  func.func @transform_7(%arg0: i32) -> (i32, i32) {
    %c0_i32 = arith.constant 0 : i32
    %c0_i32_0 = arith.constant 0 : i32
    %c0_i32_1 = arith.constant 0 : i32
    return %c0_i32, %c0_i32_0 : i32, i32
  }
  func.func @transform_8(%arg0: i32) -> (i32, i32) {
    %c0_i32 = arith.constant 0 : i32
    %c0_i32_0 = arith.constant 0 : i32
    %c0_i32_1 = arith.constant 0 : i32
    return %c0_i32, %c0_i32_0 : i32, i32
  }
  func.func @transform_9(%arg0: i32) -> (i32, i32) {
    %c0_i32 = arith.constant 0 : i32
    %c0_i32_0 = arith.constant 0 : i32
    %c0_i32_1 = arith.constant 0 : i32
    return %c0_i32, %c0_i32_0 : i32, i32
  }
  func.func @transform_10(%arg0: i32) -> (i32, i32) {
    %c0_i32 = arith.constant 0 : i32
    %c0_i32_0 = arith.constant 0 : i32
    %c0_i32_1 = arith.constant 0 : i32
    return %c0_i32, %c0_i32_0 : i32, i32
  }
  func.func @transform_11(%arg0: i32) -> (i32, i32) {
    %c0_i32 = arith.constant 0 : i32
    %c0_i32_0 = arith.constant 0 : i32
    %c0_i32_1 = arith.constant 0 : i32
    return %c0_i32, %c0_i32_0 : i32, i32
  }
  func.func @transform_12(%arg0: i32) -> (i32, i32) {
    %c0_i32 = arith.constant 0 : i32
    %c0_i32_0 = arith.constant 0 : i32
    %c0_i32_1 = arith.constant 0 : i32
    return %c0_i32, %c0_i32_0 : i32, i32
  }
  func.func @transform_13(%arg0: i32) -> (i32, i32) {
    %c0_i32 = arith.constant 0 : i32
    %c0_i32_0 = arith.constant 0 : i32
    %c0_i32_1 = arith.constant 0 : i32
    return %c0_i32, %c0_i32_0 : i32, i32
  }
  func.func @transform_14(%arg0: i32) -> (i32, i32) {
    %c0_i32 = arith.constant 0 : i32
    %c0_i32_0 = arith.constant 0 : i32
    %c0_i32_1 = arith.constant 0 : i32
    return %c0_i32, %c0_i32_0 : i32, i32
  }
  func.func @transform_15(%arg0: i32) -> (i32, i32) {
    %c0_i32 = arith.constant 0 : i32
    %c0_i32_0 = arith.constant 0 : i32
    %c0_i32_1 = arith.constant 0 : i32
    return %c0_i32, %c0_i32_0 : i32, i32
  }
  func.func @transform_16(%arg0: i32) -> (i32, i32, i32, i32) {
    %c0_i32 = arith.constant 0 : i32
    %c0_i32_0 = arith.constant 0 : i32
    %c0_i32_1 = arith.constant 0 : i32
    %c0_i32_2 = arith.constant 0 : i32
    return %arg0, %c0_i32, %c0_i32_0, %c0_i32_1 : i32, i32, i32, i32
  }
}

</mosaic_0001>

<llo_original>
// kernel: tpu_custom_call.1
$region0: #{tpu_custom_call.1}
  #allocation0 [shape = 'u32[]', space=smem, size = 0x4, offset = 0x4, fixed_abs, tag = 'smem constant byte address 0x4 - core index']
  #allocation1 [shape = 'u32[144,128]{1,0:T(1,128)}', space=vmem, size = 0x12000, scoped, tag = 'internal scratch']
  %s0 = inlined_call_operand.hbm [shape: f32[2,8,8,64], index: 0, kind: input, shape index: {}]
  %s1 = inlined_call_operand.vmem [shape: f32[1,64], index: 1, kind: input, shape index: {}]
  %s2 = inlined_call_operand.vmem [shape: f32[1,64], index: 2, kind: input, shape index: {}]
  %s3 = inlined_call_operand.vmem [shape: bf16[576,128], index: 3, kind: input, shape index: {}]
  %s4 = inlined_call_operand.hbm [shape: f32[1,128], index: 4, kind: input, shape index: {}]
  %s5 = inlined_call_operand.hbm [shape: f32[1,128], index: 5, kind: input, shape index: {}]
  %s6 = inlined_call_operand.hbm [shape: f32[1,128], index: 6, kind: input, shape index: {}]
  %s7 = inlined_call_operand.hbm [shape: bf16[1152,128], index: 7, kind: input, shape index: {}]
  %s8 = inlined_call_operand.hbm [shape: f32[1,128], index: 8, kind: input, shape index: {}]
  %s9 = inlined_call_operand.vmem [shape: f32[64,32], index: 9, kind: input, shape index: {}]
  %s10 = inlined_call_operand.hbm [shape: f32[32,64], index: 10, kind: input, shape index: {}]
  %s11 = inlined_call_operand.vmem [shape: f32[128,32], index: 11, kind: input, shape index: {}]
  %s12 = inlined_call_operand.hbm [shape: f32[32,128], index: 12, kind: input, shape index: {}]
  %s13 = inlined_call_operand.vmem [shape: f32[64,9], index: 13, kind: input, shape index: {}]
  %s14 = inlined_call_operand.hbm [shape: bf16[64,128], index: 14, kind: input, shape index: {}]
  %s15 = inlined_call_operand.vmem [shape: f32[1,128], index: 15, kind: input, shape index: {}]
  %s16 = inlined_call_operand.hbm [shape: f32[2,8,8,128], index: 16, kind: output, shape index: {}]
  %s17 = sld [smem:[#allocation0]]
  $region133: #{tpu_custom_call.1} parent=0
    _
  %s19 = ssub.s32 1, %s17
  %s20 = scalar_select 0, %s19, %s17
  $region1: #{tpu_custom_call.1} parent=0
    #allocation2 [shape = 'u8[65536]{0}', space=vmem, size = 0x10000, scoped, tag = 'input window, operand 0']
    #allocation3 [shape = 's32[2]{0}', space=sflag, size = 0x8, scoped, tag = 'scoped memory for tpu_custom_call.1']
    #allocation4 [shape = 's32[2]{0}', space=sflag, size = 0x8, scoped, tag = 'scoped memory for tpu_custom_call.1']
    #allocation5 [shape = 'u8[512]{0}', space=vmem, size = 0x400, scoped, tag = 'input window, operand 4, single buffered']
    #allocation6 [shape = 's32[1]{0}', space=sflag, size = 0x4, scoped, tag = 'scoped memory for tpu_custom_call.1']
    #allocation7 [shape = 'u8[512]{0}', space=vmem, size = 0x400, scoped, tag = 'input window, operand 5, single buffered']
    #allocation8 [shape = 'u8[512]{0}', space=vmem, size = 0x400, scoped, tag = 'input window, operand 6, single buffered']
    #allocation9 [shape = 's32[1]{0}', space=sflag, size = 0x4, scoped, tag = 'scoped memory for tpu_custom_call.1']
    #allocation10 [shape = 'u8[294912]{0}', space=vmem, size = 0x48000, scoped, tag = 'input window, operand 7, single buffered']
    #allocation11 [shape = 'u8[512]{0}', space=vmem, size = 0x400, scoped, tag = 'input window, operand 8, single buffered']
    #allocation12 [shape = 's32[1]{0}', space=sflag, size = 0x4, scoped, tag = 'scoped memory for tpu_custom_call.1']
    #allocation13 [shape = 'u8[16384]{0}', space=vmem, size = 0x4000, scoped, tag = 'input window, operand 10, single buffered']
    #allocation14 [shape = 'u8[16384]{0}', space=vmem, size = 0x4000, scoped, tag = 'input window, operand 12, single buffered']
    #allocation15 [shape = 's32[1]{0}', space=sflag, size = 0x4, scoped, tag = 'scoped memory for tpu_custom_call.1']
    #allocation16 [shape = 'u8[16384]{0}', space=vmem, size = 0x4000, scoped, tag = 'input window, operand 14, single buffered']
    #allocation17 [shape = 'u8[65536]{0}', space=vmem, size = 0x10000, scoped, tag = 'output window, operand 0']
    %21 = vsyncpa [#allocation3], 0
    %s22 = scalar_lea.sflag [#allocation3], 1
    %23 = vsyncpa %s22, 0
    %24 = vsyncpa [#allocation6], 0
    %25 = vsyncpa [#allocation9], 0
    %26 = vsyncpa [#allocation12], 0
    %27 = vsyncpa [#allocation15], 0
    %28 = vsyncpa [#allocation4], 0
    %s29 = scalar_lea.sflag [#allocation4], 1
    %30 = vsyncpa %s29, 0
    loop: start=0, step=1, limit=4
    $region2: #{tpu_custom_call.1} parent=1 // loop_pre_header
      _
    $region3: #{tpu_custom_call.1} parent=1 // loop_header
      %s32 = sphi 0, %s36
      %p33 = scmp.ge.s32.totalorder %s32, 4
      %s42 = sphi 0, %s44
      %s45 = sphi 0, %s42
      %s46 = sphi 0, %s45
      %s62 = sphi 0, %s46
      %s66 = sphi 0, %s66
      %s68 = sphi 0, %s66
      %s69 = sphi 0, %s68
      %s83 = sphi 0, %s69
      %s87 = sphi 0, %s87
      %s89 = sphi 0, %s87
      %s90 = sphi 0, %s89
      %s104 = sphi 0, %s90
      %s108 = sphi 0, %s108
      %s110 = sphi 0, %s108
      %s111 = sphi 0, %s110
      %s125 = sphi 0, %s111
      %s129 = sphi 0, %s129
      %s131 = sphi 0, %s129
      %s132 = sphi 0, %s131
      %s146 = sphi 0, %s132
      %s150 = sphi 0, %s150
      %s152 = sphi 0, %s150
      %s153 = sphi 0, %s152
      %s167 = sphi 0, %s153
      %s171 = sphi 0, %s171
      %s173 = sphi 0, %s171
      %s174 = sphi 0, %s173
      %s188 = sphi 0, %s174
      %s192 = sphi 0, %s192
      %s194 = sphi 0, %s192
      %s195 = sphi 0, %s194
      %s209 = sphi 0, %s195
      %s213 = sphi 0, %s213
      %s215 = sphi 0, %s213
      %s216 = sphi 0, %s215
      %s230 = sphi 0, %s216
      %s234 = sphi 0, %s234
      %s236 = sphi 0, %s234
      %s237 = sphi 0, %s236
      %s251 = sphi 0, %s237
      %s255 = sphi 0, %s255
      %s257 = sphi 0, %s255
      %s258 = sphi 0, %s257
      %s272 = sphi 0, %s258
      %s276 = sphi 0, %s276
      %s278 = sphi 0, %s276
      %s279 = sphi 0, %s278
      %s293 = sphi 0, %s279
      %s297 = sphi 0, %s297
      %s299 = sphi 0, %s297
      %s300 = sphi 0, %s299
      %s314 = sphi 0, %s300
      %s318 = sphi 0, %s318
      %s320 = sphi 0, %s318
      %s321 = sphi 0, %s320
      %s335 = sphi 0, %s321
      %s339 = sphi 0, %s339
      %s341 = sphi 0, %s339
      %s342 = sphi 0, %s341
      %s356 = sphi 0, %s342
      %s360 = sphi 0, %s360
      %s362 = sphi 0, %s360
      %s363 = sphi 0, %s362
      %s377 = sphi 0, %s363
      %s383 = sphi 0, %s385
      %s386 = sphi 0, %s383
      %s387 = sphi 0, %s386
      %s403 = sphi 0, %s387
    $region4: #{tpu_custom_call.1} parent=1 // loop_header_branch
      %35 = sbr.rel (%p33) target = $region8
    $region5: #{tpu_custom_call.1} parent=1 // loop_body
      %s37 = ssub.s32 %s32, 1
      %s38 = ssub.s32 %s32, 2
      %s39 = sadd.s32 %s32, 1
      %s40 = ssub.s32 %s32, %s39
      %p41 = scmp.eq.s32.totalorder %s40, 0
      %s43 = sadd.s32 %s42, 1
      %s44 = scalar_select %p41, %s42, %s43
      %p47 = pneg %p41
      %p48 = scmp.eq.s32.totalorder %s32, 1
      %p49 = por %p47, %p48
      %p50 = scmp.ne.s32.totalorder %s42, %s45
      %p51 = scmp.eq.s32.totalorder %s32, 0
      %p52 = por %p50, %p51
      %p53 = scmp.ne.s32.totalorder %s42, %s45
      %p54 = scmp.eq.s32.totalorder %s37, 1
      %p55 = por %p53, %p54
      %p56 = scmp.ne.s32.totalorder %s45, %s46
      %p57 = scmp.eq.s32.totalorder %s37, 0
      %p58 = por %p56, %p57
      %p59 = scmp.ne.s32.totalorder %s45, %s46
      %p60 = scmp.eq.s32.totalorder %s38, 1
      %p61 = por %p59, %p60
      %p63 = scmp.ne.s32.totalorder %s46, %s62
      %p64 = scmp.eq.s32.totalorder %s38, 0
      %p65 = por %p63, %p64
      %s67 = sadd.s32 %s66, 1
      %p70 = scmp.eq.s32.totalorder %s32, 1
      %p71 = scmp.ne.s32.totalorder %s66, %s68
      %p72 = scmp.eq.s32.totalorder %s32, 0
      %p73 = por %p71, %p72
      %p74 = scmp.ne.s32.totalorder %s66, %s68
      %p75 = scmp.eq.s32.totalorder %s37, 1
      %p76 = por %p74, %p75
      %p77 = scmp.ne.s32.totalorder %s68, %s69
      %p78 = scmp.eq.s32.totalorder %s37, 0
      %p79 = por %p77, %p78
      %p80 = scmp.ne.s32.totalorder %s68, %s69
      %p81 = scmp.eq.s32.totalorder %s38, 1
      %p82 = por %p80, %p81
      %p84 = scmp.ne.s32.totalorder %s69, %s83
      %p85 = scmp.eq.s32.totalorder %s38, 0
      %p86 = por %p84, %p85
      %s88 = sadd.s32 %s87, 1
      %p91 = scmp.eq.s32.totalorder %s32, 1
      %p92 = scmp.ne.s32.totalorder %s87, %s89
      %p93 = scmp.eq.s32.totalorder %s32, 0
      %p94 = por %p92, %p93
      %p95 = scmp.ne.s32.totalorder %s87, %s89
      %p96 = scmp.eq.s32.totalorder %s37, 1
      %p97 = por %p95, %p96
      %p98 = scmp.ne.s32.totalorder %s89, %s90
      %p99 = scmp.eq.s32.totalorder %s37, 0
      %p100 = por %p98, %p99
      %p101 = scmp.ne.s32.totalorder %s89, %s90
      %p102 = scmp.eq.s32.totalorder %s38, 1
      %p103 = por %p101, %p102
      %p105 = scmp.ne.s32.totalorder %s90, %s104
      %p106 = scmp.eq.s32.totalorder %s38, 0
      %p107 = por %p105, %p106
      %s109 = sadd.s32 %s108, 1
      %p112 = scmp.eq.s32.totalorder %s32, 1
      %p113 = scmp.ne.s32.totalorder %s108, %s110
      %p114 = scmp.eq.s32.totalorder %s32, 0
      %p115 = por %p113, %p114
      %p116 = scmp.ne.s32.totalorder %s108, %s110
      %p117 = scmp.eq.s32.totalorder %s37, 1
      %p118 = por %p116, %p117
      %p119 = scmp.ne.s32.totalorder %s110, %s111
      %p120 = scmp.eq.s32.totalorder %s37, 0
      %p121 = por %p119, %p120
      %p122 = scmp.ne.s32.totalorder %s110, %s111
      %p123 = scmp.eq.s32.totalorder %s38, 1
      %p124 = por %p122, %p123
      %p126 = scmp.ne.s32.totalorder %s111, %s125
      %p127 = scmp.eq.s32.totalorder %s38, 0
      %p128 = por %p126, %p127
      %s130 = sadd.s32 %s129, 1
      %p133 = scmp.eq.s32.totalorder %s32, 1
      %p134 = scmp.ne.s32.totalorder %s129, %s131
      %p135 = scmp.eq.s32.totalorder %s32, 0
      %p136 = por %p134, %p135
      %p137 = scmp.ne.s32.totalorder %s129, %s131
      %p138 = scmp.eq.s32.totalorder %s37, 1
      %p139 = por %p137, %p138
      %p140 = scmp.ne.s32.totalorder %s131, %s132
      %p141 = scmp.eq.s32.totalorder %s37, 0
      %p142 = por %p140, %p141
      %p143 = scmp.ne.s32.totalorder %s131, %s132
      %p144 = scmp.eq.s32.totalorder %s38, 1
      %p145 = por %p143, %p144
      %p147 = scmp.ne.s32.totalorder %s132, %s146
      %p148 = scmp.eq.s32.totalorder %s38, 0
      %p149 = por %p147, %p148
      %s151 = sadd.s32 %s150, 1
      %p154 = scmp.eq.s32.totalorder %s32, 1
      %p155 = scmp.ne.s32.totalorder %s150, %s152
      %p156 = scmp.eq.s32.totalorder %s32, 0
      %p157 = por %p155, %p156
      %p158 = scmp.ne.s32.totalorder %s150, %s152
      %p159 = scmp.eq.s32.totalorder %s37, 1
      %p160 = por %p158, %p159
      %p161 = scmp.ne.s32.totalorder %s152, %s153
      %p162 = scmp.eq.s32.totalorder %s37, 0
      %p163 = por %p161, %p162
      %p164 = scmp.ne.s32.totalorder %s152, %s153
      %p165 = scmp.eq.s32.totalorder %s38, 1
      %p166 = por %p164, %p165
      %p168 = scmp.ne.s32.totalorder %s153, %s167
      %p169 = scmp.eq.s32.totalorder %s38, 0
      %p170 = por %p168, %p169
      %s172 = sadd.s32 %s171, 1
      %p175 = scmp.eq.s32.totalorder %s32, 1
      %p176 = scmp.ne.s32.totalorder %s171, %s173
      %p177 = scmp.eq.s32.totalorder %s32, 0
      %p178 = por %p176, %p177
      %p179 = scmp.ne.s32.totalorder %s171, %s173
      %p180 = scmp.eq.s32.totalorder %s37, 1
      %p181 = por %p179, %p180
      %p182 = scmp.ne.s32.totalorder %s173, %s174
      %p183 = scmp.eq.s32.totalorder %s37, 0
      %p184 = por %p182, %p183
      %p185 = scmp.ne.s32.totalorder %s173, %s174
      %p186 = scmp.eq.s32.totalorder %s38, 1
      %p187 = por %p185, %p186
      %p189 = scmp.ne.s32.totalorder %s174, %s188
      %p190 = scmp.eq.s32.totalorder %s38, 0
      %p191 = por %p189, %p190
      %s193 = sadd.s32 %s192, 1
      %p196 = scmp.eq.s32.totalorder %s32, 1
      %p197 = scmp.ne.s32.totalorder %s192, %s194
      %p198 = scmp.eq.s32.totalorder %s32, 0
      %p199 = por %p197, %p198
      %p200 = scmp.ne.s32.totalorder %s192, %s194
      %p201 = scmp.eq.s32.totalorder %s37, 1
      %p202 = por %p200, %p201
      %p203 = scmp.ne.s32.totalorder %s194, %s195
      %p204 = scmp.eq.s32.totalorder %s37, 0
      %p205 = por %p203, %p204
      %p206 = scmp.ne.s32.totalorder %s194, %s195
      %p207 = scmp.eq.s32.totalorder %s38, 1
      %p208 = por %p206, %p207
      %p210 = scmp.ne.s32.totalorder %s195, %s209
      %p211 = scmp.eq.s32.totalorder %s38, 0
      %p212 = por %p210, %p211
      %s214 = sadd.s32 %s213, 1
      %p217 = scmp.eq.s32.totalorder %s32, 1
      %p218 = scmp.ne.s32.totalorder %s213, %s215
      %p219 = scmp.eq.s32.totalorder %s32, 0
      %p220 = por %p218, %p219
      %p221 = scmp.ne.s32.totalorder %s213, %s215
      %p222 = scmp.eq.s32.totalorder %s37, 1
      %p223 = por %p221, %p222
      %p224 = scmp.ne.s32.totalorder %s215, %s216
      %p225 = scmp.eq.s32.totalorder %s37, 0
      %p226 = por %p224, %p225
      %p227 = scmp.ne.s32.totalorder %s215, %s216
      %p228 = scmp.eq.s32.totalorder %s38, 1
      %p229 = por %p227, %p228
      %p231 = scmp.ne.s32.totalorder %s216, %s230
      %p232 = scmp.eq.s32.totalorder %s38, 0
      %p233 = por %p231, %p232
      %s235 = sadd.s32 %s234, 1
      %p238 = scmp.eq.s32.totalorder %s32, 1
      %p239 = scmp.ne.s32.totalorder %s234, %s236
      %p240 = scmp.eq.s32.totalorder %s32, 0
      %p241 = por %p239, %p240
      %p242 = scmp.ne.s32.totalorder %s234, %s236
      %p243 = scmp.eq.s32.totalorder %s37, 1
      %p244 = por %p242, %p243
      %p245 = scmp.ne.s32.totalorder %s236, %s237
      %p246 = scmp.eq.s32.totalorder %s37, 0
      %p247 = por %p245, %p246
      %p248 = scmp.ne.s32.totalorder %s236, %s237
      %p249 = scmp.eq.s32.totalorder %s38, 1
      %p250 = por %p248, %p249
      %p252 = scmp.ne.s32.totalorder %s237, %s251
      %p253 = scmp.eq.s32.totalorder %s38, 0
      %p254 = por %p252, %p253
      %s256 = sadd.s32 %s255, 1
      %p259 = scmp.eq.s32.totalorder %s32, 1
      %p260 = scmp.ne.s32.totalorder %s255, %s257
      %p261 = scmp.eq.s32.totalorder %s32, 0
      %p262 = por %p260, %p261
      %p263 = scmp.ne.s32.totalorder %s255, %s257
      %p264 = scmp.eq.s32.totalorder %s37, 1
      %p265 = por %p263, %p264
      %p266 = scmp.ne.s32.totalorder %s257, %s258
      %p267 = scmp.eq.s32.totalorder %s37, 0
      %p268 = por %p266, %p267
      %p269 = scmp.ne.s32.totalorder %s257, %s258
      %p270 = scmp.eq.s32.totalorder %s38, 1
      %p271 = por %p269, %p270
      %p273 = scmp.ne.s32.totalorder %s258, %s272
      %p274 = scmp.eq.s32.totalorder %s38, 0
      %p275 = por %p273, %p274
      %s277 = sadd.s32 %s276, 1
      %p280 = scmp.eq.s32.totalorder %s32, 1
      %p281 = scmp.ne.s32.totalorder %s276, %s278
      %p282 = scmp.eq.s32.totalorder %s32, 0
      %p283 = por %p281, %p282
      %p284 = scmp.ne.s32.totalorder %s276, %s278
      %p285 = scmp.eq.s32.totalorder %s37, 1
      %p286 = por %p284, %p285
      %p287 = scmp.ne.s32.totalorder %s278, %s279
      %p288 = scmp.eq.s32.totalorder %s37, 0
      %p289 = por %p287, %p288
      %p290 = scmp.ne.s32.totalorder %s278, %s279
      %p291 = scmp.eq.s32.totalorder %s38, 1
      %p292 = por %p290, %p291
      %p294 = scmp.ne.s32.totalorder %s279, %s293
      %p295 = scmp.eq.s32.totalorder %s38, 0
      %p296 = por %p294, %p295
      %s298 = sadd.s32 %s297, 1
      %p301 = scmp.eq.s32.totalorder %s32, 1
      %p302 = scmp.ne.s32.totalorder %s297, %s299
      %p303 = scmp.eq.s32.totalorder %s32, 0
      %p304 = por %p302, %p303
      %p305 = scmp.ne.s32.totalorder %s297, %s299
      %p306 = scmp.eq.s32.totalorder %s37, 1
      %p307 = por %p305, %p306
      %p308 = scmp.ne.s32.totalorder %s299, %s300
      %p309 = scmp.eq.s32.totalorder %s37, 0
      %p310 = por %p308, %p309
      %p311 = scmp.ne.s32.totalorder %s299, %s300
      %p312 = scmp.eq.s32.totalorder %s38, 1
      %p313 = por %p311, %p312
      %p315 = scmp.ne.s32.totalorder %s300, %s314
      %p316 = scmp.eq.s32.totalorder %s38, 0
      %p317 = por %p315, %p316
      %s319 = sadd.s32 %s318, 1
      %p322 = scmp.eq.s32.totalorder %s32, 1
      %p323 = scmp.ne.s32.totalorder %s318, %s320
      %p324 = scmp.eq.s32.totalorder %s32, 0
      %p325 = por %p323, %p324
      %p326 = scmp.ne.s32.totalorder %s318, %s320
      %p327 = scmp.eq.s32.totalorder %s37, 1
      %p328 = por %p326, %p327
      %p329 = scmp.ne.s32.totalorder %s320, %s321
      %p330 = scmp.eq.s32.totalorder %s37, 0
      %p331 = por %p329, %p330
      %p332 = scmp.ne.s32.totalorder %s320, %s321
      %p333 = scmp.eq.s32.totalorder %s38, 1
      %p334 = por %p332, %p333
      %p336 = scmp.ne.s32.totalorder %s321, %s335
      %p337 = scmp.eq.s32.totalorder %s38, 0
      %p338 = por %p336, %p337
      %s340 = sadd.s32 %s339, 1
      %p343 = scmp.eq.s32.totalorder %s32, 1
      %p344 = scmp.ne.s32.totalorder %s339, %s341
      %p345 = scmp.eq.s32.totalorder %s32, 0
      %p346 = por %p344, %p345
      %p347 = scmp.ne.s32.totalorder %s339, %s341
      %p348 = scmp.eq.s32.totalorder %s37, 1
      %p349 = por %p347, %p348
      %p350 = scmp.ne.s32.totalorder %s341, %s342
      %p351 = scmp.eq.s32.totalorder %s37, 0
      %p352 = por %p350, %p351
      %p353 = scmp.ne.s32.totalorder %s341, %s342
      %p354 = scmp.eq.s32.totalorder %s38, 1
      %p355 = por %p353, %p354
      %p357 = scmp.ne.s32.totalorder %s342, %s356
      %p358 = scmp.eq.s32.totalorder %s38, 0
      %p359 = por %p357, %p358
      %s361 = sadd.s32 %s360, 1
      %p364 = scmp.eq.s32.totalorder %s32, 1
      %p365 = scmp.ne.s32.totalorder %s360, %s362
      %p366 = scmp.eq.s32.totalorder %s32, 0
      %p367 = por %p365, %p366
      %p368 = scmp.ne.s32.totalorder %s360, %s362
      %p369 = scmp.eq.s32.totalorder %s37, 1
      %p370 = por %p368, %p369
      %p371 = scmp.ne.s32.totalorder %s362, %s363
      %p372 = scmp.eq.s32.totalorder %s37, 0
      %p373 = por %p371, %p372
      %p374 = scmp.ne.s32.totalorder %s362, %s363
      %p375 = scmp.eq.s32.totalorder %s38, 1
      %p376 = por %p374, %p375
      %p378 = scmp.ne.s32.totalorder %s363, %s377
      %p379 = scmp.eq.s32.totalorder %s38, 0
      %p380 = por %p378, %p379
      %s381 = ssub.s32 %s32, %s39
      %p382 = scmp.eq.s32.totalorder %s381, 0
      %s384 = sadd.s32 %s383, 1
      %s385 = scalar_select %p382, %s383, %s384
      %p388 = pneg %p382
      %p389 = scmp.eq.s32.totalorder %s32, 1
      %p390 = por %p388, %p389
      %p391 = scmp.ne.s32.totalorder %s383, %s386
      %p392 = scmp.eq.s32.totalorder %s32, 0
      %p393 = por %p391, %p392
      %p394 = scmp.ne.s32.totalorder %s383, %s386
      %p395 = scmp.eq.s32.totalorder %s37, 1
      %p396 = por %p394, %p395
      %p397 = scmp.ne.s32.totalorder %s386, %s387
      %p398 = scmp.eq.s32.totalorder %s37, 0
      %p399 = por %p397, %p398
      %p400 = scmp.ne.s32.totalorder %s386, %s387
      %p401 = scmp.eq.s32.totalorder %s38, 1
      %p402 = por %p400, %p401
      %p404 = scmp.ne.s32.totalorder %s387, %s403
      %p405 = scmp.eq.s32.totalorder %s38, 0
      %p406 = por %p404, %p405
      %p407 = scmp.le.s32.totalorder 1, %s32
      %p408 = scmp.lt.s32.totalorder %s32, 3
      %p409 = pnand %p407, %p408
      %p410 = pneg %p409
      // Predicated region
      $region9: #{tpu_custom_call.1} parent=5 // pred_check
        _
      $region10: #{tpu_custom_call.1} parent=5 // pred_check_branch
        %412 = sbr.rel (%p409) target = $region12
      $region11: #{tpu_custom_call.1} parent=5 // pred_region
        %s413 = ssub.s32 %s32, 1
        // Predicated region
        $region13: #{tpu_custom_call.1} parent=11 // pred_check
          %p414 = pneg %p79
        $region14: #{tpu_custom_call.1} parent=11 // pred_check_branch
          %416 = sbr.rel (%p414) target = $region16
        $region15: #{tpu_custom_call.1} parent=11 // pred_region
          _
        $region16: #{tpu_custom_call.1} parent=11 // pred_fallthru
          _
        // Predicated region
        $region17: #{tpu_custom_call.1} parent=11 // pred_check
          %p417 = pneg %p100
        $region18: #{tpu_custom_call.1} parent=11 // pred_check_branch
          %419 = sbr.rel (%p417) target = $region20
        $region19: #{tpu_custom_call.1} parent=11 // pred_region
          _
        $region20: #{tpu_custom_call.1} parent=11 // pred_fallthru
          _
        // Predicated region
        $region21: #{tpu_custom_call.1} parent=11 // pred_check
          %p420 = pneg %p121
        $region22: #{tpu_custom_call.1} parent=11 // pred_check_branch
          %422 = sbr.rel (%p420) target = $region24
        $region23: #{tpu_custom_call.1} parent=11 // pred_region
          _
        $region24: #{tpu_custom_call.1} parent=11 // pred_fallthru
          _
        // Predicated region
        $region25: #{tpu_custom_call.1} parent=11 // pred_check
          %p423 = pneg %p142
        $region26: #{tpu_custom_call.1} parent=11 // pred_check_branch
          %425 = sbr.rel (%p423) target = $region28
        $region27: #{tpu_custom_call.1} parent=11 // pred_region
          %s427 = ssub.s32 16, 16
          %428 = vsyncadd [#allocation6], %s427
          %s430 = sshll.u32 [#allocation5], 4
          %s431 = int_to_ptr.vmem [resolvable:$true] %s430
          %433 = dma.hbm_to_vmem [thread:$0]  %s4, 16, %s431, [#allocation6]
        $region28: #{tpu_custom_call.1} parent=11 // pred_fallthru
          _
        // Predicated region
        $region29: #{tpu_custom_call.1} parent=11 // pred_check
          %p434 = pneg %p163
        $region30: #{tpu_custom_call.1} parent=11 // pred_check_branch
          %436 = sbr.rel (%p434) target = $region32
        $region31: #{tpu_custom_call.1} parent=11 // pred_region
          %s438 = ssub.s32 16, 16
          %439 = vsyncadd [#allocation6], %s438
          %s441 = sshll.u32 [#allocation7], 4
          %s442 = int_to_ptr.vmem [resolvable:$true] %s441
          %444 = dma.hbm_to_vmem [thread:$0]  %s5, 16, %s442, [#allocation6]
        $region32: #{tpu_custom_call.1} parent=11 // pred_fallthru
          _
        // Predicated region
        $region33: #{tpu_custom_call.1} parent=11 // pred_check
          %p445 = pneg %p184
        $region34: #{tpu_custom_call.1} parent=11 // pred_check_branch
          %447 = sbr.rel (%p445) target = $region36
        $region35: #{tpu_custom_call.1} parent=11 // pred_region
          %s449 = ssub.s32 16, 16
          %450 = vsyncadd [#allocation9], %s449
          %s452 = sshll.u32 [#allocation8], 4
          %s453 = int_to_ptr.vmem [resolvable:$true] %s452
          %455 = dma.hbm_to_vmem [thread:$0]  %s6, 16, %s453, [#allocation9]
        $region36: #{tpu_custom_call.1} parent=11 // pred_fallthru
          _
        // Predicated region
        $region37: #{tpu_custom_call.1} parent=11 // pred_check
          %p456 = pneg %p205
        $region38: #{tpu_custom_call.1} parent=11 // pred_check_branch
          %458 = sbr.rel (%p456) target = $region40
        $region39: #{tpu_custom_call.1} parent=11 // pred_region
          %s460 = ssub.s32 9216, 9216
          %461 = vsyncadd [#allocation9], %s460
          %s462 = sshll.u32 [#allocation10], 4
          %s463 = int_to_ptr.vmem [resolvable:$true] %s462
          %468 = dma.hbm_to_vmem [thread:$0]  %s7, 9216, %s463, [#allocation9], 64, 64, 4
        $region40: #{tpu_custom_call.1} parent=11 // pred_fallthru
          _
        // Predicated region
        $region41: #{tpu_custom_call.1} parent=11 // pred_check
          %p469 = pneg %p226
        $region42: #{tpu_custom_call.1} parent=11 // pred_check_branch
          %471 = sbr.rel (%p469) target = $region44
        $region43: #{tpu_custom_call.1} parent=11 // pred_region
          %s473 = ssub.s32 16, 16
          %474 = vsyncadd [#allocation12], %s473
          %s476 = sshll.u32 [#allocation11], 4
          %s477 = int_to_ptr.vmem [resolvable:$true] %s476
          %479 = dma.hbm_to_vmem [thread:$0]  %s8, 16, %s477, [#allocation12]
        $region44: #{tpu_custom_call.1} parent=11 // pred_fallthru
          _
        // Predicated region
        $region45: #{tpu_custom_call.1} parent=11 // pred_check
          %p480 = pneg %p247
        $region46: #{tpu_custom_call.1} parent=11 // pred_check_branch
          %482 = sbr.rel (%p480) target = $region48
        $region47: #{tpu_custom_call.1} parent=11 // pred_region
          _
        $region48: #{tpu_custom_call.1} parent=11 // pred_fallthru
          _
        // Predicated region
        $region49: #{tpu_custom_call.1} parent=11 // pred_check
          %p483 = pneg %p268
        $region50: #{tpu_custom_call.1} parent=11 // pred_check_branch
          %485 = sbr.rel (%p483) target = $region52
        $region51: #{tpu_custom_call.1} parent=11 // pred_region
          %s487 = ssub.s32 512, 512
          %488 = vsyncadd [#allocation12], %s487
          %s489 = sshll.u32 [#allocation13], 4
          %s490 = int_to_ptr.vmem [resolvable:$true] %s489
          %495 = dma.hbm_to_vmem [thread:$0]  %s10, 512, %s490, [#allocation12], 128, 128, 8
        $region52: #{tpu_custom_call.1} parent=11 // pred_fallthru
          _
        // Predicated region
        $region53: #{tpu_custom_call.1} parent=11 // pred_check
          %p496 = pneg %p289
        $region54: #{tpu_custom_call.1} parent=11 // pred_check_branch
          %498 = sbr.rel (%p496) target = $region56
        $region55: #{tpu_custom_call.1} parent=11 // pred_region
          _
        $region56: #{tpu_custom_call.1} parent=11 // pred_fallthru
          _
        // Predicated region
        $region57: #{tpu_custom_call.1} parent=11 // pred_check
          %p499 = pneg %p310
        $region58: #{tpu_custom_call.1} parent=11 // pred_check_branch
          %501 = sbr.rel (%p499) target = $region60
        $region59: #{tpu_custom_call.1} parent=11 // pred_region
          %s503 = ssub.s32 512, 512
          %504 = vsyncadd [#allocation15], %s503
          %s505 = sshll.u32 [#allocation14], 4
          %s506 = int_to_ptr.vmem [resolvable:$true] %s505
          %511 = dma.hbm_to_vmem [thread:$0]  %s12, 512, %s506, [#allocation15], 128, 128, 8
        $region60: #{tpu_custom_call.1} parent=11 // pred_fallthru
          _
        // Predicated region
        $region61: #{tpu_custom_call.1} parent=11 // pred_check
          %p512 = pneg %p331
        $region62: #{tpu_custom_call.1} parent=11 // pred_check_branch
          %514 = sbr.rel (%p512) target = $region64
        $region63: #{tpu_custom_call.1} parent=11 // pred_region
          _
        $region64: #{tpu_custom_call.1} parent=11 // pred_fallthru
          _
        // Predicated region
        $region65: #{tpu_custom_call.1} parent=11 // pred_check
          %p515 = pneg %p352
        $region66: #{tpu_custom_call.1} parent=11 // pred_check_branch
          %517 = sbr.rel (%p515) target = $region68
        $region67: #{tpu_custom_call.1} parent=11 // pred_region
          %s519 = ssub.s32 512, 512
          %520 = vsyncadd [#allocation15], %s519
          %s521 = sshll.u32 [#allocation16], 4
          %s522 = int_to_ptr.vmem [resolvable:$true] %s521
          %527 = dma.hbm_to_vmem [thread:$0]  %s14, 512, %s522, [#allocation15], 64, 64, 4
        $region68: #{tpu_custom_call.1} parent=11 // pred_fallthru
          _
        // Predicated region
        $region69: #{tpu_custom_call.1} parent=11 // pred_check
          %p528 = pneg %p373
        $region70: #{tpu_custom_call.1} parent=11 // pred_check_branch
          %530 = sbr.rel (%p528) target = $region72
        $region71: #{tpu_custom_call.1} parent=11 // pred_region
          _
        $region72: #{tpu_custom_call.1} parent=11 // pred_fallthru
          _
      $region12: #{tpu_custom_call.1} parent=5 // pred_fallthru
        _
      %p531 = scmp.lt.s32.totalorder %s32, 2
      // Predicated region
      $region73: #{tpu_custom_call.1} parent=5 // pred_check
        %p532 = pneg %p531
      $region74: #{tpu_custom_call.1} parent=5 // pred_check_branch
        %534 = sbr.rel (%p532) target = $region76
      $region75: #{tpu_custom_call.1} parent=5 // pred_region
        // Predicated region
        $region77: #{tpu_custom_call.1} parent=75 // pred_check
          %p535 = pneg %p52
        $region78: #{tpu_custom_call.1} parent=75 // pred_check_branch
          %537 = sbr.rel (%p535) target = $region80
        $region79: #{tpu_custom_call.1} parent=75 // pred_region
          %s538 = sand.u32 %s42, 1
          %s539 = scalar_lea.sflag [#allocation3], %s538
          %s540 = sand.u32 %s42, 1
          %s541 = smul.addr %s540, 64
          %s542 = scalar_lea.vmem [#allocation2], %s541
          %s544 = ssub.s32 1024, 1024
          %545 = vsyncadd %s539, %s544
          %s546 = smul.addr %s32, 8
          %s547 = smul.addr %s546, 128
          %s548 = scalar_lea.hbm %s0, %s547
          %s549 = sshll.u32 %s542, 4
          %s550 = int_to_ptr.vmem [resolvable:$true] %s549
          %555 = dma.hbm_to_vmem [thread:$0]  %s548, 1024, %s550, %s539, 128, 128, 8
        $region80: #{tpu_custom_call.1} parent=75 // pred_fallthru
          _
      $region76: #{tpu_custom_call.1} parent=5 // pred_fallthru
        _
      %p556 = scmp.le.s32.totalorder 1, %s32
      %p557 = scmp.lt.s32.totalorder %s32, 3
      %p558 = pnand %p556, %p557
      %p559 = pneg %p558
      // Predicated region
      $region81: #{tpu_custom_call.1} parent=5 // pred_check
        _
      $region82: #{tpu_custom_call.1} parent=5 // pred_check_branch
        %561 = sbr.rel (%p558) target = $region84
      $region83: #{tpu_custom_call.1} parent=5 // pred_region
        %s562 = ssub.s32 %s32, 1
        %s563 = sand.u32 %s45, 1
        %s564 = scalar_lea.sflag [#allocation3], %s563
        %s565 = sand.u32 %s45, 1
        %s566 = smul.addr %s565, 64
        %s567 = scalar_lea.vmem [#allocation2], %s566
        // Predicated region
        $region85: #{tpu_custom_call.1} parent=83 // pred_check
          %p568 = pneg %p58
        $region86: #{tpu_custom_call.1} parent=83 // pred_check_branch
          %570 = sbr.rel (%p568) target = $region88
        $region87: #{tpu_custom_call.1} parent=83 // pred_region
          %571 = dma.done %s564, 1024
        $region88: #{tpu_custom_call.1} parent=83 // pred_fallthru
          _
        // Predicated region
        $region89: #{tpu_custom_call.1} parent=83 // pred_check
          %p572 = pneg %p142
        $region90: #{tpu_custom_call.1} parent=83 // pred_check_branch
          %574 = sbr.rel (%p572) target = $region92
        $region91: #{tpu_custom_call.1} parent=83 // pred_region
          %575 = dma.done [#allocation6], 16
        $region92: #{tpu_custom_call.1} parent=83 // pred_fallthru
          _
        // Predicated region
        $region93: #{tpu_custom_call.1} parent=83 // pred_check
          %p576 = pneg %p163
        $region94: #{tpu_custom_call.1} parent=83 // pred_check_branch
          %578 = sbr.rel (%p576) target = $region96
        $region95: #{tpu_custom_call.1} parent=83 // pred_region
          %579 = dma.done [#allocation6], 16
        $region96: #{tpu_custom_call.1} parent=83 // pred_fallthru
          _
        // Predicated region
        $region97: #{tpu_custom_call.1} parent=83 // pred_check
          %p580 = pneg %p184
        $region98: #{tpu_custom_call.1} parent=83 // pred_check_branch
          %582 = sbr.rel (%p580) target = $region100
        $region99: #{tpu_custom_call.1} parent=83 // pred_region
          %583 = dma.done [#allocation9], 16
        $region100: #{tpu_custom_call.1} parent=83 // pred_fallthru
          _
        // Predicated region
        $region101: #{tpu_custom_call.1} parent=83 // pred_check
          %p584 = pneg %p205
        $region102: #{tpu_custom_call.1} parent=83 // pred_check_branch
          %586 = sbr.rel (%p584) target = $region104
        $region103: #{tpu_custom_call.1} parent=83 // pred_region
          %587 = dma.done [#allocation9], 9216
        $region104: #{tpu_custom_call.1} parent=83 // pred_fallthru
          _
        // Predicated region
        $region105: #{tpu_custom_call.1} parent=83 // pred_check
          %p588 = pneg %p226
        $region106: #{tpu_custom_call.1} parent=83 // pred_check_branch
          %590 = sbr.rel (%p588) target = $region108
        $region107: #{tpu_custom_call.1} parent=83 // pred_region
          %591 = dma.done [#allocation12], 16
        $region108: #{tpu_custom_call.1} parent=83 // pred_fallthru
          _
        // Predicated region
        $region109: #{tpu_custom_call.1} parent=83 // pred_check
          %p592 = pneg %p268
        $region110: #{tpu_custom_call.1} parent=83 // pred_check_branch
          %594 = sbr.rel (%p592) target = $region112
        $region111: #{tpu_custom_call.1} parent=83 // pred_region
          %595 = dma.done [#allocation12], 512
        $region112: #{tpu_custom_call.1} parent=83 // pred_fallthru
          _
        // Predicated region
        $region113: #{tpu_custom_call.1} parent=83 // pred_check
          %p596 = pneg %p310
        $region114: #{tpu_custom_call.1} parent=83 // pred_check_branch
          %598 = sbr.rel (%p596) target = $region116
        $region115: #{tpu_custom_call.1} parent=83 // pred_region
          %599 = dma.done [#allocation15], 512
        $region116: #{tpu_custom_call.1} parent=83 // pred_fallthru
          _
        // Predicated region
        $region117: #{tpu_custom_call.1} parent=83 // pred_check
          %p600 = pneg %p352
        $region118: #{tpu_custom_call.1} parent=83 // pred_check_branch
          %602 = sbr.rel (%p600) target = $region120
        $region119: #{tpu_custom_call.1} parent=83 // pred_region
          %603 = dma.done [#allocation15], 512
        $region120: #{tpu_custom_call.1} parent=83 // pred_fallthru
          _
        %s604 = sand.u32 %s45, 1
        %s605 = scalar_lea.sflag [#allocation3], %s604
        %s606 = sand.u32 %s45, 1
        %s607 = smul.addr %s606, 64
        %s608 = scalar_lea.vmem [#allocation2], %s607
        %p609 = pneg %p58
        %p610 = pneg %p55
        %p611 = pneg %p79
        %p612 = pneg %p76
        %p613 = pneg %p100
        %p614 = pneg %p97
        %p615 = pneg %p121
        %p616 = pneg %p118
        %p617 = pneg %p142
        %p618 = pneg %p139
        %p619 = pneg %p163
        %p620 = pneg %p160
        %p621 = pneg %p184
        %p622 = pneg %p181
        %p623 = pneg %p205
        %p624 = pneg %p202
        %p625 = pneg %p226
        %p626 = pneg %p223
        %p627 = pneg %p247
        %p628 = pneg %p244
        %p629 = pneg %p268
        %p630 = pneg %p265
        %p631 = pneg %p289
        %p632 = pneg %p286
        %p633 = pneg %p310
        %p634 = pneg %p307
        %p635 = pneg %p331
        %p636 = pneg %p328
        %p637 = pneg %p352
        %p638 = pneg %p349
        %p639 = pneg %p373
        %p640 = pneg %p370
        %p641 = pneg %p399
        %p642 = pneg %p396
        %s643 = sand.u32 %s386, 1
        %s644 = scalar_lea.sflag [#allocation4], %s643
        %s645 = sand.u32 %s386, 1
        %s646 = smul.addr %s645, 64
        %s647 = scalar_lea.vmem [#allocation17], %s646
        %v649 = vld [vmem:[%s13] sm:$0xff]
        %v650 = vld [vmem:[%s13 + $0x8] sm:$0xff]
        %v651 = vld [vmem:[%s13 + $0x10] sm:$0xff]
        %v652 = vld [vmem:[%s13 + $0x18] sm:$0xff]
        %v653 = vld [vmem:[%s13 + $0x20] sm:$0xff]
        %v654 = vld [vmem:[%s13 + $0x28] sm:$0xff]
        %v655 = vld [vmem:[%s13 + $0x30] sm:$0xff]
        %v656 = vld [vmem:[%s13 + $0x38] sm:$0xff]
        %v657 = vld [vmem:[%s567] sm:$0xff]
        %v658 = vld [vmem:[%s567 + $0x8] sm:$0xff]
        %v659 = vld [vmem:[%s567 + $0x10] sm:$0xff]
        %v660 = vld [vmem:[%s567 + $0x18] sm:$0xff]
        %v661 = vld [vmem:[%s567 + $0x20] sm:$0xff]
        %v662 = vld [vmem:[%s567 + $0x28] sm:$0xff]
        %v663 = vld [vmem:[%s567 + $0x30] sm:$0xff]
        %v664 = vld [vmem:[%s567 + $0x38] sm:$0xff]
        %vm665 = vcmask 523264
        %v666 = vsel %vm665, %v657, 0.0
        %v667 = vsel %vm665, %v658, 0.0
        %v668 = vadd.f32 %v666, %v667
        %v669 = vsel %vm665, %v659, 0.0
        %v670 = vadd.f32 %v668, %v669
        %v671 = vsel %vm665, %v660, 0.0
        %v672 = vadd.f32 %v670, %v671
        %v673 = vsel %vm665, %v661, 0.0
        %v674 = vadd.f32 %v672, %v673
        %v675 = vsel %vm665, %v662, 0.0
        %v676 = vadd.f32 %v674, %v675
        %v677 = vsel %vm665, %v663, 0.0
        %v678 = vadd.f32 %v676, %v677
        %v679 = vsel %vm665, %v664, 0.0
        %v680 = vadd.f32 %v678, %v679
        %v681 = vrot.slane %v680, 4
        %v682 = vadd.f32 %v680, %v681
        %v683 = vrot.slane %v682, 2
        %v684 = vadd.f32 %v682, %v683
        %v685 = vrot.slane %v684, 1
        %v686 = vadd.f32 %v684, %v685
        %v687 = vmul.f32 %v657, %v657
        %v688 = vmul.f32 %v658, %v658
        %v689 = vmul.f32 %v659, %v659
        %v690 = vmul.f32 %v660, %v660
        %v691 = vmul.f32 %v661, %v661
        %v692 = vmul.f32 %v662, %v662
        %v693 = vmul.f32 %v663, %v663
        %v694 = vmul.f32 %v664, %v664
        %v695 = vsel %vm665, %v687, 0.0
        %v696 = vsel %vm665, %v688, 0.0
        %v697 = vadd.f32 %v695, %v696
        %v698 = vsel %vm665, %v689, 0.0
        %v699 = vadd.f32 %v697, %v698
        %v700 = vsel %vm665, %v690, 0.0
        %v701 = vadd.f32 %v699, %v700
        %v702 = vsel %vm665, %v691, 0.0
        %v703 = vadd.f32 %v701, %v702
        %v704 = vsel %vm665, %v692, 0.0
        %v705 = vadd.f32 %v703, %v704
        %v706 = vsel %vm665, %v693, 0.0
        %v707 = vadd.f32 %v705, %v706
        %v708 = vsel %vm665, %v694, 0.0
        %v709 = vadd.f32 %v707, %v708
        %v710 = vrot.slane %v709, 4
        %v711 = vadd.f32 %v709, %v710
        %v712 = vrot.slane %v711, 2
        %v713 = vadd.f32 %v711, %v712
        %v714 = vrot.slane %v713, 1
        %v715 = vadd.f32 %v713, %v714
        %v716 = vld [vmem:[%s9] sm:$0xff]
        %v717 = vld [vmem:[%s9 + $0x8] sm:$0xff]
        %v718 = vld [vmem:[%s9 + $0x10] sm:$0xff]
        %v719 = vld [vmem:[%s9 + $0x18] sm:$0xff]
        %v720 = vld [vmem:[%s9 + $0x20] sm:$0xff]
        %v721 = vld [vmem:[%s9 + $0x28] sm:$0xff]
        %v722 = vld [vmem:[%s9 + $0x30] sm:$0xff]
        %v723 = vld [vmem:[%s9 + $0x38] sm:$0xff]
        %v725 = vsel %vm665, %v686, 0
        %727 = vmatprep.subr.mxu0 0.0
        %728 = vmatpush1.msra.mxu0 %v716
        %729 = vmatprep.subr.mxu0 0.0
        %730 = vmatpush1.msra.mxu0 %v717
        %731 = vmatprep.subr.mxu0 0.0
        %732 = vmatpush1.msra.mxu0 %v718
        %733 = vmatprep.subr.mxu0 0.0
        %734 = vmatpush1.msra.mxu0 %v719
        %735 = vmatprep.subr.mxu0 0.0
        %736 = vmatpush1.msra.mxu0 %v720
        %737 = vmatprep.subr.mxu0 0.0
        %738 = vmatpush1.msra.mxu0 %v721
        %739 = vmatprep.subr.mxu0 0.0
        %740 = vmatpush1.msra.mxu0 %v722
        %741 = vmatprep.subr.mxu0 0.0
        %742 = vmatpush1.msra.mxu0 %v723
        %743 = vmatprep.subr.mxu0 0.0
        %744 = vmatpush1.msra.mxu0 0.0
        %745 = vmatprep.subr.mxu0 0.0
        %746 = vmatpush1.msra.mxu0 0.0
        %747 = vmatprep.subr.mxu0 0.0
        %748 = vmatpush1.msra.mxu0 0.0
        %749 = vmatprep.subr.mxu0 0.0
        %750 = vmatpush1.msra.mxu0 0.0
        %751 = vmatprep.subr.mxu0 0.0
        %752 = vmatpush1.msra.mxu0 0.0
        %753 = vmatprep.subr.mxu0 0.0
        %754 = vmatpush1.msra.mxu0 0.0
        %755 = vmatprep.subr.mxu0 0.0
        %756 = vmatpush1.msra.mxu0 0.0
        %757 = vmatprep.subr.mxu0 0.0
        %758 = vmatpush1.msra.mxu0 0.0
        %759 = vmatprep.subr.mxu0 0.0
        %760 = vmatpush1.msra.mxu0 0.0
        %761 = vmatprep.subr.mxu0 0.0
        %762 = vmatpush1.msra.mxu0 0.0
        %763 = vmatprep.subr.mxu0 0.0
        %764 = vmatpush1.msra.mxu0 0.0
        %765 = vmatprep.subr.mxu0 0.0
        %766 = vmatpush1.msra.mxu0 0.0
        %767 = vmatprep.subr.mxu0 0.0
        %768 = vmatpush1.msra.mxu0 0.0
        %769 = vmatprep.subr.mxu0 0.0
        %770 = vmatpush1.msra.mxu0 0.0
        %771 = vmatprep.subr.mxu0 0.0
        %772 = vmatpush1.msra.mxu0 0.0
        %773 = vmatprep.subr.mxu0 0.0
        %774 = vmatpush1.msra.mxu0 0.0
        %775 = vmatprep.subr.mxu0 0.0
        %776 = vmatpush1.msra.mxu0 0.0
        %777 = vmatprep.subr.mxu0 0.0
        %778 = vmatpush1.msra.mxu0 0.0
        %779 = vmatprep.subr.mxu0 0.0
        %780 = vmatpush1.msra.mxu0 0.0
        %781 = vmatprep.subr.mxu0 0.0
        %782 = vmatpush1.msra.mxu0 0.0
        %783 = vmatprep.subr.mxu0 0.0
        %784 = vmatpush1.msra.mxu0 0.0
        %785 = vmatprep.subr.mxu0 0.0
        %786 = vmatpush1.msra.mxu0 0.0
        %787 = vmatprep.subr.mxu0 0.0
        %788 = vmatpush1.msra.mxu0 0.0
        %789 = vmatprep.subr.mxu0 0.0
        %790 = vmatpush1.msra.mxu0 0.0
        %791 = vmatprep.mubr.f32.mxu0 0.0
        %792 = vmatmul.mubr.f32.gmra.mrb[0].mxu0 %v725
        %v793 = vpop.f32.mrb[0].mxu0
        %v794 = vadd.f32 0.0, %v793
        %v795 = vpop.f32.mrb[0].mxu0
        %796 = vdwg.mxu0
        %v798 = vsel %vm665, %v715, 0
        %800 = vmatprep.subr.mxu0 0.0
        %801 = vmatpush1.msra.mxu0 %v716
        %802 = vmatprep.subr.mxu0 0.0
        %803 = vmatpush1.msra.mxu0 %v717
        %804 = vmatprep.subr.mxu0 0.0
        %805 = vmatpush1.msra.mxu0 %v718
        %806 = vmatprep.subr.mxu0 0.0
        %807 = vmatpush1.msra.mxu0 %v719
        %808 = vmatprep.subr.mxu0 0.0
        %809 = vmatpush1.msra.mxu0 %v720
        %810 = vmatprep.subr.mxu0 0.0
        %811 = vmatpush1.msra.mxu0 %v721
        %812 = vmatprep.subr.mxu0 0.0
        %813 = vmatpush1.msra.mxu0 %v722
        %814 = vmatprep.subr.mxu0 0.0
        %815 = vmatpush1.msra.mxu0 %v723
        %816 = vmatprep.subr.mxu0 0.0
        %817 = vmatpush1.msra.mxu0 0.0
        %818 = vmatprep.subr.mxu0 0.0
        %819 = vmatpush1.msra.mxu0 0.0
        %820 = vmatprep.subr.mxu0 0.0
        %821 = vmatpush1.msra.mxu0 0.0
        %822 = vmatprep.subr.mxu0 0.0
        %823 = vmatpush1.msra.mxu0 0.0
        %824 = vmatprep.subr.mxu0 0.0
        %825 = vmatpush1.msra.mxu0 0.0
        %826 = vmatprep.subr.mxu0 0.0
        %827 = vmatpush1.msra.mxu0 0.0
        %828 = vmatprep.subr.mxu0 0.0
        %829 = vmatpush1.msra.mxu0 0.0
        %830 = vmatprep.subr.mxu0 0.0
        %831 = vmatpush1.msra.mxu0 0.0
        %832 = vmatprep.subr.mxu0 0.0
        %833 = vmatpush1.msra.mxu0 0.0
        %834 = vmatprep.subr.mxu0 0.0
        %835 = vmatpush1.msra.mxu0 0.0
        %836 = vmatprep.subr.mxu0 0.0
        %837 = vmatpush1.msra.mxu0 0.0
        %838 = vmatprep.subr.mxu0 0.0
        %839 = vmatpush1.msra.mxu0 0.0
        %840 = vmatprep.subr.mxu0 0.0
        %841 = vmatpush1.msra.mxu0 0.0
        %842 = vmatprep.subr.mxu0 0.0
        %843 = vmatpush1.msra.mxu0 0.0
        %844 = vmatprep.subr.mxu0 0.0
        %845 = vmatpush1.msra.mxu0 0.0
        %846 = vmatprep.subr.mxu0 0.0
        %847 = vmatpush1.msra.mxu0 0.0
        %848 = vmatprep.subr.mxu0 0.0
        %849 = vmatpush1.msra.mxu0 0.0
        %850 = vmatprep.subr.mxu0 0.0
        %851 = vmatpush1.msra.mxu0 0.0
        %852 = vmatprep.subr.mxu0 0.0
        %853 = vmatpush1.msra.mxu0 0.0
        %854 = vmatprep.subr.mxu0 0.0
        %855 = vmatpush1.msra.mxu0 0.0
        %856 = vmatprep.subr.mxu0 0.0
        %857 = vmatpush1.msra.mxu0 0.0
        %858 = vmatprep.subr.mxu0 0.0
        %859 = vmatpush1.msra.mxu0 0.0
        %860 = vmatprep.subr.mxu0 0.0
        %861 = vmatpush1.msra.mxu0 0.0
        %862 = vmatprep.subr.mxu0 0.0
        %863 = vmatpush1.msra.mxu0 0.0
        %864 = vmatprep.mubr.f32.mxu0 0.0
        %865 = vmatmul.mubr.f32.gmra.mrb[0].mxu0 %v798
        %v866 = vpop.f32.mrb[0].mxu0
        %v867 = vadd.f32 0.0, %v866
        %v868 = vpop.f32.mrb[0].mxu0
        %869 = vdwg.mxu0
        %v870 = vmul.f32 %v794, %v794
        %v871 = vsub.f32 %v867, %v870
        %v872 = vmax.f32 %v871, 0.0
        %v873 = vadd.f32 %v872, 1e-05
        %v874 = vrsqrt.pop %v873
        %v875 = vld [vmem:[#allocation13] sm:$0xff]
        %v876 = vld [vmem:[#allocation13 + $0x8] sm:$0xff]
        %v877 = vld [vmem:[#allocation13 + $0x10] sm:$0xff]
        %v878 = vld [vmem:[#allocation13 + $0x18] sm:$0xff]
        %vm879 = vcmask 261120
        %v881 = vsel %vm879, %v794, 0
        %883 = vmatprep.subr.mxu0 0.0
        %884 = vmatpush1.msra.mxu0 %v875
        %885 = vmatprep.subr.mxu0 0.0
        %886 = vmatpush1.msra.mxu0 %v876
        %887 = vmatprep.subr.mxu0 0.0
        %888 = vmatpush1.msra.mxu0 %v877
        %889 = vmatprep.subr.mxu0 0.0
        %890 = vmatpush1.msra.mxu0 %v878
        %891 = vmatprep.subr.mxu0 0.0
        %892 = vmatpush1.msra.mxu0 0.0
        %893 = vmatprep.subr.mxu0 0.0
        %894 = vmatpush1.msra.mxu0 0.0
        %895 = vmatprep.subr.mxu0 0.0
        %896 = vmatpush1.msra.mxu0 0.0
        %897 = vmatprep.subr.mxu0 0.0
        %898 = vmatpush1.msra.mxu0 0.0
        %899 = vmatprep.subr.mxu0 0.0
        %900 = vmatpush1.msra.mxu0 0.0
        %901 = vmatprep.subr.mxu0 0.0
        %902 = vmatpush1.msra.mxu0 0.0
        %903 = vmatprep.subr.mxu0 0.0
        %904 = vmatpush1.msra.mxu0 0.0
        %905 = vmatprep.subr.mxu0 0.0
        %906 = vmatpush1.msra.mxu0 0.0
        %907 = vmatprep.subr.mxu0 0.0
        %908 = vmatpush1.msra.mxu0 0.0
        %909 = vmatprep.subr.mxu0 0.0
        %910 = vmatpush1.msra.mxu0 0.0
        %911 = vmatprep.subr.mxu0 0.0
        %912 = vmatpush1.msra.mxu0 0.0
        %913 = vmatprep.subr.mxu0 0.0
        %914 = vmatpush1.msra.mxu0 0.0
        %915 = vmatprep.subr.mxu0 0.0
        %916 = vmatpush1.msra.mxu0 0.0
        %917 = vmatprep.subr.mxu0 0.0
        %918 = vmatpush1.msra.mxu0 0.0
        %919 = vmatprep.subr.mxu0 0.0
        %920 = vmatpush1.msra.mxu0 0.0
        %921 = vmatprep.subr.mxu0 0.0
        %922 = vmatpush1.msra.mxu0 0.0
        %923 = vmatprep.subr.mxu0 0.0
        %924 = vmatpush1.msra.mxu0 0.0
        %925 = vmatprep.subr.mxu0 0.0
        %926 = vmatpush1.msra.mxu0 0.0
        %927 = vmatprep.subr.mxu0 0.0
        %928 = vmatpush1.msra.mxu0 0.0
        %929 = vmatprep.subr.mxu0 0.0
        %930 = vmatpush1.msra.mxu0 0.0
        %931 = vmatprep.subr.mxu0 0.0
        %932 = vmatpush1.msra.mxu0 0.0
        %933 = vmatprep.subr.mxu0 0.0
        %934 = vmatpush1.msra.mxu0 0.0
        %935 = vmatprep.subr.mxu0 0.0
        %936 = vmatpush1.msra.mxu0 0.0
        %937 = vmatprep.subr.mxu0 0.0
        %938 = vmatpush1.msra.mxu0 0.0
        %939 = vmatprep.subr.mxu0 0.0
        %940 = vmatpush1.msra.mxu0 0.0
        %941 = vmatprep.subr.mxu0 0.0
        %942 = vmatpush1.msra.mxu0 0.0
        %943 = vmatprep.subr.mxu0 0.0
        %944 = vmatpush1.msra.mxu0 0.0
        %945 = vmatprep.subr.mxu0 0.0
        %946 = vmatpush1.msra.mxu0 0.0
        %947 = vmatprep.mubr.f32.mxu0 0.0
        %948 = vmatmul.mubr.f32.gmra.mrb[0].mxu0 %v881
        %v949 = vpop.f32.mrb[0].mxu0
        %v950 = vadd.f32 0.0, %v949
        %v951 = vpop.f32.mrb[0].mxu0
        %952 = vdwg.mxu0
        %v954 = vsel %vm879, %v874, 0
        %956 = vmatprep.subr.mxu0 0.0
        %957 = vmatpush1.msra.mxu0 %v875
        %958 = vmatprep.subr.mxu0 0.0
        %959 = vmatpush1.msra.mxu0 %v876
        %960 = vmatprep.subr.mxu0 0.0
        %961 = vmatpush1.msra.mxu0 %v877
        %962 = vmatprep.subr.mxu0 0.0
        %963 = vmatpush1.msra.mxu0 %v878
        %964 = vmatprep.subr.mxu0 0.0
        %965 = vmatpush1.msra.mxu0 0.0
        %966 = vmatprep.subr.mxu0 0.0
        %967 = vmatpush1.msra.mxu0 0.0
        %968 = vmatprep.subr.mxu0 0.0
        %969 = vmatpush1.msra.mxu0 0.0
        %970 = vmatprep.subr.mxu0 0.0
        %971 = vmatpush1.msra.mxu0 0.0
        %972 = vmatprep.subr.mxu0 0.0
        %973 = vmatpush1.msra.mxu0 0.0
        %974 = vmatprep.subr.mxu0 0.0
        %975 = vmatpush1.msra.mxu0 0.0
        %976 = vmatprep.subr.mxu0 0.0
        %977 = vmatpush1.msra.mxu0 0.0
        %978 = vmatprep.subr.mxu0 0.0
        %979 = vmatpush1.msra.mxu0 0.0
        %980 = vmatprep.subr.mxu0 0.0
        %981 = vmatpush1.msra.mxu0 0.0
        %982 = vmatprep.subr.mxu0 0.0
        %983 = vmatpush1.msra.mxu0 0.0
        %984 = vmatprep.subr.mxu0 0.0
        %985 = vmatpush1.msra.mxu0 0.0
        %986 = vmatprep.subr.mxu0 0.0
        %987 = vmatpush1.msra.mxu0 0.0
        %988 = vmatprep.subr.mxu0 0.0
        %989 = vmatpush1.msra.mxu0 0.0
        %990 = vmatprep.subr.mxu0 0.0
        %991 = vmatpush1.msra.mxu0 0.0
        %992 = vmatprep.subr.mxu0 0.0
        %993 = vmatpush1.msra.mxu0 0.0
        %994 = vmatprep.subr.mxu0 0.0
        %995 = vmatpush1.msra.mxu0 0.0
        %996 = vmatprep.subr.mxu0 0.0
        %997 = vmatpush1.msra.mxu0 0.0
        %998 = vmatprep.subr.mxu0 0.0
        %999 = vmatpush1.msra.mxu0 0.0
        %1000 = vmatprep.subr.mxu0 0.0
        %1001 = vmatpush1.msra.mxu0 0.0
        %1002 = vmatprep.subr.mxu0 0.0
        %1003 = vmatpush1.msra.mxu0 0.0
        %1004 = vmatprep.subr.mxu0 0.0
        %1005 = vmatpush1.msra.mxu0 0.0
        %1006 = vmatprep.subr.mxu0 0.0
        %1007 = vmatpush1.msra.mxu0 0.0
        %1008 = vmatprep.subr.mxu0 0.0
        %1009 = vmatpush1.msra.mxu0 0.0
        %1010 = vmatprep.subr.mxu0 0.0
        %1011 = vmatpush1.msra.mxu0 0.0
        %1012 = vmatprep.subr.mxu0 0.0
        %1013 = vmatpush1.msra.mxu0 0.0
        %1014 = vmatprep.subr.mxu0 0.0
        %1015 = vmatpush1.msra.mxu0 0.0
        %1016 = vmatprep.subr.mxu0 0.0
        %1017 = vmatpush1.msra.mxu0 0.0
        %1018 = vmatprep.subr.mxu0 0.0
        %1019 = vmatpush1.msra.mxu0 0.0
        %1020 = vmatprep.mubr.f32.mxu0 0.0
        %1021 = vmatmul.mubr.f32.gmra.mrb[0].mxu0 %v954
        %v1022 = vpop.f32.mrb[0].mxu0
        %v1023 = vadd.f32 0.0, %v1022
        %v1024 = vpop.f32.mrb[0].mxu0
        %1025 = vdwg.mxu0
        %v1026 = vld [vmem:[%s1] sm:$0x1]
        %v1027 = vld [vmem:[%s2] sm:$0x1]
        %v1028 = vlaneseq
        %v1029 = vshrl.u32 %v1028, 7
        %v1030 = vsub.s32 0, %v1029
        %v1031 = vrot.slane %v950, %v1030
        %v1032 = vsub.f32 %v657, %v1031
        %v1033 = vsub.f32 %v658, %v1031
        %v1034 = vsub.f32 %v659, %v1031
        %v1035 = vsub.f32 %v660, %v1031
        %v1036 = vsub.f32 %v661, %v1031
        %v1037 = vsub.f32 %v662, %v1031
        %v1038 = vsub.f32 %v663, %v1031
        %v1039 = vsub.f32 %v664, %v1031
        %v1040 = vlaneseq
        %v1041 = vshrl.u32 %v1040, 7
        %v1042 = vsub.s32 0, %v1041
        %v1043 = vrot.slane %v1023, %v1042
        %v1044 = vmul.f32 %v1032, %v1043
        %v1045 = vmul.f32 %v1033, %v1043
        %v1046 = vmul.f32 %v1034, %v1043
        %v1047 = vmul.f32 %v1035, %v1043
        %v1048 = vmul.f32 %v1036, %v1043
        %v1049 = vmul.f32 %v1037, %v1043
        %v1050 = vmul.f32 %v1038, %v1043
        %v1051 = vmul.f32 %v1039, %v1043
        %v1053 = vlaneseq
        %v1054 = vshrl.u32 %v1053, 7
        %v1055 = vsub.s32 0, %v1054
        %v1056 = vrot.slane %v1026, %v1055
        %v1058 = vmul.f32 %v1044, %v1056
        %v1059 = vmul.f32 %v1045, %v1056
        %v1060 = vmul.f32 %v1046, %v1056
        %v1061 = vmul.f32 %v1047, %v1056
        %v1062 = vmul.f32 %v1048, %v1056
        %v1063 = vmul.f32 %v1049, %v1056
        %v1064 = vmul.f32 %v1050, %v1056
        %v1065 = vmul.f32 %v1051, %v1056
        %v1067 = vlaneseq
        %v1068 = vshrl.u32 %v1067, 7
        %v1069 = vsub.s32 0, %v1068
        %v1070 = vrot.slane %v1027, %v1069
        %v1072 = vadd.f32 %v1058, %v1070
        %v1073 = vadd.f32 %v1059, %v1070
        %v1074 = vadd.f32 %v1060, %v1070
        %v1075 = vadd.f32 %v1061, %v1070
        %v1076 = vadd.f32 %v1062, %v1070
        %v1077 = vadd.f32 %v1063, %v1070
        %v1078 = vadd.f32 %v1064, %v1070
        %v1079 = vadd.f32 %v1065, %v1070
        %v1080 = vxor.u32 %v1072, 2147483648
        %v1081 = vxor.u32 %v1073, 2147483648
        %v1082 = vxor.u32 %v1074, 2147483648
        %v1083 = vxor.u32 %v1075, 2147483648
        %v1084 = vxor.u32 %v1076, 2147483648
        %v1085 = vxor.u32 %v1077, 2147483648
        %v1086 = vxor.u32 %v1078, 2147483648
        %v1087 = vxor.u32 %v1079, 2147483648
        %v1088 = vmul.f32 %v1080, 1.442695
        %v1089 = vpow.pop %v1088
        %v1090 = vmul.f32 %v1081, 1.442695
        %v1091 = vpow.pop %v1090
        %v1092 = vmul.f32 %v1082, 1.442695
        %v1093 = vpow.pop %v1092
        %v1094 = vmul.f32 %v1083, 1.442695
        %v1095 = vpow.pop %v1094
        %v1096 = vmul.f32 %v1084, 1.442695
        %v1097 = vpow.pop %v1096
        %v1098 = vmul.f32 %v1085, 1.442695
        %v1099 = vpow.pop %v1098
        %v1100 = vmul.f32 %v1086, 1.442695
        %v1101 = vpow.pop %v1100
        %v1102 = vmul.f32 %v1087, 1.442695
        %v1103 = vpow.pop %v1102
        %v1104 = vadd.f32 %v1089, 1.0
        %v1105 = vadd.f32 %v1091, 1.0
        %v1106 = vadd.f32 %v1093, 1.0
        %v1107 = vadd.f32 %v1095, 1.0
        %v1108 = vadd.f32 %v1097, 1.0
        %v1109 = vadd.f32 %v1099, 1.0
        %v1110 = vadd.f32 %v1101, 1.0
        %v1111 = vadd.f32 %v1103, 1.0
        %v1112 = vrcp.pop %v1104
        %v1113 = vmul.f32 1.0, %v1112
        %v1114 = vrcp.pop %v1105
        %v1115 = vmul.f32 1.0, %v1114
        %v1116 = vrcp.pop %v1106
        %v1117 = vmul.f32 1.0, %v1116
        %v1118 = vrcp.pop %v1107
        %v1119 = vmul.f32 1.0, %v1118
        %v1120 = vrcp.pop %v1108
        %v1121 = vmul.f32 1.0, %v1120
        %v1122 = vrcp.pop %v1109
        %v1123 = vmul.f32 1.0, %v1122
        %v1124 = vrcp.pop %v1110
        %v1125 = vmul.f32 1.0, %v1124
        %v1126 = vrcp.pop %v1111
        %v1127 = vmul.f32 1.0, %v1126
        %v1128 = vmul.f32 %v1072, %v1113
        %v1129 = vmul.f32 %v1073, %v1115
        %v1130 = vmul.f32 %v1074, %v1117
        %v1131 = vmul.f32 %v1075, %v1119
        %v1132 = vmul.f32 %v1076, %v1121
        %v1133 = vmul.f32 %v1077, %v1123
        %v1134 = vmul.f32 %v1078, %v1125
        %v1135 = vmul.f32 %v1079, %v1127
        %v1136 = vrot.slane %v1128, 7
        %v1137 = vrot.slane %v1129, 7
        %v1138 = vrot.slane %v1130, 7
        %v1139 = vrot.slane %v1131, 7
        %v1140 = vrot.slane %v1132, 7
        %v1141 = vrot.slane %v1133, 7
        %v1142 = vrot.slane %v1134, 7
        %v1143 = vrot.slane %v1135, 7
        %v1144 = vlaneseq
        %v1145 = vshrl.u32 %v1144, 7
        %vm1146 = vcmp.lt.s32.totalorder %v1145, 1
        %v1147 = vsel %vm1146, %v1142, %v1143
        %v1148 = vsel %vm1146, %v1141, %v1142
        %v1149 = vsel %vm1146, %v1140, %v1141
        %v1150 = vsel %vm1146, %v1139, %v1140
        %v1151 = vsel %vm1146, %v1138, %v1139
        %v1152 = vsel %vm1146, %v1137, %v1138
        %v1153 = vsel %vm1146, %v1136, %v1137
        %v1154 = vsel %vm1146, %v1143, %v1136
        %1156 = vset.pattern.permute.xlu0 0
        %1157 = vperm.xlu0 %1156, %v649
        %v1158 = vpop.permute.xlu0 %1157
        %1161 = vset.pattern.permute.xlu0 0
        %1162 = vperm.xlu0 %1161, %v650
        %v1163 = vpop.permute.xlu0 %1162
        %1166 = vset.pattern.permute.xlu0 0
        %1167 = vperm.xlu0 %1166, %v651
        %v1168 = vpop.permute.xlu0 %1167
        %1171 = vset.pattern.permute.xlu0 0
        %1172 = vperm.xlu0 %1171, %v652
        %v1173 = vpop.permute.xlu0 %1172
        %1176 = vset.pattern.permute.xlu0 0
        %1177 = vperm.xlu0 %1176, %v653
        %v1178 = vpop.permute.xlu0 %1177
        %1181 = vset.pattern.permute.xlu0 0
        %1182 = vperm.xlu0 %1181, %v654
        %v1183 = vpop.permute.xlu0 %1182
        %1186 = vset.pattern.permute.xlu0 0
        %1187 = vperm.xlu0 %1186, %v655
        %v1188 = vpop.permute.xlu0 %1187
        %1191 = vset.pattern.permute.xlu0 0
        %1192 = vperm.xlu0 %1191, %v656
        %v1193 = vpop.permute.xlu0 %1192
        %v1195 = vmul.f32 %v1147, %v1158
        %v1196 = vmul.f32 %v1154, %v1163
        %v1197 = vmul.f32 %v1153, %v1168
        %v1198 = vmul.f32 %v1152, %v1173
        %v1199 = vmul.f32 %v1151, %v1178
        %v1200 = vmul.f32 %v1150, %v1183
        %v1201 = vmul.f32 %v1149, %v1188
        %v1202 = vmul.f32 %v1148, %v1193
        %v1203 = vpack.c.bf16 %v1196, %v1195
        %v1204 = vpack.c.bf16 %v1198, %v1197
        %v1205 = vpack.c.bf16 %v1200, %v1199
        %v1206 = vpack.c.bf16 %v1202, %v1201
        %v1207 = vld [vmem:[%s3] sm:$0xf]
        %v1208 = vld [vmem:[%s3 + $0x4] sm:$0xf]
        %v1209 = vld [vmem:[%s3 + $0x8] sm:$0xf]
        %v1210 = vld [vmem:[%s3 + $0xc] sm:$0xf]
        %v1211 = vld [vmem:[%s3 + $0x10] sm:$0xf]
        %v1212 = vld [vmem:[%s3 + $0x14] sm:$0xf]
        %v1213 = vld [vmem:[%s3 + $0x18] sm:$0xf]
        %v1214 = vld [vmem:[%s3 + $0x1c] sm:$0xf]
        %1215 = vset.pattern.permute.xlu0 1
        %1216 = vperm.xlu0 %1215, %v649
        %v1217 = vpop.permute.xlu0 %1216
        %1219 = vset.pattern.permute.xlu0 1
        %1220 = vperm.xlu0 %1219, %v650
        %v1221 = vpop.permute.xlu0 %1220
        %1223 = vset.pattern.permute.xlu0 1
        %1224 = vperm.xlu0 %1223, %v651
        %v1225 = vpop.permute.xlu0 %1224
        %1227 = vset.pattern.permute.xlu0 1
        %1228 = vperm.xlu0 %1227, %v652
        %v1229 = vpop.permute.xlu0 %1228
        %1231 = vset.pattern.permute.xlu0 1
        %1232 = vperm.xlu0 %1231, %v653
        %v1233 = vpop.permute.xlu0 %1232
        %1235 = vset.pattern.permute.xlu0 1
        %1236 = vperm.xlu0 %1235, %v654
        %v1237 = vpop.permute.xlu0 %1236
        %1239 = vset.pattern.permute.xlu0 1
        %1240 = vperm.xlu0 %1239, %v655
        %v1241 = vpop.permute.xlu0 %1240
        %1243 = vset.pattern.permute.xlu0 1
        %1244 = vperm.xlu0 %1243, %v656
        %v1245 = vpop.permute.xlu0 %1244
        %v1247 = vmul.f32 %v1135, %v1217
        %v1248 = vmul.f32 %v1128, %v1221
        %v1249 = vmul.f32 %v1129, %v1225
        %v1250 = vmul.f32 %v1130, %v1229
        %v1251 = vmul.f32 %v1131, %v1233
        %v1252 = vmul.f32 %v1132, %v1237
        %v1253 = vmul.f32 %v1133, %v1241
        %v1254 = vmul.f32 %v1134, %v1245
        %v1255 = vpack.c.bf16 %v1248, %v1247
        %v1256 = vpack.c.bf16 %v1250, %v1249
        %v1257 = vpack.c.bf16 %v1252, %v1251
        %v1258 = vpack.c.bf16 %v1254, %v1253
        %v1259 = vld [vmem:[%s3 + $0x20] sm:$0xf]
        %v1260 = vld [vmem:[%s3 + $0x24] sm:$0xf]
        %v1261 = vld [vmem:[%s3 + $0x28] sm:$0xf]
        %v1262 = vld [vmem:[%s3 + $0x2c] sm:$0xf]
        %v1263 = vld [vmem:[%s3 + $0x30] sm:$0xf]
        %v1264 = vld [vmem:[%s3 + $0x34] sm:$0xf]
        %v1265 = vld [vmem:[%s3 + $0x38] sm:$0xf]
        %v1266 = vld [vmem:[%s3 + $0x3c] sm:$0xf]
        %v1275 = vunpack.c.l.b16 %v1259
        %v1276 = vunpack.c.l.b16 %v1260
        %v1277 = vunpack.c.l.b16 %v1261
        %v1278 = vunpack.c.l.b16 %v1262
        %v1279 = vunpack.c.l.b16 %v1263
        %v1280 = vunpack.c.l.b16 %v1264
        %v1281 = vunpack.c.l.b16 %v1265
        %v1282 = vunpack.c.l.b16 %v1266
        %v1283 = vpack.c.b16 %v1276, %v1275
        %v1284 = vpack.c.b16 %v1278, %v1277
        %v1285 = vpack.c.b16 %v1280, %v1279
        %v1286 = vpack.c.b16 %v1282, %v1281
        %v1292 = vsel %vm665, %v1255, 0
        %v1295 = vsel %vm665, %v1256, 0
        %v1298 = vsel %vm665, %v1257, 0
        %v1301 = vsel %vm665, %v1258, 0
        %1303 = vmatprep.subr.bf16.mxu0 0
        %1304 = vmatpush1.bf16.msra.mxu0 %v1283
        %1305 = vmatprep.subr.bf16.mxu0 0
        %1306 = vmatpush1.bf16.msra.mxu0 %v1284
        %1307 = vmatprep.subr.bf16.mxu0 0
        %1308 = vmatpush1.bf16.msra.mxu0 %v1285
        %1309 = vmatprep.subr.bf16.mxu0 0
        %1310 = vmatpush1.bf16.msra.mxu0 %v1286
        %1311 = vmatprep.subr.bf16.mxu0 0
        %1312 = vmatpush1.bf16.msra.mxu0 0
        %1313 = vmatprep.subr.bf16.mxu0 0
        %1314 = vmatpush1.bf16.msra.mxu0 0
        %1315 = vmatprep.subr.bf16.mxu0 0
        %1316 = vmatpush1.bf16.msra.mxu0 0
        %1317 = vmatprep.subr.bf16.mxu0 0
        %1318 = vmatpush1.bf16.msra.mxu0 0
        %1319 = vmatprep.subr.bf16.mxu0 0
        %1320 = vmatpush1.bf16.msra.mxu0 0
        %1321 = vmatprep.subr.bf16.mxu0 0
        %1322 = vmatpush1.bf16.msra.mxu0 0
        %1323 = vmatprep.subr.bf16.mxu0 0
        %1324 = vmatpush1.bf16.msra.mxu0 0
        %1325 = vmatprep.subr.bf16.mxu0 0
        %1326 = vmatpush1.bf16.msra.mxu0 0
        %1327 = vmatprep.subr.bf16.mxu0 0
        %1328 = vmatpush1.bf16.msra.mxu0 0
        %1329 = vmatprep.subr.bf16.mxu0 0
        %1330 = vmatpush1.bf16.msra.mxu0 0
        %1331 = vmatprep.subr.bf16.mxu0 0
        %1332 = vmatpush1.bf16.msra.mxu0 0
        %1333 = vmatprep.subr.bf16.mxu0 0
        %1334 = vmatpush1.bf16.msra.mxu0 0
        %1335 = vmatprep.mubr.bf16.mxu0 0
        %1336 = vmatmul.mubr.bf16.gmra.mrb[0].mxu0 %v1292
        %v1337 = vpop.f32.mrb[0].mxu0
        %v1338 = vadd.f32 0.0, %v1337
        %v1339 = vpop.f32.mrb[0].mxu0
        %v1340 = vpop.f32.mrb[0].mxu0
        %v1341 = vadd.f32 0.0, %v1340
        %v1342 = vpop.f32.mrb[0].mxu0
        %1343 = vmatprep.mubr.bf16.mxu0 0
        %1344 = vmatmul.mubr.bf16.gmra.mrb[0].mxu0 %v1295
        %v1345 = vpop.f32.mrb[0].mxu0
        %v1346 = vadd.f32 0.0, %v1345
        %v1347 = vpop.f32.mrb[0].mxu0
        %v1348 = vpop.f32.mrb[0].mxu0
        %v1349 = vadd.f32 0.0, %v1348
        %v1350 = vpop.f32.mrb[0].mxu0
        %1351 = vmatprep.mubr.bf16.mxu0 0
        %1352 = vmatmul.mubr.bf16.gmra.mrb[0].mxu0 %v1298
        %v1353 = vpop.f32.mrb[0].mxu0
        %v1354 = vadd.f32 0.0, %v1353
        %v1355 = vpop.f32.mrb[0].mxu0
        %v1356 = vpop.f32.mrb[0].mxu0
        %v1357 = vadd.f32 0.0, %v1356
        %v1358 = vpop.f32.mrb[0].mxu0
        %1359 = vmatprep.mubr.bf16.mxu0 0
        %1360 = vmatmul.mubr.bf16.gmra.mrb[0].mxu0 %v1301
        %v1361 = vpop.f32.mrb[0].mxu0
        %v1362 = vadd.f32 0.0, %v1361
        %v1363 = vpop.f32.mrb[0].mxu0
        %v1364 = vpop.f32.mrb[0].mxu0
        %v1365 = vadd.f32 0.0, %v1364
        %v1366 = vpop.f32.mrb[0].mxu0
        %1367 = vdwg.mxu0
        %v1376 = vunpack.c.l.b16 %v1207
        %v1377 = vunpack.c.l.b16 %v1208
        %v1378 = vunpack.c.l.b16 %v1209
        %v1379 = vunpack.c.l.b16 %v1210
        %v1380 = vunpack.c.l.b16 %v1211
        %v1381 = vunpack.c.l.b16 %v1212
        %v1382 = vunpack.c.l.b16 %v1213
        %v1383 = vunpack.c.l.b16 %v1214
        %v1384 = vpack.c.b16 %v1377, %v1376
        %v1385 = vpack.c.b16 %v1379, %v1378
        %v1386 = vpack.c.b16 %v1381, %v1380
        %v1387 = vpack.c.b16 %v1383, %v1382
        %v1393 = vsel %vm665, %v1203, 0
        %v1396 = vsel %vm665, %v1204, 0
        %v1399 = vsel %vm665, %v1205, 0
        %v1402 = vsel %vm665, %v1206, 0
        %1404 = vmatprep.subr.bf16.mxu0 0
        %1405 = vmatpush1.bf16.msra.mxu0 %v1384
        %1406 = vmatprep.subr.bf16.mxu0 0
        %1407 = vmatpush1.bf16.msra.mxu0 %v1385
        %1408 = vmatprep.subr.bf16.mxu0 0
        %1409 = vmatpush1.bf16.msra.mxu0 %v1386
        %1410 = vmatprep.subr.bf16.mxu0 0
        %1411 = vmatpush1.bf16.msra.mxu0 %v1387
        %1412 = vmatprep.subr.bf16.mxu0 0
        %1413 = vmatpush1.bf16.msra.mxu0 0
        %1414 = vmatprep.subr.bf16.mxu0 0
        %1415 = vmatpush1.bf16.msra.mxu0 0
        %1416 = vmatprep.subr.bf16.mxu0 0
        %1417 = vmatpush1.bf16.msra.mxu0 0
        %1418 = vmatprep.subr.bf16.mxu0 0
        %1419 = vmatpush1.bf16.msra.mxu0 0
        %1420 = vmatprep.subr.bf16.mxu0 0
        %1421 = vmatpush1.bf16.msra.mxu0 0
        %1422 = vmatprep.subr.bf16.mxu0 0
        %1423 = vmatpush1.bf16.msra.mxu0 0
        %1424 = vmatprep.subr.bf16.mxu0 0
        %1425 = vmatpush1.bf16.msra.mxu0 0
        %1426 = vmatprep.subr.bf16.mxu0 0
        %1427 = vmatpush1.bf16.msra.mxu0 0
        %1428 = vmatprep.subr.bf16.mxu0 0
        %1429 = vmatpush1.bf16.msra.mxu0 0
        %1430 = vmatprep.subr.bf16.mxu0 0
        %1431 = vmatpush1.bf16.msra.mxu0 0
        %1432 = vmatprep.subr.bf16.mxu0 0
        %1433 = vmatpush1.bf16.msra.mxu0 0
        %1434 = vmatprep.subr.bf16.mxu0 0
        %1435 = vmatpush1.bf16.msra.mxu0 0
        %1436 = vmatprep.mubr.bf16.mxu0 0
        %1437 = vmatmul.mubr.bf16.gmra.mrb[0].mxu0 %v1393
        %v1438 = vpop.f32.mrb[0].mxu0
        %v1439 = vadd.f32 %v1338, %v1438
        %v1440 = vpop.f32.mrb[0].mxu0
        %v1441 = vpop.f32.mrb[0].mxu0
        %v1442 = vadd.f32 %v1341, %v1441
        %v1443 = vpop.f32.mrb[0].mxu0
        %1444 = vmatprep.mubr.bf16.mxu0 0
        %1445 = vmatmul.mubr.bf16.gmra.mrb[0].mxu0 %v1396
        %v1446 = vpop.f32.mrb[0].mxu0
        %v1447 = vadd.f32 %v1346, %v1446
        %v1448 = vpop.f32.mrb[0].mxu0
        %v1449 = vpop.f32.mrb[0].mxu0
        %v1450 = vadd.f32 %v1349, %v1449
        %v1451 = vpop.f32.mrb[0].mxu0
        %1452 = vmatprep.mubr.bf16.mxu0 0
        %1453 = vmatmul.mubr.bf16.gmra.mrb[0].mxu0 %v1399
        %v1454 = vpop.f32.mrb[0].mxu0
        %v1455 = vadd.f32 %v1354, %v1454
        %v1456 = vpop.f32.mrb[0].mxu0
        %v1457 = vpop.f32.mrb[0].mxu0
        %v1458 = vadd.f32 %v1357, %v1457
        %v1459 = vpop.f32.mrb[0].mxu0
        %1460 = vmatprep.mubr.bf16.mxu0 0
        %1461 = vmatmul.mubr.bf16.gmra.mrb[0].mxu0 %v1402
        %v1462 = vpop.f32.mrb[0].mxu0
        %v1463 = vadd.f32 %v1362, %v1462
        %v1464 = vpop.f32.mrb[0].mxu0
        %v1465 = vpop.f32.mrb[0].mxu0
        %v1466 = vadd.f32 %v1365, %v1465
        %v1467 = vpop.f32.mrb[0].mxu0
        %1468 = vdwg.mxu0
        %v1469 = vrot.slane %v1128, 1
        %v1470 = vrot.slane %v1129, 1
        %v1471 = vrot.slane %v1130, 1
        %v1472 = vrot.slane %v1131, 1
        %v1473 = vrot.slane %v1132, 1
        %v1474 = vrot.slane %v1133, 1
        %v1475 = vrot.slane %v1134, 1
        %v1476 = vrot.slane %v1135, 1
        %vm1477 = vcmp.lt.s32.totalorder %v1145, 7
        %v1478 = vsel %vm1477, %v1475, %v1476
        %v1479 = vsel %vm1477, %v1474, %v1475
        %v1480 = vsel %vm1477, %v1473, %v1474
        %v1481 = vsel %vm1477, %v1472, %v1473
        %v1482 = vsel %vm1477, %v1471, %v1472
        %v1483 = vsel %vm1477, %v1470, %v1471
        %v1484 = vsel %vm1477, %v1469, %v1470
        %v1485 = vsel %vm1477, %v1476, %v1469
        %1486 = vset.pattern.permute.xlu0 2
        %1487 = vperm.xlu0 %1486, %v649
        %v1488 = vpop.permute.xlu0 %1487
        %1490 = vset.pattern.permute.xlu0 2
        %1491 = vperm.xlu0 %1490, %v650
        %v1492 = vpop.permute.xlu0 %1491
        %1494 = vset.pattern.permute.xlu0 2
        %1495 = vperm.xlu0 %1494, %v651
        %v1496 = vpop.permute.xlu0 %1495
        %1498 = vset.pattern.permute.xlu0 2
        %1499 = vperm.xlu0 %1498, %v652
        %v1500 = vpop.permute.xlu0 %1499
        %1502 = vset.pattern.permute.xlu0 2
        %1503 = vperm.xlu0 %1502, %v653
        %v1504 = vpop.permute.xlu0 %1503
        %1506 = vset.pattern.permute.xlu0 2
        %1507 = vperm.xlu0 %1506, %v654
        %v1508 = vpop.permute.xlu0 %1507
        %1510 = vset.pattern.permute.xlu0 2
        %1511 = vperm.xlu0 %1510, %v655
        %v1512 = vpop.permute.xlu0 %1511
        %1514 = vset.pattern.permute.xlu0 2
        %1515 = vperm.xlu0 %1514, %v656
        %v1516 = vpop.permute.xlu0 %1515
        %v1518 = vmul.f32 %v1485, %v1488
        %v1519 = vmul.f32 %v1484, %v1492
        %v1520 = vmul.f32 %v1483, %v1496
        %v1521 = vmul.f32 %v1482, %v1500
        %v1522 = vmul.f32 %v1481, %v1504
        %v1523 = vmul.f32 %v1480, %v1508
        %v1524 = vmul.f32 %v1479, %v1512
        %v1525 = vmul.f32 %v1478, %v1516
        %v1526 = vpack.c.bf16 %v1519, %v1518
        %v1527 = vpack.c.bf16 %v1521, %v1520
        %v1528 = vpack.c.bf16 %v1523, %v1522
        %v1529 = vpack.c.bf16 %v1525, %v1524
        %v1530 = vld [vmem:[%s3 + $0x40] sm:$0xf]
        %v1531 = vld [vmem:[%s3 + $0x44] sm:$0xf]
        %v1532 = vld [vmem:[%s3 + $0x48] sm:$0xf]
        %v1533 = vld [vmem:[%s3 + $0x4c] sm:$0xf]
        %v1534 = vld [vmem:[%s3 + $0x50] sm:$0xf]
        %v1535 = vld [vmem:[%s3 + $0x54] sm:$0xf]
        %v1536 = vld [vmem:[%s3 + $0x58] sm:$0xf]
        %v1537 = vld [vmem:[%s3 + $0x5c] sm:$0xf]
        %v1546 = vunpack.c.l.b16 %v1530
        %v1547 = vunpack.c.l.b16 %v1531
        %v1548 = vunpack.c.l.b16 %v1532
        %v1549 = vunpack.c.l.b16 %v1533
        %v1550 = vunpack.c.l.b16 %v1534
        %v1551 = vunpack.c.l.b16 %v1535
        %v1552 = vunpack.c.l.b16 %v1536
        %v1553 = vunpack.c.l.b16 %v1537
        %v1554 = vpack.c.b16 %v1547, %v1546
        %v1555 = vpack.c.b16 %v1549, %v1548
        %v1556 = vpack.c.b16 %v1551, %v1550
        %v1557 = vpack.c.b16 %v1553, %v1552
        %v1563 = vsel %vm665, %v1526, 0
        %v1566 = vsel %vm665, %v1527, 0
        %v1569 = vsel %vm665, %v1528, 0
        %v1572 = vsel %vm665, %v1529, 0
        %1574 = vmatprep.subr.bf16.mxu0 0
        %1575 = vmatpush1.bf16.msra.mxu0 %v1554
        %1576 = vmatprep.subr.bf16.mxu0 0
        %1577 = vmatpush1.bf16.msra.mxu0 %v1555
        %1578 = vmatprep.subr.bf16.mxu0 0
        %1579 = vmatpush1.bf16.msra.mxu0 %v1556
        %1580 = vmatprep.subr.bf16.mxu0 0
        %1581 = vmatpush1.bf16.msra.mxu0 %v1557
        %1582 = vmatprep.subr.bf16.mxu0 0
        %1583 = vmatpush1.bf16.msra.mxu0 0
        %1584 = vmatprep.subr.bf16.mxu0 0
        %1585 = vmatpush1.bf16.msra.mxu0 0
        %1586 = vmatprep.subr.bf16.mxu0 0
        %1587 = vmatpush1.bf16.msra.mxu0 0
        %1588 = vmatprep.subr.bf16.mxu0 0
        %1589 = vmatpush1.bf16.msra.mxu0 0
        %1590 = vmatprep.subr.bf16.mxu0 0
        %1591 = vmatpush1.bf16.msra.mxu0 0
        %1592 = vmatprep.subr.bf16.mxu0 0
        %1593 = vmatpush1.bf16.msra.mxu0 0
        %1594 = vmatprep.subr.bf16.mxu0 0
        %1595 = vmatpush1.bf16.msra.mxu0 0
        %1596 = vmatprep.subr.bf16.mxu0 0
        %1597 = vmatpush1.bf16.msra.mxu0 0
        %1598 = vmatprep.subr.bf16.mxu0 0
        %1599 = vmatpush1.bf16.msra.mxu0 0
        %1600 = vmatprep.subr.bf16.mxu0 0
        %1601 = vmatpush1.bf16.msra.mxu0 0
        %1602 = vmatprep.subr.bf16.mxu0 0
        %1603 = vmatpush1.bf16.msra.mxu0 0
        %1604 = vmatprep.subr.bf16.mxu0 0
        %1605 = vmatpush1.bf16.msra.mxu0 0
        %1606 = vmatprep.mubr.bf16.mxu0 0
        %1607 = vmatmul.mubr.bf16.gmra.mrb[0].mxu0 %v1563
        %v1608 = vpop.f32.mrb[0].mxu0
        %v1609 = vadd.f32 0.0, %v1608
        %v1610 = vpop.f32.mrb[0].mxu0
        %v1611 = vpop.f32.mrb[0].mxu0
        %v1612 = vadd.f32 0.0, %v1611
        %v1613 = vpop.f32.mrb[0].mxu0
        %1614 = vmatprep.mubr.bf16.mxu0 0
        %1615 = vmatmul.mubr.bf16.gmra.mrb[0].mxu0 %v1566
        %v1616 = vpop.f32.mrb[0].mxu0
        %v1617 = vadd.f32 0.0, %v1616
        %v1618 = vpop.f32.mrb[0].mxu0
        %v1619 = vpop.f32.mrb[0].mxu0
        %v1620 = vadd.f32 0.0, %v1619
        %v1621 = vpop.f32.mrb[0].mxu0
        %1622 = vmatprep.mubr.bf16.mxu0 0
        %1623 = vmatmul.mubr.bf16.gmra.mrb[0].mxu0 %v1569
        %v1624 = vpop.f32.mrb[0].mxu0
        %v1625 = vadd.f32 0.0, %v1624
        %v1626 = vpop.f32.mrb[0].mxu0
        %v1627 = vpop.f32.mrb[0].mxu0
        %v1628 = vadd.f32 0.0, %v1627
        %v1629 = vpop.f32.mrb[0].mxu0
        %1630 = vmatprep.mubr.bf16.mxu0 0
        %1631 = vmatmul.mubr.bf16.gmra.mrb[0].mxu0 %v1572
        %v1632 = vpop.f32.mrb[0].mxu0
        %v1633 = vadd.f32 0.0, %v1632
        %v1634 = vpop.f32.mrb[0].mxu0
        %v1635 = vpop.f32.mrb[0].mxu0
        %v1636 = vadd.f32 0.0, %v1635
        %v1637 = vpop.f32.mrb[0].mxu0
        %1638 = vdwg.mxu0
        %v1639 = vadd.f32 %v1439, %v1609
        %v1640 = vadd.f32 %v1442, %v1612
        %v1641 = vadd.f32 %v1447, %v1617
        %v1642 = vadd.f32 %v1450, %v1620
        %v1643 = vadd.f32 %v1455, %v1625
        %v1644 = vadd.f32 %v1458, %v1628
        %v1645 = vadd.f32 %v1463, %v1633
        %v1646 = vadd.f32 %v1466, %v1636
        %1647 = vset.pattern.permute.xlu0 3
        %1648 = vperm.xlu0 %1647, %v649
        %v1649 = vpop.permute.xlu0 %1648
        %1651 = vset.pattern.permute.xlu0 3
        %1652 = vperm.xlu0 %1651, %v650
        %v1653 = vpop.permute.xlu0 %1652
        %1655 = vset.pattern.permute.xlu0 3
        %1656 = vperm.xlu0 %1655, %v651
        %v1657 = vpop.permute.xlu0 %1656
        %1659 = vset.pattern.permute.xlu0 3
        %1660 = vperm.xlu0 %1659, %v652
        %v1661 = vpop.permute.xlu0 %1660
        %1663 = vset.pattern.permute.xlu0 3
        %1664 = vperm.xlu0 %1663, %v653
        %v1665 = vpop.permute.xlu0 %1664
        %1667 = vset.pattern.permute.xlu0 3
        %1668 = vperm.xlu0 %1667, %v654
        %v1669 = vpop.permute.xlu0 %1668
        %1671 = vset.pattern.permute.xlu0 3
        %1672 = vperm.xlu0 %1671, %v655
        %v1673 = vpop.permute.xlu0 %1672
        %1675 = vset.pattern.permute.xlu0 3
        %1676 = vperm.xlu0 %1675, %v656
        %v1677 = vpop.permute.xlu0 %1676
        %v1679 = vmul.f32 %v1154, %v1649
        %v1680 = vmul.f32 %v1153, %v1653
        %v1681 = vmul.f32 %v1152, %v1657
        %v1682 = vmul.f32 %v1151, %v1661
        %v1683 = vmul.f32 %v1150, %v1665
        %v1684 = vmul.f32 %v1149, %v1669
        %v1685 = vmul.f32 %v1148, %v1673
        %v1686 = vmul.f32 %v1147, %v1677
        %v1687 = vpack.c.bf16 %v1680, %v1679
        %v1688 = vpack.c.bf16 %v1682, %v1681
        %v1689 = vpack.c.bf16 %v1684, %v1683
        %v1690 = vpack.c.bf16 %v1686, %v1685
        %v1691 = vld [vmem:[%s3 + $0x60] sm:$0xf]
        %v1692 = vld [vmem:[%s3 + $0x64] sm:$0xf]
        %v1693 = vld [vmem:[%s3 + $0x68] sm:$0xf]
        %v1694 = vld [vmem:[%s3 + $0x6c] sm:$0xf]
        %v1695 = vld [vmem:[%s3 + $0x70] sm:$0xf]
        %v1696 = vld [vmem:[%s3 + $0x74] sm:$0xf]
        %v1697 = vld [vmem:[%s3 + $0x78] sm:$0xf]
        %v1698 = vld [vmem:[%s3 + $0x7c] sm:$0xf]
        %v1707 = vunpack.c.l.b16 %v1691
        %v1708 = vunpack.c.l.b16 %v1692
        %v1709 = vunpack.c.l.b16 %v1693
        %v1710 = vunpack.c.l.b16 %v1694
        %v1711 = vunpack.c.l.b16 %v1695
        %v1712 = vunpack.c.l.b16 %v1696
        %v1713 = vunpack.c.l.b16 %v1697
        %v1714 = vunpack.c.l.b16 %v1698
        %v1715 = vpack.c.b16 %v1708, %v1707
        %v1716 = vpack.c.b16 %v1710, %v1709
        %v1717 = vpack.c.b16 %v1712, %v1711
        %v1718 = vpack.c.b16 %v1714, %v1713
        %v1724 = vsel %vm665, %v1687, 0
        %v1727 = vsel %vm665, %v1688, 0
        %v1730 = vsel %vm665, %v1689, 0
        %v1733 = vsel %vm665, %v1690, 0
        %1735 = vmatprep.subr.bf16.mxu0 0
        %1736 = vmatpush1.bf16.msra.mxu0 %v1715
        %1737 = vmatprep.subr.bf16.mxu0 0
        %1738 = vmatpush1.bf16.msra.mxu0 %v1716
        %1739 = vmatprep.subr.bf16.mxu0 0
        %1740 = vmatpush1.bf16.msra.mxu0 %v1717
        %1741 = vmatprep.subr.bf16.mxu0 0
        %1742 = vmatpush1.bf16.msra.mxu0 %v1718
        %1743 = vmatprep.subr.bf16.mxu0 0
        %1744 = vmatpush1.bf16.msra.mxu0 0
        %1745 = vmatprep.subr.bf16.mxu0 0
        %1746 = vmatpush1.bf16.msra.mxu0 0
        %1747 = vmatprep.subr.bf16.mxu0 0
        %1748 = vmatpush1.bf16.msra.mxu0 0
        %1749 = vmatprep.subr.bf16.mxu0 0
        %1750 = vmatpush1.bf16.msra.mxu0 0
        %1751 = vmatprep.subr.bf16.mxu0 0
        %1752 = vmatpush1.bf16.msra.mxu0 0
        %1753 = vmatprep.subr.bf16.mxu0 0
        %1754 = vmatpush1.bf16.msra.mxu0 0
        %1755 = vmatprep.subr.bf16.mxu0 0
        %1756 = vmatpush1.bf16.msra.mxu0 0
        %1757 = vmatprep.subr.bf16.mxu0 0
        %1758 = vmatpush1.bf16.msra.mxu0 0
        %1759 = vmatprep.subr.bf16.mxu0 0
        %1760 = vmatpush1.bf16.msra.mxu0 0
        %1761 = vmatprep.subr.bf16.mxu0 0
        %1762 = vmatpush1.bf16.msra.mxu0 0
        %1763 = vmatprep.subr.bf16.mxu0 0
        %1764 = vmatpush1.bf16.msra.mxu0 0
        %1765 = vmatprep.subr.bf16.mxu0 0
        %1766 = vmatpush1.bf16.msra.mxu0 0
        %1767 = vmatprep.mubr.bf16.mxu0 0
        %1768 = vmatmul.mubr.bf16.gmra.mrb[0].mxu0 %v1724
        %v1769 = vpop.f32.mrb[0].mxu0
        %v1770 = vadd.f32 0.0, %v1769
        %v1771 = vpop.f32.mrb[0].mxu0
        %v1772 = vpop.f32.mrb[0].mxu0
        %v1773 = vadd.f32 0.0, %v1772
        %v1774 = vpop.f32.mrb[0].mxu0
        %1775 = vmatprep.mubr.bf16.mxu0 0
        %1776 = vmatmul.mubr.bf16.gmra.mrb[0].mxu0 %v1727
        %v1777 = vpop.f32.mrb[0].mxu0
        %v1778 = vadd.f32 0.0, %v1777
        %v1779 = vpop.f32.mrb[0].mxu0
        %v1780 = vpop.f32.mrb[0].mxu0
        %v1781 = vadd.f32 0.0, %v1780
        %v1782 = vpop.f32.mrb[0].mxu0
        %1783 = vmatprep.mubr.bf16.mxu0 0
        %1784 = vmatmul.mubr.bf16.gmra.mrb[0].mxu0 %v1730
        %v1785 = vpop.f32.mrb[0].mxu0
        %v1786 = vadd.f32 0.0, %v1785
        %v1787 = vpop.f32.mrb[0].mxu0
        %v1788 = vpop.f32.mrb[0].mxu0
        %v1789 = vadd.f32 0.0, %v1788
        %v1790 = vpop.f32.mrb[0].mxu0
        %1791 = vmatprep.mubr.bf16.mxu0 0
        %1792 = vmatmul.mubr.bf16.gmra.mrb[0].mxu0 %v1733
        %v1793 = vpop.f32.mrb[0].mxu0
        %v1794 = vadd.f32 0.0, %v1793
        %v1795 = vpop.f32.mrb[0].mxu0
        %v1796 = vpop.f32.mrb[0].mxu0
        %v1797 = vadd.f32 0.0, %v1796
        %v1798 = vpop.f32.mrb[0].mxu0
        %1799 = vdwg.mxu0
        %v1800 = vadd.f32 %v1639, %v1770
        %v1801 = vadd.f32 %v1640, %v1773
        %v1802 = vadd.f32 %v1641, %v1778
        %v1803 = vadd.f32 %v1642, %v1781
        %v1804 = vadd.f32 %v1643, %v1786
        %v1805 = vadd.f32 %v1644, %v1789
        %v1806 = vadd.f32 %v1645, %v1794
        %v1807 = vadd.f32 %v1646, %v1797
        %v1808 = vpack.c.bf16 %v1129, %v1128
        %v1809 = vpack.c.bf16 %v1131, %v1130
        %v1810 = vpack.c.bf16 %v1133, %v1132
        %v1811 = vpack.c.bf16 %v1135, %v1134
        %v1812 = vld [vmem:[%s3 + $0x80] sm:$0xf]
        %v1813 = vld [vmem:[%s3 + $0x84] sm:$0xf]
        %v1814 = vld [vmem:[%s3 + $0x88] sm:$0xf]
        %v1815 = vld [vmem:[%s3 + $0x8c] sm:$0xf]
        %v1816 = vld [vmem:[%s3 + $0x90] sm:$0xf]
        %v1817 = vld [vmem:[%s3 + $0x94] sm:$0xf]
        %v1818 = vld [vmem:[%s3 + $0x98] sm:$0xf]
        %v1819 = vld [vmem:[%s3 + $0x9c] sm:$0xf]
        %v1828 = vunpack.c.l.b16 %v1812
        %v1829 = vunpack.c.l.b16 %v1813
        %v1830 = vunpack.c.l.b16 %v1814
        %v1831 = vunpack.c.l.b16 %v1815
        %v1832 = vunpack.c.l.b16 %v1816
        %v1833 = vunpack.c.l.b16 %v1817
        %v1834 = vunpack.c.l.b16 %v1818
        %v1835 = vunpack.c.l.b16 %v1819
        %v1836 = vpack.c.b16 %v1829, %v1828
        %v1837 = vpack.c.b16 %v1831, %v1830
        %v1838 = vpack.c.b16 %v1833, %v1832
        %v1839 = vpack.c.b16 %v1835, %v1834
        %v1845 = vsel %vm665, %v1808, 0
        %v1848 = vsel %vm665, %v1809, 0
        %v1851 = vsel %vm665, %v1810, 0
        %v1854 = vsel %vm665, %v1811, 0
        %1856 = vmatprep.subr.bf16.mxu0 0
        %1857 = vmatpush1.bf16.msra.mxu0 %v1836
        %1858 = vmatprep.subr.bf16.mxu0 0
        %1859 = vmatpush1.bf16.msra.mxu0 %v1837
        %1860 = vmatprep.subr.bf16.mxu0 0
        %1861 = vmatpush1.bf16.msra.mxu0 %v1838
        %1862 = vmatprep.subr.bf16.mxu0 0
        %1863 = vmatpush1.bf16.msra.mxu0 %v1839
        %1864 = vmatprep.subr.bf16.mxu0 0
        %1865 = vmatpush1.bf16.msra.mxu0 0
        %1866 = vmatprep.subr.bf16.mxu0 0
        %1867 = vmatpush1.bf16.msra.mxu0 0
        %1868 = vmatprep.subr.bf16.mxu0 0
        %1869 = vmatpush1.bf16.msra.mxu0 0
        %1870 = vmatprep.subr.bf16.mxu0 0
        %1871 = vmatpush1.bf16.msra.mxu0 0
        %1872 = vmatprep.subr.bf16.mxu0 0
        %1873 = vmatpush1.bf16.msra.mxu0 0
        %1874 = vmatprep.subr.bf16.mxu0 0
        %1875 = vmatpush1.bf16.msra.mxu0 0
        %1876 = vmatprep.subr.bf16.mxu0 0
        %1877 = vmatpush1.bf16.msra.mxu0 0
        %1878 = vmatprep.subr.bf16.mxu0 0
        %1879 = vmatpush1.bf16.msra.mxu0 0
        %1880 = vmatprep.subr.bf16.mxu0 0
        %1881 = vmatpush1.bf16.msra.mxu0 0
        %1882 = vmatprep.subr.bf16.mxu0 0
        %1883 = vmatpush1.bf16.msra.mxu0 0
        %1884 = vmatprep.subr.bf16.mxu0 0
        %1885 = vmatpush1.bf16.msra.mxu0 0
        %1886 = vmatprep.subr.bf16.mxu0 0
        %1887 = vmatpush1.bf16.msra.mxu0 0
        %1888 = vmatprep.mubr.bf16.mxu0 0
        %1889 = vmatmul.mubr.bf16.gmra.mrb[0].mxu0 %v1845
        %v1890 = vpop.f32.mrb[0].mxu0
        %v1891 = vadd.f32 0.0, %v1890
        %v1892 = vpop.f32.mrb[0].mxu0
        %v1893 = vpop.f32.mrb[0].mxu0
        %v1894 = vadd.f32 0.0, %v1893
        %v1895 = vpop.f32.mrb[0].mxu0
        %1896 = vmatprep.mubr.bf16.mxu0 0
        %1897 = vmatmul.mubr.bf16.gmra.mrb[0].mxu0 %v1848
        %v1898 = vpop.f32.mrb[0].mxu0
        %v1899 = vadd.f32 0.0, %v1898
        %v1900 = vpop.f32.mrb[0].mxu0
        %v1901 = vpop.f32.mrb[0].mxu0
        %v1902 = vadd.f32 0.0, %v1901
        %v1903 = vpop.f32.mrb[0].mxu0
        %1904 = vmatprep.mubr.bf16.mxu0 0
        %1905 = vmatmul.mubr.bf16.gmra.mrb[0].mxu0 %v1851
        %v1906 = vpop.f32.mrb[0].mxu0
        %v1907 = vadd.f32 0.0, %v1906
        %v1908 = vpop.f32.mrb[0].mxu0
        %v1909 = vpop.f32.mrb[0].mxu0
        %v1910 = vadd.f32 0.0, %v1909
        %v1911 = vpop.f32.mrb[0].mxu0
        %1912 = vmatprep.mubr.bf16.mxu0 0
        %1913 = vmatmul.mubr.bf16.gmra.mrb[0].mxu0 %v1854
        %v1914 = vpop.f32.mrb[0].mxu0
        %v1915 = vadd.f32 0.0, %v1914
        %v1916 = vpop.f32.mrb[0].mxu0
        %v1917 = vpop.f32.mrb[0].mxu0
        %v1918 = vadd.f32 0.0, %v1917
        %v1919 = vpop.f32.mrb[0].mxu0
        %1920 = vdwg.mxu0
        %v1921 = vadd.f32 %v1800, %v1891
        %v1922 = vadd.f32 %v1801, %v1894
        %v1923 = vadd.f32 %v1802, %v1899
        %v1924 = vadd.f32 %v1803, %v1902
        %v1925 = vadd.f32 %v1804, %v1907
        %v1926 = vadd.f32 %v1805, %v1910
        %v1927 = vadd.f32 %v1806, %v1915
        %v1928 = vadd.f32 %v1807, %v1918
        %1929 = vset.pattern.permute.xlu0 5
        %1930 = vperm.xlu0 %1929, %v649
        %v1931 = vpop.permute.xlu0 %1930
        %1933 = vset.pattern.permute.xlu0 5
        %1934 = vperm.xlu0 %1933, %v650
        %v1935 = vpop.permute.xlu0 %1934
        %1937 = vset.pattern.permute.xlu0 5
        %1938 = vperm.xlu0 %1937, %v651
        %v1939 = vpop.permute.xlu0 %1938
        %1941 = vset.pattern.permute.xlu0 5
        %1942 = vperm.xlu0 %1941, %v652
        %v1943 = vpop.permute.xlu0 %1942
        %1945 = vset.pattern.permute.xlu0 5
        %1946 = vperm.xlu0 %1945, %v653
        %v1947 = vpop.permute.xlu0 %1946
        %1949 = vset.pattern.permute.xlu0 5
        %1950 = vperm.xlu0 %1949, %v654
        %v1951 = vpop.permute.xlu0 %1950
        %1953 = vset.pattern.permute.xlu0 5
        %1954 = vperm.xlu0 %1953, %v655
        %v1955 = vpop.permute.xlu0 %1954
        %1957 = vset.pattern.permute.xlu0 5
        %1958 = vperm.xlu0 %1957, %v656
        %v1959 = vpop.permute.xlu0 %1958
        %v1961 = vmul.f32 %v1484, %v1931
        %v1962 = vmul.f32 %v1483, %v1935
        %v1963 = vmul.f32 %v1482, %v1939
        %v1964 = vmul.f32 %v1481, %v1943
        %v1965 = vmul.f32 %v1480, %v1947
        %v1966 = vmul.f32 %v1479, %v1951
        %v1967 = vmul.f32 %v1478, %v1955
        %v1968 = vmul.f32 %v1485, %v1959
        %v1969 = vpack.c.bf16 %v1962, %v1961
        %v1970 = vpack.c.bf16 %v1964, %v1963
        %v1971 = vpack.c.bf16 %v1966, %v1965
        %v1972 = vpack.c.bf16 %v1968, %v1967
        %v1973 = vld [vmem:[%s3 + $0xa0] sm:$0xf]
        %v1974 = vld [vmem:[%s3 + $0xa4] sm:$0xf]
        %v1975 = vld [vmem:[%s3 + $0xa8] sm:$0xf]
        %v1976 = vld [vmem:[%s3 + $0xac] sm:$0xf]
        %v1977 = vld [vmem:[%s3 + $0xb0] sm:$0xf]
        %v1978 = vld [vmem:[%s3 + $0xb4] sm:$0xf]
        %v1979 = vld [vmem:[%s3 + $0xb8] sm:$0xf]
        %v1980 = vld [vmem:[%s3 + $0xbc] sm:$0xf]
        %v1989 = vunpack.c.l.b16 %v1973
        %v1990 = vunpack.c.l.b16 %v1974
        %v1991 = vunpack.c.l.b16 %v1975
        %v1992 = vunpack.c.l.b16 %v1976
        %v1993 = vunpack.c.l.b16 %v1977
        %v1994 = vunpack.c.l.b16 %v1978
        %v1995 = vunpack.c.l.b16 %v1979
        %v1996 = vunpack.c.l.b16 %v1980
        %v1997 = vpack.c.b16 %v1990, %v1989
        %v1998 = vpack.c.b16 %v1992, %v1991
        %v1999 = vpack.c.b16 %v1994, %v1993
        %v2000 = vpack.c.b16 %v1996, %v1995
        %v2006 = vsel %vm665, %v1969, 0
        %v2009 = vsel %vm665, %v1970, 0
        %v2012 = vsel %vm665, %v1971, 0
        %v2015 = vsel %vm665, %v1972, 0
        %2017 = vmatprep.subr.bf16.mxu0 0
        %2018 = vmatpush1.bf16.msra.mxu0 %v1997
        %2019 = vmatprep.subr.bf16.mxu0 0
        %2020 = vmatpush1.bf16.msra.mxu0 %v1998
        %2021 = vmatprep.subr.bf16.mxu0 0
        %2022 = vmatpush1.bf16.msra.mxu0 %v1999
        %2023 = vmatprep.subr.bf16.mxu0 0
        %2024 = vmatpush1.bf16.msra.mxu0 %v2000
        %2025 = vmatprep.subr.bf16.mxu0 0
        %2026 = vmatpush1.bf16.msra.mxu0 0
        %2027 = vmatprep.subr.bf16.mxu0 0
        %2028 = vmatpush1.bf16.msra.mxu0 0
        %2029 = vmatprep.subr.bf16.mxu0 0
        %2030 = vmatpush1.bf16.msra.mxu0 0
        %2031 = vmatprep.subr.bf16.mxu0 0
        %2032 = vmatpush1.bf16.msra.mxu0 0
        %2033 = vmatprep.subr.bf16.mxu0 0
        %2034 = vmatpush1.bf16.msra.mxu0 0
        %2035 = vmatprep.subr.bf16.mxu0 0
        %2036 = vmatpush1.bf16.msra.mxu0 0
        %2037 = vmatprep.subr.bf16.mxu0 0
        %2038 = vmatpush1.bf16.msra.mxu0 0
        %2039 = vmatprep.subr.bf16.mxu0 0
        %2040 = vmatpush1.bf16.msra.mxu0 0
        %2041 = vmatprep.subr.bf16.mxu0 0
        %2042 = vmatpush1.bf16.msra.mxu0 0
        %2043 = vmatprep.subr.bf16.mxu0 0
        %2044 = vmatpush1.bf16.msra.mxu0 0
        %2045 = vmatprep.subr.bf16.mxu0 0
        %2046 = vmatpush1.bf16.msra.mxu0 0
        %2047 = vmatprep.subr.bf16.mxu0 0
        %2048 = vmatpush1.bf16.msra.mxu0 0
        %2049 = vmatprep.mubr.bf16.mxu0 0
        %2050 = vmatmul.mubr.bf16.gmra.mrb[0].mxu0 %v2006
        %v2051 = vpop.f32.mrb[0].mxu0
        %v2052 = vadd.f32 0.0, %v2051
        %v2053 = vpop.f32.mrb[0].mxu0
        %v2054 = vpop.f32.mrb[0].mxu0
        %v2055 = vadd.f32 0.0, %v2054
        %v2056 = vpop.f32.mrb[0].mxu0
        %2057 = vmatprep.mubr.bf16.mxu0 0
        %2058 = vmatmul.mubr.bf16.gmra.mrb[0].mxu0 %v2009
        %v2059 = vpop.f32.mrb[0].mxu0
        %v2060 = vadd.f32 0.0, %v2059
        %v2061 = vpop.f32.mrb[0].mxu0
        %v2062 = vpop.f32.mrb[0].mxu0
        %v2063 = vadd.f32 0.0, %v2062
        %v2064 = vpop.f32.mrb[0].mxu0
        %2065 = vmatprep.mubr.bf16.mxu0 0
        %2066 = vmatmul.mubr.bf16.gmra.mrb[0].mxu0 %v2012
        %v2067 = vpop.f32.mrb[0].mxu0
        %v2068 = vadd.f32 0.0, %v2067
        %v2069 = vpop.f32.mrb[0].mxu0
        %v2070 = vpop.f32.mrb[0].mxu0
        %v2071 = vadd.f32 0.0, %v2070
        %v2072 = vpop.f32.mrb[0].mxu0
        %2073 = vmatprep.mubr.bf16.mxu0 0
        %2074 = vmatmul.mubr.bf16.gmra.mrb[0].mxu0 %v2015
        %v2075 = vpop.f32.mrb[0].mxu0
        %v2076 = vadd.f32 0.0, %v2075
        %v2077 = vpop.f32.mrb[0].mxu0
        %v2078 = vpop.f32.mrb[0].mxu0
        %v2079 = vadd.f32 0.0, %v2078
        %v2080 = vpop.f32.mrb[0].mxu0
        %2081 = vdwg.mxu0
        %v2082 = vadd.f32 %v1921, %v2052
        %v2083 = vadd.f32 %v1922, %v2055
        %v2084 = vadd.f32 %v1923, %v2060
        %v2085 = vadd.f32 %v1924, %v2063
        %v2086 = vadd.f32 %v1925, %v2068
        %v2087 = vadd.f32 %v1926, %v2071
        %v2088 = vadd.f32 %v1927, %v2076
        %v2089 = vadd.f32 %v1928, %v2079
        %2090 = vset.pattern.permute.xlu0 6
        %2091 = vperm.xlu0 %2090, %v649
        %v2092 = vpop.permute.xlu0 %2091
        %2094 = vset.pattern.permute.xlu0 6
        %2095 = vperm.xlu0 %2094, %v650
        %v2096 = vpop.permute.xlu0 %2095
        %2098 = vset.pattern.permute.xlu0 6
        %2099 = vperm.xlu0 %2098, %v651
        %v2100 = vpop.permute.xlu0 %2099
        %2102 = vset.pattern.permute.xlu0 6
        %2103 = vperm.xlu0 %2102, %v652
        %v2104 = vpop.permute.xlu0 %2103
        %2106 = vset.pattern.permute.xlu0 6
        %2107 = vperm.xlu0 %2106, %v653
        %v2108 = vpop.permute.xlu0 %2107
        %2110 = vset.pattern.permute.xlu0 6
        %2111 = vperm.xlu0 %2110, %v654
        %v2112 = vpop.permute.xlu0 %2111
        %2114 = vset.pattern.permute.xlu0 6
        %2115 = vperm.xlu0 %2114, %v655
        %v2116 = vpop.permute.xlu0 %2115
        %2118 = vset.pattern.permute.xlu0 6
        %2119 = vperm.xlu0 %2118, %v656
        %v2120 = vpop.permute.xlu0 %2119
        %v2122 = vmul.f32 %v1153, %v2092
        %v2123 = vmul.f32 %v1152, %v2096
        %v2124 = vmul.f32 %v1151, %v2100
        %v2125 = vmul.f32 %v1150, %v2104
        %v2126 = vmul.f32 %v1149, %v2108
        %v2127 = vmul.f32 %v1148, %v2112
        %v2128 = vmul.f32 %v1147, %v2116
        %v2129 = vmul.f32 %v1154, %v2120
        %v2130 = vpack.c.bf16 %v2123, %v2122
        %v2131 = vpack.c.bf16 %v2125, %v2124
        %v2132 = vpack.c.bf16 %v2127, %v2126
        %v2133 = vpack.c.bf16 %v2129, %v2128
        %v2134 = vld [vmem:[%s3 + $0xc0] sm:$0xf]
        %v2135 = vld [vmem:[%s3 + $0xc4] sm:$0xf]
        %v2136 = vld [vmem:[%s3 + $0xc8] sm:$0xf]
        %v2137 = vld [vmem:[%s3 + $0xcc] sm:$0xf]
        %v2138 = vld [vmem:[%s3 + $0xd0] sm:$0xf]
        %v2139 = vld [vmem:[%s3 + $0xd4] sm:$0xf]
        %v2140 = vld [vmem:[%s3 + $0xd8] sm:$0xf]
        %v2141 = vld [vmem:[%s3 + $0xdc] sm:$0xf]
        %v2150 = vunpack.c.l.b16 %v2134
        %v2151 = vunpack.c.l.b16 %v2135
        %v2152 = vunpack.c.l.b16 %v2136
        %v2153 = vunpack.c.l.b16 %v2137
        %v2154 = vunpack.c.l.b16 %v2138
        %v2155 = vunpack.c.l.b16 %v2139
        %v2156 = vunpack.c.l.b16 %v2140
        %v2157 = vunpack.c.l.b16 %v2141
        %v2158 = vpack.c.b16 %v2151, %v2150
        %v2159 = vpack.c.b16 %v2153, %v2152
        %v2160 = vpack.c.b16 %v2155, %v2154
        %v2161 = vpack.c.b16 %v2157, %v2156
        %v2167 = vsel %vm665, %v2130, 0
        %v2170 = vsel %vm665, %v2131, 0
        %v2173 = vsel %vm665, %v2132, 0
        %v2176 = vsel %vm665, %v2133, 0
        %2178 = vmatprep.subr.bf16.mxu0 0
        %2179 = vmatpush1.bf16.msra.mxu0 %v2158
        %2180 = vmatprep.subr.bf16.mxu0 0
        %2181 = vmatpush1.bf16.msra.mxu0 %v2159
        %2182 = vmatprep.subr.bf16.mxu0 0
        %2183 = vmatpush1.bf16.msra.mxu0 %v2160
        %2184 = vmatprep.subr.bf16.mxu0 0
        %2185 = vmatpush1.bf16.msra.mxu0 %v2161
        %2186 = vmatprep.subr.bf16.mxu0 0
        %2187 = vmatpush1.bf16.msra.mxu0 0
        %2188 = vmatprep.subr.bf16.mxu0 0
        %2189 = vmatpush1.bf16.msra.mxu0 0
        %2190 = vmatprep.subr.bf16.mxu0 0
        %2191 = vmatpush1.bf16.msra.mxu0 0
        %2192 = vmatprep.subr.bf16.mxu0 0
        %2193 = vmatpush1.bf16.msra.mxu0 0
        %2194 = vmatprep.subr.bf16.mxu0 0
        %2195 = vmatpush1.bf16.msra.mxu0 0
        %2196 = vmatprep.subr.bf16.mxu0 0
        %2197 = vmatpush1.bf16.msra.mxu0 0
        %2198 = vmatprep.subr.bf16.mxu0 0
        %2199 = vmatpush1.bf16.msra.mxu0 0
        %2200 = vmatprep.subr.bf16.mxu0 0
        %2201 = vmatpush1.bf16.msra.mxu0 0
        %2202 = vmatprep.subr.bf16.mxu0 0
        %2203 = vmatpush1.bf16.msra.mxu0 0
        %2204 = vmatprep.subr.bf16.mxu0 0
        %2205 = vmatpush1.bf16.msra.mxu0 0
        %2206 = vmatprep.subr.bf16.mxu0 0
        %2207 = vmatpush1.bf16.msra.mxu0 0
        %2208 = vmatprep.subr.bf16.mxu0 0
        %2209 = vmatpush1.bf16.msra.mxu0 0
        %2210 = vmatprep.mubr.bf16.mxu0 0
        %2211 = vmatmul.mubr.bf16.gmra.mrb[0].mxu0 %v2167
        %v2212 = vpop.f32.mrb[0].mxu0
        %v2213 = vadd.f32 0.0, %v2212
        %v2214 = vpop.f32.mrb[0].mxu0
        %v2215 = vpop.f32.mrb[0].mxu0
        %v2216 = vadd.f32 0.0, %v2215
        %v2217 = vpop.f32.mrb[0].mxu0
        %2218 = vmatprep.mubr.bf16.mxu0 0
        %2219 = vmatmul.mubr.bf16.gmra.mrb[0].mxu0 %v2170
        %v2220 = vpop.f32.mrb[0].mxu0
        %v2221 = vadd.f32 0.0, %v2220
        %v2222 = vpop.f32.mrb[0].mxu0
        %v2223 = vpop.f32.mrb[0].mxu0
        %v2224 = vadd.f32 0.0, %v2223
        %v2225 = vpop.f32.mrb[0].mxu0
        %2226 = vmatprep.mubr.bf16.mxu0 0
        %2227 = vmatmul.mubr.bf16.gmra.mrb[0].mxu0 %v2173
        %v2228 = vpop.f32.mrb[0].mxu0
        %v2229 = vadd.f32 0.0, %v2228
        %v2230 = vpop.f32.mrb[0].mxu0
        %v2231 = vpop.f32.mrb[0].mxu0
        %v2232 = vadd.f32 0.0, %v2231
        %v2233 = vpop.f32.mrb[0].mxu0
        %2234 = vmatprep.mubr.bf16.mxu0 0
        %2235 = vmatmul.mubr.bf16.gmra.mrb[0].mxu0 %v2176
        %v2236 = vpop.f32.mrb[0].mxu0
        %v2237 = vadd.f32 0.0, %v2236
        %v2238 = vpop.f32.mrb[0].mxu0
        %v2239 = vpop.f32.mrb[0].mxu0
        %v2240 = vadd.f32 0.0, %v2239
        %v2241 = vpop.f32.mrb[0].mxu0
        %2242 = vdwg.mxu0
        %v2243 = vadd.f32 %v2082, %v2213
        %v2244 = vadd.f32 %v2083, %v2216
        %v2245 = vadd.f32 %v2084, %v2221
        %v2246 = vadd.f32 %v2085, %v2224
        %v2247 = vadd.f32 %v2086, %v2229
        %v2248 = vadd.f32 %v2087, %v2232
        %v2249 = vadd.f32 %v2088, %v2237
        %v2250 = vadd.f32 %v2089, %v2240
        %2251 = vset.pattern.permute.xlu0 7
        %2252 = vperm.xlu0 %2251, %v649
        %v2253 = vpop.permute.xlu0 %2252
        %2255 = vset.pattern.permute.xlu0 7
        %2256 = vperm.xlu0 %2255, %v650
        %v2257 = vpop.permute.xlu0 %2256
        %2259 = vset.pattern.permute.xlu0 7
        %2260 = vperm.xlu0 %2259, %v651
        %v2261 = vpop.permute.xlu0 %2260
        %2263 = vset.pattern.permute.xlu0 7
        %2264 = vperm.xlu0 %2263, %v652
        %v2265 = vpop.permute.xlu0 %2264
        %2267 = vset.pattern.permute.xlu0 7
        %2268 = vperm.xlu0 %2267, %v653
        %v2269 = vpop.permute.xlu0 %2268
        %2271 = vset.pattern.permute.xlu0 7
        %2272 = vperm.xlu0 %2271, %v654
        %v2273 = vpop.permute.xlu0 %2272
        %2275 = vset.pattern.permute.xlu0 7
        %2276 = vperm.xlu0 %2275, %v655
        %v2277 = vpop.permute.xlu0 %2276
        %2279 = vset.pattern.permute.xlu0 7
        %2280 = vperm.xlu0 %2279, %v656
        %v2281 = vpop.permute.xlu0 %2280
        %v2283 = vmul.f32 %v1129, %v2253
        %v2284 = vmul.f32 %v1130, %v2257
        %v2285 = vmul.f32 %v1131, %v2261
        %v2286 = vmul.f32 %v1132, %v2265
        %v2287 = vmul.f32 %v1133, %v2269
        %v2288 = vmul.f32 %v1134, %v2273
        %v2289 = vmul.f32 %v1135, %v2277
        %v2290 = vmul.f32 %v1128, %v2281
        %v2291 = vpack.c.bf16 %v2284, %v2283
        %v2292 = vpack.c.bf16 %v2286, %v2285
        %v2293 = vpack.c.bf16 %v2288, %v2287
        %v2294 = vpack.c.bf16 %v2290, %v2289
        %v2295 = vld [vmem:[%s3 + $0xe0] sm:$0xf]
        %v2296 = vld [vmem:[%s3 + $0xe4] sm:$0xf]
        %v2297 = vld [vmem:[%s3 + $0xe8] sm:$0xf]
        %v2298 = vld [vmem:[%s3 + $0xec] sm:$0xf]
        %v2299 = vld [vmem:[%s3 + $0xf0] sm:$0xf]
        %v2300 = vld [vmem:[%s3 + $0xf4] sm:$0xf]
        %v2301 = vld [vmem:[%s3 + $0xf8] sm:$0xf]
        %v2302 = vld [vmem:[%s3 + $0xfc] sm:$0xf]
        %v2311 = vunpack.c.l.b16 %v2295
        %v2312 = vunpack.c.l.b16 %v2296
        %v2313 = vunpack.c.l.b16 %v2297
        %v2314 = vunpack.c.l.b16 %v2298
        %v2315 = vunpack.c.l.b16 %v2299
        %v2316 = vunpack.c.l.b16 %v2300
        %v2317 = vunpack.c.l.b16 %v2301
        %v2318 = vunpack.c.l.b16 %v2302
        %v2319 = vpack.c.b16 %v2312, %v2311
        %v2320 = vpack.c.b16 %v2314, %v2313
        %v2321 = vpack.c.b16 %v2316, %v2315
        %v2322 = vpack.c.b16 %v2318, %v2317
        %v2328 = vsel %vm665, %v2291, 0
        %v2331 = vsel %vm665, %v2292, 0
        %v2334 = vsel %vm665, %v2293, 0
        %v2337 = vsel %vm665, %v2294, 0
        %2339 = vmatprep.subr.bf16.mxu0 0
        %2340 = vmatpush1.bf16.msra.mxu0 %v2319
        %2341 = vmatprep.subr.bf16.mxu0 0
        %2342 = vmatpush1.bf16.msra.mxu0 %v2320
        %2343 = vmatprep.subr.bf16.mxu0 0
        %2344 = vmatpush1.bf16.msra.mxu0 %v2321
        %2345 = vmatprep.subr.bf16.mxu0 0
        %2346 = vmatpush1.bf16.msra.mxu0 %v2322
        %2347 = vmatprep.subr.bf16.mxu0 0
        %2348 = vmatpush1.bf16.msra.mxu0 0
        %2349 = vmatprep.subr.bf16.mxu0 0
        %2350 = vmatpush1.bf16.msra.mxu0 0
        %2351 = vmatprep.subr.bf16.mxu0 0
        %2352 = vmatpush1.bf16.msra.mxu0 0
        %2353 = vmatprep.subr.bf16.mxu0 0
        %2354 = vmatpush1.bf16.msra.mxu0 0
        %2355 = vmatprep.subr.bf16.mxu0 0
        %2356 = vmatpush1.bf16.msra.mxu0 0
        %2357 = vmatprep.subr.bf16.mxu0 0
        %2358 = vmatpush1.bf16.msra.mxu0 0
        %2359 = vmatprep.subr.bf16.mxu0 0
        %2360 = vmatpush1.bf16.msra.mxu0 0
        %2361 = vmatprep.subr.bf16.mxu0 0
        %2362 = vmatpush1.bf16.msra.mxu0 0
        %2363 = vmatprep.subr.bf16.mxu0 0
        %2364 = vmatpush1.bf16.msra.mxu0 0
        %2365 = vmatprep.subr.bf16.mxu0 0
        %2366 = vmatpush1.bf16.msra.mxu0 0
        %2367 = vmatprep.subr.bf16.mxu0 0
        %2368 = vmatpush1.bf16.msra.mxu0 0
        %2369 = vmatprep.subr.bf16.mxu0 0
        %2370 = vmatpush1.bf16.msra.mxu0 0
        %2371 = vmatprep.mubr.bf16.mxu0 0
        %2372 = vmatmul.mubr.bf16.gmra.mrb[0].mxu0 %v2328
        %v2373 = vpop.f32.mrb[0].mxu0
        %v2374 = vadd.f32 0.0, %v2373
        %v2375 = vpop.f32.mrb[0].mxu0
        %v2376 = vpop.f32.mrb[0].mxu0
        %v2377 = vadd.f32 0.0, %v2376
        %v2378 = vpop.f32.mrb[0].mxu0
        %2379 = vmatprep.mubr.bf16.mxu0 0
        %2380 = vmatmul.mubr.bf16.gmra.mrb[0].mxu0 %v2331
        %v2381 = vpop.f32.mrb[0].mxu0
        %v2382 = vadd.f32 0.0, %v2381
        %v2383 = vpop.f32.mrb[0].mxu0
        %v2384 = vpop.f32.mrb[0].mxu0
        %v2385 = vadd.f32 0.0, %v2384
        %v2386 = vpop.f32.mrb[0].mxu0
        %2387 = vmatprep.mubr.bf16.mxu0 0
        %2388 = vmatmul.mubr.bf16.gmra.mrb[0].mxu0 %v2334
        %v2389 = vpop.f32.mrb[0].mxu0
        %v2390 = vadd.f32 0.0, %v2389
        %v2391 = vpop.f32.mrb[0].mxu0
        %v2392 = vpop.f32.mrb[0].mxu0
        %v2393 = vadd.f32 0.0, %v2392
        %v2394 = vpop.f32.mrb[0].mxu0
        %2395 = vmatprep.mubr.bf16.mxu0 0
        %2396 = vmatmul.mubr.bf16.gmra.mrb[0].mxu0 %v2337
        %v2397 = vpop.f32.mrb[0].mxu0
        %v2398 = vadd.f32 0.0, %v2397
        %v2399 = vpop.f32.mrb[0].mxu0
        %v2400 = vpop.f32.mrb[0].mxu0
        %v2401 = vadd.f32 0.0, %v2400
        %v2402 = vpop.f32.mrb[0].mxu0
        %2403 = vdwg.mxu0
        %v2404 = vadd.f32 %v2243, %v2374
        %v2405 = vadd.f32 %v2244, %v2377
        %v2406 = vadd.f32 %v2245, %v2382
        %v2407 = vadd.f32 %v2246, %v2385
        %v2408 = vadd.f32 %v2247, %v2390
        %v2409 = vadd.f32 %v2248, %v2393
        %v2410 = vadd.f32 %v2249, %v2398
        %v2411 = vadd.f32 %v2250, %v2401
        %2412 = vset.pattern.permute.xlu0 8
        %2413 = vperm.xlu0 %2412, %v649
        %v2414 = vpop.permute.xlu0 %2413
        %2416 = vset.pattern.permute.xlu0 8
        %2417 = vperm.xlu0 %2416, %v650
        %v2418 = vpop.permute.xlu0 %2417
        %2420 = vset.pattern.permute.xlu0 8
        %2421 = vperm.xlu0 %2420, %v651
        %v2422 = vpop.permute.xlu0 %2421
        %2424 = vset.pattern.permute.xlu0 8
        %2425 = vperm.xlu0 %2424, %v652
        %v2426 = vpop.permute.xlu0 %2425
        %2428 = vset.pattern.permute.xlu0 8
        %2429 = vperm.xlu0 %2428, %v653
        %v2430 = vpop.permute.xlu0 %2429
        %2432 = vset.pattern.permute.xlu0 8
        %2433 = vperm.xlu0 %2432, %v654
        %v2434 = vpop.permute.xlu0 %2433
        %2436 = vset.pattern.permute.xlu0 8
        %2437 = vperm.xlu0 %2436, %v655
        %v2438 = vpop.permute.xlu0 %2437
        %2440 = vset.pattern.permute.xlu0 8
        %2441 = vperm.xlu0 %2440, %v656
        %v2442 = vpop.permute.xlu0 %2441
        %v2444 = vmul.f32 %v1483, %v2414
        %v2445 = vmul.f32 %v1482, %v2418
        %v2446 = vmul.f32 %v1481, %v2422
        %v2447 = vmul.f32 %v1480, %v2426
        %v2448 = vmul.f32 %v1479, %v2430
        %v2449 = vmul.f32 %v1478, %v2434
        %v2450 = vmul.f32 %v1485, %v2438
        %v2451 = vmul.f32 %v1484, %v2442
        %v2452 = vpack.c.bf16 %v2445, %v2444
        %v2453 = vpack.c.bf16 %v2447, %v2446
        %v2454 = vpack.c.bf16 %v2449, %v2448
        %v2455 = vpack.c.bf16 %v2451, %v2450
        %v2456 = vld [vmem:[%s3 + $0x100] sm:$0xf]
        %v2457 = vld [vmem:[%s3 + $0x104] sm:$0xf]
        %v2458 = vld [vmem:[%s3 + $0x108] sm:$0xf]
        %v2459 = vld [vmem:[%s3 + $0x10c] sm:$0xf]
        %v2460 = vld [vmem:[%s3 + $0x110] sm:$0xf]
        %v2461 = vld [vmem:[%s3 + $0x114] sm:$0xf]
        %v2462 = vld [vmem:[%s3 + $0x118] sm:$0xf]
        %v2463 = vld [vmem:[%s3 + $0x11c] sm:$0xf]
        %v2472 = vunpack.c.l.b16 %v2456
        %v2473 = vunpack.c.l.b16 %v2457
        %v2474 = vunpack.c.l.b16 %v2458
        %v2475 = vunpack.c.l.b16 %v2459
        %v2476 = vunpack.c.l.b16 %v2460
        %v2477 = vunpack.c.l.b16 %v2461
        %v2478 = vunpack.c.l.b16 %v2462
        %v2479 = vunpack.c.l.b16 %v2463
        %v2480 = vpack.c.b16 %v2473, %v2472
        %v2481 = vpack.c.b16 %v2475, %v2474
        %v2482 = vpack.c.b16 %v2477, %v2476
        %v2483 = vpack.c.b16 %v2479, %v2478
        %v2489 = vsel %vm665, %v2452, 0
        %v2492 = vsel %vm665, %v2453, 0
        %v2495 = vsel %vm665, %v2454, 0
        %v2498 = vsel %vm665, %v2455, 0
        %2500 = vmatprep.subr.bf16.mxu0 0
        %2501 = vmatpush1.bf16.msra.mxu0 %v2480
        %2502 = vmatprep.subr.bf16.mxu0 0
        %2503 = vmatpush1.bf16.msra.mxu0 %v2481
        %2504 = vmatprep.subr.bf16.mxu0 0
        %2505 = vmatpush1.bf16.msra.mxu0 %v2482
        %2506 = vmatprep.subr.bf16.mxu0 0
        %2507 = vmatpush1.bf16.msra.mxu0 %v2483
        %2508 = vmatprep.subr.bf16.mxu0 0
        %2509 = vmatpush1.bf16.msra.mxu0 0
        %2510 = vmatprep.subr.bf16.mxu0 0
        %2511 = vmatpush1.bf16.msra.mxu0 0
        %2512 = vmatprep.subr.bf16.mxu0 0
        %2513 = vmatpush1.bf16.msra.mxu0 0
        %2514 = vmatprep.subr.bf16.mxu0 0
        %2515 = vmatpush1.bf16.msra.mxu0 0
        %2516 = vmatprep.subr.bf16.mxu0 0
        %2517 = vmatpush1.bf16.msra.mxu0 0
        %2518 = vmatprep.subr.bf16.mxu0 0
        %2519 = vmatpush1.bf16.msra.mxu0 0
        %2520 = vmatprep.subr.bf16.mxu0 0
        %2521 = vmatpush1.bf16.msra.mxu0 0
        %2522 = vmatprep.subr.bf16.mxu0 0
        %2523 = vmatpush1.bf16.msra.mxu0 0
        %2524 = vmatprep.subr.bf16.mxu0 0
        %2525 = vmatpush1.bf16.msra.mxu0 0
        %2526 = vmatprep.subr.bf16.mxu0 0
        %2527 = vmatpush1.bf16.msra.mxu0 0
        %2528 = vmatprep.subr.bf16.mxu0 0
        %2529 = vmatpush1.bf16.msra.mxu0 0
        %2530 = vmatprep.subr.bf16.mxu0 0
        %2531 = vmatpush1.bf16.msra.mxu0 0
        %2532 = vmatprep.mubr.bf16.mxu0 0
        %2533 = vmatmul.mubr.bf16.gmra.mrb[0].mxu0 %v2489
        %v2534 = vpop.f32.mrb[0].mxu0
        %v2535 = vadd.f32 0.0, %v2534
        %v2536 = vpop.f32.mrb[0].mxu0
        %v2537 = vpop.f32.mrb[0].mxu0
        %v2538 = vadd.f32 0.0, %v2537
        %v2539 = vpop.f32.mrb[0].mxu0
        %2540 = vmatprep.mubr.bf16.mxu0 0
        %2541 = vmatmul.mubr.bf16.gmra.mrb[0].mxu0 %v2492
        %v2542 = vpop.f32.mrb[0].mxu0
        %v2543 = vadd.f32 0.0, %v2542
        %v2544 = vpop.f32.mrb[0].mxu0
        %v2545 = vpop.f32.mrb[0].mxu0
        %v2546 = vadd.f32 0.0, %v2545
        %v2547 = vpop.f32.mrb[0].mxu0
        %2548 = vmatprep.mubr.bf16.mxu0 0
        %2549 = vmatmul.mubr.bf16.gmra.mrb[0].mxu0 %v2495
        %v2550 = vpop.f32.mrb[0].mxu0
        %v2551 = vadd.f32 0.0, %v2550
        %v2552 = vpop.f32.mrb[0].mxu0
        %v2553 = vpop.f32.mrb[0].mxu0
        %v2554 = vadd.f32 0.0, %v2553
        %v2555 = vpop.f32.mrb[0].mxu0
        %2556 = vmatprep.mubr.bf16.mxu0 0
        %2557 = vmatmul.mubr.bf16.gmra.mrb[0].mxu0 %v2498
        %v2558 = vpop.f32.mrb[0].mxu0
        %v2559 = vadd.f32 0.0, %v2558
        %v2560 = vpop.f32.mrb[0].mxu0
        %v2561 = vpop.f32.mrb[0].mxu0
        %v2562 = vadd.f32 0.0, %v2561
        %v2563 = vpop.f32.mrb[0].mxu0
        %2564 = vdwg.mxu0
        %v2565 = vadd.f32 %v2404, %v2535
        %v2566 = vadd.f32 %v2405, %v2538
        %v2567 = vadd.f32 %v2406, %v2543
        %v2568 = vadd.f32 %v2407, %v2546
        %v2569 = vadd.f32 %v2408, %v2551
        %v2570 = vadd.f32 %v2409, %v2554
        %v2571 = vadd.f32 %v2410, %v2559
        %v2572 = vadd.f32 %v2411, %v2562
        %v2573 = vld [vmem:[#allocation5] sm:$0x1]
        %v2575 = vlaneseq
        %v2576 = vshrl.u32 %v2575, 7
        %v2577 = vsub.s32 0, %v2576
        %v2578 = vrot.slane %v2573, %v2577
        %v2580 = vadd.f32 %v2565, %v2578
        %v2581 = vadd.f32 %v2566, %v2578
        %v2582 = vadd.f32 %v2567, %v2578
        %v2583 = vadd.f32 %v2568, %v2578
        %v2584 = vadd.f32 %v2569, %v2578
        %v2585 = vadd.f32 %v2570, %v2578
        %v2586 = vadd.f32 %v2571, %v2578
        %v2587 = vadd.f32 %v2572, %v2578
        %v2588 = vadd.f32 %v2580, %v2581
        %v2589 = vadd.f32 %v2588, %v2582
        %v2590 = vadd.f32 %v2589, %v2583
        %v2591 = vadd.f32 %v2590, %v2584
        %v2592 = vadd.f32 %v2591, %v2585
        %v2593 = vadd.f32 %v2592, %v2586
        %v2594 = vadd.f32 %v2593, %v2587
        %v2595 = vrot.slane %v2594, 4
        %v2596 = vadd.f32 %v2594, %v2595
        %v2597 = vrot.slane %v2596, 2
        %v2598 = vadd.f32 %v2596, %v2597
        %v2599 = vrot.slane %v2598, 1
        %v2600 = vadd.f32 %v2598, %v2599
        %v2601 = vmul.f32 %v2580, %v2580
        %v2602 = vmul.f32 %v2581, %v2581
        %v2603 = vmul.f32 %v2582, %v2582
        %v2604 = vmul.f32 %v2583, %v2583
        %v2605 = vmul.f32 %v2584, %v2584
        %v2606 = vmul.f32 %v2585, %v2585
        %v2607 = vmul.f32 %v2586, %v2586
        %v2608 = vmul.f32 %v2587, %v2587
        %v2609 = vadd.f32 %v2601, %v2602
        %v2610 = vadd.f32 %v2609, %v2603
        %v2611 = vadd.f32 %v2610, %v2604
        %v2612 = vadd.f32 %v2611, %v2605
        %v2613 = vadd.f32 %v2612, %v2606
        %v2614 = vadd.f32 %v2613, %v2607
        %v2615 = vadd.f32 %v2614, %v2608
        %v2616 = vrot.slane %v2615, 4
        %v2617 = vadd.f32 %v2615, %v2616
        %v2618 = vrot.slane %v2617, 2
        %v2619 = vadd.f32 %v2617, %v2618
        %v2620 = vrot.slane %v2619, 1
        %v2621 = vadd.f32 %v2619, %v2620
        %v2622 = vld [vmem:[%s11] sm:$0xff]
        %v2623 = vld [vmem:[%s11 + $0x8] sm:$0xff]
        %v2624 = vld [vmem:[%s11 + $0x10] sm:$0xff]
        %v2625 = vld [vmem:[%s11 + $0x18] sm:$0xff]
        %v2626 = vld [vmem:[%s11 + $0x20] sm:$0xff]
        %v2627 = vld [vmem:[%s11 + $0x28] sm:$0xff]
        %v2628 = vld [vmem:[%s11 + $0x30] sm:$0xff]
        %v2629 = vld [vmem:[%s11 + $0x38] sm:$0xff]
        %v2630 = vld [vmem:[%s11 + $0x40] sm:$0xff]
        %v2631 = vld [vmem:[%s11 + $0x48] sm:$0xff]
        %v2632 = vld [vmem:[%s11 + $0x50] sm:$0xff]
        %v2633 = vld [vmem:[%s11 + $0x58] sm:$0xff]
        %v2634 = vld [vmem:[%s11 + $0x60] sm:$0xff]
        %v2635 = vld [vmem:[%s11 + $0x68] sm:$0xff]
        %v2636 = vld [vmem:[%s11 + $0x70] sm:$0xff]
        %v2637 = vld [vmem:[%s11 + $0x78] sm:$0xff]
        %2638 = vmatprep.subr.mxu0 0.0
        %2639 = vmatpush1.msra.mxu0 %v2622
        %2640 = vmatprep.subr.mxu0 0.0
        %2641 = vmatpush1.msra.mxu0 %v2623
        %2642 = vmatprep.subr.mxu0 0.0
        %2643 = vmatpush1.msra.mxu0 %v2624
        %2644 = vmatprep.subr.mxu0 0.0
        %2645 = vmatpush1.msra.mxu0 %v2625
        %2646 = vmatprep.subr.mxu0 0.0
        %2647 = vmatpush1.msra.mxu0 %v2626
        %2648 = vmatprep.subr.mxu0 0.0
        %2649 = vmatpush1.msra.mxu0 %v2627
        %2650 = vmatprep.subr.mxu0 0.0
        %2651 = vmatpush1.msra.mxu0 %v2628
        %2652 = vmatprep.subr.mxu0 0.0
        %2653 = vmatpush1.msra.mxu0 %v2629
        %2654 = vmatprep.subr.mxu0 0.0
        %2655 = vmatpush1.msra.mxu0 %v2630
        %2656 = vmatprep.subr.mxu0 0.0
        %2657 = vmatpush1.msra.mxu0 %v2631
        %2658 = vmatprep.subr.mxu0 0.0
        %2659 = vmatpush1.msra.mxu0 %v2632
        %2660 = vmatprep.subr.mxu0 0.0
        %2661 = vmatpush1.msra.mxu0 %v2633
        %2662 = vmatprep.subr.mxu0 0.0
        %2663 = vmatpush1.msra.mxu0 %v2634
        %2664 = vmatprep.subr.mxu0 0.0
        %2665 = vmatpush1.msra.mxu0 %v2635
        %2666 = vmatprep.subr.mxu0 0.0
        %2667 = vmatpush1.msra.mxu0 %v2636
        %2668 = vmatprep.subr.mxu0 0.0
        %2669 = vmatpush1.msra.mxu0 %v2637
        %2670 = vmatprep.subr.mxu0 0.0
        %2671 = vmatpush1.msra.mxu0 0.0
        %2672 = vmatprep.subr.mxu0 0.0
        %2673 = vmatpush1.msra.mxu0 0.0
        %2674 = vmatprep.subr.mxu0 0.0
        %2675 = vmatpush1.msra.mxu0 0.0
        %2676 = vmatprep.subr.mxu0 0.0
        %2677 = vmatpush1.msra.mxu0 0.0
        %2678 = vmatprep.subr.mxu0 0.0
        %2679 = vmatpush1.msra.mxu0 0.0
        %2680 = vmatprep.subr.mxu0 0.0
        %2681 = vmatpush1.msra.mxu0 0.0
        %2682 = vmatprep.subr.mxu0 0.0
        %2683 = vmatpush1.msra.mxu0 0.0
        %2684 = vmatprep.subr.mxu0 0.0
        %2685 = vmatpush1.msra.mxu0 0.0
        %2686 = vmatprep.subr.mxu0 0.0
        %2687 = vmatpush1.msra.mxu0 0.0
        %2688 = vmatprep.subr.mxu0 0.0
        %2689 = vmatpush1.msra.mxu0 0.0
        %2690 = vmatprep.subr.mxu0 0.0
        %2691 = vmatpush1.msra.mxu0 0.0
        %2692 = vmatprep.subr.mxu0 0.0
        %2693 = vmatpush1.msra.mxu0 0.0
        %2694 = vmatprep.subr.mxu0 0.0
        %2695 = vmatpush1.msra.mxu0 0.0
        %2696 = vmatprep.subr.mxu0 0.0
        %2697 = vmatpush1.msra.mxu0 0.0
        %2698 = vmatprep.subr.mxu0 0.0
        %2699 = vmatpush1.msra.mxu0 0.0
        %2700 = vmatprep.subr.mxu0 0.0
        %2701 = vmatpush1.msra.mxu0 0.0
        %2702 = vmatprep.mubr.f32.mxu0 0.0
        %2703 = vmatmul.mubr.f32.gmra.mrb[0].mxu0 %v2600
        %v2704 = vpop.f32.mrb[0].mxu0
        %v2705 = vadd.f32 0.0, %v2704
        %v2706 = vpop.f32.mrb[0].mxu0
        %2707 = vdwg.mxu0
        %2708 = vmatprep.subr.mxu0 0.0
        %2709 = vmatpush1.msra.mxu0 %v2622
        %2710 = vmatprep.subr.mxu0 0.0
        %2711 = vmatpush1.msra.mxu0 %v2623
        %2712 = vmatprep.subr.mxu0 0.0
        %2713 = vmatpush1.msra.mxu0 %v2624
        %2714 = vmatprep.subr.mxu0 0.0
        %2715 = vmatpush1.msra.mxu0 %v2625
        %2716 = vmatprep.subr.mxu0 0.0
        %2717 = vmatpush1.msra.mxu0 %v2626
        %2718 = vmatprep.subr.mxu0 0.0
        %2719 = vmatpush1.msra.mxu0 %v2627
        %2720 = vmatprep.subr.mxu0 0.0
        %2721 = vmatpush1.msra.mxu0 %v2628
        %2722 = vmatprep.subr.mxu0 0.0
        %2723 = vmatpush1.msra.mxu0 %v2629
        %2724 = vmatprep.subr.mxu0 0.0
        %2725 = vmatpush1.msra.mxu0 %v2630
        %2726 = vmatprep.subr.mxu0 0.0
        %2727 = vmatpush1.msra.mxu0 %v2631
        %2728 = vmatprep.subr.mxu0 0.0
        %2729 = vmatpush1.msra.mxu0 %v2632
        %2730 = vmatprep.subr.mxu0 0.0
        %2731 = vmatpush1.msra.mxu0 %v2633
        %2732 = vmatprep.subr.mxu0 0.0
        %2733 = vmatpush1.msra.mxu0 %v2634
        %2734 = vmatprep.subr.mxu0 0.0
        %2735 = vmatpush1.msra.mxu0 %v2635
        %2736 = vmatprep.subr.mxu0 0.0
        %2737 = vmatpush1.msra.mxu0 %v2636
        %2738 = vmatprep.subr.mxu0 0.0
        %2739 = vmatpush1.msra.mxu0 %v2637
        %2740 = vmatprep.subr.mxu0 0.0
        %2741 = vmatpush1.msra.mxu0 0.0
        %2742 = vmatprep.subr.mxu0 0.0
        %2743 = vmatpush1.msra.mxu0 0.0
        %2744 = vmatprep.subr.mxu0 0.0
        %2745 = vmatpush1.msra.mxu0 0.0
        %2746 = vmatprep.subr.mxu0 0.0
        %2747 = vmatpush1.msra.mxu0 0.0
        %2748 = vmatprep.subr.mxu0 0.0
        %2749 = vmatpush1.msra.mxu0 0.0
        %2750 = vmatprep.subr.mxu0 0.0
        %2751 = vmatpush1.msra.mxu0 0.0
        %2752 = vmatprep.subr.mxu0 0.0
        %2753 = vmatpush1.msra.mxu0 0.0
        %2754 = vmatprep.subr.mxu0 0.0
        %2755 = vmatpush1.msra.mxu0 0.0
        %2756 = vmatprep.subr.mxu0 0.0
        %2757 = vmatpush1.msra.mxu0 0.0
        %2758 = vmatprep.subr.mxu0 0.0
        %2759 = vmatpush1.msra.mxu0 0.0
        %2760 = vmatprep.subr.mxu0 0.0
        %2761 = vmatpush1.msra.mxu0 0.0
        %2762 = vmatprep.subr.mxu0 0.0
        %2763 = vmatpush1.msra.mxu0 0.0
        %2764 = vmatprep.subr.mxu0 0.0
        %2765 = vmatpush1.msra.mxu0 0.0
        %2766 = vmatprep.subr.mxu0 0.0
        %2767 = vmatpush1.msra.mxu0 0.0
        %2768 = vmatprep.subr.mxu0 0.0
        %2769 = vmatpush1.msra.mxu0 0.0
        %2770 = vmatprep.subr.mxu0 0.0
        %2771 = vmatpush1.msra.mxu0 0.0
        %2772 = vmatprep.mubr.f32.mxu0 0.0
        %2773 = vmatmul.mubr.f32.gmra.mrb[0].mxu0 %v2621
        %v2774 = vpop.f32.mrb[0].mxu0
        %v2775 = vadd.f32 0.0, %v2774
        %v2776 = vpop.f32.mrb[0].mxu0
        %2777 = vdwg.mxu0
        %v2778 = vmul.f32 %v2705, %v2705
        %v2779 = vsub.f32 %v2775, %v2778
        %v2780 = vmax.f32 %v2779, 0.0
        %v2781 = vadd.f32 %v2780, 1e-05
        %v2782 = vrsqrt.pop %v2781
        %v2783 = vld [vmem:[#allocation14] sm:$0xff]
        %v2784 = vld [vmem:[#allocation14 + $0x8] sm:$0xff]
        %v2785 = vld [vmem:[#allocation14 + $0x10] sm:$0xff]
        %v2786 = vld [vmem:[#allocation14 + $0x18] sm:$0xff]
        %v2788 = vsel %vm879, %v2705, 0
        %2790 = vmatprep.subr.mxu0 0.0
        %2791 = vmatpush1.msra.mxu0 %v2783
        %2792 = vmatprep.subr.mxu0 0.0
        %2793 = vmatpush1.msra.mxu0 %v2784
        %2794 = vmatprep.subr.mxu0 0.0
        %2795 = vmatpush1.msra.mxu0 %v2785
        %2796 = vmatprep.subr.mxu0 0.0
        %2797 = vmatpush1.msra.mxu0 %v2786
        %2798 = vmatprep.subr.mxu0 0.0
        %2799 = vmatpush1.msra.mxu0 0.0
        %2800 = vmatprep.subr.mxu0 0.0
        %2801 = vmatpush1.msra.mxu0 0.0
        %2802 = vmatprep.subr.mxu0 0.0
        %2803 = vmatpush1.msra.mxu0 0.0
        %2804 = vmatprep.subr.mxu0 0.0
        %2805 = vmatpush1.msra.mxu0 0.0
        %2806 = vmatprep.subr.mxu0 0.0
        %2807 = vmatpush1.msra.mxu0 0.0
        %2808 = vmatprep.subr.mxu0 0.0
        %2809 = vmatpush1.msra.mxu0 0.0
        %2810 = vmatprep.subr.mxu0 0.0
        %2811 = vmatpush1.msra.mxu0 0.0
        %2812 = vmatprep.subr.mxu0 0.0
        %2813 = vmatpush1.msra.mxu0 0.0
        %2814 = vmatprep.subr.mxu0 0.0
        %2815 = vmatpush1.msra.mxu0 0.0
        %2816 = vmatprep.subr.mxu0 0.0
        %2817 = vmatpush1.msra.mxu0 0.0
        %2818 = vmatprep.subr.mxu0 0.0
        %2819 = vmatpush1.msra.mxu0 0.0
        %2820 = vmatprep.subr.mxu0 0.0
        %2821 = vmatpush1.msra.mxu0 0.0
        %2822 = vmatprep.subr.mxu0 0.0
        %2823 = vmatpush1.msra.mxu0 0.0
        %2824 = vmatprep.subr.mxu0 0.0
        %2825 = vmatpush1.msra.mxu0 0.0
        %2826 = vmatprep.subr.mxu0 0.0
        %2827 = vmatpush1.msra.mxu0 0.0
        %2828 = vmatprep.subr.mxu0 0.0
        %2829 = vmatpush1.msra.mxu0 0.0
        %2830 = vmatprep.subr.mxu0 0.0
        %2831 = vmatpush1.msra.mxu0 0.0
        %2832 = vmatprep.subr.mxu0 0.0
        %2833 = vmatpush1.msra.mxu0 0.0
        %2834 = vmatprep.subr.mxu0 0.0
        %2835 = vmatpush1.msra.mxu0 0.0
        %2836 = vmatprep.subr.mxu0 0.0
        %2837 = vmatpush1.msra.mxu0 0.0
        %2838 = vmatprep.subr.mxu0 0.0
        %2839 = vmatpush1.msra.mxu0 0.0
        %2840 = vmatprep.subr.mxu0 0.0
        %2841 = vmatpush1.msra.mxu0 0.0
        %2842 = vmatprep.subr.mxu0 0.0
        %2843 = vmatpush1.msra.mxu0 0.0
        %2844 = vmatprep.subr.mxu0 0.0
        %2845 = vmatpush1.msra.mxu0 0.0
        %2846 = vmatprep.subr.mxu0 0.0
        %2847 = vmatpush1.msra.mxu0 0.0
        %2848 = vmatprep.subr.mxu0 0.0
        %2849 = vmatpush1.msra.mxu0 0.0
        %2850 = vmatprep.subr.mxu0 0.0
        %2851 = vmatpush1.msra.mxu0 0.0
        %2852 = vmatprep.subr.mxu0 0.0
        %2853 = vmatpush1.msra.mxu0 0.0
        %2854 = vmatprep.mubr.f32.mxu0 0.0
        %2855 = vmatmul.mubr.f32.gmra.mrb[0].mxu0 %v2788
        %v2856 = vpop.f32.mrb[0].mxu0
        %v2857 = vadd.f32 0.0, %v2856
        %v2858 = vpop.f32.mrb[0].mxu0
        %2859 = vdwg.mxu0
        %v2861 = vsel %vm879, %v2782, 0
        %2863 = vmatprep.subr.mxu0 0.0
        %2864 = vmatpush1.msra.mxu0 %v2783
        %2865 = vmatprep.subr.mxu0 0.0
        %2866 = vmatpush1.msra.mxu0 %v2784
        %2867 = vmatprep.subr.mxu0 0.0
        %2868 = vmatpush1.msra.mxu0 %v2785
        %2869 = vmatprep.subr.mxu0 0.0
        %2870 = vmatpush1.msra.mxu0 %v2786
        %2871 = vmatprep.subr.mxu0 0.0
        %2872 = vmatpush1.msra.mxu0 0.0
        %2873 = vmatprep.subr.mxu0 0.0
        %2874 = vmatpush1.msra.mxu0 0.0
        %2875 = vmatprep.subr.mxu0 0.0
        %2876 = vmatpush1.msra.mxu0 0.0
        %2877 = vmatprep.subr.mxu0 0.0
        %2878 = vmatpush1.msra.mxu0 0.0
        %2879 = vmatprep.subr.mxu0 0.0
        %2880 = vmatpush1.msra.mxu0 0.0
        %2881 = vmatprep.subr.mxu0 0.0
        %2882 = vmatpush1.msra.mxu0 0.0
        %2883 = vmatprep.subr.mxu0 0.0
        %2884 = vmatpush1.msra.mxu0 0.0
        %2885 = vmatprep.subr.mxu0 0.0
        %2886 = vmatpush1.msra.mxu0 0.0
        %2887 = vmatprep.subr.mxu0 0.0
        %2888 = vmatpush1.msra.mxu0 0.0
        %2889 = vmatprep.subr.mxu0 0.0
        %2890 = vmatpush1.msra.mxu0 0.0
        %2891 = vmatprep.subr.mxu0 0.0
        %2892 = vmatpush1.msra.mxu0 0.0
        %2893 = vmatprep.subr.mxu0 0.0
        %2894 = vmatpush1.msra.mxu0 0.0
        %2895 = vmatprep.subr.mxu0 0.0
        %2896 = vmatpush1.msra.mxu0 0.0
        %2897 = vmatprep.subr.mxu0 0.0
        %2898 = vmatpush1.msra.mxu0 0.0
        %2899 = vmatprep.subr.mxu0 0.0
        %2900 = vmatpush1.msra.mxu0 0.0
        %2901 = vmatprep.subr.mxu0 0.0
        %2902 = vmatpush1.msra.mxu0 0.0
        %2903 = vmatprep.subr.mxu0 0.0
        %2904 = vmatpush1.msra.mxu0 0.0
        %2905 = vmatprep.subr.mxu0 0.0
        %2906 = vmatpush1.msra.mxu0 0.0
        %2907 = vmatprep.subr.mxu0 0.0
        %2908 = vmatpush1.msra.mxu0 0.0
        %2909 = vmatprep.subr.mxu0 0.0
        %2910 = vmatpush1.msra.mxu0 0.0
        %2911 = vmatprep.subr.mxu0 0.0
        %2912 = vmatpush1.msra.mxu0 0.0
        %2913 = vmatprep.subr.mxu0 0.0
        %2914 = vmatpush1.msra.mxu0 0.0
        %2915 = vmatprep.subr.mxu0 0.0
        %2916 = vmatpush1.msra.mxu0 0.0
        %2917 = vmatprep.subr.mxu0 0.0
        %2918 = vmatpush1.msra.mxu0 0.0
        %2919 = vmatprep.subr.mxu0 0.0
        %2920 = vmatpush1.msra.mxu0 0.0
        %2921 = vmatprep.subr.mxu0 0.0
        %2922 = vmatpush1.msra.mxu0 0.0
        %2923 = vmatprep.subr.mxu0 0.0
        %2924 = vmatpush1.msra.mxu0 0.0
        %2925 = vmatprep.subr.mxu0 0.0
        %2926 = vmatpush1.msra.mxu0 0.0
        %2927 = vmatprep.mubr.f32.mxu0 0.0
        %2928 = vmatmul.mubr.f32.gmra.mrb[0].mxu0 %v2861
        %v2929 = vpop.f32.mrb[0].mxu0
        %v2930 = vadd.f32 0.0, %v2929
        %v2931 = vpop.f32.mrb[0].mxu0
        %2932 = vdwg.mxu0
        %v2933 = vld [vmem:[#allocation7] sm:$0x1]
        %v2934 = vld [vmem:[#allocation8] sm:$0x1]
        %v2935 = vlaneseq
        %v2936 = vshrl.u32 %v2935, 7
        %v2937 = vsub.s32 0, %v2936
        %v2938 = vrot.slane %v2857, %v2937
        %v2939 = vsub.f32 %v2580, %v2938
        %v2940 = vsub.f32 %v2581, %v2938
        %v2941 = vsub.f32 %v2582, %v2938
        %v2942 = vsub.f32 %v2583, %v2938
        %v2943 = vsub.f32 %v2584, %v2938
        %v2944 = vsub.f32 %v2585, %v2938
        %v2945 = vsub.f32 %v2586, %v2938
        %v2946 = vsub.f32 %v2587, %v2938
        %v2947 = vlaneseq
        %v2948 = vshrl.u32 %v2947, 7
        %v2949 = vsub.s32 0, %v2948
        %v2950 = vrot.slane %v2930, %v2949
        %v2951 = vmul.f32 %v2939, %v2950
        %v2952 = vmul.f32 %v2940, %v2950
        %v2953 = vmul.f32 %v2941, %v2950
        %v2954 = vmul.f32 %v2942, %v2950
        %v2955 = vmul.f32 %v2943, %v2950
        %v2956 = vmul.f32 %v2944, %v2950
        %v2957 = vmul.f32 %v2945, %v2950
        %v2958 = vmul.f32 %v2946, %v2950
        %v2960 = vlaneseq
        %v2961 = vshrl.u32 %v2960, 7
        %v2962 = vsub.s32 0, %v2961
        %v2963 = vrot.slane %v2933, %v2962
        %v2965 = vmul.f32 %v2951, %v2963
        %v2966 = vmul.f32 %v2952, %v2963
        %v2967 = vmul.f32 %v2953, %v2963
        %v2968 = vmul.f32 %v2954, %v2963
        %v2969 = vmul.f32 %v2955, %v2963
        %v2970 = vmul.f32 %v2956, %v2963
        %v2971 = vmul.f32 %v2957, %v2963
        %v2972 = vmul.f32 %v2958, %v2963
        %v2974 = vlaneseq
        %v2975 = vshrl.u32 %v2974, 7
        %v2976 = vsub.s32 0, %v2975
        %v2977 = vrot.slane %v2934, %v2976
        %v2979 = vadd.f32 %v2965, %v2977
        %v2980 = vadd.f32 %v2966, %v2977
        %v2981 = vadd.f32 %v2967, %v2977
        %v2982 = vadd.f32 %v2968, %v2977
        %v2983 = vadd.f32 %v2969, %v2977
        %v2984 = vadd.f32 %v2970, %v2977
        %v2985 = vadd.f32 %v2971, %v2977
        %v2986 = vadd.f32 %v2972, %v2977
        %v2987 = vxor.u32 %v2979, 2147483648
        %v2988 = vxor.u32 %v2980, 2147483648
        %v2989 = vxor.u32 %v2981, 2147483648
        %v2990 = vxor.u32 %v2982, 2147483648
        %v2991 = vxor.u32 %v2983, 2147483648
        %v2992 = vxor.u32 %v2984, 2147483648
        %v2993 = vxor.u32 %v2985, 2147483648
        %v2994 = vxor.u32 %v2986, 2147483648
        %v2995 = vmul.f32 %v2987, 1.442695
        %v2996 = vpow.pop %v2995
        %v2997 = vmul.f32 %v2988, 1.442695
        %v2998 = vpow.pop %v2997
        %v2999 = vmul.f32 %v2989, 1.442695
        %v3000 = vpow.pop %v2999
        %v3001 = vmul.f32 %v2990, 1.442695
        %v3002 = vpow.pop %v3001
        %v3003 = vmul.f32 %v2991, 1.442695
        %v3004 = vpow.pop %v3003
        %v3005 = vmul.f32 %v2992, 1.442695
        %v3006 = vpow.pop %v3005
        %v3007 = vmul.f32 %v2993, 1.442695
        %v3008 = vpow.pop %v3007
        %v3009 = vmul.f32 %v2994, 1.442695
        %v3010 = vpow.pop %v3009
        %v3011 = vadd.f32 %v2996, 1.0
        %v3012 = vadd.f32 %v2998, 1.0
        %v3013 = vadd.f32 %v3000, 1.0
        %v3014 = vadd.f32 %v3002, 1.0
        %v3015 = vadd.f32 %v3004, 1.0
        %v3016 = vadd.f32 %v3006, 1.0
        %v3017 = vadd.f32 %v3008, 1.0
        %v3018 = vadd.f32 %v3010, 1.0
        %v3019 = vrcp.pop %v3011
        %v3020 = vmul.f32 1.0, %v3019
        %v3021 = vrcp.pop %v3012
        %v3022 = vmul.f32 1.0, %v3021
        %v3023 = vrcp.pop %v3013
        %v3024 = vmul.f32 1.0, %v3023
        %v3025 = vrcp.pop %v3014
        %v3026 = vmul.f32 1.0, %v3025
        %v3027 = vrcp.pop %v3015
        %v3028 = vmul.f32 1.0, %v3027
        %v3029 = vrcp.pop %v3016
        %v3030 = vmul.f32 1.0, %v3029
        %v3031 = vrcp.pop %v3017
        %v3032 = vmul.f32 1.0, %v3031
        %v3033 = vrcp.pop %v3018
        %v3034 = vmul.f32 1.0, %v3033
        %v3035 = vmul.f32 %v2979, %v3020
        %v3036 = vmul.f32 %v2980, %v3022
        %v3037 = vmul.f32 %v2981, %v3024
        %v3038 = vmul.f32 %v2982, %v3026
        %v3039 = vmul.f32 %v2983, %v3028
        %v3040 = vmul.f32 %v2984, %v3030
        %v3041 = vmul.f32 %v2985, %v3032
        %v3042 = vmul.f32 %v2986, %v3034
        %v3043 = vrot.slane %v3035, 7
        %v3044 = vrot.slane %v3036, 7
        %v3045 = vrot.slane %v3037, 7
        %v3046 = vrot.slane %v3038, 7
        %v3047 = vrot.slane %v3039, 7
        %v3048 = vrot.slane %v3040, 7
        %v3049 = vrot.slane %v3041, 7
        %v3050 = vrot.slane %v3042, 7
        %v3051 = vsel %vm1146, %v3049, %v3050
        %v3052 = vsel %vm1146, %v3048, %v3049
        %v3053 = vsel %vm1146, %v3047, %v3048
        %v3054 = vsel %vm1146, %v3046, %v3047
        %v3055 = vsel %vm1146, %v3045, %v3046
        %v3056 = vsel %vm1146, %v3044, %v3045
        %v3057 = vsel %vm1146, %v3043, %v3044
        %v3058 = vsel %vm1146, %v3050, %v3043
        %v3059 = vmul.f32 %v3051, %v1158
        %v3060 = vmul.f32 %v3058, %v1163
        %v3061 = vmul.f32 %v3057, %v1168
        %v3062 = vmul.f32 %v3056, %v1173
        %v3063 = vmul.f32 %v3055, %v1178
        %v3064 = vmul.f32 %v3054, %v1183
        %v3065 = vmul.f32 %v3053, %v1188
        %v3066 = vmul.f32 %v3052, %v1193
        %v3067 = vpack.c.bf16 %v3060, %v3059
        %v3068 = vpack.c.bf16 %v3062, %v3061
        %v3069 = vpack.c.bf16 %v3064, %v3063
        %v3070 = vpack.c.bf16 %v3066, %v3065
        %v3071 = vld [vmem:[#allocation10] sm:$0xf]
        %v3072 = vld [vmem:[#allocation10 + $0x4] sm:$0xf]
        %v3073 = vld [vmem:[#allocation10 + $0x8] sm:$0xf]
        %v3074 = vld [vmem:[#allocation10 + $0xc] sm:$0xf]
        %v3075 = vld [vmem:[#allocation10 + $0x10] sm:$0xf]
        %v3076 = vld [vmem:[#allocation10 + $0x14] sm:$0xf]
        %v3077 = vld [vmem:[#allocation10 + $0x18] sm:$0xf]
        %v3078 = vld [vmem:[#allocation10 + $0x1c] sm:$0xf]
        %v3079 = vld [vmem:[#allocation10 + $0x20] sm:$0xf]
        %v3080 = vld [vmem:[#allocation10 + $0x24] sm:$0xf]
        %v3081 = vld [vmem:[#allocation10 + $0x28] sm:$0xf]
        %v3082 = vld [vmem:[#allocation10 + $0x2c] sm:$0xf]
        %v3083 = vld [vmem:[#allocation10 + $0x30] sm:$0xf]
        %v3084 = vld [vmem:[#allocation10 + $0x34] sm:$0xf]
        %v3085 = vld [vmem:[#allocation10 + $0x38] sm:$0xf]
        %v3086 = vld [vmem:[#allocation10 + $0x3c] sm:$0xf]
        %v3087 = vmul.f32 %v3042, %v1217
        %v3088 = vmul.f32 %v3035, %v1221
        %v3089 = vmul.f32 %v3036, %v1225
        %v3090 = vmul.f32 %v3037, %v1229
        %v3091 = vmul.f32 %v3038, %v1233
        %v3092 = vmul.f32 %v3039, %v1237
        %v3093 = vmul.f32 %v3040, %v1241
        %v3094 = vmul.f32 %v3041, %v1245
        %v3095 = vpack.c.bf16 %v3088, %v3087
        %v3096 = vpack.c.bf16 %v3090, %v3089
        %v3097 = vpack.c.bf16 %v3092, %v3091
        %v3098 = vpack.c.bf16 %v3094, %v3093
        %v3099 = vld [vmem:[#allocation10 + $0x40] sm:$0xf]
        %v3100 = vld [vmem:[#allocation10 + $0x44] sm:$0xf]
        %v3101 = vld [vmem:[#allocation10 + $0x48] sm:$0xf]
        %v3102 = vld [vmem:[#allocation10 + $0x4c] sm:$0xf]
        %v3103 = vld [vmem:[#allocation10 + $0x50] sm:$0xf]
        %v3104 = vld [vmem:[#allocation10 + $0x54] sm:$0xf]
        %v3105 = vld [vmem:[#allocation10 + $0x58] sm:$0xf]
        %v3106 = vld [vmem:[#allocation10 + $0x5c] sm:$0xf]
        %v3107 = vld [vmem:[#allocation10 + $0x60] sm:$0xf]
        %v3108 = vld [vmem:[#allocation10 + $0x64] sm:$0xf]
        %v3109 = vld [vmem:[#allocation10 + $0x68] sm:$0xf]
        %v3110 = vld [vmem:[#allocation10 + $0x6c] sm:$0xf]
        %v3111 = vld [vmem:[#allocation10 + $0x70] sm:$0xf]
        %v3112 = vld [vmem:[#allocation10 + $0x74] sm:$0xf]
        %v3113 = vld [vmem:[#allocation10 + $0x78] sm:$0xf]
        %v3114 = vld [vmem:[#allocation10 + $0x7c] sm:$0xf]
        %v3131 = vunpack.c.l.b16 %v3099
        %v3132 = vunpack.c.l.b16 %v3100
        %v3133 = vunpack.c.l.b16 %v3101
        %v3134 = vunpack.c.l.b16 %v3102
        %v3135 = vunpack.c.l.b16 %v3103
        %v3136 = vunpack.c.l.b16 %v3104
        %v3137 = vunpack.c.l.b16 %v3105
        %v3138 = vunpack.c.l.b16 %v3106
        %v3139 = vunpack.c.l.b16 %v3107
        %v3140 = vunpack.c.l.b16 %v3108
        %v3141 = vunpack.c.l.b16 %v3109
        %v3142 = vunpack.c.l.b16 %v3110
        %v3143 = vunpack.c.l.b16 %v3111
        %v3144 = vunpack.c.l.b16 %v3112
        %v3145 = vunpack.c.l.b16 %v3113
        %v3146 = vunpack.c.l.b16 %v3114
        %v3147 = vpack.c.b16 %v3132, %v3131
        %v3148 = vpack.c.b16 %v3134, %v3133
        %v3149 = vpack.c.b16 %v3136, %v3135
        %v3150 = vpack.c.b16 %v3138, %v3137
        %v3151 = vpack.c.b16 %v3140, %v3139
        %v3152 = vpack.c.b16 %v3142, %v3141
        %v3153 = vpack.c.b16 %v3144, %v3143
        %v3154 = vpack.c.b16 %v3146, %v3145
        %3163 = vmatprep.subr.bf16.mxu0 0
        %3164 = vmatpush1.bf16.msra.mxu0 %v3147
        %3165 = vmatprep.subr.bf16.mxu0 0
        %3166 = vmatpush1.bf16.msra.mxu0 %v3148
        %3167 = vmatprep.subr.bf16.mxu0 0
        %3168 = vmatpush1.bf16.msra.mxu0 %v3149
        %3169 = vmatprep.subr.bf16.mxu0 0
        %3170 = vmatpush1.bf16.msra.mxu0 %v3150
        %3171 = vmatprep.subr.bf16.mxu0 0
        %3172 = vmatpush1.bf16.msra.mxu0 %v3151
        %3173 = vmatprep.subr.bf16.mxu0 0
        %3174 = vmatpush1.bf16.msra.mxu0 %v3152
        %3175 = vmatprep.subr.bf16.mxu0 0
        %3176 = vmatpush1.bf16.msra.mxu0 %v3153
        %3177 = vmatprep.subr.bf16.mxu0 0
        %3178 = vmatpush1.bf16.msra.mxu0 %v3154
        %3179 = vmatprep.subr.bf16.mxu0 0
        %3180 = vmatpush1.bf16.msra.mxu0 0
        %3181 = vmatprep.subr.bf16.mxu0 0
        %3182 = vmatpush1.bf16.msra.mxu0 0
        %3183 = vmatprep.subr.bf16.mxu0 0
        %3184 = vmatpush1.bf16.msra.mxu0 0
        %3185 = vmatprep.subr.bf16.mxu0 0
        %3186 = vmatpush1.bf16.msra.mxu0 0
        %3187 = vmatprep.subr.bf16.mxu0 0
        %3188 = vmatpush1.bf16.msra.mxu0 0
        %3189 = vmatprep.subr.bf16.mxu0 0
        %3190 = vmatpush1.bf16.msra.mxu0 0
        %3191 = vmatprep.subr.bf16.mxu0 0
        %3192 = vmatpush1.bf16.msra.mxu0 0
        %3193 = vmatprep.subr.bf16.mxu0 0
        %3194 = vmatpush1.bf16.msra.mxu0 0
        %3195 = vmatprep.mubr.bf16.mxu0 0
        %3196 = vmatmul.mubr.bf16.gmra.mrb[0].mxu0 %v3095
        %v3197 = vpop.f32.mrb[0].mxu0
        %v3198 = vadd.f32 0.0, %v3197
        %v3199 = vpop.f32.mrb[0].mxu0
        %v3200 = vpop.f32.mrb[0].mxu0
        %v3201 = vadd.f32 0.0, %v3200
        %v3202 = vpop.f32.mrb[0].mxu0
        %3203 = vmatprep.mubr.bf16.mxu0 0
        %3204 = vmatmul.mubr.bf16.gmra.mrb[0].mxu0 %v3096
        %v3205 = vpop.f32.mrb[0].mxu0
        %v3206 = vadd.f32 0.0, %v3205
        %v3207 = vpop.f32.mrb[0].mxu0
        %v3208 = vpop.f32.mrb[0].mxu0
        %v3209 = vadd.f32 0.0, %v3208
        %v3210 = vpop.f32.mrb[0].mxu0
        %3211 = vmatprep.mubr.bf16.mxu0 0
        %3212 = vmatmul.mubr.bf16.gmra.mrb[0].mxu0 %v3097
        %v3213 = vpop.f32.mrb[0].mxu0
        %v3214 = vadd.f32 0.0, %v3213
        %v3215 = vpop.f32.mrb[0].mxu0
        %v3216 = vpop.f32.mrb[0].mxu0
        %v3217 = vadd.f32 0.0, %v3216
        %v3218 = vpop.f32.mrb[0].mxu0
        %3219 = vmatprep.mubr.bf16.mxu0 0
        %3220 = vmatmul.mubr.bf16.gmra.mrb[0].mxu0 %v3098
        %v3221 = vpop.f32.mrb[0].mxu0
        %v3222 = vadd.f32 0.0, %v3221
        %v3223 = vpop.f32.mrb[0].mxu0
        %v3224 = vpop.f32.mrb[0].mxu0
        %v3225 = vadd.f32 0.0, %v3224
        %v3226 = vpop.f32.mrb[0].mxu0
        %3227 = vdwg.mxu0
        %v3244 = vunpack.c.l.b16 %v3071
        %v3245 = vunpack.c.l.b16 %v3072
        %v3246 = vunpack.c.l.b16 %v3073
        %v3247 = vunpack.c.l.b16 %v3074
        %v3248 = vunpack.c.l.b16 %v3075
        %v3249 = vunpack.c.l.b16 %v3076
        %v3250 = vunpack.c.l.b16 %v3077
        %v3251 = vunpack.c.l.b16 %v3078
        %v3252 = vunpack.c.l.b16 %v3079
        %v3253 = vunpack.c.l.b16 %v3080
        %v3254 = vunpack.c.l.b16 %v3081
        %v3255 = vunpack.c.l.b16 %v3082
        %v3256 = vunpack.c.l.b16 %v3083
        %v3257 = vunpack.c.l.b16 %v3084
        %v3258 = vunpack.c.l.b16 %v3085
        %v3259 = vunpack.c.l.b16 %v3086
        %v3260 = vpack.c.b16 %v3245, %v3244
        %v3261 = vpack.c.b16 %v3247, %v3246
        %v3262 = vpack.c.b16 %v3249, %v3248
        %v3263 = vpack.c.b16 %v3251, %v3250
        %v3264 = vpack.c.b16 %v3253, %v3252
        %v3265 = vpack.c.b16 %v3255, %v3254
        %v3266 = vpack.c.b16 %v3257, %v3256
        %v3267 = vpack.c.b16 %v3259, %v3258
        %3276 = vmatprep.subr.bf16.mxu0 0
        %3277 = vmatpush1.bf16.msra.mxu0 %v3260
        %3278 = vmatprep.subr.bf16.mxu0 0
        %3279 = vmatpush1.bf16.msra.mxu0 %v3261
        %3280 = vmatprep.subr.bf16.mxu0 0
        %3281 = vmatpush1.bf16.msra.mxu0 %v3262
        %3282 = vmatprep.subr.bf16.mxu0 0
        %3283 = vmatpush1.bf16.msra.mxu0 %v3263
        %3284 = vmatprep.subr.bf16.mxu0 0
        %3285 = vmatpush1.bf16.msra.mxu0 %v3264
        %3286 = vmatprep.subr.bf16.mxu0 0
        %3287 = vmatpush1.bf16.msra.mxu0 %v3265
        %3288 = vmatprep.subr.bf16.mxu0 0
        %3289 = vmatpush1.bf16.msra.mxu0 %v3266
        %3290 = vmatprep.subr.bf16.mxu0 0
        %3291 = vmatpush1.bf16.msra.mxu0 %v3267
        %3292 = vmatprep.subr.bf16.mxu0 0
        %3293 = vmatpush1.bf16.msra.mxu0 0
        %3294 = vmatprep.subr.bf16.mxu0 0
        %3295 = vmatpush1.bf16.msra.mxu0 0
        %3296 = vmatprep.subr.bf16.mxu0 0
        %3297 = vmatpush1.bf16.msra.mxu0 0
        %3298 = vmatprep.subr.bf16.mxu0 0
        %3299 = vmatpush1.bf16.msra.mxu0 0
        %3300 = vmatprep.subr.bf16.mxu0 0
        %3301 = vmatpush1.bf16.msra.mxu0 0
        %3302 = vmatprep.subr.bf16.mxu0 0
        %3303 = vmatpush1.bf16.msra.mxu0 0
        %3304 = vmatprep.subr.bf16.mxu0 0
        %3305 = vmatpush1.bf16.msra.mxu0 0
        %3306 = vmatprep.subr.bf16.mxu0 0
        %3307 = vmatpush1.bf16.msra.mxu0 0
        %3308 = vmatprep.mubr.bf16.mxu0 0
        %3309 = vmatmul.mubr.bf16.gmra.mrb[0].mxu0 %v3067
        %v3310 = vpop.f32.mrb[0].mxu0
        %v3311 = vadd.f32 %v3198, %v3310
        %v3312 = vpop.f32.mrb[0].mxu0
        %v3313 = vpop.f32.mrb[0].mxu0
        %v3314 = vadd.f32 %v3201, %v3313
        %v3315 = vpop.f32.mrb[0].mxu0
        %3316 = vmatprep.mubr.bf16.mxu0 0
        %3317 = vmatmul.mubr.bf16.gmra.mrb[0].mxu0 %v3068
        %v3318 = vpop.f32.mrb[0].mxu0
        %v3319 = vadd.f32 %v3206, %v3318
        %v3320 = vpop.f32.mrb[0].mxu0
        %v3321 = vpop.f32.mrb[0].mxu0
        %v3322 = vadd.f32 %v3209, %v3321
        %v3323 = vpop.f32.mrb[0].mxu0
        %3324 = vmatprep.mubr.bf16.mxu0 0
        %3325 = vmatmul.mubr.bf16.gmra.mrb[0].mxu0 %v3069
        %v3326 = vpop.f32.mrb[0].mxu0
        %v3327 = vadd.f32 %v3214, %v3326
        %v3328 = vpop.f32.mrb[0].mxu0
        %v3329 = vpop.f32.mrb[0].mxu0
        %v3330 = vadd.f32 %v3217, %v3329
        %v3331 = vpop.f32.mrb[0].mxu0
        %3332 = vmatprep.mubr.bf16.mxu0 0
        %3333 = vmatmul.mubr.bf16.gmra.mrb[0].mxu0 %v3070
        %v3334 = vpop.f32.mrb[0].mxu0
        %v3335 = vadd.f32 %v3222, %v3334
        %v3336 = vpop.f32.mrb[0].mxu0
        %v3337 = vpop.f32.mrb[0].mxu0
        %v3338 = vadd.f32 %v3225, %v3337
        %v3339 = vpop.f32.mrb[0].mxu0
        %3340 = vdwg.mxu0
        %v3341 = vrot.slane %v3035, 1
        %v3342 = vrot.slane %v3036, 1
        %v3343 = vrot.slane %v3037, 1
        %v3344 = vrot.slane %v3038, 1
        %v3345 = vrot.slane %v3039, 1
        %v3346 = vrot.slane %v3040, 1
        %v3347 = vrot.slane %v3041, 1
        %v3348 = vrot.slane %v3042, 1
        %v3349 = vsel %vm1477, %v3347, %v3348
        %v3350 = vsel %vm1477, %v3346, %v3347
        %v3351 = vsel %vm1477, %v3345, %v3346
        %v3352 = vsel %vm1477, %v3344, %v3345
        %v3353 = vsel %vm1477, %v3343, %v3344
        %v3354 = vsel %vm1477, %v3342, %v3343
        %v3355 = vsel %vm1477, %v3341, %v3342
        %v3356 = vsel %vm1477, %v3348, %v3341
        %v3357 = vmul.f32 %v3356, %v1488
        %v3358 = vmul.f32 %v3355, %v1492
        %v3359 = vmul.f32 %v3354, %v1496
        %v3360 = vmul.f32 %v3353, %v1500
        %v3361 = vmul.f32 %v3352, %v1504
        %v3362 = vmul.f32 %v3351, %v1508
        %v3363 = vmul.f32 %v3350, %v1512
        %v3364 = vmul.f32 %v3349, %v1516
        %v3365 = vpack.c.bf16 %v3358, %v3357
        %v3366 = vpack.c.bf16 %v3360, %v3359
        %v3367 = vpack.c.bf16 %v3362, %v3361
        %v3368 = vpack.c.bf16 %v3364, %v3363
        %v3369 = vld [vmem:[#allocation10 + $0x80] sm:$0xf]
        %v3370 = vld [vmem:[#allocation10 + $0x84] sm:$0xf]
        %v3371 = vld [vmem:[#allocation10 + $0x88] sm:$0xf]
        %v3372 = vld [vmem:[#allocation10 + $0x8c] sm:$0xf]
        %v3373 = vld [vmem:[#allocation10 + $0x90] sm:$0xf]
        %v3374 = vld [vmem:[#allocation10 + $0x94] sm:$0xf]
        %v3375 = vld [vmem:[#allocation10 + $0x98] sm:$0xf]
        %v3376 = vld [vmem:[#allocation10 + $0x9c] sm:$0xf]
        %v3377 = vld [vmem:[#allocation10 + $0xa0] sm:$0xf]
        %v3378 = vld [vmem:[#allocation10 + $0xa4] sm:$0xf]
        %v3379 = vld [vmem:[#allocation10 + $0xa8] sm:$0xf]
        %v3380 = vld [vmem:[#allocation10 + $0xac] sm:$0xf]
        %v3381 = vld [vmem:[#allocation10 + $0xb0] sm:$0xf]
        %v3382 = vld [vmem:[#allocation10 + $0xb4] sm:$0xf]
        %v3383 = vld [vmem:[#allocation10 + $0xb8] sm:$0xf]
        %v3384 = vld [vmem:[#allocation10 + $0xbc] sm:$0xf]
        %v3401 = vunpack.c.l.b16 %v3369
        %v3402 = vunpack.c.l.b16 %v3370
        %v3403 = vunpack.c.l.b16 %v3371
        %v3404 = vunpack.c.l.b16 %v3372
        %v3405 = vunpack.c.l.b16 %v3373
        %v3406 = vunpack.c.l.b16 %v3374
        %v3407 = vunpack.c.l.b16 %v3375
        %v3408 = vunpack.c.l.b16 %v3376
        %v3409 = vunpack.c.l.b16 %v3377
        %v3410 = vunpack.c.l.b16 %v3378
        %v3411 = vunpack.c.l.b16 %v3379
        %v3412 = vunpack.c.l.b16 %v3380
        %v3413 = vunpack.c.l.b16 %v3381
        %v3414 = vunpack.c.l.b16 %v3382
        %v3415 = vunpack.c.l.b16 %v3383
        %v3416 = vunpack.c.l.b16 %v3384
        %v3417 = vpack.c.b16 %v3402, %v3401
        %v3418 = vpack.c.b16 %v3404, %v3403
        %v3419 = vpack.c.b16 %v3406, %v3405
        %v3420 = vpack.c.b16 %v3408, %v3407
        %v3421 = vpack.c.b16 %v3410, %v3409
        %v3422 = vpack.c.b16 %v3412, %v3411
        %v3423 = vpack.c.b16 %v3414, %v3413
        %v3424 = vpack.c.b16 %v3416, %v3415
        %3433 = vmatprep.subr.bf16.mxu0 0
        %3434 = vmatpush1.bf16.msra.mxu0 %v3417
        %3435 = vmatprep.subr.bf16.mxu0 0
        %3436 = vmatpush1.bf16.msra.mxu0 %v3418
        %3437 = vmatprep.subr.bf16.mxu0 0
        %3438 = vmatpush1.bf16.msra.mxu0 %v3419
        %3439 = vmatprep.subr.bf16.mxu0 0
        %3440 = vmatpush1.bf16.msra.mxu0 %v3420
        %3441 = vmatprep.subr.bf16.mxu0 0
        %3442 = vmatpush1.bf16.msra.mxu0 %v3421
        %3443 = vmatprep.subr.bf16.mxu0 0
        %3444 = vmatpush1.bf16.msra.mxu0 %v3422
        %3445 = vmatprep.subr.bf16.mxu0 0
        %3446 = vmatpush1.bf16.msra.mxu0 %v3423
        %3447 = vmatprep.subr.bf16.mxu0 0
        %3448 = vmatpush1.bf16.msra.mxu0 %v3424
        %3449 = vmatprep.subr.bf16.mxu0 0
        %3450 = vmatpush1.bf16.msra.mxu0 0
        %3451 = vmatprep.subr.bf16.mxu0 0
        %3452 = vmatpush1.bf16.msra.mxu0 0
        %3453 = vmatprep.subr.bf16.mxu0 0
        %3454 = vmatpush1.bf16.msra.mxu0 0
        %3455 = vmatprep.subr.bf16.mxu0 0
        %3456 = vmatpush1.bf16.msra.mxu0 0
        %3457 = vmatprep.subr.bf16.mxu0 0
        %3458 = vmatpush1.bf16.msra.mxu0 0
        %3459 = vmatprep.subr.bf16.mxu0 0
        %3460 = vmatpush1.bf16.msra.mxu0 0
        %3461 = vmatprep.subr.bf16.mxu0 0
        %3462 = vmatpush1.bf16.msra.mxu0 0
        %3463 = vmatprep.subr.bf16.mxu0 0
        %3464 = vmatpush1.bf16.msra.mxu0 0
        %3465 = vmatprep.mubr.bf16.mxu0 0
        %3466 = vmatmul.mubr.bf16.gmra.mrb[0].mxu0 %v3365
        %v3467 = vpop.f32.mrb[0].mxu0
        %v3468 = vadd.f32 0.0, %v3467
        %v3469 = vpop.f32.mrb[0].mxu0
        %v3470 = vpop.f32.mrb[0].mxu0
        %v3471 = vadd.f32 0.0, %v3470
        %v3472 = vpop.f32.mrb[0].mxu0
        %3473 = vmatprep.mubr.bf16.mxu0 0
        %3474 = vmatmul.mubr.bf16.gmra.mrb[0].mxu0 %v3366
        %v3475 = vpop.f32.mrb[0].mxu0
        %v3476 = vadd.f32 0.0, %v3475
        %v3477 = vpop.f32.mrb[0].mxu0
        %v3478 = vpop.f32.mrb[0].mxu0
        %v3479 = vadd.f32 0.0, %v3478
        %v3480 = vpop.f32.mrb[0].mxu0
        %3481 = vmatprep.mubr.bf16.mxu0 0
        %3482 = vmatmul.mubr.bf16.gmra.mrb[0].mxu0 %v3367
        %v3483 = vpop.f32.mrb[0].mxu0
        %v3484 = vadd.f32 0.0, %v3483
        %v3485 = vpop.f32.mrb[0].mxu0
        %v3486 = vpop.f32.mrb[0].mxu0
        %v3487 = vadd.f32 0.0, %v3486
        %v3488 = vpop.f32.mrb[0].mxu0
        %3489 = vmatprep.mubr.bf16.mxu0 0
        %3490 = vmatmul.mubr.bf16.gmra.mrb[0].mxu0 %v3368
        %v3491 = vpop.f32.mrb[0].mxu0
        %v3492 = vadd.f32 0.0, %v3491
        %v3493 = vpop.f32.mrb[0].mxu0
        %v3494 = vpop.f32.mrb[0].mxu0
        %v3495 = vadd.f32 0.0, %v3494
        %v3496 = vpop.f32.mrb[0].mxu0
        %3497 = vdwg.mxu0
        %v3498 = vadd.f32 %v3311, %v3468
        %v3499 = vadd.f32 %v3314, %v3471
        %v3500 = vadd.f32 %v3319, %v3476
        %v3501 = vadd.f32 %v3322, %v3479
        %v3502 = vadd.f32 %v3327, %v3484
        %v3503 = vadd.f32 %v3330, %v3487
        %v3504 = vadd.f32 %v3335, %v3492
        %v3505 = vadd.f32 %v3338, %v3495
        %v3506 = vmul.f32 %v3058, %v1649
        %v3507 = vmul.f32 %v3057, %v1653
        %v3508 = vmul.f32 %v3056, %v1657
        %v3509 = vmul.f32 %v3055, %v1661
        %v3510 = vmul.f32 %v3054, %v1665
        %v3511 = vmul.f32 %v3053, %v1669
        %v3512 = vmul.f32 %v3052, %v1673
        %v3513 = vmul.f32 %v3051, %v1677
        %v3514 = vpack.c.bf16 %v3507, %v3506
        %v3515 = vpack.c.bf16 %v3509, %v3508
        %v3516 = vpack.c.bf16 %v3511, %v3510
        %v3517 = vpack.c.bf16 %v3513, %v3512
        %v3518 = vld [vmem:[#allocation10 + $0xc0] sm:$0xf]
        %v3519 = vld [vmem:[#allocation10 + $0xc4] sm:$0xf]
        %v3520 = vld [vmem:[#allocation10 + $0xc8] sm:$0xf]
        %v3521 = vld [vmem:[#allocation10 + $0xcc] sm:$0xf]
        %v3522 = vld [vmem:[#allocation10 + $0xd0] sm:$0xf]
        %v3523 = vld [vmem:[#allocation10 + $0xd4] sm:$0xf]
        %v3524 = vld [vmem:[#allocation10 + $0xd8] sm:$0xf]
        %v3525 = vld [vmem:[#allocation10 + $0xdc] sm:$0xf]
        %v3526 = vld [vmem:[#allocation10 + $0xe0] sm:$0xf]
        %v3527 = vld [vmem:[#allocation10 + $0xe4] sm:$0xf]
        %v3528 = vld [vmem:[#allocation10 + $0xe8] sm:$0xf]
        %v3529 = vld [vmem:[#allocation10 + $0xec] sm:$0xf]
        %v3530 = vld [vmem:[#allocation10 + $0xf0] sm:$0xf]
        %v3531 = vld [vmem:[#allocation10 + $0xf4] sm:$0xf]
        %v3532 = vld [vmem:[#allocation10 + $0xf8] sm:$0xf]
        %v3533 = vld [vmem:[#allocation10 + $0xfc] sm:$0xf]
        %v3550 = vunpack.c.l.b16 %v3518
        %v3551 = vunpack.c.l.b16 %v3519
        %v3552 = vunpack.c.l.b16 %v3520
        %v3553 = vunpack.c.l.b16 %v3521
        %v3554 = vunpack.c.l.b16 %v3522
        %v3555 = vunpack.c.l.b16 %v3523
        %v3556 = vunpack.c.l.b16 %v3524
        %v3557 = vunpack.c.l.b16 %v3525
        %v3558 = vunpack.c.l.b16 %v3526
        %v3559 = vunpack.c.l.b16 %v3527
        %v3560 = vunpack.c.l.b16 %v3528
        %v3561 = vunpack.c.l.b16 %v3529
        %v3562 = vunpack.c.l.b16 %v3530
        %v3563 = vunpack.c.l.b16 %v3531
        %v3564 = vunpack.c.l.b16 %v3532
        %v3565 = vunpack.c.l.b16 %v3533
        %v3566 = vpack.c.b16 %v3551, %v3550
        %v3567 = vpack.c.b16 %v3553, %v3552
        %v3568 = vpack.c.b16 %v3555, %v3554
        %v3569 = vpack.c.b16 %v3557, %v3556
        %v3570 = vpack.c.b16 %v3559, %v3558
        %v3571 = vpack.c.b16 %v3561, %v3560
        %v3572 = vpack.c.b16 %v3563, %v3562
        %v3573 = vpack.c.b16 %v3565, %v3564
        %3582 = vmatprep.subr.bf16.mxu0 0
        %3583 = vmatpush1.bf16.msra.mxu0 %v3566
        %3584 = vmatprep.subr.bf16.mxu0 0
        %3585 = vmatpush1.bf16.msra.mxu0 %v3567
        %3586 = vmatprep.subr.bf16.mxu0 0
        %3587 = vmatpush1.bf16.msra.mxu0 %v3568
        %3588 = vmatprep.subr.bf16.mxu0 0
        %3589 = vmatpush1.bf16.msra.mxu0 %v3569
        %3590 = vmatprep.subr.bf16.mxu0 0
        %3591 = vmatpush1.bf16.msra.mxu0 %v3570
        %3592 = vmatprep.subr.bf16.mxu0 0
        %3593 = vmatpush1.bf16.msra.mxu0 %v3571
        %3594 = vmatprep.subr.bf16.mxu0 0
        %3595 = vmatpush1.bf16.msra.mxu0 %v3572
        %3596 = vmatprep.subr.bf16.mxu0 0
        %3597 = vmatpush1.bf16.msra.mxu0 %v3573
        %3598 = vmatprep.subr.bf16.mxu0 0
        %3599 = vmatpush1.bf16.msra.mxu0 0
        %3600 = vmatprep.subr.bf16.mxu0 0
        %3601 = vmatpush1.bf16.msra.mxu0 0
        %3602 = vmatprep.subr.bf16.mxu0 0
        %3603 = vmatpush1.bf16.msra.mxu0 0
        %3604 = vmatprep.subr.bf16.mxu0 0
        %3605 = vmatpush1.bf16.msra.mxu0 0
        %3606 = vmatprep.subr.bf16.mxu0 0
        %3607 = vmatpush1.bf16.msra.mxu0 0
        %3608 = vmatprep.subr.bf16.mxu0 0
        %3609 = vmatpush1.bf16.msra.mxu0 0
        %3610 = vmatprep.subr.bf16.mxu0 0
        %3611 = vmatpush1.bf16.msra.mxu0 0
        %3612 = vmatprep.subr.bf16.mxu0 0
        %3613 = vmatpush1.bf16.msra.mxu0 0
        %3614 = vmatprep.mubr.bf16.mxu0 0
        %3615 = vmatmul.mubr.bf16.gmra.mrb[0].mxu0 %v3514
        %v3616 = vpop.f32.mrb[0].mxu0
        %v3617 = vadd.f32 0.0, %v3616
        %v3618 = vpop.f32.mrb[0].mxu0
        %v3619 = vpop.f32.mrb[0].mxu0
        %v3620 = vadd.f32 0.0, %v3619
        %v3621 = vpop.f32.mrb[0].mxu0
        %3622 = vmatprep.mubr.bf16.mxu0 0
        %3623 = vmatmul.mubr.bf16.gmra.mrb[0].mxu0 %v3515
        %v3624 = vpop.f32.mrb[0].mxu0
        %v3625 = vadd.f32 0.0, %v3624
        %v3626 = vpop.f32.mrb[0].mxu0
        %v3627 = vpop.f32.mrb[0].mxu0
        %v3628 = vadd.f32 0.0, %v3627
        %v3629 = vpop.f32.mrb[0].mxu0
        %3630 = vmatprep.mubr.bf16.mxu0 0
        %3631 = vmatmul.mubr.bf16.gmra.mrb[0].mxu0 %v3516
        %v3632 = vpop.f32.mrb[0].mxu0
        %v3633 = vadd.f32 0.0, %v3632
        %v3634 = vpop.f32.mrb[0].mxu0
        %v3635 = vpop.f32.mrb[0].mxu0
        %v3636 = vadd.f32 0.0, %v3635
        %v3637 = vpop.f32.mrb[0].mxu0
        %3638 = vmatprep.mubr.bf16.mxu0 0
        %3639 = vmatmul.mubr.bf16.gmra.mrb[0].mxu0 %v3517
        %v3640 = vpop.f32.mrb[0].mxu0
        %v3641 = vadd.f32 0.0, %v3640
        %v3642 = vpop.f32.mrb[0].mxu0
        %v3643 = vpop.f32.mrb[0].mxu0
        %v3644 = vadd.f32 0.0, %v3643
        %v3645 = vpop.f32.mrb[0].mxu0
        %3646 = vdwg.mxu0
        %v3647 = vadd.f32 %v3498, %v3617
        %v3648 = vadd.f32 %v3499, %v3620
        %v3649 = vadd.f32 %v3500, %v3625
        %v3650 = vadd.f32 %v3501, %v3628
        %v3651 = vadd.f32 %v3502, %v3633
        %v3652 = vadd.f32 %v3503, %v3636
        %v3653 = vadd.f32 %v3504, %v3641
        %v3654 = vadd.f32 %v3505, %v3644
        %v3655 = vpack.c.bf16 %v3036, %v3035
        %v3656 = vpack.c.bf16 %v3038, %v3037
        %v3657 = vpack.c.bf16 %v3040, %v3039
        %v3658 = vpack.c.bf16 %v3042, %v3041
        %v3659 = vld [vmem:[#allocation10 + $0x100] sm:$0xf]
        %v3660 = vld [vmem:[#allocation10 + $0x104] sm:$0xf]
        %v3661 = vld [vmem:[#allocation10 + $0x108] sm:$0xf]
        %v3662 = vld [vmem:[#allocation10 + $0x10c] sm:$0xf]
        %v3663 = vld [vmem:[#allocation10 + $0x110] sm:$0xf]
        %v3664 = vld [vmem:[#allocation10 + $0x114] sm:$0xf]
        %v3665 = vld [vmem:[#allocation10 + $0x118] sm:$0xf]
        %v3666 = vld [vmem:[#allocation10 + $0x11c] sm:$0xf]
        %v3667 = vld [vmem:[#allocation10 + $0x120] sm:$0xf]
        %v3668 = vld [vmem:[#allocation10 + $0x124] sm:$0xf]
        %v3669 = vld [vmem:[#allocation10 + $0x128] sm:$0xf]
        %v3670 = vld [vmem:[#allocation10 + $0x12c] sm:$0xf]
        %v3671 = vld [vmem:[#allocation10 + $0x130] sm:$0xf]
        %v3672 = vld [vmem:[#allocation10 + $0x134] sm:$0xf]
        %v3673 = vld [vmem:[#allocation10 + $0x138] sm:$0xf]
        %v3674 = vld [vmem:[#allocation10 + $0x13c] sm:$0xf]
        %v3691 = vunpack.c.l.b16 %v3659
        %v3692 = vunpack.c.l.b16 %v3660
        %v3693 = vunpack.c.l.b16 %v3661
        %v3694 = vunpack.c.l.b16 %v3662
        %v3695 = vunpack.c.l.b16 %v3663
        %v3696 = vunpack.c.l.b16 %v3664
        %v3697 = vunpack.c.l.b16 %v3665
        %v3698 = vunpack.c.l.b16 %v3666
        %v3699 = vunpack.c.l.b16 %v3667
        %v3700 = vunpack.c.l.b16 %v3668
        %v3701 = vunpack.c.l.b16 %v3669
        %v3702 = vunpack.c.l.b16 %v3670
        %v3703 = vunpack.c.l.b16 %v3671
        %v3704 = vunpack.c.l.b16 %v3672
        %v3705 = vunpack.c.l.b16 %v3673
        %v3706 = vunpack.c.l.b16 %v3674
        %v3707 = vpack.c.b16 %v3692, %v3691
        %v3708 = vpack.c.b16 %v3694, %v3693
        %v3709 = vpack.c.b16 %v3696, %v3695
        %v3710 = vpack.c.b16 %v3698, %v3697
        %v3711 = vpack.c.b16 %v3700, %v3699
        %v3712 = vpack.c.b16 %v3702, %v3701
        %v3713 = vpack.c.b16 %v3704, %v3703
        %v3714 = vpack.c.b16 %v3706, %v3705
        %3723 = vmatprep.subr.bf16.mxu0 0
        %3724 = vmatpush1.bf16.msra.mxu0 %v3707
        %3725 = vmatprep.subr.bf16.mxu0 0
        %3726 = vmatpush1.bf16.msra.mxu0 %v3708
        %3727 = vmatprep.subr.bf16.mxu0 0
        %3728 = vmatpush1.bf16.msra.mxu0 %v3709
        %3729 = vmatprep.subr.bf16.mxu0 0
        %3730 = vmatpush1.bf16.msra.mxu0 %v3710
        %3731 = vmatprep.subr.bf16.mxu0 0
        %3732 = vmatpush1.bf16.msra.mxu0 %v3711
        %3733 = vmatprep.subr.bf16.mxu0 0
        %3734 = vmatpush1.bf16.msra.mxu0 %v3712
        %3735 = vmatprep.subr.bf16.mxu0 0
        %3736 = vmatpush1.bf16.msra.mxu0 %v3713
        %3737 = vmatprep.subr.bf16.mxu0 0
        %3738 = vmatpush1.bf16.msra.mxu0 %v3714
        %3739 = vmatprep.subr.bf16.mxu0 0
        %3740 = vmatpush1.bf16.msra.mxu0 0
        %3741 = vmatprep.subr.bf16.mxu0 0
        %3742 = vmatpush1.bf16.msra.mxu0 0
        %3743 = vmatprep.subr.bf16.mxu0 0
        %3744 = vmatpush1.bf16.msra.mxu0 0
        %3745 = vmatprep.subr.bf16.mxu0 0
        %3746 = vmatpush1.bf16.msra.mxu0 0
        %3747 = vmatprep.subr.bf16.mxu0 0
        %3748 = vmatpush1.bf16.msra.mxu0 0
        %3749 = vmatprep.subr.bf16.mxu0 0
        %3750 = vmatpush1.bf16.msra.mxu0 0
        %3751 = vmatprep.subr.bf16.mxu0 0
        %3752 = vmatpush1.bf16.msra.mxu0 0
        %3753 = vmatprep.subr.bf16.mxu0 0
        %3754 = vmatpush1.bf16.msra.mxu0 0
        %3755 = vmatprep.mubr.bf16.mxu0 0
        %3756 = vmatmul.mubr.bf16.gmra.mrb[0].mxu0 %v3655
        %v3757 = vpop.f32.mrb[0].mxu0
        %v3758 = vadd.f32 0.0, %v3757
        %v3759 = vpop.f32.mrb[0].mxu0
        %v3760 = vpop.f32.mrb[0].mxu0
        %v3761 = vadd.f32 0.0, %v3760
        %v3762 = vpop.f32.mrb[0].mxu0
        %3763 = vmatprep.mubr.bf16.mxu0 0
        %3764 = vmatmul.mubr.bf16.gmra.mrb[0].mxu0 %v3656
        %v3765 = vpop.f32.mrb[0].mxu0
        %v3766 = vadd.f32 0.0, %v3765
        %v3767 = vpop.f32.mrb[0].mxu0
        %v3768 = vpop.f32.mrb[0].mxu0
        %v3769 = vadd.f32 0.0, %v3768
        %v3770 = vpop.f32.mrb[0].mxu0
        %3771 = vmatprep.mubr.bf16.mxu0 0
        %3772 = vmatmul.mubr.bf16.gmra.mrb[0].mxu0 %v3657
        %v3773 = vpop.f32.mrb[0].mxu0
        %v3774 = vadd.f32 0.0, %v3773
        %v3775 = vpop.f32.mrb[0].mxu0
        %v3776 = vpop.f32.mrb[0].mxu0
        %v3777 = vadd.f32 0.0, %v3776
        %v3778 = vpop.f32.mrb[0].mxu0
        %3779 = vmatprep.mubr.bf16.mxu0 0
        %3780 = vmatmul.mubr.bf16.gmra.mrb[0].mxu0 %v3658
        %v3781 = vpop.f32.mrb[0].mxu0
        %v3782 = vadd.f32 0.0, %v3781
        %v3783 = vpop.f32.mrb[0].mxu0
        %v3784 = vpop.f32.mrb[0].mxu0
        %v3785 = vadd.f32 0.0, %v3784
        %v3786 = vpop.f32.mrb[0].mxu0
        %3787 = vdwg.mxu0
        %v3788 = vadd.f32 %v3647, %v3758
        %v3789 = vadd.f32 %v3648, %v3761
        %v3790 = vadd.f32 %v3649, %v3766
        %v3791 = vadd.f32 %v3650, %v3769
        %v3792 = vadd.f32 %v3651, %v3774
        %v3793 = vadd.f32 %v3652, %v3777
        %v3794 = vadd.f32 %v3653, %v3782
        %v3795 = vadd.f32 %v3654, %v3785
        %v3796 = vmul.f32 %v3355, %v1931
        %v3797 = vmul.f32 %v3354, %v1935
        %v3798 = vmul.f32 %v3353, %v1939
        %v3799 = vmul.f32 %v3352, %v1943
        %v3800 = vmul.f32 %v3351, %v1947
        %v3801 = vmul.f32 %v3350, %v1951
        %v3802 = vmul.f32 %v3349, %v1955
        %v3803 = vmul.f32 %v3356, %v1959
        %v3804 = vpack.c.bf16 %v3797, %v3796
        %v3805 = vpack.c.bf16 %v3799, %v3798
        %v3806 = vpack.c.bf16 %v3801, %v3800
        %v3807 = vpack.c.bf16 %v3803, %v3802
        %v3808 = vld [vmem:[#allocation10 + $0x140] sm:$0xf]
        %v3809 = vld [vmem:[#allocation10 + $0x144] sm:$0xf]
        %v3810 = vld [vmem:[#allocation10 + $0x148] sm:$0xf]
        %v3811 = vld [vmem:[#allocation10 + $0x14c] sm:$0xf]
        %v3812 = vld [vmem:[#allocation10 + $0x150] sm:$0xf]
        %v3813 = vld [vmem:[#allocation10 + $0x154] sm:$0xf]
        %v3814 = vld [vmem:[#allocation10 + $0x158] sm:$0xf]
        %v3815 = vld [vmem:[#allocation10 + $0x15c] sm:$0xf]
        %v3816 = vld [vmem:[#allocation10 + $0x160] sm:$0xf]
        %v3817 = vld [vmem:[#allocation10 + $0x164] sm:$0xf]
        %v3818 = vld [vmem:[#allocation10 + $0x168] sm:$0xf]
        %v3819 = vld [vmem:[#allocation10 + $0x16c] sm:$0xf]
        %v3820 = vld [vmem:[#allocation10 + $0x170] sm:$0xf]
        %v3821 = vld [vmem:[#allocation10 + $0x174] sm:$0xf]
        %v3822 = vld [vmem:[#allocation10 + $0x178] sm:$0xf]
        %v3823 = vld [vmem:[#allocation10 + $0x17c] sm:$0xf]
        %v3840 = vunpack.c.l.b16 %v3808
        %v3841 = vunpack.c.l.b16 %v3809
        %v3842 = vunpack.c.l.b16 %v3810
        %v3843 = vunpack.c.l.b16 %v3811
        %v3844 = vunpack.c.l.b16 %v3812
        %v3845 = vunpack.c.l.b16 %v3813
        %v3846 = vunpack.c.l.b16 %v3814
        %v3847 = vunpack.c.l.b16 %v3815
        %v3848 = vunpack.c.l.b16 %v3816
        %v3849 = vunpack.c.l.b16 %v3817
        %v3850 = vunpack.c.l.b16 %v3818
        %v3851 = vunpack.c.l.b16 %v3819
        %v3852 = vunpack.c.l.b16 %v3820
        %v3853 = vunpack.c.l.b16 %v3821
        %v3854 = vunpack.c.l.b16 %v3822
        %v3855 = vunpack.c.l.b16 %v3823
        %v3856 = vpack.c.b16 %v3841, %v3840
        %v3857 = vpack.c.b16 %v3843, %v3842
        %v3858 = vpack.c.b16 %v3845, %v3844
        %v3859 = vpack.c.b16 %v3847, %v3846
        %v3860 = vpack.c.b16 %v3849, %v3848
        %v3861 = vpack.c.b16 %v3851, %v3850
        %v3862 = vpack.c.b16 %v3853, %v3852
        %v3863 = vpack.c.b16 %v3855, %v3854
        %3872 = vmatprep.subr.bf16.mxu0 0
        %3873 = vmatpush1.bf16.msra.mxu0 %v3856
        %3874 = vmatprep.subr.bf16.mxu0 0
        %3875 = vmatpush1.bf16.msra.mxu0 %v3857
        %3876 = vmatprep.subr.bf16.mxu0 0
        %3877 = vmatpush1.bf16.msra.mxu0 %v3858
        %3878 = vmatprep.subr.bf16.mxu0 0
        %3879 = vmatpush1.bf16.msra.mxu0 %v3859
        %3880 = vmatprep.subr.bf16.mxu0 0
        %3881 = vmatpush1.bf16.msra.mxu0 %v3860
        %3882 = vmatprep.subr.bf16.mxu0 0
        %3883 = vmatpush1.bf16.msra.mxu0 %v3861
        %3884 = vmatprep.subr.bf16.mxu0 0
        %3885 = vmatpush1.bf16.msra.mxu0 %v3862
        %3886 = vmatprep.subr.bf16.mxu0 0
        %3887 = vmatpush1.bf16.msra.mxu0 %v3863
        %3888 = vmatprep.subr.bf16.mxu0 0
        %3889 = vmatpush1.bf16.msra.mxu0 0
        %3890 = vmatprep.subr.bf16.mxu0 0
        %3891 = vmatpush1.bf16.msra.mxu0 0
        %3892 = vmatprep.subr.bf16.mxu0 0
        %3893 = vmatpush1.bf16.msra.mxu0 0
        %3894 = vmatprep.subr.bf16.mxu0 0
        %3895 = vmatpush1.bf16.msra.mxu0 0
        %3896 = vmatprep.subr.bf16.mxu0 0
        %3897 = vmatpush1.bf16.msra.mxu0 0
        %3898 = vmatprep.subr.bf16.mxu0 0
        %3899 = vmatpush1.bf16.msra.mxu0 0
        %3900 = vmatprep.subr.bf16.mxu0 0
        %3901 = vmatpush1.bf16.msra.mxu0 0
        %3902 = vmatprep.subr.bf16.mxu0 0
        %3903 = vmatpush1.bf16.msra.mxu0 0
        %3904 = vmatprep.mubr.bf16.mxu0 0
        %3905 = vmatmul.mubr.bf16.gmra.mrb[0].mxu0 %v3804
        %v3906 = vpop.f32.mrb[0].mxu0
        %v3907 = vadd.f32 0.0, %v3906
        %v3908 = vpop.f32.mrb[0].mxu0
        %v3909 = vpop.f32.mrb[0].mxu0
        %v3910 = vadd.f32 0.0, %v3909
        %v3911 = vpop.f32.mrb[0].mxu0
        %3912 = vmatprep.mubr.bf16.mxu0 0
        %3913 = vmatmul.mubr.bf16.gmra.mrb[0].mxu0 %v3805
        %v3914 = vpop.f32.mrb[0].mxu0
        %v3915 = vadd.f32 0.0, %v3914
        %v3916 = vpop.f32.mrb[0].mxu0
        %v3917 = vpop.f32.mrb[0].mxu0
        %v3918 = vadd.f32 0.0, %v3917
        %v3919 = vpop.f32.mrb[0].mxu0
        %3920 = vmatprep.mubr.bf16.mxu0 0
        %3921 = vmatmul.mubr.bf16.gmra.mrb[0].mxu0 %v3806
        %v3922 = vpop.f32.mrb[0].mxu0
        %v3923 = vadd.f32 0.0, %v3922
        %v3924 = vpop.f32.mrb[0].mxu0
        %v3925 = vpop.f32.mrb[0].mxu0
        %v3926 = vadd.f32 0.0, %v3925
        %v3927 = vpop.f32.mrb[0].mxu0
        %3928 = vmatprep.mubr.bf16.mxu0 0
        %3929 = vmatmul.mubr.bf16.gmra.mrb[0].mxu0 %v3807
        %v3930 = vpop.f32.mrb[0].mxu0
        %v3931 = vadd.f32 0.0, %v3930
        %v3932 = vpop.f32.mrb[0].mxu0
        %v3933 = vpop.f32.mrb[0].mxu0
        %v3934 = vadd.f32 0.0, %v3933
        %v3935 = vpop.f32.mrb[0].mxu0
        %3936 = vdwg.mxu0
        %v3937 = vadd.f32 %v3788, %v3907
        %v3938 = vadd.f32 %v3789, %v3910
        %v3939 = vadd.f32 %v3790, %v3915
        %v3940 = vadd.f32 %v3791, %v3918
        %v3941 = vadd.f32 %v3792, %v3923
        %v3942 = vadd.f32 %v3793, %v3926
        %v3943 = vadd.f32 %v3794, %v3931
        %v3944 = vadd.f32 %v3795, %v3934
        %v3945 = vmul.f32 %v3057, %v2092
        %v3946 = vmul.f32 %v3056, %v2096
        %v3947 = vmul.f32 %v3055, %v2100
        %v3948 = vmul.f32 %v3054, %v2104
        %v3949 = vmul.f32 %v3053, %v2108
        %v3950 = vmul.f32 %v3052, %v2112
        %v3951 = vmul.f32 %v3051, %v2116
        %v3952 = vmul.f32 %v3058, %v2120
        %v3953 = vpack.c.bf16 %v3946, %v3945
        %v3954 = vpack.c.bf16 %v3948, %v3947
        %v3955 = vpack.c.bf16 %v3950, %v3949
        %v3956 = vpack.c.bf16 %v3952, %v3951
        %v3957 = vld [vmem:[#allocation10 + $0x180] sm:$0xf]
        %v3958 = vld [vmem:[#allocation10 + $0x184] sm:$0xf]
        %v3959 = vld [vmem:[#allocation10 + $0x188] sm:$0xf]
        %v3960 = vld [vmem:[#allocation10 + $0x18c] sm:$0xf]
        %v3961 = vld [vmem:[#allocation10 + $0x190] sm:$0xf]
        %v3962 = vld [vmem:[#allocation10 + $0x194] sm:$0xf]
        %v3963 = vld [vmem:[#allocation10 + $0x198] sm:$0xf]
        %v3964 = vld [vmem:[#allocation10 + $0x19c] sm:$0xf]
        %v3965 = vld [vmem:[#allocation10 + $0x1a0] sm:$0xf]
        %v3966 = vld [vmem:[#allocation10 + $0x1a4] sm:$0xf]
        %v3967 = vld [vmem:[#allocation10 + $0x1a8] sm:$0xf]
        %v3968 = vld [vmem:[#allocation10 + $0x1ac] sm:$0xf]
        %v3969 = vld [vmem:[#allocation10 + $0x1b0] sm:$0xf]
        %v3970 = vld [vmem:[#allocation10 + $0x1b4] sm:$0xf]
        %v3971 = vld [vmem:[#allocation10 + $0x1b8] sm:$0xf]
        %v3972 = vld [vmem:[#allocation10 + $0x1bc] sm:$0xf]
        %v3989 = vunpack.c.l.b16 %v3957
        %v3990 = vunpack.c.l.b16 %v3958
        %v3991 = vunpack.c.l.b16 %v3959
        %v3992 = vunpack.c.l.b16 %v3960
        %v3993 = vunpack.c.l.b16 %v3961
        %v3994 = vunpack.c.l.b16 %v3962
        %v3995 = vunpack.c.l.b16 %v3963
        %v3996 = vunpack.c.l.b16 %v3964
        %v3997 = vunpack.c.l.b16 %v3965
        %v3998 = vunpack.c.l.b16 %v3966
        %v3999 = vunpack.c.l.b16 %v3967
        %v4000 = vunpack.c.l.b16 %v3968
        %v4001 = vunpack.c.l.b16 %v3969
        %v4002 = vunpack.c.l.b16 %v3970
        %v4003 = vunpack.c.l.b16 %v3971
        %v4004 = vunpack.c.l.b16 %v3972
        %v4005 = vpack.c.b16 %v3990, %v3989
        %v4006 = vpack.c.b16 %v3992, %v3991
        %v4007 = vpack.c.b16 %v3994, %v3993
        %v4008 = vpack.c.b16 %v3996, %v3995
        %v4009 = vpack.c.b16 %v3998, %v3997
        %v4010 = vpack.c.b16 %v4000, %v3999
        %v4011 = vpack.c.b16 %v4002, %v4001
        %v4012 = vpack.c.b16 %v4004, %v4003
        %4021 = vmatprep.subr.bf16.mxu0 0
        %4022 = vmatpush1.bf16.msra.mxu0 %v4005
        %4023 = vmatprep.subr.bf16.mxu0 0
        %4024 = vmatpush1.bf16.msra.mxu0 %v4006
        %4025 = vmatprep.subr.bf16.mxu0 0
        %4026 = vmatpush1.bf16.msra.mxu0 %v4007
        %4027 = vmatprep.subr.bf16.mxu0 0
        %4028 = vmatpush1.bf16.msra.mxu0 %v4008
        %4029 = vmatprep.subr.bf16.mxu0 0
        %4030 = vmatpush1.bf16.msra.mxu0 %v4009
        %4031 = vmatprep.subr.bf16.mxu0 0
        %4032 = vmatpush1.bf16.msra.mxu0 %v4010
        %4033 = vmatprep.subr.bf16.mxu0 0
        %4034 = vmatpush1.bf16.msra.mxu0 %v4011
        %4035 = vmatprep.subr.bf16.mxu0 0
        %4036 = vmatpush1.bf16.msra.mxu0 %v4012
        %4037 = vmatprep.subr.bf16.mxu0 0
        %4038 = vmatpush1.bf16.msra.mxu0 0
        %4039 = vmatprep.subr.bf16.mxu0 0
        %4040 = vmatpush1.bf16.msra.mxu0 0
        %4041 = vmatprep.subr.bf16.mxu0 0
        %4042 = vmatpush1.bf16.msra.mxu0 0
        %4043 = vmatprep.subr.bf16.mxu0 0
        %4044 = vmatpush1.bf16.msra.mxu0 0
        %4045 = vmatprep.subr.bf16.mxu0 0
        %4046 = vmatpush1.bf16.msra.mxu0 0
        %4047 = vmatprep.subr.bf16.mxu0 0
        %4048 = vmatpush1.bf16.msra.mxu0 0
        %4049 = vmatprep.subr.bf16.mxu0 0
        %4050 = vmatpush1.bf16.msra.mxu0 0
        %4051 = vmatprep.subr.bf16.mxu0 0
        %4052 = vmatpush1.bf16.msra.mxu0 0
        %4053 = vmatprep.mubr.bf16.mxu0 0
        %4054 = vmatmul.mubr.bf16.gmra.mrb[0].mxu0 %v3953
        %v4055 = vpop.f32.mrb[0].mxu0
        %v4056 = vadd.f32 0.0, %v4055
        %v4057 = vpop.f32.mrb[0].mxu0
        %v4058 = vpop.f32.mrb[0].mxu0
        %v4059 = vadd.f32 0.0, %v4058
        %v4060 = vpop.f32.mrb[0].mxu0
        %4061 = vmatprep.mubr.bf16.mxu0 0
        %4062 = vmatmul.mubr.bf16.gmra.mrb[0].mxu0 %v3954
        %v4063 = vpop.f32.mrb[0].mxu0
        %v4064 = vadd.f32 0.0, %v4063
        %v4065 = vpop.f32.mrb[0].mxu0
        %v4066 = vpop.f32.mrb[0].mxu0
        %v4067 = vadd.f32 0.0, %v4066
        %v4068 = vpop.f32.mrb[0].mxu0
        %4069 = vmatprep.mubr.bf16.mxu0 0
        %4070 = vmatmul.mubr.bf16.gmra.mrb[0].mxu0 %v3955
        %v4071 = vpop.f32.mrb[0].mxu0
        %v4072 = vadd.f32 0.0, %v4071
        %v4073 = vpop.f32.mrb[0].mxu0
        %v4074 = vpop.f32.mrb[0].mxu0
        %v4075 = vadd.f32 0.0, %v4074
        %v4076 = vpop.f32.mrb[0].mxu0
        %4077 = vmatprep.mubr.bf16.mxu0 0
        %4078 = vmatmul.mubr.bf16.gmra.mrb[0].mxu0 %v3956
        %v4079 = vpop.f32.mrb[0].mxu0
        %v4080 = vadd.f32 0.0, %v4079
        %v4081 = vpop.f32.mrb[0].mxu0
        %v4082 = vpop.f32.mrb[0].mxu0
        %v4083 = vadd.f32 0.0, %v4082
        %v4084 = vpop.f32.mrb[0].mxu0
        %4085 = vdwg.mxu0
        %v4086 = vadd.f32 %v3937, %v4056
        %v4087 = vadd.f32 %v3938, %v4059
        %v4088 = vadd.f32 %v3939, %v4064
        %v4089 = vadd.f32 %v3940, %v4067
        %v4090 = vadd.f32 %v3941, %v4072
        %v4091 = vadd.f32 %v3942, %v4075
        %v4092 = vadd.f32 %v3943, %v4080
        %v4093 = vadd.f32 %v3944, %v4083
        %v4094 = vmul.f32 %v3036, %v2253
        %v4095 = vmul.f32 %v3037, %v2257
        %v4096 = vmul.f32 %v3038, %v2261
        %v4097 = vmul.f32 %v3039, %v2265
        %v4098 = vmul.f32 %v3040, %v2269
        %v4099 = vmul.f32 %v3041, %v2273
        %v4100 = vmul.f32 %v3042, %v2277
        %v4101 = vmul.f32 %v3035, %v2281
        %v4102 = vpack.c.bf16 %v4095, %v4094
        %v4103 = vpack.c.bf16 %v4097, %v4096
        %v4104 = vpack.c.bf16 %v4099, %v4098
        %v4105 = vpack.c.bf16 %v4101, %v4100
        %v4106 = vld [vmem:[#allocation10 + $0x1c0] sm:$0xf]
        %v4107 = vld [vmem:[#allocation10 + $0x1c4] sm:$0xf]
        %v4108 = vld [vmem:[#allocation10 + $0x1c8] sm:$0xf]
        %v4109 = vld [vmem:[#allocation10 + $0x1cc] sm:$0xf]
        %v4110 = vld [vmem:[#allocation10 + $0x1d0] sm:$0xf]
        %v4111 = vld [vmem:[#allocation10 + $0x1d4] sm:$0xf]
        %v4112 = vld [vmem:[#allocation10 + $0x1d8] sm:$0xf]
        %v4113 = vld [vmem:[#allocation10 + $0x1dc] sm:$0xf]
        %v4114 = vld [vmem:[#allocation10 + $0x1e0] sm:$0xf]
        %v4115 = vld [vmem:[#allocation10 + $0x1e4] sm:$0xf]
        %v4116 = vld [vmem:[#allocation10 + $0x1e8] sm:$0xf]
        %v4117 = vld [vmem:[#allocation10 + $0x1ec] sm:$0xf]
        %v4118 = vld [vmem:[#allocation10 + $0x1f0] sm:$0xf]
        %v4119 = vld [vmem:[#allocation10 + $0x1f4] sm:$0xf]
        %v4120 = vld [vmem:[#allocation10 + $0x1f8] sm:$0xf]
        %v4121 = vld [vmem:[#allocation10 + $0x1fc] sm:$0xf]
        %v4138 = vunpack.c.l.b16 %v4106
        %v4139 = vunpack.c.l.b16 %v4107
        %v4140 = vunpack.c.l.b16 %v4108
        %v4141 = vunpack.c.l.b16 %v4109
        %v4142 = vunpack.c.l.b16 %v4110
        %v4143 = vunpack.c.l.b16 %v4111
        %v4144 = vunpack.c.l.b16 %v4112
        %v4145 = vunpack.c.l.b16 %v4113
        %v4146 = vunpack.c.l.b16 %v4114
        %v4147 = vunpack.c.l.b16 %v4115
        %v4148 = vunpack.c.l.b16 %v4116
        %v4149 = vunpack.c.l.b16 %v4117
        %v4150 = vunpack.c.l.b16 %v4118
        %v4151 = vunpack.c.l.b16 %v4119
        %v4152 = vunpack.c.l.b16 %v4120
        %v4153 = vunpack.c.l.b16 %v4121
        %v4154 = vpack.c.b16 %v4139, %v4138
        %v4155 = vpack.c.b16 %v4141, %v4140
        %v4156 = vpack.c.b16 %v4143, %v4142
        %v4157 = vpack.c.b16 %v4145, %v4144
        %v4158 = vpack.c.b16 %v4147, %v4146
        %v4159 = vpack.c.b16 %v4149, %v4148
        %v4160 = vpack.c.b16 %v4151, %v4150
        %v4161 = vpack.c.b16 %v4153, %v4152
        %4170 = vmatprep.subr.bf16.mxu0 0
        %4171 = vmatpush1.bf16.msra.mxu0 %v4154
        %4172 = vmatprep.subr.bf16.mxu0 0
        %4173 = vmatpush1.bf16.msra.mxu0 %v4155
        %4174 = vmatprep.subr.bf16.mxu0 0
        %4175 = vmatpush1.bf16.msra.mxu0 %v4156
        %4176 = vmatprep.subr.bf16.mxu0 0
        %4177 = vmatpush1.bf16.msra.mxu0 %v4157
        %4178 = vmatprep.subr.bf16.mxu0 0
        %4179 = vmatpush1.bf16.msra.mxu0 %v4158
        %4180 = vmatprep.subr.bf16.mxu0 0
        %4181 = vmatpush1.bf16.msra.mxu0 %v4159
        %4182 = vmatprep.subr.bf16.mxu0 0
        %4183 = vmatpush1.bf16.msra.mxu0 %v4160
        %4184 = vmatprep.subr.bf16.mxu0 0
        %4185 = vmatpush1.bf16.msra.mxu0 %v4161
        %4186 = vmatprep.subr.bf16.mxu0 0
        %4187 = vmatpush1.bf16.msra.mxu0 0
        %4188 = vmatprep.subr.bf16.mxu0 0
        %4189 = vmatpush1.bf16.msra.mxu0 0
        %4190 = vmatprep.subr.bf16.mxu0 0
        %4191 = vmatpush1.bf16.msra.mxu0 0
        %4192 = vmatprep.subr.bf16.mxu0 0
        %4193 = vmatpush1.bf16.msra.mxu0 0
        %4194 = vmatprep.subr.bf16.mxu0 0
        %4195 = vmatpush1.bf16.msra.mxu0 0
        %4196 = vmatprep.subr.bf16.mxu0 0
        %4197 = vmatpush1.bf16.msra.mxu0 0
        %4198 = vmatprep.subr.bf16.mxu0 0
        %4199 = vmatpush1.bf16.msra.mxu0 0
        %4200 = vmatprep.subr.bf16.mxu0 0
        %4201 = vmatpush1.bf16.msra.mxu0 0
        %4202 = vmatprep.mubr.bf16.mxu0 0
        %4203 = vmatmul.mubr.bf16.gmra.mrb[0].mxu0 %v4102
        %v4204 = vpop.f32.mrb[0].mxu0
        %v4205 = vadd.f32 0.0, %v4204
        %v4206 = vpop.f32.mrb[0].mxu0
        %v4207 = vpop.f32.mrb[0].mxu0
        %v4208 = vadd.f32 0.0, %v4207
        %v4209 = vpop.f32.mrb[0].mxu0
        %4210 = vmatprep.mubr.bf16.mxu0 0
        %4211 = vmatmul.mubr.bf16.gmra.mrb[0].mxu0 %v4103
        %v4212 = vpop.f32.mrb[0].mxu0
        %v4213 = vadd.f32 0.0, %v4212
        %v4214 = vpop.f32.mrb[0].mxu0
        %v4215 = vpop.f32.mrb[0].mxu0
        %v4216 = vadd.f32 0.0, %v4215
        %v4217 = vpop.f32.mrb[0].mxu0
        %4218 = vmatprep.mubr.bf16.mxu0 0
        %4219 = vmatmul.mubr.bf16.gmra.mrb[0].mxu0 %v4104
        %v4220 = vpop.f32.mrb[0].mxu0
        %v4221 = vadd.f32 0.0, %v4220
        %v4222 = vpop.f32.mrb[0].mxu0
        %v4223 = vpop.f32.mrb[0].mxu0
        %v4224 = vadd.f32 0.0, %v4223
        %v4225 = vpop.f32.mrb[0].mxu0
        %4226 = vmatprep.mubr.bf16.mxu0 0
        %4227 = vmatmul.mubr.bf16.gmra.mrb[0].mxu0 %v4105
        %v4228 = vpop.f32.mrb[0].mxu0
        %v4229 = vadd.f32 0.0, %v4228
        %v4230 = vpop.f32.mrb[0].mxu0
        %v4231 = vpop.f32.mrb[0].mxu0
        %v4232 = vadd.f32 0.0, %v4231
        %v4233 = vpop.f32.mrb[0].mxu0
        %4234 = vdwg.mxu0
        %v4235 = vadd.f32 %v4086, %v4205
        %v4236 = vadd.f32 %v4087, %v4208
        %v4237 = vadd.f32 %v4088, %v4213
        %v4238 = vadd.f32 %v4089, %v4216
        %v4239 = vadd.f32 %v4090, %v4221
        %v4240 = vadd.f32 %v4091, %v4224
        %v4241 = vadd.f32 %v4092, %v4229
        %v4242 = vadd.f32 %v4093, %v4232
        %v4243 = vmul.f32 %v3354, %v2414
        %v4244 = vmul.f32 %v3353, %v2418
        %v4245 = vmul.f32 %v3352, %v2422
        %v4246 = vmul.f32 %v3351, %v2426
        %v4247 = vmul.f32 %v3350, %v2430
        %v4248 = vmul.f32 %v3349, %v2434
        %v4249 = vmul.f32 %v3356, %v2438
        %v4250 = vmul.f32 %v3355, %v2442
        %v4251 = vpack.c.bf16 %v4244, %v4243
        %v4252 = vpack.c.bf16 %v4246, %v4245
        %v4253 = vpack.c.bf16 %v4248, %v4247
        %v4254 = vpack.c.bf16 %v4250, %v4249
        %v4255 = vld [vmem:[#allocation10 + $0x200] sm:$0xf]
        %v4256 = vld [vmem:[#allocation10 + $0x204] sm:$0xf]
        %v4257 = vld [vmem:[#allocation10 + $0x208] sm:$0xf]
        %v4258 = vld [vmem:[#allocation10 + $0x20c] sm:$0xf]
        %v4259 = vld [vmem:[#allocation10 + $0x210] sm:$0xf]
        %v4260 = vld [vmem:[#allocation10 + $0x214] sm:$0xf]
        %v4261 = vld [vmem:[#allocation10 + $0x218] sm:$0xf]
        %v4262 = vld [vmem:[#allocation10 + $0x21c] sm:$0xf]
        %v4263 = vld [vmem:[#allocation10 + $0x220] sm:$0xf]
        %v4264 = vld [vmem:[#allocation10 + $0x224] sm:$0xf]
        %v4265 = vld [vmem:[#allocation10 + $0x228] sm:$0xf]
        %v4266 = vld [vmem:[#allocation10 + $0x22c] sm:$0xf]
        %v4267 = vld [vmem:[#allocation10 + $0x230] sm:$0xf]
        %v4268 = vld [vmem:[#allocation10 + $0x234] sm:$0xf]
        %v4269 = vld [vmem:[#allocation10 + $0x238] sm:$0xf]
        %v4270 = vld [vmem:[#allocation10 + $0x23c] sm:$0xf]
        %v4287 = vunpack.c.l.b16 %v4255
        %v4288 = vunpack.c.l.b16 %v4256
        %v4289 = vunpack.c.l.b16 %v4257
        %v4290 = vunpack.c.l.b16 %v4258
        %v4291 = vunpack.c.l.b16 %v4259
        %v4292 = vunpack.c.l.b16 %v4260
        %v4293 = vunpack.c.l.b16 %v4261
        %v4294 = vunpack.c.l.b16 %v4262
        %v4295 = vunpack.c.l.b16 %v4263
        %v4296 = vunpack.c.l.b16 %v4264
        %v4297 = vunpack.c.l.b16 %v4265
        %v4298 = vunpack.c.l.b16 %v4266
        %v4299 = vunpack.c.l.b16 %v4267
        %v4300 = vunpack.c.l.b16 %v4268
        %v4301 = vunpack.c.l.b16 %v4269
        %v4302 = vunpack.c.l.b16 %v4270
        %v4303 = vpack.c.b16 %v4288, %v4287
        %v4304 = vpack.c.b16 %v4290, %v4289
        %v4305 = vpack.c.b16 %v4292, %v4291
        %v4306 = vpack.c.b16 %v4294, %v4293
        %v4307 = vpack.c.b16 %v4296, %v4295
        %v4308 = vpack.c.b16 %v4298, %v4297
        %v4309 = vpack.c.b16 %v4300, %v4299
        %v4310 = vpack.c.b16 %v4302, %v4301
        %4319 = vmatprep.subr.bf16.mxu0 0
        %4320 = vmatpush1.bf16.msra.mxu0 %v4303
        %4321 = vmatprep.subr.bf16.mxu0 0
        %4322 = vmatpush1.bf16.msra.mxu0 %v4304
        %4323 = vmatprep.subr.bf16.mxu0 0
        %4324 = vmatpush1.bf16.msra.mxu0 %v4305
        %4325 = vmatprep.subr.bf16.mxu0 0
        %4326 = vmatpush1.bf16.msra.mxu0 %v4306
        %4327 = vmatprep.subr.bf16.mxu0 0
        %4328 = vmatpush1.bf16.msra.mxu0 %v4307
        %4329 = vmatprep.subr.bf16.mxu0 0
        %4330 = vmatpush1.bf16.msra.mxu0 %v4308
        %4331 = vmatprep.subr.bf16.mxu0 0
        %4332 = vmatpush1.bf16.msra.mxu0 %v4309
        %4333 = vmatprep.subr.bf16.mxu0 0
        %4334 = vmatpush1.bf16.msra.mxu0 %v4310
        %4335 = vmatprep.subr.bf16.mxu0 0
        %4336 = vmatpush1.bf16.msra.mxu0 0
        %4337 = vmatprep.subr.bf16.mxu0 0
        %4338 = vmatpush1.bf16.msra.mxu0 0
        %4339 = vmatprep.subr.bf16.mxu0 0
        %4340 = vmatpush1.bf16.msra.mxu0 0
        %4341 = vmatprep.subr.bf16.mxu0 0
        %4342 = vmatpush1.bf16.msra.mxu0 0
        %4343 = vmatprep.subr.bf16.mxu0 0
        %4344 = vmatpush1.bf16.msra.mxu0 0
        %4345 = vmatprep.subr.bf16.mxu0 0
        %4346 = vmatpush1.bf16.msra.mxu0 0
        %4347 = vmatprep.subr.bf16.mxu0 0
        %4348 = vmatpush1.bf16.msra.mxu0 0
        %4349 = vmatprep.subr.bf16.mxu0 0
        %4350 = vmatpush1.bf16.msra.mxu0 0
        %4351 = vmatprep.mubr.bf16.mxu0 0
        %4352 = vmatmul.mubr.bf16.gmra.mrb[0].mxu0 %v4251
        %v4353 = vpop.f32.mrb[0].mxu0
        %v4354 = vadd.f32 0.0, %v4353
        %v4355 = vpop.f32.mrb[0].mxu0
        %v4356 = vpop.f32.mrb[0].mxu0
        %v4357 = vadd.f32 0.0, %v4356
        %v4358 = vpop.f32.mrb[0].mxu0
        %4359 = vmatprep.mubr.bf16.mxu0 0
        %4360 = vmatmul.mubr.bf16.gmra.mrb[0].mxu0 %v4252
        %v4361 = vpop.f32.mrb[0].mxu0
        %v4362 = vadd.f32 0.0, %v4361
        %v4363 = vpop.f32.mrb[0].mxu0
        %v4364 = vpop.f32.mrb[0].mxu0
        %v4365 = vadd.f32 0.0, %v4364
        %v4366 = vpop.f32.mrb[0].mxu0
        %4367 = vmatprep.mubr.bf16.mxu0 0
        %4368 = vmatmul.mubr.bf16.gmra.mrb[0].mxu0 %v4253
        %v4369 = vpop.f32.mrb[0].mxu0
        %v4370 = vadd.f32 0.0, %v4369
        %v4371 = vpop.f32.mrb[0].mxu0
        %v4372 = vpop.f32.mrb[0].mxu0
        %v4373 = vadd.f32 0.0, %v4372
        %v4374 = vpop.f32.mrb[0].mxu0
        %4375 = vmatprep.mubr.bf16.mxu0 0
        %4376 = vmatmul.mubr.bf16.gmra.mrb[0].mxu0 %v4254
        %v4377 = vpop.f32.mrb[0].mxu0
        %v4378 = vadd.f32 0.0, %v4377
        %v4379 = vpop.f32.mrb[0].mxu0
        %v4380 = vpop.f32.mrb[0].mxu0
        %v4381 = vadd.f32 0.0, %v4380
        %v4382 = vpop.f32.mrb[0].mxu0
        %4383 = vdwg.mxu0
        %v4384 = vadd.f32 %v4235, %v4354
        %v4385 = vadd.f32 %v4236, %v4357
        %v4386 = vadd.f32 %v4237, %v4362
        %v4387 = vadd.f32 %v4238, %v4365
        %v4388 = vadd.f32 %v4239, %v4370
        %v4389 = vadd.f32 %v4240, %v4373
        %v4390 = vadd.f32 %v4241, %v4378
        %v4391 = vadd.f32 %v4242, %v4381
        %v4392 = vld [vmem:[#allocation11] sm:$0x1]
        %v4394 = vlaneseq
        %v4395 = vshrl.u32 %v4394, 7
        %v4396 = vsub.s32 0, %v4395
        %v4397 = vrot.slane %v4392, %v4396
        %v4399 = vadd.f32 %v4384, %v4397
        %v4400 = vadd.f32 %v4385, %v4397
        %v4401 = vadd.f32 %v4386, %v4397
        %v4402 = vadd.f32 %v4387, %v4397
        %v4403 = vadd.f32 %v4388, %v4397
        %v4404 = vadd.f32 %v4389, %v4397
        %v4405 = vadd.f32 %v4390, %v4397
        %v4406 = vadd.f32 %v4391, %v4397
        %v4407 = vpack.c.bf16 %v658, %v657
        %v4408 = vpack.c.bf16 %v660, %v659
        %v4409 = vpack.c.bf16 %v662, %v661
        %v4410 = vpack.c.bf16 %v664, %v663
        %v4411 = vld [vmem:[#allocation16] sm:$0xf]
        %v4412 = vld [vmem:[#allocation16 + $0x4] sm:$0xf]
        %v4413 = vld [vmem:[#allocation16 + $0x8] sm:$0xf]
        %v4414 = vld [vmem:[#allocation16 + $0xc] sm:$0xf]
        %v4415 = vld [vmem:[#allocation16 + $0x10] sm:$0xf]
        %v4416 = vld [vmem:[#allocation16 + $0x14] sm:$0xf]
        %v4417 = vld [vmem:[#allocation16 + $0x18] sm:$0xf]
        %v4418 = vld [vmem:[#allocation16 + $0x1c] sm:$0xf]
        %v4419 = vld [vmem:[%s15] sm:$0x1]
        %v4421 = vlaneseq
        %v4422 = vshrl.u32 %v4421, 7
        %v4423 = vsub.s32 0, %v4422
        %v4424 = vrot.slane %v4419, %v4423
        %v4434 = vunpack.c.l.b16 %v4411
        %v4435 = vunpack.c.l.b16 %v4412
        %v4436 = vunpack.c.l.b16 %v4413
        %v4437 = vunpack.c.l.b16 %v4414
        %v4438 = vunpack.c.l.b16 %v4415
        %v4439 = vunpack.c.l.b16 %v4416
        %v4440 = vunpack.c.l.b16 %v4417
        %v4441 = vunpack.c.l.b16 %v4418
        %v4442 = vpack.c.b16 %v4435, %v4434
        %v4443 = vpack.c.b16 %v4437, %v4436
        %v4444 = vpack.c.b16 %v4439, %v4438
        %v4445 = vpack.c.b16 %v4441, %v4440
        %v4451 = vsel %vm665, %v4407, 0
        %v4454 = vsel %vm665, %v4408, 0
        %v4457 = vsel %vm665, %v4409, 0
        %v4460 = vsel %vm665, %v4410, 0
        %4462 = vmatprep.subr.bf16.mxu0 0
        %4463 = vmatpush1.bf16.msra.mxu0 %v4442
        %4464 = vmatprep.subr.bf16.mxu0 0
        %4465 = vmatpush1.bf16.msra.mxu0 %v4443
        %4466 = vmatprep.subr.bf16.mxu0 0
        %4467 = vmatpush1.bf16.msra.mxu0 %v4444
        %4468 = vmatprep.subr.bf16.mxu0 0
        %4469 = vmatpush1.bf16.msra.mxu0 %v4445
        %4470 = vmatprep.subr.bf16.mxu0 0
        %4471 = vmatpush1.bf16.msra.mxu0 0
        %4472 = vmatprep.subr.bf16.mxu0 0
        %4473 = vmatpush1.bf16.msra.mxu0 0
        %4474 = vmatprep.subr.bf16.mxu0 0
        %4475 = vmatpush1.bf16.msra.mxu0 0
        %4476 = vmatprep.subr.bf16.mxu0 0
        %4477 = vmatpush1.bf16.msra.mxu0 0
        %4478 = vmatprep.subr.bf16.mxu0 0
        %4479 = vmatpush1.bf16.msra.mxu0 0
        %4480 = vmatprep.subr.bf16.mxu0 0
        %4481 = vmatpush1.bf16.msra.mxu0 0
        %4482 = vmatprep.subr.bf16.mxu0 0
        %4483 = vmatpush1.bf16.msra.mxu0 0
        %4484 = vmatprep.subr.bf16.mxu0 0
        %4485 = vmatpush1.bf16.msra.mxu0 0
        %4486 = vmatprep.subr.bf16.mxu0 0
        %4487 = vmatpush1.bf16.msra.mxu0 0
        %4488 = vmatprep.subr.bf16.mxu0 0
        %4489 = vmatpush1.bf16.msra.mxu0 0
        %4490 = vmatprep.subr.bf16.mxu0 0
        %4491 = vmatpush1.bf16.msra.mxu0 0
        %4492 = vmatprep.subr.bf16.mxu0 0
        %4493 = vmatpush1.bf16.msra.mxu0 0
        %4494 = vmatprep.mubr.bf16.mxu0 0
        %4495 = vmatmul.mubr.bf16.gmra.mrb[0].mxu0 %v4451
        %v4496 = vpop.f32.mrb[0].mxu0
        %v4497 = vadd.f32 %v4424, %v4496
        %v4498 = vpop.f32.mrb[0].mxu0
        %v4499 = vpop.f32.mrb[0].mxu0
        %v4500 = vadd.f32 %v4424, %v4499
        %v4501 = vpop.f32.mrb[0].mxu0
        %4502 = vmatprep.mubr.bf16.mxu0 0
        %4503 = vmatmul.mubr.bf16.gmra.mrb[0].mxu0 %v4454
        %v4504 = vpop.f32.mrb[0].mxu0
        %v4505 = vadd.f32 %v4424, %v4504
        %v4506 = vpop.f32.mrb[0].mxu0
        %v4507 = vpop.f32.mrb[0].mxu0
        %v4508 = vadd.f32 %v4424, %v4507
        %v4509 = vpop.f32.mrb[0].mxu0
        %4510 = vmatprep.mubr.bf16.mxu0 0
        %4511 = vmatmul.mubr.bf16.gmra.mrb[0].mxu0 %v4457
        %v4512 = vpop.f32.mrb[0].mxu0
        %v4513 = vadd.f32 %v4424, %v4512
        %v4514 = vpop.f32.mrb[0].mxu0
        %v4515 = vpop.f32.mrb[0].mxu0
        %v4516 = vadd.f32 %v4424, %v4515
        %v4517 = vpop.f32.mrb[0].mxu0
        %4518 = vmatprep.mubr.bf16.mxu0 0
        %4519 = vmatmul.mubr.bf16.gmra.mrb[0].mxu0 %v4460
        %v4520 = vpop.f32.mrb[0].mxu0
        %v4521 = vadd.f32 %v4424, %v4520
        %v4522 = vpop.f32.mrb[0].mxu0
        %v4523 = vpop.f32.mrb[0].mxu0
        %v4524 = vadd.f32 %v4424, %v4523
        %v4525 = vpop.f32.mrb[0].mxu0
        %4526 = vdwg.mxu0
        %v4527 = vadd.f32 %v4399, %v4497
        %v4528 = vadd.f32 %v4400, %v4500
        %v4529 = vadd.f32 %v4401, %v4505
        %v4530 = vadd.f32 %v4402, %v4508
        %v4531 = vadd.f32 %v4403, %v4513
        %v4532 = vadd.f32 %v4404, %v4516
        %v4533 = vadd.f32 %v4405, %v4521
        %v4534 = vadd.f32 %v4406, %v4524
        %4535 = vst [vmem:[%s647] sm:$0xff] %v4527
        %4536 = vst [vmem:[%s647 + $0x8] sm:$0xff] %v4528
        %4537 = vst [vmem:[%s647 + $0x10] sm:$0xff] %v4529
        %4538 = vst [vmem:[%s647 + $0x18] sm:$0xff] %v4530
        %4539 = vst [vmem:[%s647 + $0x20] sm:$0xff] %v4531
        %4540 = vst [vmem:[%s647 + $0x28] sm:$0xff] %v4532
        %4541 = vst [vmem:[%s647 + $0x30] sm:$0xff] %v4533
        %4542 = vst [vmem:[%s647 + $0x38] sm:$0xff] %v4534
        %s4543 = sand.u32 %s386, 1
        %s4544 = scalar_lea.sflag [#allocation4], %s4543
        %s4545 = sand.u32 %s386, 1
        %s4546 = smul.addr %s4545, 64
        %s4547 = scalar_lea.vmem [#allocation17], %s4546
        // Predicated region
        $region121: #{tpu_custom_call.1} parent=83 // pred_check
          %p4548 = pneg %p396
        $region122: #{tpu_custom_call.1} parent=83 // pred_check_branch
          %4550 = sbr.rel (%p4548) target = $region124
        $region123: #{tpu_custom_call.1} parent=83 // pred_region
          %s4552 = ssub.s32 1024, 1024
          %4553 = vsyncadd %s4544, %s4552
          %s4554 = smul.addr %s37, 8
          %s4555 = smul.addr %s4554, 128
          %s4556 = scalar_lea.hbm %s16, %s4555
          %s4557 = sshll.u32 %s4547, 4
          %s4558 = int_to_ptr.vmem [resolvable:$true] %s4557
          %4563 = dma.vmem_to_hbm [thread:$0]  %s4558, 1024, %s4556, %s4544, 128, 128, 8
        $region124: #{tpu_custom_call.1} parent=83 // pred_fallthru
          _
      $region84: #{tpu_custom_call.1} parent=5 // pred_fallthru
        _
      %p4564 = scmp.le.s32.totalorder 2, %s32
      // Predicated region
      $region125: #{tpu_custom_call.1} parent=5 // pred_check
        %p4565 = pneg %p4564
      $region126: #{tpu_custom_call.1} parent=5 // pred_check_branch
        %4567 = sbr.rel (%p4565) target = $region128
      $region127: #{tpu_custom_call.1} parent=5 // pred_region
        %s4568 = ssub.s32 %s32, 2
        // Predicated region
        $region129: #{tpu_custom_call.1} parent=127 // pred_check
          %p4569 = pneg %p402
        $region130: #{tpu_custom_call.1} parent=127 // pred_check_branch
          %4571 = sbr.rel (%p4569) target = $region132
        $region131: #{tpu_custom_call.1} parent=127 // pred_region
          %s4572 = sand.u32 %s387, 1
          %s4573 = scalar_lea.sflag [#allocation4], %s4572
          %s4574 = sand.u32 %s387, 1
          %s4575 = smul.addr %s4574, 64
          %s4576 = scalar_lea.vmem [#allocation17], %s4575
          %4577 = dma.done %s4573, 1024
        $region132: #{tpu_custom_call.1} parent=127 // pred_fallthru
          _
      $region128: #{tpu_custom_call.1} parent=5 // pred_fallthru
        _
    $region6: #{tpu_custom_call.1} parent=1 // loop_footer
      %s36 = sadd.s32 1, %s32
    $region7: #{tpu_custom_call.1} parent=1 // loop_footer_branch
      %31 = sbr.rel target = $region3
    $region8: #{tpu_custom_call.1} parent=1 // loop_exit
      _
    %4578 = vsyncpa [#allocation3], 1
    %s4579 = scalar_lea.sflag [#allocation3], 1
    %4580 = vsyncpa %s4579, 1
    %4581 = vsyncpa [#allocation6], 1
    %4582 = vsyncpa [#allocation9], 1
    %4583 = vsyncpa [#allocation12], 1
    %4584 = vsyncpa [#allocation15], 1
    %4585 = vsyncpa [#allocation4], 1
    %s4586 = scalar_lea.sflag [#allocation4], 1
    %4587 = vsyncpa %s4586, 1

// kernel: tpu_custom_call.1
$region0: #{tpu_custom_call.1}
  #allocation0 [shape = 'u32[]', space=smem, size = 0x4, offset = 0x4, fixed_abs, tag = 'smem constant byte address 0x4 - core index']
  #allocation1 [shape = 'u32[144,128]{1,0:T(1,128)}', space=vmem, size = 0x12000, scoped, tag = 'internal scratch']
  %s0 = inlined_call_operand.hbm [shape: f32[2,8,8,64], index: 0, kind: input, shape index: {}]
  %s1 = inlined_call_operand.vmem [shape: f32[1,64], index: 1, kind: input, shape index: {}]
  %s2 = inlined_call_operand.vmem [shape: f32[1,64], index: 2, kind: input, shape index: {}]
  %s3 = inlined_call_operand.vmem [shape: bf16[576,128], index: 3, kind: input, shape index: {}]
  %s4 = inlined_call_operand.hbm [shape: f32[1,128], index: 4, kind: input, shape index: {}]
  %s5 = inlined_call_operand.hbm [shape: f32[1,128], index: 5, kind: input, shape index: {}]
  %s6 = inlined_call_operand.hbm [shape: f32[1,128], index: 6, kind: input, shape index: {}]
  %s7 = inlined_call_operand.hbm [shape: bf16[1152,128], index: 7, kind: input, shape index: {}]
  %s8 = inlined_call_operand.hbm [shape: f32[1,128], index: 8, kind: input, shape index: {}]
  %s9 = inlined_call_operand.vmem [shape: f32[64,32], index: 9, kind: input, shape index: {}]
  %s10 = inlined_call_operand.hbm [shape: f32[32,64], index: 10, kind: input, shape index: {}]
  %s11 = inlined_call_operand.vmem [shape: f32[128,32], index: 11, kind: input, shape index: {}]
  %s12 = inlined_call_operand.hbm [shape: f32[32,128], index: 12, kind: input, shape index: {}]
  %s13 = inlined_call_operand.vmem [shape: f32[64,9], index: 13, kind: input, shape index: {}]
  %s14 = inlined_call_operand.hbm [shape: bf16[64,128], index: 14, kind: input, shape index: {}]
  %s15 = inlined_call_operand.vmem [shape: f32[1,128], index: 15, kind: input, shape index: {}]
  %s16 = inlined_call_operand.hbm [shape: f32[2,8,8,128], index: 16, kind: output, shape index: {}]
  %s17 = sld [smem:[#allocation0]]
  $region133: #{tpu_custom_call.1} parent=0
    _
  %s19 = ssub.s32 1, %s17
  %s20 = scalar_select 0, %s19, %s17
  $region1: #{tpu_custom_call.1} parent=0
    #allocation2 [shape = 'u8[65536]{0}', space=vmem, size = 0x10000, scoped, tag = 'input window, operand 0']
    #allocation3 [shape = 's32[2]{0}', space=sflag, size = 0x8, scoped, tag = 'scoped memory for tpu_custom_call.1']
    #allocation4 [shape = 's32[2]{0}', space=sflag, size = 0x8, scoped, tag = 'scoped memory for tpu_custom_call.1']
    #allocation5 [shape = 'u8[512]{0}', space=vmem, size = 0x400, scoped, tag = 'input window, operand 4, single buffered']
    #allocation6 [shape = 's32[1]{0}', space=sflag, size = 0x4, scoped, tag = 'scoped memory for tpu_custom_call.1']
    #allocation7 [shape = 'u8[512]{0}', space=vmem, size = 0x400, scoped, tag = 'input window, operand 5, single buffered']
    #allocation8 [shape = 'u8[512]{0}', space=vmem, size = 0x400, scoped, tag = 'input window, operand 6, single buffered']
    #allocation9 [shape = 's32[1]{0}', space=sflag, size = 0x4, scoped, tag = 'scoped memory for tpu_custom_call.1']
    #allocation10 [shape = 'u8[294912]{0}', space=vmem, size = 0x48000, scoped, tag = 'input window, operand 7, single buffered']
    #allocation11 [shape = 'u8[512]{0}', space=vmem, size = 0x400, scoped, tag = 'input window, operand 8, single buffered']
    #allocation12 [shape = 's32[1]{0}', space=sflag, size = 0x4, scoped, tag = 'scoped memory for tpu_custom_call.1']
    #allocation13 [shape = 'u8[16384]{0}', space=vmem, size = 0x4000, scoped, tag = 'input window, operand 10, single buffered']
    #allocation14 [shape = 'u8[16384]{0}', space=vmem, size = 0x4000, scoped, tag = 'input window, operand 12, single buffered']
    #allocation15 [shape = 's32[1]{0}', space=sflag, size = 0x4, scoped, tag = 'scoped memory for tpu_custom_call.1']
    #allocation16 [shape = 'u8[16384]{0}', space=vmem, size = 0x4000, scoped, tag = 'input window, operand 14, single buffered']
    #allocation17 [shape = 'u8[65536]{0}', space=vmem, size = 0x10000, scoped, tag = 'output window, operand 0']
    %21 = vsyncpa [#allocation3], 0
    %s22 = scalar_lea.sflag [#allocation3], 1
    %23 = vsyncpa %s22, 0
    %24 = vsyncpa [#allocation6], 0
    %25 = vsyncpa [#allocation9], 0
    %26 = vsyncpa [#allocation12], 0
    %27 = vsyncpa [#allocation15], 0
    %28 = vsyncpa [#allocation4], 0
    %s29 = scalar_lea.sflag [#allocation4], 1
    %30 = vsyncpa %s29, 0
    loop: start=0, step=1, limit=4
    $region2: #{tpu_custom_call.1} parent=1 // loop_pre_header
      _
    $region3: #{tpu_custom_call.1} parent=1 // loop_header
      %s32 = sphi 0, %s36
      %p33 = scmp.ge.s32.totalorder %s32, 4
      %s42 = sphi 0, %s44
      %s45 = sphi 0, %s42
      %s46 = sphi 0, %s45
      %s62 = sphi 0, %s46
      %s66 = sphi 0, %s66
      %s68 = sphi 0, %s66
      %s69 = sphi 0, %s68
      %s83 = sphi 0, %s69
      %s87 = sphi 0, %s87
      %s89 = sphi 0, %s87
      %s90 = sphi 0, %s89
      %s104 = sphi 0, %s90
      %s108 = sphi 0, %s108
      %s110 = sphi 0, %s108
      %s111 = sphi 0, %s110
      %s125 = sphi 0, %s111
      %s129 = sphi 0, %s129
      %s131 = sphi 0, %s129
      %s132 = sphi 0, %s131
      %s146 = sphi 0, %s132
      %s150 = sphi 0, %s150
      %s152 = sphi 0, %s150
      %s153 = sphi 0, %s152
      %s167 = sphi 0, %s153
      %s171 = sphi 0, %s171
      %s173 = sphi 0, %s171
      %s174 = sphi 0, %s173
      %s188 = sphi 0, %s174
      %s192 = sphi 0, %s192
      %s194 = sphi 0, %s192
      %s195 = sphi 0, %s194
      %s209 = sphi 0, %s195
      %s213 = sphi 0, %s213
      %s215 = sphi 0, %s213
      %s216 = sphi 0, %s215
      %s230 = sphi 0, %s216
      %s234 = sphi 0, %s234
      %s236 = sphi 0, %s234
      %s237 = sphi 0, %s236
      %s251 = sphi 0, %s237
      %s255 = sphi 0, %s255
      %s257 = sphi 0, %s255
      %s258 = sphi 0, %s257
      %s272 = sphi 0, %s258
      %s276 = sphi 0, %s276
      %s278 = sphi 0, %s276
      %s279 = sphi 0, %s278
      %s293 = sphi 0, %s279
      %s297 = sphi 0, %s297
      %s299 = sphi 0, %s297
      %s300 = sphi 0, %s299
      %s314 = sphi 0, %s300
      %s318 = sphi 0, %s318
      %s320 = sphi 0, %s318
      %s321 = sphi 0, %s320
      %s335 = sphi 0, %s321
      %s339 = sphi 0, %s339
      %s341 = sphi 0, %s339
      %s342 = sphi 0, %s341
      %s356 = sphi 0, %s342
      %s360 = sphi 0, %s360
      %s362 = sphi 0, %s360
      %s363 = sphi 0, %s362
      %s377 = sphi 0, %s363
      %s383 = sphi 0, %s385
      %s386 = sphi 0, %s383
      %s387 = sphi 0, %s386
      %s403 = sphi 0, %s387
    $region4: #{tpu_custom_call.1} parent=1 // loop_header_branch
      %35 = sbr.rel (%p33) target = $region8
    $region5: #{tpu_custom_call.1} parent=1 // loop_body
      %s37 = ssub.s32 %s32, 1
      %s38 = ssub.s32 %s32, 2
      %s39 = sadd.s32 %s32, 1
      %s40 = ssub.s32 %s32, %s39
      %p41 = scmp.eq.s32.totalorder %s40, 0
      %s43 = sadd.s32 %s42, 1
      %s44 = scalar_select %p41, %s42, %s43
      %p47 = pneg %p41
      %p48 = scmp.eq.s32.totalorder %s32, 1
      %p49 = por %p47, %p48
      %p50 = scmp.ne.s32.totalorder %s42, %s45
      %p51 = scmp.eq.s32.totalorder %s32, 0
      %p52 = por %p50, %p51
      %p53 = scmp.ne.s32.totalorder %s42, %s45
      %p54 = scmp.eq.s32.totalorder %s37, 1
      %p55 = por %p53, %p54
      %p56 = scmp.ne.s32.totalorder %s45, %s46
      %p57 = scmp.eq.s32.totalorder %s37, 0
      %p58 = por %p56, %p57
      %p59 = scmp.ne.s32.totalorder %s45, %s46
      %p60 = scmp.eq.s32.totalorder %s38, 1
      %p61 = por %p59, %p60
      %p63 = scmp.ne.s32.totalorder %s46, %s62
      %p64 = scmp.eq.s32.totalorder %s38, 0
      %p65 = por %p63, %p64
      %s67 = sadd.s32 %s66, 1
      %p70 = scmp.eq.s32.totalorder %s32, 1
      %p71 = scmp.ne.s32.totalorder %s66, %s68
      %p72 = scmp.eq.s32.totalorder %s32, 0
      %p73 = por %p71, %p72
      %p74 = scmp.ne.s32.totalorder %s66, %s68
      %p75 = scmp.eq.s32.totalorder %s37, 1
      %p76 = por %p74, %p75
      %p77 = scmp.ne.s32.totalorder %s68, %s69
      %p78 = scmp.eq.s32.totalorder %s37, 0
      %p79 = por %p77, %p78
      %p80 = scmp.ne.s32.totalorder %s68, %s69
      %p81 = scmp.eq.s32.totalorder %s38, 1
      %p82 = por %p80, %p81
      %p84 = scmp.ne.s32.totalorder %s69, %s83
      %p85 = scmp.eq.s32.totalorder %s38, 0
      %p86 = por %p84, %p85
      %s88 = sadd.s32 %s87, 1
      %p91 = scmp.eq.s32.totalorder %s32, 1
      %p92 = scmp.ne.s32.totalorder %s87, %s89
      %p93 = scmp.eq.s32.totalorder %s32, 0
      %p94 = por %p92, %p93
      %p95 = scmp.ne.s32.totalorder %s87, %s89
      %p96 = scmp.eq.s32.totalorder %s37, 1
      %p97 = por %p95, %p96
      %p98 = scmp.ne.s32.totalorder %s89, %s90
      %p99 = scmp.eq.s32.totalorder %s37, 0
      %p100 = por %p98, %p99
      %p101 = scmp.ne.s32.totalorder %s89, %s90
      %p102 = scmp.eq.s32.totalorder %s38, 1
      %p103 = por %p101, %p102
      %p105 = scmp.ne.s32.totalorder %s90, %s104
      %p106 = scmp.eq.s32.totalorder %s38, 0
      %p107 = por %p105, %p106
      %s109 = sadd.s32 %s108, 1
      %p112 = scmp.eq.s32.totalorder %s32, 1
      %p113 = scmp.ne.s32.totalorder %s108, %s110
      %p114 = scmp.eq.s32.totalorder %s32, 0
      %p115 = por %p113, %p114
      %p116 = scmp.ne.s32.totalorder %s108, %s110
      %p117 = scmp.eq.s32.totalorder %s37, 1
      %p118 = por %p116, %p117
      %p119 = scmp.ne.s32.totalorder %s110, %s111
      %p120 = scmp.eq.s32.totalorder %s37, 0
      %p121 = por %p119, %p120
      %p122 = scmp.ne.s32.totalorder %s110, %s111
      %p123 = scmp.eq.s32.totalorder %s38, 1
      %p124 = por %p122, %p123
      %p126 = scmp.ne.s32.totalorder %s111, %s125
      %p127 = scmp.eq.s32.totalorder %s38, 0
      %p128 = por %p126, %p127
      %s130 = sadd.s32 %s129, 1
      %p133 = scmp.eq.s32.totalorder %s32, 1
      %p134 = scmp.ne.s32.totalorder %s129, %s131
      %p135 = scmp.eq.s32.totalorder %s32, 0
      %p136 = por %p134, %p135
      %p137 = scmp.ne.s32.totalorder %s129, %s131
      %p138 = scmp.eq.s32.totalorder %s37, 1
      %p139 = por %p137, %p138
      %p140 = scmp.ne.s32.totalorder %s131, %s132
      %p141 = scmp.eq.s32.totalorder %s37, 0
      %p142 = por %p140, %p141
      %p143 = scmp.ne.s32.totalorder %s131, %s132
      %p144 = scmp.eq.s32.totalorder %s38, 1
      %p145 = por %p143, %p144
      %p147 = scmp.ne.s32.totalorder %s132, %s146
      %p148 = scmp.eq.s32.totalorder %s38, 0
      %p149 = por %p147, %p148
      %s151 = sadd.s32 %s150, 1
      %p154 = scmp.eq.s32.totalorder %s32, 1
      %p155 = scmp.ne.s32.totalorder %s150, %s152
      %p156 = scmp.eq.s32.totalorder %s32, 0
      %p157 = por %p155, %p156
      %p158 = scmp.ne.s32.totalorder %s150, %s152
      %p159 = scmp.eq.s32.totalorder %s37, 1
      %p160 = por %p158, %p159
      %p161 = scmp.ne.s32.totalorder %s152, %s153
      %p162 = scmp.eq.s32.totalorder %s37, 0
      %p163 = por %p161, %p162
      %p164 = scmp.ne.s32.totalorder %s152, %s153
      %p165 = scmp.eq.s32.totalorder %s38, 1
      %p166 = por %p164, %p165
      %p168 = scmp.ne.s32.totalorder %s153, %s167
      %p169 = scmp.eq.s32.totalorder %s38, 0
      %p170 = por %p168, %p169
      %s172 = sadd.s32 %s171, 1
      %p175 = scmp.eq.s32.totalorder %s32, 1
      %p176 = scmp.ne.s32.totalorder %s171, %s173
      %p177 = scmp.eq.s32.totalorder %s32, 0
      %p178 = por %p176, %p177
      %p179 = scmp.ne.s32.totalorder %s171, %s173
      %p180 = scmp.eq.s32.totalorder %s37, 1
      %p181 = por %p179, %p180
      %p182 = scmp.ne.s32.totalorder %s173, %s174
      %p183 = scmp.eq.s32.totalorder %s37, 0
      %p184 = por %p182, %p183
      %p185 = scmp.ne.s32.totalorder %s173, %s174
      %p186 = scmp.eq.s32.totalorder %s38, 1
      %p187 = por %p185, %p186
      %p189 = scmp.ne.s32.totalorder %s174, %s188
      %p190 = scmp.eq.s32.totalorder %s38, 0
      %p191 = por %p189, %p190
      %s193 = sadd.s32 %s192, 1
      %p196 = scmp.eq.s32.totalorder %s32, 1
      %p197 = scmp.ne.s32.totalorder %s192, %s194
      %p198 = scmp.eq.s32.totalorder %s32, 0
      %p199 = por %p197, %p198
      %p200 = scmp.ne.s32.totalorder %s192, %s194
      %p201 = scmp.eq.s32.totalorder %s37, 1
      %p202 = por %p200, %p201
      %p203 = scmp.ne.s32.totalorder %s194, %s195
      %p204 = scmp.eq.s32.totalorder %s37, 0
      %p205 = por %p203, %p204
      %p206 = scmp.ne.s32.totalorder %s194, %s195
      %p207 = scmp.eq.s32.totalorder %s38, 1
      %p208 = por %p206, %p207
      %p210 = scmp.ne.s32.totalorder %s195, %s209
      %p211 = scmp.eq.s32.totalorder %s38, 0
      %p212 = por %p210, %p211
      %s214 = sadd.s32 %s213, 1
      %p217 = scmp.eq.s32.totalorder %s32, 1
      %p218 = scmp.ne.s32.totalorder %s213, %s215
      %p219 = scmp.eq.s32.totalorder %s32, 0
      %p220 = por %p218, %p219
      %p221 = scmp.ne.s32.totalorder %s213, %s215
      %p222 = scmp.eq.s32.totalorder %s37, 1
      %p223 = por %p221, %p222
      %p224 = scmp.ne.s32.totalorder %s215, %s216
      %p225 = scmp.eq.s32.totalorder %s37, 0
      %p226 = por %p224, %p225
      %p227 = scmp.ne.s32.totalorder %s215, %s216
      %p228 = scmp.eq.s32.totalorder %s38, 1
      %p229 = por %p227, %p228
      %p231 = scmp.ne.s32.totalorder %s216, %s230
      %p232 = scmp.eq.s32.totalorder %s38, 0
      %p233 = por %p231, %p232
      %s235 = sadd.s32 %s234, 1
      %p238 = scmp.eq.s32.totalorder %s32, 1
      %p239 = scmp.ne.s32.totalorder %s234, %s236
      %p240 = scmp.eq.s32.totalorder %s32, 0
      %p241 = por %p239, %p240
      %p242 = scmp.ne.s32.totalorder %s234, %s236
      %p243 = scmp.eq.s32.totalorder %s37, 1
      %p244 = por %p242, %p243
      %p245 = scmp.ne.s32.totalorder %s236, %s237
      %p246 = scmp.eq.s32.totalorder %s37, 0
      %p247 = por %p245, %p246
      %p248 = scmp.ne.s32.totalorder %s236, %s237
      %p249 = scmp.eq.s32.totalorder %s38, 1
      %p250 = por %p248, %p249
      %p252 = scmp.ne.s32.totalorder %s237, %s251
      %p253 = scmp.eq.s32.totalorder %s38, 0
      %p254 = por %p252, %p253
      %s256 = sadd.s32 %s255, 1
      %p259 = scmp.eq.s32.totalorder %s32, 1
      %p260 = scmp.ne.s32.totalorder %s255, %s257
      %p261 = scmp.eq.s32.totalorder %s32, 0
      %p262 = por %p260, %p261
      %p263 = scmp.ne.s32.totalorder %s255, %s257
      %p264 = scmp.eq.s32.totalorder %s37, 1
      %p265 = por %p263, %p264
      %p266 = scmp.ne.s32.totalorder %s257, %s258
      %p267 = scmp.eq.s32.totalorder %s37, 0
      %p268 = por %p266, %p267
      %p269 = scmp.ne.s32.totalorder %s257, %s258
      %p270 = scmp.eq.s32.totalorder %s38, 1
      %p271 = por %p269, %p270
      %p273 = scmp.ne.s32.totalorder %s258, %s272
      %p274 = scmp.eq.s32.totalorder %s38, 0
      %p275 = por %p273, %p274
      %s277 = sadd.s32 %s276, 1
      %p280 = scmp.eq.s32.totalorder %s32, 1
      %p281 = scmp.ne.s32.totalorder %s276, %s278
      %p282 = scmp.eq.s32.totalorder %s32, 0
      %p283 = por %p281, %p282
      %p284 = scmp.ne.s32.totalorder %s276, %s278
      %p285 = scmp.eq.s32.totalorder %s37, 1
      %p286 = por %p284, %p285
      %p287 = scmp.ne.s32.totalorder %s278, %s279
      %p288 = scmp.eq.s32.totalorder %s37, 0
      %p289 = por %p287, %p288
      %p290 = scmp.ne.s32.totalorder %s278, %s279
      %p291 = scmp.eq.s32.totalorder %s38, 1
      %p292 = por %p290, %p291
      %p294 = scmp.ne.s32.totalorder %s279, %s293
      %p295 = scmp.eq.s32.totalorder %s38, 0
      %p296 = por %p294, %p295
      %s298 = sadd.s32 %s297, 1
      %p301 = scmp.eq.s32.totalorder %s32, 1
      %p302 = scmp.ne.s32.totalorder %s297, %s299
      %p303 = scmp.eq.s32.totalorder %s32, 0
      %p304 = por %p302, %p303
      %p305 = scmp.ne.s32.totalorder %s297, %s299
      %p306 = scmp.eq.s32.totalorder %s37, 1
      %p307 = por %p305, %p306
      %p308 = scmp.ne.s32.totalorder %s299, %s300
      %p309 = scmp.eq.s32.totalorder %s37, 0
      %p310 = por %p308, %p309
      %p311 = scmp.ne.s32.totalorder %s299, %s300
      %p312 = scmp.eq.s32.totalorder %s38, 1
      %p313 = por %p311, %p312
      %p315 = scmp.ne.s32.totalorder %s300, %s314
      %p316 = scmp.eq.s32.totalorder %s38, 0
      %p317 = por %p315, %p316
      %s319 = sadd.s32 %s318, 1
      %p322 = scmp.eq.s32.totalorder %s32, 1
      %p323 = scmp.ne.s32.totalorder %s318, %s320
      %p324 = scmp.eq.s32.totalorder %s32, 0
      %p325 = por %p323, %p324
      %p326 = scmp.ne.s32.totalorder %s318, %s320
      %p327 = scmp.eq.s32.totalorder %s37, 1
      %p328 = por %p326, %p327
      %p329 = scmp.ne.s32.totalorder %s320, %s321
      %p330 = scmp.eq.s32.totalorder %s37, 0
      %p331 = por %p329, %p330
      %p332 = scmp.ne.s32.totalorder %s320, %s321
      %p333 = scmp.eq.s32.totalorder %s38, 1
      %p334 = por %p332, %p333
      %p336 = scmp.ne.s32.totalorder %s321, %s335
      %p337 = scmp.eq.s32.totalorder %s38, 0
      %p338 = por %p336, %p337
      %s340 = sadd.s32 %s339, 1
      %p343 = scmp.eq.s32.totalorder %s32, 1
      %p344 = scmp.ne.s32.totalorder %s339, %s341
      %p345 = scmp.eq.s32.totalorder %s32, 0
      %p346 = por %p344, %p345
      %p347 = scmp.ne.s32.totalorder %s339, %s341
      %p348 = scmp.eq.s32.totalorder %s37, 1
      %p349 = por %p347, %p348
      %p350 = scmp.ne.s32.totalorder %s341, %s342
      %p351 = scmp.eq.s32.totalorder %s37, 0
      %p352 = por %p350, %p351
      %p353 = scmp.ne.s32.totalorder %s341, %s342
      %p354 = scmp.eq.s32.totalorder %s38, 1
      %p355 = por %p353, %p354
      %p357 = scmp.ne.s32.totalorder %s342, %s356
      %p358 = scmp.eq.s32.totalorder %s38, 0
      %p359 = por %p357, %p358
      %s361 = sadd.s32 %s360, 1
      %p364 = scmp.eq.s32.totalorder %s32, 1
      %p365 = scmp.ne.s32.totalorder %s360, %s362
      %p366 = scmp.eq.s32.totalorder %s32, 0
      %p367 = por %p365, %p366
      %p368 = scmp.ne.s32.totalorder %s360, %s362
      %p369 = scmp.eq.s32.totalorder %s37, 1
      %p370 = por %p368, %p369
      %p371 = scmp.ne.s32.totalorder %s362, %s363
      %p372 = scmp.eq.s32.totalorder %s37, 0
      %p373 = por %p371, %p372
      %p374 = scmp.ne.s32.totalorder %s362, %s363
      %p375 = scmp.eq.s32.totalorder %s38, 1
      %p376 = por %p374, %p375
      %p378 = scmp.ne.s32.totalorder %s363, %s377
      %p379 = scmp.eq.s32.totalorder %s38, 0
      %p380 = por %p378, %p379
      %s381 = ssub.s32 %s32, %s39
      %p382 = scmp.eq.s32.totalorder %s381, 0
      %s384 = sadd.s32 %s383, 1
      %s385 = scalar_select %p382, %s383, %s384
      %p388 = pneg %p382
      %p389 = scmp.eq.s32.totalorder %s32, 1
      %p390 = por %p388, %p389
      %p391 = scmp.ne.s32.totalorder %s383, %s386
      %p392 = scmp.eq.s32.totalorder %s32, 0
      %p393 = por %p391, %p392
      %p394 = scmp.ne.s32.totalorder %s383, %s386
      %p395 = scmp.eq.s32.totalorder %s37, 1
      %p396 = por %p394, %p395
      %p397 = scmp.ne.s32.totalorder %s386, %s387
      %p398 = scmp.eq.s32.totalorder %s37, 0
      %p399 = por %p397, %p398
      %p400 = scmp.ne.s32.totalorder %s386, %s387
      %p401 = scmp.eq.s32.totalorder %s38, 1
      %p402 = por %p400, %p401
      %p404 = scmp.ne.s32.totalorder %s387, %s403
      %p405 = scmp.eq.s32.totalorder %s38, 0
      %p406 = por %p404, %p405
      %p407 = scmp.le.s32.totalorder 1, %s32
      %p408 = scmp.lt.s32.totalorder %s32, 3
      %p409 = pnand %p407, %p408
      %p410 = pneg %p409
      // Predicated region
      $region9: #{tpu_custom_call.1} parent=5 // pred_check
        _
      $region10: #{tpu_custom_call.1} parent=5 // pred_check_branch
        %412 = sbr.rel (%p409) target = $region12
      $region11: #{tpu_custom_call.1} parent=5 // pred_region
        %s413 = ssub.s32 %s32, 1
        // Predicated region
        $region13: #{tpu_custom_call.1} parent=11 // pred_check
          %p414 = pneg %p79
        $region14: #{tpu_custom_call.1} parent=11 // pred_check_branch
          %416 = sbr.rel (%p414) target = $region16
        $region15: #{tpu_custom_call.1} parent=11 // pred_region
          _
        $region16: #{tpu_custom_call.1} parent=11 // pred_fallthru
          _
        // Predicated region
        $region17: #{tpu_custom_call.1} parent=11 // pred_check
          %p417 = pneg %p100
        $region18: #{tpu_custom_call.1} parent=11 // pred_check_branch
          %419 = sbr.rel (%p417) target = $region20
        $region19: #{tpu_custom_call.1} parent=11 // pred_region
          _
        $region20: #{tpu_custom_call.1} parent=11 // pred_fallthru
          _
        // Predicated region
        $region21: #{tpu_custom_call.1} parent=11 // pred_check
          %p420 = pneg %p121
        $region22: #{tpu_custom_call.1} parent=11 // pred_check_branch
          %422 = sbr.rel (%p420) target = $region24
        $region23: #{tpu_custom_call.1} parent=11 // pred_region
          _
        $region24: #{tpu_custom_call.1} parent=11 // pred_fallthru
          _
        // Predicated region
        $region25: #{tpu_custom_call.1} parent=11 // pred_check
          %p423 = pneg %p142
        $region26: #{tpu_custom_call.1} parent=11 // pred_check_branch
          %425 = sbr.rel (%p423) target = $region28
        $region27: #{tpu_custom_call.1} parent=11 // pred_region
          %s427 = ssub.s32 16, 16
          %428 = vsyncadd [#allocation6], %s427
          %s430 = sshll.u32 [#allocation5], 4
          %s431 = int_to_ptr.vmem [resolvable:$true] %s430
          %433 = dma.hbm_to_vmem [thread:$0]  %s4, 16, %s431, [#allocation6]
        $region28: #{tpu_custom_call.1} parent=11 // pred_fallthru
          _
        // Predicated region
        $region29: #{tpu_custom_call.1} parent=11 // pred_check
          %p434 = pneg %p163
        $region30: #{tpu_custom_call.1} parent=11 // pred_check_branch
          %436 = sbr.rel (%p434) target = $region32
        $region31: #{tpu_custom_call.1} parent=11 // pred_region
          %s438 = ssub.s32 16, 16
          %439 = vsyncadd [#allocation6], %s438
          %s441 = sshll.u32 [#allocation7], 4
          %s442 = int_to_ptr.vmem [resolvable:$true] %s441
          %444 = dma.hbm_to_vmem [thread:$0]  %s5, 16, %s442, [#allocation6]
        $region32: #{tpu_custom_call.1} parent=11 // pred_fallthru
          _
        // Predicated region
        $region33: #{tpu_custom_call.1} parent=11 // pred_check
          %p445 = pneg %p184
        $region34: #{tpu_custom_call.1} parent=11 // pred_check_branch
          %447 = sbr.rel (%p445) target = $region36
        $region35: #{tpu_custom_call.1} parent=11 // pred_region
          %s449 = ssub.s32 16, 16
          %450 = vsyncadd [#allocation9], %s449
          %s452 = sshll.u32 [#allocation8], 4
          %s453 = int_to_ptr.vmem [resolvable:$true] %s452
          %455 = dma.hbm_to_vmem [thread:$0]  %s6, 16, %s453, [#allocation9]
        $region36: #{tpu_custom_call.1} parent=11 // pred_fallthru
          _
        // Predicated region
        $region37: #{tpu_custom_call.1} parent=11 // pred_check
          %p456 = pneg %p205
        $region38: #{tpu_custom_call.1} parent=11 // pred_check_branch
          %458 = sbr.rel (%p456) target = $region40
        $region39: #{tpu_custom_call.1} parent=11 // pred_region
          %s460 = ssub.s32 9216, 9216
          %461 = vsyncadd [#allocation9], %s460
          %s462 = sshll.u32 [#allocation10], 4
          %s463 = int_to_ptr.vmem [resolvable:$true] %s462
          %468 = dma.hbm_to_vmem [thread:$0]  %s7, 9216, %s463, [#allocation9], 64, 64, 4
        $region40: #{tpu_custom_call.1} parent=11 // pred_fallthru
          _
        // Predicated region
        $region41: #{tpu_custom_call.1} parent=11 // pred_check
          %p469 = pneg %p226
        $region42: #{tpu_custom_call.1} parent=11 // pred_check_branch
          %471 = sbr.rel (%p469) target = $region44
        $region43: #{tpu_custom_call.1} parent=11 // pred_region
          %s473 = ssub.s32 16, 16
          %474 = vsyncadd [#allocation12], %s473
          %s476 = sshll.u32 [#allocation11], 4
          %s477 = int_to_ptr.vmem [resolvable:$true] %s476
          %479 = dma.hbm_to_vmem [thread:$0]  %s8, 16, %s477, [#allocation12]
        $region44: #{tpu_custom_call.1} parent=11 // pred_fallthru
          _
        // Predicated region
        $region45: #{tpu_custom_call.1} parent=11 // pred_check
          %p480 = pneg %p247
        $region46: #{tpu_custom_call.1} parent=11 // pred_check_branch
          %482 = sbr.rel (%p480) target = $region48
        $region47: #{tpu_custom_call.1} parent=11 // pred_region
          _
        $region48: #{tpu_custom_call.1} parent=11 // pred_fallthru
          _
        // Predicated region
        $region49: #{tpu_custom_call.1} parent=11 // pred_check
          %p483 = pneg %p268
        $region50: #{tpu_custom_call.1} parent=11 // pred_check_branch
          %485 = sbr.rel (%p483) target = $region52
        $region51: #{tpu_custom_call.1} parent=11 // pred_region
          %s487 = ssub.s32 512, 512
          %488 = vsyncadd [#allocation12], %s487
          %s489 = sshll.u32 [#allocation13], 4
          %s490 = int_to_ptr.vmem [resolvable:$true] %s489
          %495 = dma.hbm_to_vmem [thread:$0]  %s10, 512, %s490, [#allocation12], 128, 128, 8
        $region52: #{tpu_custom_call.1} parent=11 // pred_fallthru
          _
        // Predicated region
        $region53: #{tpu_custom_call.1} parent=11 // pred_check
          %p496 = pneg %p289
        $region54: #{tpu_custom_call.1} parent=11 // pred_check_branch
          %498 = sbr.rel (%p496) target = $region56
        $region55: #{tpu_custom_call.1} parent=11 // pred_region
          _
        $region56: #{tpu_custom_call.1} parent=11 // pred_fallthru
          _
        // Predicated region
        $region57: #{tpu_custom_call.1} parent=11 // pred_check
          %p499 = pneg %p310
        $region58: #{tpu_custom_call.1} parent=11 // pred_check_branch
          %501 = sbr.rel (%p499) target = $region60
        $region59: #{tpu_custom_call.1} parent=11 // pred_region
          %s503 = ssub.s32 512, 512
          %504 = vsyncadd [#allocation15], %s503
          %s505 = sshll.u32 [#allocation14], 4
          %s506 = int_to_ptr.vmem [resolvable:$true] %s505
          %511 = dma.hbm_to_vmem [thread:$0]  %s12, 512, %s506, [#allocation15], 128, 128, 8
        $region60: #{tpu_custom_call.1} parent=11 // pred_fallthru
          _
        // Predicated region
        $region61: #{tpu_custom_call.1} parent=11 // pred_check
          %p512 = pneg %p331
        $region62: #{tpu_custom_call.1} parent=11 // pred_check_branch
          %514 = sbr.rel (%p512) target = $region64
        $region63: #{tpu_custom_call.1} parent=11 // pred_region
          _
        $region64: #{tpu_custom_call.1} parent=11 // pred_fallthru
          _
        // Predicated region
        $region65: #{tpu_custom_call.1} parent=11 // pred_check
          %p515 = pneg %p352
        $region66: #{tpu_custom_call.1} parent=11 // pred_check_branch
          %517 = sbr.rel (%p515) target = $region68
        $region67: #{tpu_custom_call.1} parent=11 // pred_region
          %s519 = ssub.s32 512, 512
          %520 = vsyncadd [#allocation15], %s519
          %s521 = sshll.u32 [#allocation16], 4
          %s522 = int_to_ptr.vmem [resolvable:$true] %s521
          %527 = dma.hbm_to_vmem [thread:$0]  %s14, 512, %s522, [#allocation15], 64, 64, 4
        $region68: #{tpu_custom_call.1} parent=11 // pred_fallthru
          _
        // Predicated region
        $region69: #{tpu_custom_call.1} parent=11 // pred_check
          %p528 = pneg %p373
        $region70: #{tpu_custom_call.1} parent=11 // pred_check_branch
          %530 = sbr.rel (%p528) target = $region72
        $region71: #{tpu_custom_call.1} parent=11 // pred_region
          _
        $region72: #{tpu_custom_call.1} parent=11 // pred_fallthru
          _
      $region12: #{tpu_custom_call.1} parent=5 // pred_fallthru
        _
      %p531 = scmp.lt.s32.totalorder %s32, 2
      // Predicated region
      $region73: #{tpu_custom_call.1} parent=5 // pred_check
        %p532 = pneg %p531
      $region74: #{tpu_custom_call.1} parent=5 // pred_check_branch
        %534 = sbr.rel (%p532) target = $region76
      $region75: #{tpu_custom_call.1} parent=5 // pred_region
        // Predicated region
        $region77: #{tpu_custom_call.1} parent=75 // pred_check
          %p535 = pneg %p52
        $region78: #{tpu_custom_call.1} parent=75 // pred_check_branch
          %537 = sbr.rel (%p535) target = $region80
        $region79: #{tpu_custom_call.1} parent=75 // pred_region
          %s538 = sand.u32 %s42, 1
          %s539 = scalar_lea.sflag [#allocation3], %s538
          %s540 = sand.u32 %s42, 1
          %s541 = smul.addr %s540, 64
          %s542 = scalar_lea.vmem [#allocation2], %s541
          %s544 = ssub.s32 1024, 1024
          %545 = vsyncadd %s539, %s544
          %s546 = smul.addr %s32, 8
          %s547 = smul.addr %s546, 128
          %s548 = scalar_lea.hbm %s0, %s547
          %s549 = sshll.u32 %s542, 4
          %s550 = int_to_ptr.vmem [resolvable:$true] %s549
          %555 = dma.hbm_to_vmem [thread:$0]  %s548, 1024, %s550, %s539, 128, 128, 8
        $region80: #{tpu_custom_call.1} parent=75 // pred_fallthru
          _
      $region76: #{tpu_custom_call.1} parent=5 // pred_fallthru
        _
      %p556 = scmp.le.s32.totalorder 1, %s32
      %p557 = scmp.lt.s32.totalorder %s32, 3
      %p558 = pnand %p556, %p557
      %p559 = pneg %p558
      // Predicated region
      $region81: #{tpu_custom_call.1} parent=5 // pred_check
        _
      $region82: #{tpu_custom_call.1} parent=5 // pred_check_branch
        %561 = sbr.rel (%p558) target = $region84
      $region83: #{tpu_custom_call.1} parent=5 // pred_region
        %s562 = ssub.s32 %s32, 1
        %s563 = sand.u32 %s45, 1
        %s564 = scalar_lea.sflag [#allocation3], %s563
        %s565 = sand.u32 %s45, 1
        %s566 = smul.addr %s565, 64
        %s567 = scalar_lea.vmem [#allocation2], %s566
        // Predicated region
        $region85: #{tpu_custom_call.1} parent=83 // pred_check
          %p568 = pneg %p58
        $region86: #{tpu_custom_call.1} parent=83 // pred_check_branch
          %570 = sbr.rel (%p568) target = $region88
        $region87: #{tpu_custom_call.1} parent=83 // pred_region
          %571 = dma.done %s564, 1024
        $region88: #{tpu_custom_call.1} parent=83 // pred_fallthru
          _
        // Predicated region
        $region89: #{tpu_custom_call.1} parent=83 // pred_check
          %p572 = pneg %p142
        $region90: #{tpu_custom_call.1} parent=83 // pred_check_branch
          %574 = sbr.rel (%p572) target = $region92
        $region91: #{tpu_custom_call.1} parent=83 // pred_region
          %575 = dma.done [#allocation6], 16
        $region92: #{tpu_custom_call.1} parent=83 // pred_fallthru
          _
        // Predicated region
        $region93: #{tpu_custom_call.1} parent=83 // pred_check
          %p576 = pneg %p163
        $region94: #{tpu_custom_call.1} parent=83 // pred_check_branch
          %578 = sbr.rel (%p576) target = $region96
        $region95: #{tpu_custom_call.1} parent=83 // pred_region
          %579 = dma.done [#allocation6], 16
        $region96: #{tpu_custom_call.1} parent=83 // pred_fallthru
          _
        // Predicated region
        $region97: #{tpu_custom_call.1} parent=83 // pred_check
          %p580 = pneg %p184
        $region98: #{tpu_custom_call.1} parent=83 // pred_check_branch
          %582 = sbr.rel (%p580) target = $region100
        $region99: #{tpu_custom_call.1} parent=83 // pred_region
          %583 = dma.done [#allocation9], 16
        $region100: #{tpu_custom_call.1} parent=83 // pred_fallthru
          _
        // Predicated region
        $region101: #{tpu_custom_call.1} parent=83 // pred_check
          %p584 = pneg %p205
        $region102: #{tpu_custom_call.1} parent=83 // pred_check_branch
          %586 = sbr.rel (%p584) target = $region104
        $region103: #{tpu_custom_call.1} parent=83 // pred_region
          %587 = dma.done [#allocation9], 9216
        $region104: #{tpu_custom_call.1} parent=83 // pred_fallthru
          _
        // Predicated region
        $region105: #{tpu_custom_call.1} parent=83 // pred_check
          %p588 = pneg %p226
        $region106: #{tpu_custom_call.1} parent=83 // pred_check_branch
          %590 = sbr.rel (%p588) target = $region108
        $region107: #{tpu_custom_call.1} parent=83 // pred_region
          %591 = dma.done [#allocation12], 16
        $region108: #{tpu_custom_call.1} parent=83 // pred_fallthru
          _
        // Predicated region
        $region109: #{tpu_custom_call.1} parent=83 // pred_check
          %p592 = pneg %p268
        $region110: #{tpu_custom_call.1} parent=83 // pred_check_branch
          %594 = sbr.rel (%p592) target = $region112
        $region111: #{tpu_custom_call.1} parent=83 // pred_region
          %595 = dma.done [#allocation12], 512
        $region112: #{tpu_custom_call.1} parent=83 // pred_fallthru
          _
        // Predicated region
        $region113: #{tpu_custom_call.1} parent=83 // pred_check
          %p596 = pneg %p310
        $region114: #{tpu_custom_call.1} parent=83 // pred_check_branch
          %598 = sbr.rel (%p596) target = $region116
        $region115: #{tpu_custom_call.1} parent=83 // pred_region
          %599 = dma.done [#allocation15], 512
        $region116: #{tpu_custom_call.1} parent=83 // pred_fallthru
          _
        // Predicated region
        $region117: #{tpu_custom_call.1} parent=83 // pred_check
          %p600 = pneg %p352
        $region118: #{tpu_custom_call.1} parent=83 // pred_check_branch
          %602 = sbr.rel (%p600) target = $region120
        $region119: #{tpu_custom_call.1} parent=83 // pred_region
          %603 = dma.done [#allocation15], 512
        $region120: #{tpu_custom_call.1} parent=83 // pred_fallthru
          _
        %s604 = sand.u32 %s45, 1
        %s605 = scalar_lea.sflag [#allocation3], %s604
        %s606 = sand.u32 %s45, 1
        %s607 = smul.addr %s606, 64
        %s608 = scalar_lea.vmem [#allocation2], %s607
        %p609 = pneg %p58
        %p610 = pneg %p55
        %p611 = pneg %p79
        %p612 = pneg %p76
        %p613 = pneg %p100
        %p614 = pneg %p97
        %p615 = pneg %p121
        %p616 = pneg %p118
        %p617 = pneg %p142
        %p618 = pneg %p139
        %p619 = pneg %p163
        %p620 = pneg %p160
        %p621 = pneg %p184
        %p622 = pneg %p181
        %p623 = pneg %p205
        %p624 = pneg %p202
        %p625 = pneg %p226
        %p626 = pneg %p223
        %p627 = pneg %p247
        %p628 = pneg %p244
        %p629 = pneg %p268
        %p630 = pneg %p265
        %p631 = pneg %p289
        %p632 = pneg %p286
        %p633 = pneg %p310
        %p634 = pneg %p307
        %p635 = pneg %p331
        %p636 = pneg %p328
        %p637 = pneg %p352
        %p638 = pneg %p349
        %p639 = pneg %p373
        %p640 = pneg %p370
        %p641 = pneg %p399
        %p642 = pneg %p396
        %s643 = sand.u32 %s386, 1
        %s644 = scalar_lea.sflag [#allocation4], %s643
        %s645 = sand.u32 %s386, 1
        %s646 = smul.addr %s645, 64
        %s647 = scalar_lea.vmem [#allocation17], %s646
        %v649 = vld [vmem:[%s13] sm:$0xff]
        %v650 = vld [vmem:[%s13 + $0x8] sm:$0xff]
        %v651 = vld [vmem:[%s13 + $0x10] sm:$0xff]
        %v652 = vld [vmem:[%s13 + $0x18] sm:$0xff]
        %v653 = vld [vmem:[%s13 + $0x20] sm:$0xff]
        %v654 = vld [vmem:[%s13 + $0x28] sm:$0xff]
        %v655 = vld [vmem:[%s13 + $0x30] sm:$0xff]
        %v656 = vld [vmem:[%s13 + $0x38] sm:$0xff]
        %v657 = vld [vmem:[%s567] sm:$0xff]
        %v658 = vld [vmem:[%s567 + $0x8] sm:$0xff]
        %v659 = vld [vmem:[%s567 + $0x10] sm:$0xff]
        %v660 = vld [vmem:[%s567 + $0x18] sm:$0xff]
        %v661 = vld [vmem:[%s567 + $0x20] sm:$0xff]
        %v662 = vld [vmem:[%s567 + $0x28] sm:$0xff]
        %v663 = vld [vmem:[%s567 + $0x30] sm:$0xff]
        %v664 = vld [vmem:[%s567 + $0x38] sm:$0xff]
        %vm665 = vcmask 523264
        %v666 = vsel %vm665, %v657, 0.0
        %v667 = vsel %vm665, %v658, 0.0
        %v668 = vadd.f32 %v666, %v667
        %v669 = vsel %vm665, %v659, 0.0
        %v670 = vadd.f32 %v668, %v669
        %v671 = vsel %vm665, %v660, 0.0
        %v672 = vadd.f32 %v670, %v671
        %v673 = vsel %vm665, %v661, 0.0
        %v674 = vadd.f32 %v672, %v673
        %v675 = vsel %vm665, %v662, 0.0
        %v676 = vadd.f32 %v674, %v675
        %v677 = vsel %vm665, %v663, 0.0
        %v678 = vadd.f32 %v676, %v677
        %v679 = vsel %vm665, %v664, 0.0
        %v680 = vadd.f32 %v678, %v679
        %v681 = vrot.slane %v680, 4
        %v682 = vadd.f32 %v680, %v681
        %v683 = vrot.slane %v682, 2
        %v684 = vadd.f32 %v682, %v683
        %v685 = vrot.slane %v684, 1
        %v686 = vadd.f32 %v684, %v685
        %v687 = vmul.f32 %v657, %v657
        %v688 = vmul.f32 %v658, %v658
        %v689 = vmul.f32 %v659, %v659
        %v690 = vmul.f32 %v660, %v660
        %v691 = vmul.f32 %v661, %v661
        %v692 = vmul.f32 %v662, %v662
        %v693 = vmul.f32 %v663, %v663
        %v694 = vmul.f32 %v664, %v664
        %v695 = vsel %vm665, %v687, 0.0
        %v696 = vsel %vm665, %v688, 0.0
        %v697 = vadd.f32 %v695, %v696
        %v698 = vsel %vm665, %v689, 0.0
        %v699 = vadd.f32 %v697, %v698
        %v700 = vsel %vm665, %v690, 0.0
        %v701 = vadd.f32 %v699, %v700
        %v702 = vsel %vm665, %v691, 0.0
        %v703 = vadd.f32 %v701, %v702
        %v704 = vsel %vm665, %v692, 0.0
        %v705 = vadd.f32 %v703, %v704
        %v706 = vsel %vm665, %v693, 0.0
        %v707 = vadd.f32 %v705, %v706
        %v708 = vsel %vm665, %v694, 0.0
        %v709 = vadd.f32 %v707, %v708
        %v710 = vrot.slane %v709, 4
        %v711 = vadd.f32 %v709, %v710
        %v712 = vrot.slane %v711, 2
        %v713 = vadd.f32 %v711, %v712
        %v714 = vrot.slane %v713, 1
        %v715 = vadd.f32 %v713, %v714
        %v716 = vld [vmem:[%s9] sm:$0xff]
        %v717 = vld [vmem:[%s9 + $0x8] sm:$0xff]
        %v718 = vld [vmem:[%s9 + $0x10] sm:$0xff]
        %v719 = vld [vmem:[%s9 + $0x18] sm:$0xff]
        %v720 = vld [vmem:[%s9 + $0x20] sm:$0xff]
        %v721 = vld [vmem:[%s9 + $0x28] sm:$0xff]
        %v722 = vld [vmem:[%s9 + $0x30] sm:$0xff]
        %v723 = vld [vmem:[%s9 + $0x38] sm:$0xff]
        %v725 = vsel %vm665, %v686, 0
        %727 = vmatprep.subr.mxu0 0.0
        %728 = vmatpush1.msra.mxu0 %v716
        %729 = vmatprep.subr.mxu0 0.0
        %730 = vmatpush1.msra.mxu0 %v717
        %731 = vmatprep.subr.mxu0 0.0
        %732 = vmatpush1.msra.mxu0 %v718
        %733 = vmatprep.subr.mxu0 0.0
        %734 = vmatpush1.msra.mxu0 %v719
        %735 = vmatprep.subr.mxu0 0.0
        %736 = vmatpush1.msra.mxu0 %v720
        %737 = vmatprep.subr.mxu0 0.0
        %738 = vmatpush1.msra.mxu0 %v721
        %739 = vmatprep.subr.mxu0 0.0
        %740 = vmatpush1.msra.mxu0 %v722
        %741 = vmatprep.subr.mxu0 0.0
        %742 = vmatpush1.msra.mxu0 %v723
        %743 = vmatprep.subr.mxu0 0.0
        %744 = vmatpush1.msra.mxu0 0.0
        %745 = vmatprep.subr.mxu0 0.0
        %746 = vmatpush1.msra.mxu0 0.0
        %747 = vmatprep.subr.mxu0 0.0
        %748 = vmatpush1.msra.mxu0 0.0
        %749 = vmatprep.subr.mxu0 0.0
        %750 = vmatpush1.msra.mxu0 0.0
        %751 = vmatprep.subr.mxu0 0.0
        %752 = vmatpush1.msra.mxu0 0.0
        %753 = vmatprep.subr.mxu0 0.0
        %754 = vmatpush1.msra.mxu0 0.0
        %755 = vmatprep.subr.mxu0 0.0
        %756 = vmatpush1.msra.mxu0 0.0
        %757 = vmatprep.subr.mxu0 0.0
        %758 = vmatpush1.msra.mxu0 0.0
        %759 = vmatprep.subr.mxu0 0.0
        %760 = vmatpush1.msra.mxu0 0.0
        %761 = vmatprep.subr.mxu0 0.0
        %762 = vmatpush1.msra.mxu0 0.0
        %763 = vmatprep.subr.mxu0 0.0
        %764 = vmatpush1.msra.mxu0 0.0
        %765 = vmatprep.subr.mxu0 0.0
        %766 = vmatpush1.msra.mxu0 0.0
        %767 = vmatprep.subr.mxu0 0.0
        %768 = vmatpush1.msra.mxu0 0.0
        %769 = vmatprep.subr.mxu0 0.0
        %770 = vmatpush1.msra.mxu0 0.0
        %771 = vmatprep.subr.mxu0 0.0
        %772 = vmatpush1.msra.mxu0 0.0
        %773 = vmatprep.subr.mxu0 0.0
        %774 = vmatpush1.msra.mxu0 0.0
        %775 = vmatprep.subr.mxu0 0.0
        %776 = vmatpush1.msra.mxu0 0.0
        %777 = vmatprep.subr.mxu0 0.0
        %778 = vmatpush1.msra.mxu0 0.0
        %779 = vmatprep.subr.mxu0 0.0
        %780 = vmatpush1.msra.mxu0 0.0
        %781 = vmatprep.subr.mxu0 0.0
        %782 = vmatpush1.msra.mxu0 0.0
        %783 = vmatprep.subr.mxu0 0.0
        %784 = vmatpush1.msra.mxu0 0.0
        %785 = vmatprep.subr.mxu0 0.0
        %786 = vmatpush1.msra.mxu0 0.0
        %787 = vmatprep.subr.mxu0 0.0
        %788 = vmatpush1.msra.mxu0 0.0
        %789 = vmatprep.subr.mxu0 0.0
        %790 = vmatpush1.msra.mxu0 0.0
        %791 = vmatprep.mubr.f32.mxu0 0.0
        %792 = vmatmul.mubr.f32.gmra.mrb[0].mxu0 %v725
        %v793 = vpop.f32.mrb[0].mxu0
        %v794 = vadd.f32 0.0, %v793
        %v795 = vpop.f32.mrb[0].mxu0
        %796 = vdwg.mxu0
        %v798 = vsel %vm665, %v715, 0
        %800 = vmatprep.subr.mxu0 0.0
        %801 = vmatpush1.msra.mxu0 %v716
        %802 = vmatprep.subr.mxu0 0.0
        %803 = vmatpush1.msra.mxu0 %v717
        %804 = vmatprep.subr.mxu0 0.0
        %805 = vmatpush1.msra.mxu0 %v718
        %806 = vmatprep.subr.mxu0 0.0
        %807 = vmatpush1.msra.mxu0 %v719
        %808 = vmatprep.subr.mxu0 0.0
        %809 = vmatpush1.msra.mxu0 %v720
        %810 = vmatprep.subr.mxu0 0.0
        %811 = vmatpush1.msra.mxu0 %v721
        %812 = vmatprep.subr.mxu0 0.0
        %813 = vmatpush1.msra.mxu0 %v722
        %814 = vmatprep.subr.mxu0 0.0
        %815 = vmatpush1.msra.mxu0 %v723
        %816 = vmatprep.subr.mxu0 0.0
        %817 = vmatpush1.msra.mxu0 0.0
        %818 = vmatprep.subr.mxu0 0.0
        %819 = vmatpush1.msra.mxu0 0.0
        %820 = vmatprep.subr.mxu0 0.0
        %821 = vmatpush1.msra.mxu0 0.0
        %822 = vmatprep.subr.mxu0 0.0
        %823 = vmatpush1.msra.mxu0 0.0
        %824 = vmatprep.subr.mxu0 0.0
        %825 = vmatpush1.msra.mxu0 0.0
        %826 = vmatprep.subr.mxu0 0.0
        %827 = vmatpush1.msra.mxu0 0.0
        %828 = vmatprep.subr.mxu0 0.0
        %829 = vmatpush1.msra.mxu0 0.0
        %830 = vmatprep.subr.mxu0 0.0
        %831 = vmatpush1.msra.mxu0 0.0
        %832 = vmatprep.subr.mxu0 0.0
        %833 = vmatpush1.msra.mxu0 0.0
        %834 = vmatprep.subr.mxu0 0.0
        %835 = vmatpush1.msra.mxu0 0.0
        %836 = vmatprep.subr.mxu0 0.0
        %837 = vmatpush1.msra.mxu0 0.0
        %838 = vmatprep.subr.mxu0 0.0
        %839 = vmatpush1.msra.mxu0 0.0
        %840 = vmatprep.subr.mxu0 0.0
        %841 = vmatpush1.msra.mxu0 0.0
        %842 = vmatprep.subr.mxu0 0.0
        %843 = vmatpush1.msra.mxu0 0.0
        %844 = vmatprep.subr.mxu0 0.0
        %845 = vmatpush1.msra.mxu0 0.0
        %846 = vmatprep.subr.mxu0 0.0
        %847 = vmatpush1.msra.mxu0 0.0
        %848 = vmatprep.subr.mxu0 0.0
        %849 = vmatpush1.msra.mxu0 0.0
        %850 = vmatprep.subr.mxu0 0.0
        %851 = vmatpush1.msra.mxu0 0.0
        %852 = vmatprep.subr.mxu0 0.0
        %853 = vmatpush1.msra.mxu0 0.0
        %854 = vmatprep.subr.mxu0 0.0
        %855 = vmatpush1.msra.mxu0 0.0
        %856 = vmatprep.subr.mxu0 0.0
        %857 = vmatpush1.msra.mxu0 0.0
        %858 = vmatprep.subr.mxu0 0.0
        %859 = vmatpush1.msra.mxu0 0.0
        %860 = vmatprep.subr.mxu0 0.0
        %861 = vmatpush1.msra.mxu0 0.0
        %862 = vmatprep.subr.mxu0 0.0
        %863 = vmatpush1.msra.mxu0 0.0
        %864 = vmatprep.mubr.f32.mxu0 0.0
        %865 = vmatmul.mubr.f32.gmra.mrb[0].mxu0 %v798
        %v866 = vpop.f32.mrb[0].mxu0
        %v867 = vadd.f32 0.0, %v866
        %v868 = vpop.f32.mrb[0].mxu0
        %869 = vdwg.mxu0
        %v870 = vmul.f32 %v794, %v794
        %v871 = vsub.f32 %v867, %v870
        %v872 = vmax.f32 %v871, 0.0
        %v873 = vadd.f32 %v872, 1e-05
        %v874 = vrsqrt.pop %v873
        %v875 = vld [vmem:[#allocation13] sm:$0xff]
        %v876 = vld [vmem:[#allocation13 + $0x8] sm:$0xff]
        %v877 = vld [vmem:[#allocation13 + $0x10] sm:$0xff]
        %v878 = vld [vmem:[#allocation13 + $0x18] sm:$0xff]
        %vm879 = vcmask 261120
        %v881 = vsel %vm879, %v794, 0
        %883 = vmatprep.subr.mxu0 0.0
        %884 = vmatpush1.msra.mxu0 %v875
        %885 = vmatprep.subr.mxu0 0.0
        %886 = vmatpush1.msra.mxu0 %v876
        %887 = vmatprep.subr.mxu0 0.0
        %888 = vmatpush1.msra.mxu0 %v877
        %889 = vmatprep.subr.mxu0 0.0
        %890 = vmatpush1.msra.mxu0 %v878
        %891 = vmatprep.subr.mxu0 0.0
        %892 = vmatpush1.msra.mxu0 0.0
        %893 = vmatprep.subr.mxu0 0.0
        %894 = vmatpush1.msra.mxu0 0.0
        %895 = vmatprep.subr.mxu0 0.0
        %896 = vmatpush1.msra.mxu0 0.0
        %897 = vmatprep.subr.mxu0 0.0
        %898 = vmatpush1.msra.mxu0 0.0
        %899 = vmatprep.subr.mxu0 0.0
        %900 = vmatpush1.msra.mxu0 0.0
        %901 = vmatprep.subr.mxu0 0.0
        %902 = vmatpush1.msra.mxu0 0.0
        %903 = vmatprep.subr.mxu0 0.0
        %904 = vmatpush1.msra.mxu0 0.0
        %905 = vmatprep.subr.mxu0 0.0
        %906 = vmatpush1.msra.mxu0 0.0
        %907 = vmatprep.subr.mxu0 0.0
        %908 = vmatpush1.msra.mxu0 0.0
        %909 = vmatprep.subr.mxu0 0.0
        %910 = vmatpush1.msra.mxu0 0.0
        %911 = vmatprep.subr.mxu0 0.0
        %912 = vmatpush1.msra.mxu0 0.0
        %913 = vmatprep.subr.mxu0 0.0
        %914 = vmatpush1.msra.mxu0 0.0
        %915 = vmatprep.subr.mxu0 0.0
        %916 = vmatpush1.msra.mxu0 0.0
        %917 = vmatprep.subr.mxu0 0.0
        %918 = vmatpush1.msra.mxu0 0.0
        %919 = vmatprep.subr.mxu0 0.0
        %920 = vmatpush1.msra.mxu0 0.0
        %921 = vmatprep.subr.mxu0 0.0
        %922 = vmatpush1.msra.mxu0 0.0
        %923 = vmatprep.subr.mxu0 0.0
        %924 = vmatpush1.msra.mxu0 0.0
        %925 = vmatprep.subr.mxu0 0.0
        %926 = vmatpush1.msra.mxu0 0.0
        %927 = vmatprep.subr.mxu0 0.0
        %928 = vmatpush1.msra.mxu0 0.0
        %929 = vmatprep.subr.mxu0 0.0
        %930 = vmatpush1.msra.mxu0 0.0
        %931 = vmatprep.subr.mxu0 0.0
        %932 = vmatpush1.msra.mxu0 0.0
        %933 = vmatprep.subr.mxu0 0.0
        %934 = vmatpush1.msra.mxu0 0.0
        %935 = vmatprep.subr.mxu0 0.0
        %936 = vmatpush1.msra.mxu0 0.0
        %937 = vmatprep.subr.mxu0 0.0
        %938 = vmatpush1.msra.mxu0 0.0
        %939 = vmatprep.subr.mxu0 0.0
        %940 = vmatpush1.msra.mxu0 0.0
        %941 = vmatprep.subr.mxu0 0.0
        %942 = vmatpush1.msra.mxu0 0.0
        %943 = vmatprep.subr.mxu0 0.0
        %944 = vmatpush1.msra.mxu0 0.0
        %945 = vmatprep.subr.mxu0 0.0
        %946 = vmatpush1.msra.mxu0 0.0
        %947 = vmatprep.mubr.f32.mxu0 0.0
        %948 = vmatmul.mubr.f32.gmra.mrb[0].mxu0 %v881
        %v949 = vpop.f32.mrb[0].mxu0
        %v950 = vadd.f32 0.0, %v949
        %v951 = vpop.f32.mrb[0].mxu0
        %952 = vdwg.mxu0
        %v954 = vsel %vm879, %v874, 0
        %956 = vmatprep.subr.mxu0 0.0
        %957 = vmatpush1.msra.mxu0 %v875
        %958 = vmatprep.subr.mxu0 0.0
        %959 = vmatpush1.msra.mxu0 %v876
        %960 = vmatprep.subr.mxu0 0.0
        %961 = vmatpush1.msra.mxu0 %v877
        %962 = vmatprep.subr.mxu0 0.0
        %963 = vmatpush1.msra.mxu0 %v878
        %964 = vmatprep.subr.mxu0 0.0
        %965 = vmatpush1.msra.mxu0 0.0
        %966 = vmatprep.subr.mxu0 0.0
        %967 = vmatpush1.msra.mxu0 0.0
        %968 = vmatprep.subr.mxu0 0.0
        %969 = vmatpush1.msra.mxu0 0.0
        %970 = vmatprep.subr.mxu0 0.0
        %971 = vmatpush1.msra.mxu0 0.0
        %972 = vmatprep.subr.mxu0 0.0
        %973 = vmatpush1.msra.mxu0 0.0
        %974 = vmatprep.subr.mxu0 0.0
        %975 = vmatpush1.msra.mxu0 0.0
        %976 = vmatprep.subr.mxu0 0.0
        %977 = vmatpush1.msra.mxu0 0.0
        %978 = vmatprep.subr.mxu0 0.0
        %979 = vmatpush1.msra.mxu0 0.0
        %980 = vmatprep.subr.mxu0 0.0
        %981 = vmatpush1.msra.mxu0 0.0
        %982 = vmatprep.subr.mxu0 0.0
        %983 = vmatpush1.msra.mxu0 0.0
        %984 = vmatprep.subr.mxu0 0.0
        %985 = vmatpush1.msra.mxu0 0.0
        %986 = vmatprep.subr.mxu0 0.0
        %987 = vmatpush1.msra.mxu0 0.0
        %988 = vmatprep.subr.mxu0 0.0
        %989 = vmatpush1.msra.mxu0 0.0
        %990 = vmatprep.subr.mxu0 0.0
        %991 = vmatpush1.msra.mxu0 0.0
        %992 = vmatprep.subr.mxu0 0.0
        %993 = vmatpush1.msra.mxu0 0.0
        %994 = vmatprep.subr.mxu0 0.0
        %995 = vmatpush1.msra.mxu0 0.0
        %996 = vmatprep.subr.mxu0 0.0
        %997 = vmatpush1.msra.mxu0 0.0
        %998 = vmatprep.subr.mxu0 0.0
        %999 = vmatpush1.msra.mxu0 0.0
        %1000 = vmatprep.subr.mxu0 0.0
        %1001 = vmatpush1.msra.mxu0 0.0
        %1002 = vmatprep.subr.mxu0 0.0
        %1003 = vmatpush1.msra.mxu0 0.0
        %1004 = vmatprep.subr.mxu0 0.0
        %1005 = vmatpush1.msra.mxu0 0.0
        %1006 = vmatprep.subr.mxu0 0.0
        %1007 = vmatpush1.msra.mxu0 0.0
        %1008 = vmatprep.subr.mxu0 0.0
        %1009 = vmatpush1.msra.mxu0 0.0
        %1010 = vmatprep.subr.mxu0 0.0
        %1011 = vmatpush1.msra.mxu0 0.0
        %1012 = vmatprep.subr.mxu0 0.0
        %1013 = vmatpush1.msra.mxu0 0.0
        %1014 = vmatprep.subr.mxu0 0.0
        %1015 = vmatpush1.msra.mxu0 0.0
        %1016 = vmatprep.subr.mxu0 0.0
        %1017 = vmatpush1.msra.mxu0 0.0
        %1018 = vmatprep.subr.mxu0 0.0
        %1019 = vmatpush1.msra.mxu0 0.0
        %1020 = vmatprep.mubr.f32.mxu0 0.0
        %1021 = vmatmul.mubr.f32.gmra.mrb[0].mxu0 %v954
        %v1022 = vpop.f32.mrb[0].mxu0
        %v1023 = vadd.f32 0.0, %v1022
        %v1024 = vpop.f32.mrb[0].mxu0
        %1025 = vdwg.mxu0
        %v1026 = vld [vmem:[%s1] sm:$0x1]
        %v1027 = vld [vmem:[%s2] sm:$0x1]
        %v1028 = vlaneseq
        %v1029 = vshrl.u32 %v1028, 7
        %v1030 = vsub.s32 0, %v1029
        %v1031 = vrot.slane %v950, %v1030
        %v1032 = vsub.f32 %v657, %v1031
        %v1033 = vsub.f32 %v658, %v1031
        %v1034 = vsub.f32 %v659, %v1031
        %v1035 = vsub.f32 %v660, %v1031
        %v1036 = vsub.f32 %v661, %v1031
        %v1037 = vsub.f32 %v662, %v1031
        %v1038 = vsub.f32 %v663, %v1031
        %v1039 = vsub.f32 %v664, %v1031
        %v1040 = vlaneseq
        %v1041 = vshrl.u32 %v1040, 7
        %v1042 = vsub.s32 0, %v1041
        %v1043 = vrot.slane %v1023, %v1042
        %v1044 = vmul.f32 %v1032, %v1043
        %v1045 = vmul.f32 %v1033, %v1043
        %v1046 = vmul.f32 %v1034, %v1043
        %v1047 = vmul.f32 %v1035, %v1043
        %v1048 = vmul.f32 %v1036, %v1043
        %v1049 = vmul.f32 %v1037, %v1043
        %v1050 = vmul.f32 %v1038, %v1043
        %v1051 = vmul.f32 %v1039, %v1043
        %v1053 = vlaneseq
        %v1054 = vshrl.u32 %v1053, 7
        %v1055 = vsub.s32 0, %v1054
        %v1056 = vrot.slane %v1026, %v1055
        %v1058 = vmul.f32 %v1044, %v1056
        %v1059 = vmul.f32 %v1045, %v1056
        %v1060 = vmul.f32 %v1046, %v1056
        %v1061 = vmul.f32 %v1047, %v1056
        %v1062 = vmul.f32 %v1048, %v1056
        %v1063 = vmul.f32 %v1049, %v1056
        %v1064 = vmul.f32 %v1050, %v1056
        %v1065 = vmul.f32 %v1051, %v1056
        %v1067 = vlaneseq
        %v1068 = vshrl.u32 %v1067, 7
        %v1069 = vsub.s32 0, %v1068
        %v1070 = vrot.slane %v1027, %v1069
        %v1072 = vadd.f32 %v1058, %v1070
        %v1073 = vadd.f32 %v1059, %v1070
        %v1074 = vadd.f32 %v1060, %v1070
        %v1075 = vadd.f32 %v1061, %v1070
        %v1076 = vadd.f32 %v1062, %v1070
        %v1077 = vadd.f32 %v1063, %v1070
        %v1078 = vadd.f32 %v1064, %v1070
        %v1079 = vadd.f32 %v1065, %v1070
        %v1080 = vxor.u32 %v1072, 2147483648
        %v1081 = vxor.u32 %v1073, 2147483648
        %v1082 = vxor.u32 %v1074, 2147483648
        %v1083 = vxor.u32 %v1075, 2147483648
        %v1084 = vxor.u32 %v1076, 2147483648
        %v1085 = vxor.u32 %v1077, 2147483648
        %v1086 = vxor.u32 %v1078, 2147483648
        %v1087 = vxor.u32 %v1079, 2147483648
        %v1088 = vmul.f32 %v1080, 1.442695
        %v1089 = vpow.pop %v1088
        %v1090 = vmul.f32 %v1081, 1.442695
        %v1091 = vpow.pop %v1090
        %v1092 = vmul.f32 %v1082, 1.442695
        %v1093 = vpow.pop %v1092
        %v1094 = vmul.f32 %v1083, 1.442695
        %v1095 = vpow.pop %v1094
        %v1096 = vmul.f32 %v1084, 1.442695
        %v1097 = vpow.pop %v1096
        %v1098 = vmul.f32 %v1085, 1.442695
        %v1099 = vpow.pop %v1098
        %v1100 = vmul.f32 %v1086, 1.442695
        %v1101 = vpow.pop %v1100
        %v1102 = vmul.f32 %v1087, 1.442695
        %v1103 = vpow.pop %v1102
        %v1104 = vadd.f32 %v1089, 1.0
        %v1105 = vadd.f32 %v1091, 1.0
        %v1106 = vadd.f32 %v1093, 1.0
        %v1107 = vadd.f32 %v1095, 1.0
        %v1108 = vadd.f32 %v1097, 1.0
        %v1109 = vadd.f32 %v1099, 1.0
        %v1110 = vadd.f32 %v1101, 1.0
        %v1111 = vadd.f32 %v1103, 1.0
        %v1112 = vrcp.pop %v1104
        %v1113 = vmul.f32 1.0, %v1112
        %v1114 = vrcp.pop %v1105
        %v1115 = vmul.f32 1.0, %v1114
        %v1116 = vrcp.pop %v1106
        %v1117 = vmul.f32 1.0, %v1116
        %v1118 = vrcp.pop %v1107
        %v1119 = vmul.f32 1.0, %v1118
        %v1120 = vrcp.pop %v1108
        %v1121 = vmul.f32 1.0, %v1120
        %v1122 = vrcp.pop %v1109
        %v1123 = vmul.f32 1.0, %v1122
        %v1124 = vrcp.pop %v1110
        %v1125 = vmul.f32 1.0, %v1124
        %v1126 = vrcp.pop %v1111
        %v1127 = vmul.f32 1.0, %v1126
        %v1128 = vmul.f32 %v1072, %v1113
        %v1129 = vmul.f32 %v1073, %v1115
        %v1130 = vmul.f32 %v1074, %v1117
        %v1131 = vmul.f32 %v1075, %v1119
        %v1132 = vmul.f32 %v1076, %v1121
        %v1133 = vmul.f32 %v1077, %v1123
        %v1134 = vmul.f32 %v1078, %v1125
        %v1135 = vmul.f32 %v1079, %v1127
        %v1136 = vrot.slane %v1128, 7
        %v1137 = vrot.slane %v1129, 7
        %v1138 = vrot.slane %v1130, 7
        %v1139 = vrot.slane %v1131, 7
        %v1140 = vrot.slane %v1132, 7
        %v1141 = vrot.slane %v1133, 7
        %v1142 = vrot.slane %v1134, 7
        %v1143 = vrot.slane %v1135, 7
        %v1144 = vlaneseq
        %v1145 = vshrl.u32 %v1144, 7
        %vm1146 = vcmp.lt.s32.totalorder %v1145, 1
        %v1147 = vsel %vm1146, %v1142, %v1143
        %v1148 = vsel %vm1146, %v1141, %v1142
        %v1149 = vsel %vm1146, %v1140, %v1141
        %v1150 = vsel %vm1146, %v1139, %v1140
        %v1151 = vsel %vm1146, %v1138, %v1139
        %v1152 = vsel %vm1146, %v1137, %v1138
        %v1153 = vsel %vm1146, %v1136, %v1137
        %v1154 = vsel %vm1146, %v1143, %v1136
        %1156 = vset.pattern.permute.xlu0 0
        %1157 = vperm.xlu0 %1156, %v649
        %v1158 = vpop.permute.xlu0 %1157
        %1161 = vset.pattern.permute.xlu0 0
        %1162 = vperm.xlu0 %1161, %v650
        %v1163 = vpop.permute.xlu0 %1162
        %1166 = vset.pattern.permute.xlu0 0
        %1167 = vperm.xlu0 %1166, %v651
        %v1168 = vpop.permute.xlu0 %1167
        %1171 = vset.pattern.permute.xlu0 0
        %1172 = vperm.xlu0 %1171, %v652
        %v1173 = vpop.permute.xlu0 %1172
        %1176 = vset.pattern.permute.xlu0 0
        %1177 = vperm.xlu0 %1176, %v653
        %v1178 = vpop.permute.xlu0 %1177
        %1181 = vset.pattern.permute.xlu0 0
        %1182 = vperm.xlu0 %1181, %v654
        %v1183 = vpop.permute.xlu0 %1182
        %1186 = vset.pattern.permute.xlu0 0
        %1187 = vperm.xlu0 %1186, %v655
        %v1188 = vpop.permute.xlu0 %1187
        %1191 = vset.pattern.permute.xlu0 0
        %1192 = vperm.xlu0 %1191, %v656
        %v1193 = vpop.permute.xlu0 %1192
        %v1195 = vmul.f32 %v1147, %v1158
        %v1196 = vmul.f32 %v1154, %v1163
        %v1197 = vmul.f32 %v1153, %v1168
        %v1198 = vmul.f32 %v1152, %v1173
        %v1199 = vmul.f32 %v1151, %v1178
        %v1200 = vmul.f32 %v1150, %v1183
        %v1201 = vmul.f32 %v1149, %v1188
        %v1202 = vmul.f32 %v1148, %v1193
        %v1203 = vpack.c.bf16 %v1196, %v1195
        %v1204 = vpack.c.bf16 %v1198, %v1197
        %v1205 = vpack.c.bf16 %v1200, %v1199
        %v1206 = vpack.c.bf16 %v1202, %v1201
        %v1207 = vld [vmem:[%s3] sm:$0xf]
        %v1208 = vld [vmem:[%s3 + $0x4] sm:$0xf]
        %v1209 = vld [vmem:[%s3 + $0x8] sm:$0xf]
        %v1210 = vld [vmem:[%s3 + $0xc] sm:$0xf]
        %v1211 = vld [vmem:[%s3 + $0x10] sm:$0xf]
        %v1212 = vld [vmem:[%s3 + $0x14] sm:$0xf]
        %v1213 = vld [vmem:[%s3 + $0x18] sm:$0xf]
        %v1214 = vld [vmem:[%s3 + $0x1c] sm:$0xf]
        %1215 = vset.pattern.permute.xlu0 1
        %1216 = vperm.xlu0 %1215, %v649
        %v1217 = vpop.permute.xlu0 %1216
        %1219 = vset.pattern.permute.xlu0 1
        %1220 = vperm.xlu0 %1219, %v650
        %v1221 = vpop.permute.xlu0 %1220
        %1223 = vset.pattern.permute.xlu0 1
        %1224 = vperm.xlu0 %1223, %v651
        %v1225 = vpop.permute.xlu0 %1224
        %1227 = vset.pattern.permute.xlu0 1
        %1228 = vperm.xlu0 %1227, %v652
        %v1229 = vpop.permute.xlu0 %1228
        %1231 = vset.pattern.permute.xlu0 1
        %1232 = vperm.xlu0 %1231, %v653
        %v1233 = vpop.permute.xlu0 %1232
        %1235 = vset.pattern.permute.xlu0 1
        %1236 = vperm.xlu0 %1235, %v654
        %v1237 = vpop.permute.xlu0 %1236
        %1239 = vset.pattern.permute.xlu0 1
        %1240 = vperm.xlu0 %1239, %v655
        %v1241 = vpop.permute.xlu0 %1240
        %1243 = vset.pattern.permute.xlu0 1
        %1244 = vperm.xlu0 %1243, %v656
        %v1245 = vpop.permute.xlu0 %1244
        %v1247 = vmul.f32 %v1135, %v1217
        %v1248 = vmul.f32 %v1128, %v1221
        %v1249 = vmul.f32 %v1129, %v1225
        %v1250 = vmul.f32 %v1130, %v1229
        %v1251 = vmul.f32 %v1131, %v1233
        %v1252 = vmul.f32 %v1132, %v1237
        %v1253 = vmul.f32 %v1133, %v1241
        %v1254 = vmul.f32 %v1134, %v1245
        %v1255 = vpack.c.bf16 %v1248, %v1247
        %v1256 = vpack.c.bf16 %v1250, %v1249
        %v1257 = vpack.c.bf16 %v1252, %v1251
        %v1258 = vpack.c.bf16 %v1254, %v1253
        %v1259 = vld [vmem:[%s3 + $0x20] sm:$0xf]
        %v1260 = vld [vmem:[%s3 + $0x24] sm:$0xf]
        %v1261 = vld [vmem:[%s3 + $0x28] sm:$0xf]
        %v1262 = vld [vmem:[%s3 + $0x2c] sm:$0xf]
        %v1263 = vld [vmem:[%s3 + $0x30] sm:$0xf]
        %v1264 = vld [vmem:[%s3 + $0x34] sm:$0xf]
        %v1265 = vld [vmem:[%s3 + $0x38] sm:$0xf]
        %v1266 = vld [vmem:[%s3 + $0x3c] sm:$0xf]
        %v1275 = vunpack.c.l.b16 %v1259
        %v1276 = vunpack.c.l.b16 %v1260
        %v1277 = vunpack.c.l.b16 %v1261
        %v1278 = vunpack.c.l.b16 %v1262
        %v1279 = vunpack.c.l.b16 %v1263
        %v1280 = vunpack.c.l.b16 %v1264
        %v1281 = vunpack.c.l.b16 %v1265
        %v1282 = vunpack.c.l.b16 %v1266
        %v1283 = vpack.c.b16 %v1276, %v1275
        %v1284 = vpack.c.b16 %v1278, %v1277
        %v1285 = vpack.c.b16 %v1280, %v1279
        %v1286 = vpack.c.b16 %v1282, %v1281
        %v1292 = vsel %vm665, %v1255, 0
        %v1295 = vsel %vm665, %v1256, 0
        %v1298 = vsel %vm665, %v1257, 0
        %v1301 = vsel %vm665, %v1258, 0
        %1303 = vmatprep.subr.bf16.mxu0 0
        %1304 = vmatpush1.bf16.msra.mxu0 %v1283
        %1305 = vmatprep.subr.bf16.mxu0 0
        %1306 = vmatpush1.bf16.msra.mxu0 %v1284
        %1307 = vmatprep.subr.bf16.mxu0 0
        %1308 = vmatpush1.bf16.msra.mxu0 %v1285
        %1309 = vmatprep.subr.bf16.mxu0 0
        %1310 = vmatpush1.bf16.msra.mxu0 %v1286
        %1311 = vmatprep.subr.bf16.mxu0 0
        %1312 = vmatpush1.bf16.msra.mxu0 0
        %1313 = vmatprep.subr.bf16.mxu0 0
        %1314 = vmatpush1.bf16.msra.mxu0 0
        %1315 = vmatprep.subr.bf16.mxu0 0
        %1316 = vmatpush1.bf16.msra.mxu0 0
        %1317 = vmatprep.subr.bf16.mxu0 0
        %1318 = vmatpush1.bf16.msra.mxu0 0
        %1319 = vmatprep.subr.bf16.mxu0 0
        %1320 = vmatpush1.bf16.msra.mxu0 0
        %1321 = vmatprep.subr.bf16.mxu0 0
        %1322 = vmatpush1.bf16.msra.mxu0 0
        %1323 = vmatprep.subr.bf16.mxu0 0
        %1324 = vmatpush1.bf16.msra.mxu0 0
        %1325 = vmatprep.subr.bf16.mxu0 0
        %1326 = vmatpush1.bf16.msra.mxu0 0
        %1327 = vmatprep.subr.bf16.mxu0 0
        %1328 = vmatpush1.bf16.msra.mxu0 0
        %1329 = vmatprep.subr.bf16.mxu0 0
        %1330 = vmatpush1.bf16.msra.mxu0 0
        %1331 = vmatprep.subr.bf16.mxu0 0
        %1332 = vmatpush1.bf16.msra.mxu0 0
        %1333 = vmatprep.subr.bf16.mxu0 0
        %1334 = vmatpush1.bf16.msra.mxu0 0
        %1335 = vmatprep.mubr.bf16.mxu0 0
        %1336 = vmatmul.mubr.bf16.gmra.mrb[0].mxu0 %v1292
        %v1337 = vpop.f32.mrb[0].mxu0
        %v1338 = vadd.f32 0.0, %v1337
        %v1339 = vpop.f32.mrb[0].mxu0
        %v1340 = vpop.f32.mrb[0].mxu0
        %v1341 = vadd.f32 0.0, %v1340
        %v1342 = vpop.f32.mrb[0].mxu0
        %1343 = vmatprep.mubr.bf16.mxu0 0
        %1344 = vmatmul.mubr.bf16.gmra.mrb[0].mxu0 %v1295
        %v1345 = vpop.f32.mrb[0].mxu0
        %v1346 = vadd.f32 0.0, %v1345
        %v1347 = vpop.f32.mrb[0].mxu0
        %v1348 = vpop.f32.mrb[0].mxu0
        %v1349 = vadd.f32 0.0, %v1348
        %v1350 = vpop.f32.mrb[0].mxu0
        %1351 = vmatprep.mubr.bf16.mxu0 0
        %1352 = vmatmul.mubr.bf16.gmra.mrb[0].mxu0 %v1298
        %v1353 = vpop.f32.mrb[0].mxu0
        %v1354 = vadd.f32 0.0, %v1353
        %v1355 = vpop.f32.mrb[0].mxu0
        %v1356 = vpop.f32.mrb[0].mxu0
        %v1357 = vadd.f32 0.0, %v1356
        %v1358 = vpop.f32.mrb[0].mxu0
        %1359 = vmatprep.mubr.bf16.mxu0 0
        %1360 = vmatmul.mubr.bf16.gmra.mrb[0].mxu0 %v1301
        %v1361 = vpop.f32.mrb[0].mxu0
        %v1362 = vadd.f32 0.0, %v1361
        %v1363 = vpop.f32.mrb[0].mxu0
        %v1364 = vpop.f32.mrb[0].mxu0
        %v1365 = vadd.f32 0.0, %v1364
        %v1366 = vpop.f32.mrb[0].mxu0
        %1367 = vdwg.mxu0
        %v1376 = vunpack.c.l.b16 %v1207
        %v1377 = vunpack.c.l.b16 %v1208
        %v1378 = vunpack.c.l.b16 %v1209
        %v1379 = vunpack.c.l.b16 %v1210
        %v1380 = vunpack.c.l.b16 %v1211
        %v1381 = vunpack.c.l.b16 %v1212
        %v1382 = vunpack.c.l.b16 %v1213
        %v1383 = vunpack.c.l.b16 %v1214
        %v1384 = vpack.c.b16 %v1377, %v1376
        %v1385 = vpack.c.b16 %v1379, %v1378
        %v1386 = vpack.c.b16 %v1381, %v1380
        %v1387 = vpack.c.b16 %v1383, %v1382
        %v1393 = vsel %vm665, %v1203, 0
        %v1396 = vsel %vm665, %v1204, 0
        %v1399 = vsel %vm665, %v1205, 0
        %v1402 = vsel %vm665, %v1206, 0
        %1404 = vmatprep.subr.bf16.mxu0 0
        %1405 = vmatpush1.bf16.msra.mxu0 %v1384
        %1406 = vmatprep.subr.bf16.mxu0 0
        %1407 = vmatpush1.bf16.msra.mxu0 %v1385
        %1408 = vmatprep.subr.bf16.mxu0 0
        %1409 = vmatpush1.bf16.msra.mxu0 %v1386
        %1410 = vmatprep.subr.bf16.mxu0 0
        %1411 = vmatpush1.bf16.msra.mxu0 %v1387
        %1412 = vmatprep.subr.bf16.mxu0 0
        %1413 = vmatpush1.bf16.msra.mxu0 0
        %1414 = vmatprep.subr.bf16.mxu0 0
        %1415 = vmatpush1.bf16.msra.mxu0 0
        %1416 = vmatprep.subr.bf16.mxu0 0
        %1417 = vmatpush1.bf16.msra.mxu0 0
        %1418 = vmatprep.subr.bf16.mxu0 0
        %1419 = vmatpush1.bf16.msra.mxu0 0
        %1420 = vmatprep.subr.bf16.mxu0 0
        %1421 = vmatpush1.bf16.msra.mxu0 0
        %1422 = vmatprep.subr.bf16.mxu0 0
        %1423 = vmatpush1.bf16.msra.mxu0 0
        %1424 = vmatprep.subr.bf16.mxu0 0
        %1425 = vmatpush1.bf16.msra.mxu0 0
        %1426 = vmatprep.subr.bf16.mxu0 0
        %1427 = vmatpush1.bf16.msra.mxu0 0
        %1428 = vmatprep.subr.bf16.mxu0 0
        %1429 = vmatpush1.bf16.msra.mxu0 0
        %1430 = vmatprep.subr.bf16.mxu0 0
        %1431 = vmatpush1.bf16.msra.mxu0 0
        %1432 = vmatprep.subr.bf16.mxu0 0
        %1433 = vmatpush1.bf16.msra.mxu0 0
        %1434 = vmatprep.subr.bf16.mxu0 0
        %1435 = vmatpush1.bf16.msra.mxu0 0
        %1436 = vmatprep.mubr.bf16.mxu0 0
        %1437 = vmatmul.mubr.bf16.gmra.mrb[0].mxu0 %v1393
        %v1438 = vpop.f32.mrb[0].mxu0
        %v1439 = vadd.f32 %v1338, %v1438
        %v1440 = vpop.f32.mrb[0].mxu0
        %v1441 = vpop.f32.mrb[0].mxu0
        %v1442 = vadd.f32 %v1341, %v1441
        %v1443 = vpop.f32.mrb[0].mxu0
        %1444 = vmatprep.mubr.bf16.mxu0 0
        %1445 = vmatmul.mubr.bf16.gmra.mrb[0].mxu0 %v1396
        %v1446 = vpop.f32.mrb[0].mxu0
        %v1447 = vadd.f32 %v1346, %v1446
        %v1448 = vpop.f32.mrb[0].mxu0
        %v1449 = vpop.f32.mrb[0].mxu0
        %v1450 = vadd.f32 %v1349, %v1449
        %v1451 = vpop.f32.mrb[0].mxu0
        %1452 = vmatprep.mubr.bf16.mxu0 0
        %1453 = vmatmul.mubr.bf16.gmra.mrb[0].mxu0 %v1399
        %v1454 = vpop.f32.mrb[0].mxu0
        %v1455 = vadd.f32 %v1354, %v1454
        %v1456 = vpop.f32.mrb[0].mxu0
        %v1457 = vpop.f32.mrb[0].mxu0
        %v1458 = vadd.f32 %v1357, %v1457
        %v1459 = vpop.f32.mrb[0].mxu0
        %1460 = vmatprep.mubr.bf16.mxu0 0
        %1461 = vmatmul.mubr.bf16.gmra.mrb[0].mxu0 %v1402
        %v1462 = vpop.f32.mrb[0].mxu0
        %v1463 = vadd.f32 %v1362, %v1462
        %v1464 = vpop.f32.mrb[0].mxu0
        %v1465 = vpop.f32.mrb[0].mxu0
        %v1466 = vadd.f32 %v1365, %v1465
        %v1467 = vpop.f32.mrb[0].mxu0
        %1468 = vdwg.mxu0
        %v1469 = vrot.slane %v1128, 1
        %v1470 = vrot.slane %v1129, 1
        %v1471 = vrot.slane %v1130, 1
        %v1472 = vrot.slane %v1131, 1
        %v1473 = vrot.slane %v1132, 1
        %v1474 = vrot.slane %v1133, 1
        %v1475 = vrot.slane %v1134, 1
        %v1476 = vrot.slane %v1135, 1
        %vm1477 = vcmp.lt.s32.totalorder %v1145, 7
        %v1478 = vsel %vm1477, %v1475, %v1476
        %v1479 = vsel %vm1477, %v1474, %v1475
        %v1480 = vsel %vm1477, %v1473, %v1474
        %v1481 = vsel %vm1477, %v1472, %v1473
        %v1482 = vsel %vm1477, %v1471, %v1472
        %v1483 = vsel %vm1477, %v1470, %v1471
        %v1484 = vsel %vm1477, %v1469, %v1470
        %v1485 = vsel %vm1477, %v1476, %v1469
        %1486 = vset.pattern.permute.xlu0 2
        %1487 = vperm.xlu0 %1486, %v649
        %v1488 = vpop.permute.xlu0 %1487
        %1490 = vset.pattern.permute.xlu0 2
        %1491 = vperm.xlu0 %1490, %v650
        %v1492 = vpop.permute.xlu0 %1491
        %1494 = vset.pattern.permute.xlu0 2
        %1495 = vperm.xlu0 %1494, %v651
        %v1496 = vpop.permute.xlu0 %1495
        %1498 = vset.pattern.permute.xlu0 2
        %1499 = vperm.xlu0 %1498, %v652
        %v1500 = vpop.permute.xlu0 %1499
        %1502 = vset.pattern.permute.xlu0 2
        %1503 = vperm.xlu0 %1502, %v653
        %v1504 = vpop.permute.xlu0 %1503
        %1506 = vset.pattern.permute.xlu0 2
        %1507 = vperm.xlu0 %1506, %v654
        %v1508 = vpop.permute.xlu0 %1507
        %1510 = vset.pattern.permute.xlu0 2
        %1511 = vperm.xlu0 %1510, %v655
        %v1512 = vpop.permute.xlu0 %1511
        %1514 = vset.pattern.permute.xlu0 2
        %1515 = vperm.xlu0 %1514, %v656
        %v1516 = vpop.permute.xlu0 %1515
        %v1518 = vmul.f32 %v1485, %v1488
        %v1519 = vmul.f32 %v1484, %v1492
        %v1520 = vmul.f32 %v1483, %v1496
        %v1521 = vmul.f32 %v1482, %v1500
        %v1522 = vmul.f32 %v1481, %v1504
        %v1523 = vmul.f32 %v1480, %v1508
        %v1524 = vmul.f32 %v1479, %v1512
        %v1525 = vmul.f32 %v1478, %v1516
        %v1526 = vpack.c.bf16 %v1519, %v1518
        %v1527 = vpack.c.bf16 %v1521, %v1520
        %v1528 = vpack.c.bf16 %v1523, %v1522
        %v1529 = vpack.c.bf16 %v1525, %v1524
        %v1530 = vld [vmem:[%s3 + $0x40] sm:$0xf]
        %v1531 = vld [vmem:[%s3 + $0x44] sm:$0xf]
        %v1532 = vld [vmem:[%s3 + $0x48] sm:$0xf]
        %v1533 = vld [vmem:[%s3 + $0x4c] sm:$0xf]
        %v1534 = vld [vmem:[%s3 + $0x50] sm:$0xf]
        %v1535 = vld [vmem:[%s3 + $0x54] sm:$0xf]
        %v1536 = vld [vmem:[%s3 + $0x58] sm:$0xf]
        %v1537 = vld [vmem:[%s3 + $0x5c] sm:$0xf]
        %v1546 = vunpack.c.l.b16 %v1530
        %v1547 = vunpack.c.l.b16 %v1531
        %v1548 = vunpack.c.l.b16 %v1532
        %v1549 = vunpack.c.l.b16 %v1533
        %v1550 = vunpack.c.l.b16 %v1534
        %v1551 = vunpack.c.l.b16 %v1535
        %v1552 = vunpack.c.l.b16 %v1536
        %v1553 = vunpack.c.l.b16 %v1537
        %v1554 = vpack.c.b16 %v1547, %v1546
        %v1555 = vpack.c.b16 %v1549, %v1548
        %v1556 = vpack.c.b16 %v1551, %v1550
        %v1557 = vpack.c.b16 %v1553, %v1552
        %v1563 = vsel %vm665, %v1526, 0
        %v1566 = vsel %vm665, %v1527, 0
        %v1569 = vsel %vm665, %v1528, 0
        %v1572 = vsel %vm665, %v1529, 0
        %1574 = vmatprep.subr.bf16.mxu0 0
        %1575 = vmatpush1.bf16.msra.mxu0 %v1554
        %1576 = vmatprep.subr.bf16.mxu0 0
        %1577 = vmatpush1.bf16.msra.mxu0 %v1555
        %1578 = vmatprep.subr.bf16.mxu0 0
        %1579 = vmatpush1.bf16.msra.mxu0 %v1556
        %1580 = vmatprep.subr.bf16.mxu0 0
        %1581 = vmatpush1.bf16.msra.mxu0 %v1557
        %1582 = vmatprep.subr.bf16.mxu0 0
        %1583 = vmatpush1.bf16.msra.mxu0 0
        %1584 = vmatprep.subr.bf16.mxu0 0
        %1585 = vmatpush1.bf16.msra.mxu0 0
        %1586 = vmatprep.subr.bf16.mxu0 0
        %1587 = vmatpush1.bf16.msra.mxu0 0
        %1588 = vmatprep.subr.bf16.mxu0 0
        %1589 = vmatpush1.bf16.msra.mxu0 0
        %1590 = vmatprep.subr.bf16.mxu0 0
        %1591 = vmatpush1.bf16.msra.mxu0 0
        %1592 = vmatprep.subr.bf16.mxu0 0
        %1593 = vmatpush1.bf16.msra.mxu0 0
        %1594 = vmatprep.subr.bf16.mxu0 0
        %1595 = vmatpush1.bf16.msra.mxu0 0
        %1596 = vmatprep.subr.bf16.mxu0 0
        %1597 = vmatpush1.bf16.msra.mxu0 0
        %1598 = vmatprep.subr.bf16.mxu0 0
        %1599 = vmatpush1.bf16.msra.mxu0 0
        %1600 = vmatprep.subr.bf16.mxu0 0
        %1601 = vmatpush1.bf16.msra.mxu0 0
        %1602 = vmatprep.subr.bf16.mxu0 0
        %1603 = vmatpush1.bf16.msra.mxu0 0
        %1604 = vmatprep.subr.bf16.mxu0 0
        %1605 = vmatpush1.bf16.msra.mxu0 0
        %1606 = vmatprep.mubr.bf16.mxu0 0
        %1607 = vmatmul.mubr.bf16.gmra.mrb[0].mxu0 %v1563
        %v1608 = vpop.f32.mrb[0].mxu0
        %v1609 = vadd.f32 0.0, %v1608
        %v1610 = vpop.f32.mrb[0].mxu0
        %v1611 = vpop.f32.mrb[0].mxu0
        %v1612 = vadd.f32 0.0, %v1611
        %v1613 = vpop.f32.mrb[0].mxu0
        %1614 = vmatprep.mubr.bf16.mxu0 0
        %1615 = vmatmul.mubr.bf16.gmra.mrb[0].mxu0 %v1566
        %v1616 = vpop.f32.mrb[0].mxu0
        %v1617 = vadd.f32 0.0, %v1616
        %v1618 = vpop.f32.mrb[0].mxu0
        %v1619 = vpop.f32.mrb[0].mxu0
        %v1620 = vadd.f32 0.0, %v1619
        %v1621 = vpop.f32.mrb[0].mxu0
        %1622 = vmatprep.mubr.bf16.mxu0 0
        %1623 = vmatmul.mubr.bf16.gmra.mrb[0].mxu0 %v1569
        %v1624 = vpop.f32.mrb[0].mxu0
        %v1625 = vadd.f32 0.0, %v1624
        %v1626 = vpop.f32.mrb[0].mxu0
        %v1627 = vpop.f32.mrb[0].mxu0
        %v1628 = vadd.f32 0.0, %v1627
        %v1629 = vpop.f32.mrb[0].mxu0
        %1630 = vmatprep.mubr.bf16.mxu0 0
        %1631 = vmatmul.mubr.bf16.gmra.mrb[0].mxu0 %v1572
        %v1632 = vpop.f32.mrb[0].mxu0
        %v1633 = vadd.f32 0.0, %v1632
        %v1634 = vpop.f32.mrb[0].mxu0
        %v1635 = vpop.f32.mrb[0].mxu0
        %v1636 = vadd.f32 0.0, %v1635
        %v1637 = vpop.f32.mrb[0].mxu0
        %1638 = vdwg.mxu0
        %v1639 = vadd.f32 %v1439, %v1609
        %v1640 = vadd.f32 %v1442, %v1612
        %v1641 = vadd.f32 %v1447, %v1617
        %v1642 = vadd.f32 %v1450, %v1620
        %v1643 = vadd.f32 %v1455, %v1625
        %v1644 = vadd.f32 %v1458, %v1628
        %v1645 = vadd.f32 %v1463, %v1633
        %v1646 = vadd.f32 %v1466, %v1636
        %1647 = vset.pattern.permute.xlu0 3
        %1648 = vperm.xlu0 %1647, %v649
        %v1649 = vpop.permute.xlu0 %1648
        %1651 = vset.pattern.permute.xlu0 3
        %1652 = vperm.xlu0 %1651, %v650
        %v1653 = vpop.permute.xlu0 %1652
        %1655 = vset.pattern.permute.xlu0 3
        %1656 = vperm.xlu0 %1655, %v651
        %v1657 = vpop.permute.xlu0 %1656
        %1659 = vset.pattern.permute.xlu0 3
        %1660 = vperm.xlu0 %1659, %v652
        %v1661 = vpop.permute.xlu0 %1660
        %1663 = vset.pattern.permute.xlu0 3
        %1664 = vperm.xlu0 %1663, %v653
        %v1665 = vpop.permute.xlu0 %1664
        %1667 = vset.pattern.permute.xlu0 3
        %1668 = vperm.xlu0 %1667, %v654
        %v1669 = vpop.permute.xlu0 %1668
        %1671 = vset.pattern.permute.xlu0 3
        %1672 = vperm.xlu0 %1671, %v655
        %v1673 = vpop.permute.xlu0 %1672
        %1675 = vset.pattern.permute.xlu0 3
        %1676 = vperm.xlu0 %1675, %v656
        %v1677 = vpop.permute.xlu0 %1676
        %v1679 = vmul.f32 %v1154, %v1649
        %v1680 = vmul.f32 %v1153, %v1653
        %v1681 = vmul.f32 %v1152, %v1657
        %v1682 = vmul.f32 %v1151, %v1661
        %v1683 = vmul.f32 %v1150, %v1665
        %v1684 = vmul.f32 %v1149, %v1669
        %v1685 = vmul.f32 %v1148, %v1673
        %v1686 = vmul.f32 %v1147, %v1677
        %v1687 = vpack.c.bf16 %v1680, %v1679
        %v1688 = vpack.c.bf16 %v1682, %v1681
        %v1689 = vpack.c.bf16 %v1684, %v1683
        %v1690 = vpack.c.bf16 %v1686, %v1685
        %v1691 = vld [vmem:[%s3 + $0x60] sm:$0xf]
        %v1692 = vld [vmem:[%s3 + $0x64] sm:$0xf]
        %v1693 = vld [vmem:[%s3 + $0x68] sm:$0xf]
        %v1694 = vld [vmem:[%s3 + $0x6c] sm:$0xf]
        %v1695 = vld [vmem:[%s3 + $0x70] sm:$0xf]
        %v1696 = vld [vmem:[%s3 + $0x74] sm:$0xf]
        %v1697 = vld [vmem:[%s3 + $0x78] sm:$0xf]
        %v1698 = vld [vmem:[%s3 + $0x7c] sm:$0xf]
        %v1707 = vunpack.c.l.b16 %v1691
        %v1708 = vunpack.c.l.b16 %v1692
        %v1709 = vunpack.c.l.b16 %v1693
        %v1710 = vunpack.c.l.b16 %v1694
        %v1711 = vunpack.c.l.b16 %v1695
        %v1712 = vunpack.c.l.b16 %v1696
        %v1713 = vunpack.c.l.b16 %v1697
        %v1714 = vunpack.c.l.b16 %v1698
        %v1715 = vpack.c.b16 %v1708, %v1707
        %v1716 = vpack.c.b16 %v1710, %v1709
        %v1717 = vpack.c.b16 %v1712, %v1711
        %v1718 = vpack.c.b16 %v1714, %v1713
        %v1724 = vsel %vm665, %v1687, 0
        %v1727 = vsel %vm665, %v1688, 0
        %v1730 = vsel %vm665, %v1689, 0
        %v1733 = vsel %vm665, %v1690, 0
        %1735 = vmatprep.subr.bf16.mxu0 0
        %1736 = vmatpush1.bf16.msra.mxu0 %v1715
        %1737 = vmatprep.subr.bf16.mxu0 0
        %1738 = vmatpush1.bf16.msra.mxu0 %v1716
        %1739 = vmatprep.subr.bf16.mxu0 0
        %1740 = vmatpush1.bf16.msra.mxu0 %v1717
        %1741 = vmatprep.subr.bf16.mxu0 0
        %1742 = vmatpush1.bf16.msra.mxu0 %v1718
        %1743 = vmatprep.subr.bf16.mxu0 0
        %1744 = vmatpush1.bf16.msra.mxu0 0
        %1745 = vmatprep.subr.bf16.mxu0 0
        %1746 = vmatpush1.bf16.msra.mxu0 0
        %1747 = vmatprep.subr.bf16.mxu0 0
        %1748 = vmatpush1.bf16.msra.mxu0 0
        %1749 = vmatprep.subr.bf16.mxu0 0
        %1750 = vmatpush1.bf16.msra.mxu0 0
        %1751 = vmatprep.subr.bf16.mxu0 0
        %1752 = vmatpush1.bf16.msra.mxu0 0
        %1753 = vmatprep.subr.bf16.mxu0 0
        %1754 = vmatpush1.bf16.msra.mxu0 0
        %1755 = vmatprep.subr.bf16.mxu0 0
        %1756 = vmatpush1.bf16.msra.mxu0 0
        %1757 = vmatprep.subr.bf16.mxu0 0
        %1758 = vmatpush1.bf16.msra.mxu0 0
        %1759 = vmatprep.subr.bf16.mxu0 0
        %1760 = vmatpush1.bf16.msra.mxu0 0
        %1761 = vmatprep.subr.bf16.mxu0 0
        %1762 = vmatpush1.bf16.msra.mxu0 0
        %1763 = vmatprep.subr.bf16.mxu0 0
        %1764 = vmatpush1.bf16.msra.mxu0 0
        %1765 = vmatprep.subr.bf16.mxu0 0
        %1766 = vmatpush1.bf16.msra.mxu0 0
        %1767 = vmatprep.mubr.bf16.mxu0 0
        %1768 = vmatmul.mubr.bf16.gmra.mrb[0].mxu0 %v1724
        %v1769 = vpop.f32.mrb[0].mxu0
        %v1770 = vadd.f32 0.0, %v1769
        %v1771 = vpop.f32.mrb[0].mxu0
        %v1772 = vpop.f32.mrb[0].mxu0
        %v1773 = vadd.f32 0.0, %v1772
        %v1774 = vpop.f32.mrb[0].mxu0
        %1775 = vmatprep.mubr.bf16.mxu0 0
        %1776 = vmatmul.mubr.bf16.gmra.mrb[0].mxu0 %v1727
        %v1777 = vpop.f32.mrb[0].mxu0
        %v1778 = vadd.f32 0.0, %v1777
        %v1779 = vpop.f32.mrb[0].mxu0
        %v1780 = vpop.f32.mrb[0].mxu0
        %v1781 = vadd.f32 0.0, %v1780
        %v1782 = vpop.f32.mrb[0].mxu0
        %1783 = vmatprep.mubr.bf16.mxu0 0
        %1784 = vmatmul.mubr.bf16.gmra.mrb[0].mxu0 %v1730
        %v1785 = vpop.f32.mrb[0].mxu0
        %v1786 = vadd.f32 0.0, %v1785
        %v1787 = vpop.f32.mrb[0].mxu0
        %v1788 = vpop.f32.mrb[0].mxu0
        %v1789 = vadd.f32 0.0, %v1788
        %v1790 = vpop.f32.mrb[0].mxu0
        %1791 = vmatprep.mubr.bf16.mxu0 0
        %1792 = vmatmul.mubr.bf16.gmra.mrb[0].mxu0 %v1733
        %v1793 = vpop.f32.mrb[0].mxu0
        %v1794 = vadd.f32 0.0, %v1793
        %v1795 = vpop.f32.mrb[0].mxu0
        %v1796 = vpop.f32.mrb[0].mxu0
        %v1797 = vadd.f32 0.0, %v1796
        %v1798 = vpop.f32.mrb[0].mxu0
        %1799 = vdwg.mxu0
        %v1800 = vadd.f32 %v1639, %v1770
        %v1801 = vadd.f32 %v1640, %v1773
        %v1802 = vadd.f32 %v1641, %v1778
        %v1803 = vadd.f32 %v1642, %v1781
        %v1804 = vadd.f32 %v1643, %v1786
        %v1805 = vadd.f32 %v1644, %v1789
        %v1806 = vadd.f32 %v1645, %v1794
        %v1807 = vadd.f32 %v1646, %v1797
        %v1808 = vpack.c.bf16 %v1129, %v1128
        %v1809 = vpack.c.bf16 %v1131, %v1130
        %v1810 = vpack.c.bf16 %v1133, %v1132
        %v1811 = vpack.c.bf16 %v1135, %v1134
        %v1812 = vld [vmem:[%s3 + $0x80] sm:$0xf]
        %v1813 = vld [vmem:[%s3 + $0x84] sm:$0xf]
        %v1814 = vld [vmem:[%s3 + $0x88] sm:$0xf]
        %v1815 = vld [vmem:[%s3 + $0x8c] sm:$0xf]
        %v1816 = vld [vmem:[%s3 + $0x90] sm:$0xf]
        %v1817 = vld [vmem:[%s3 + $0x94] sm:$0xf]
        %v1818 = vld [vmem:[%s3 + $0x98] sm:$0xf]
        %v1819 = vld [vmem:[%s3 + $0x9c] sm:$0xf]
        %v1828 = vunpack.c.l.b16 %v1812
        %v1829 = vunpack.c.l.b16 %v1813
        %v1830 = vunpack.c.l.b16 %v1814
        %v1831 = vunpack.c.l.b16 %v1815
        %v1832 = vunpack.c.l.b16 %v1816
        %v1833 = vunpack.c.l.b16 %v1817
        %v1834 = vunpack.c.l.b16 %v1818
        %v1835 = vunpack.c.l.b16 %v1819
        %v1836 = vpack.c.b16 %v1829, %v1828
        %v1837 = vpack.c.b16 %v1831, %v1830
        %v1838 = vpack.c.b16 %v1833, %v1832
        %v1839 = vpack.c.b16 %v1835, %v1834
        %v1845 = vsel %vm665, %v1808, 0
        %v1848 = vsel %vm665, %v1809, 0
        %v1851 = vsel %vm665, %v1810, 0
        %v1854 = vsel %vm665, %v1811, 0
        %1856 = vmatprep.subr.bf16.mxu0 0
        %1857 = vmatpush1.bf16.msra.mxu0 %v1836
        %1858 = vmatprep.subr.bf16.mxu0 0
        %1859 = vmatpush1.bf16.msra.mxu0 %v1837
        %1860 = vmatprep.subr.bf16.mxu0 0
        %1861 = vmatpush1.bf16.msra.mxu0 %v1838
        %1862 = vmatprep.subr.bf16.mxu0 0
        %1863 = vmatpush1.bf16.msra.mxu0 %v1839
        %1864 = vmatprep.subr.bf16.mxu0 0
        %1865 = vmatpush1.bf16.msra.mxu0 0
        %1866 = vmatprep.subr.bf16.mxu0 0
        %1867 = vmatpush1.bf16.msra.mxu0 0
        %1868 = vmatprep.subr.bf16.mxu0 0
        %1869 = vmatpush1.bf16.msra.mxu0 0
        %1870 = vmatprep.subr.bf16.mxu0 0
        %1871 = vmatpush1.bf16.msra.mxu0 0
        %1872 = vmatprep.subr.bf16.mxu0 0
        %1873 = vmatpush1.bf16.msra.mxu0 0
        %1874 = vmatprep.subr.bf16.mxu0 0
        %1875 = vmatpush1.bf16.msra.mxu0 0
        %1876 = vmatprep.subr.bf16.mxu0 0
        %1877 = vmatpush1.bf16.msra.mxu0 0
        %1878 = vmatprep.subr.bf16.mxu0 0
        %1879 = vmatpush1.bf16.msra.mxu0 0
        %1880 = vmatprep.subr.bf16.mxu0 0
        %1881 = vmatpush1.bf16.msra.mxu0 0
        %1882 = vmatprep.subr.bf16.mxu0 0
        %1883 = vmatpush1.bf16.msra.mxu0 0
        %1884 = vmatprep.subr.bf16.mxu0 0
        %1885 = vmatpush1.bf16.msra.mxu0 0
        %1886 = vmatprep.subr.bf16.mxu0 0
        %1887 = vmatpush1.bf16.msra.mxu0 0
        %1888 = vmatprep.mubr.bf16.mxu0 0
        %1889 = vmatmul.mubr.bf16.gmra.mrb[0].mxu0 %v1845
        %v1890 = vpop.f32.mrb[0].mxu0
        %v1891 = vadd.f32 0.0, %v1890
        %v1892 = vpop.f32.mrb[0].mxu0
        %v1893 = vpop.f32.mrb[0].mxu0
        %v1894 = vadd.f32 0.0, %v1893
        %v1895 = vpop.f32.mrb[0].mxu0
        %1896 = vmatprep.mubr.bf16.mxu0 0
        %1897 = vmatmul.mubr.bf16.gmra.mrb[0].mxu0 %v1848
        %v1898 = vpop.f32.mrb[0].mxu0
        %v1899 = vadd.f32 0.0, %v1898
        %v1900 = vpop.f32.mrb[0].mxu0
        %v1901 = vpop.f32.mrb[0].mxu0
        %v1902 = vadd.f32 0.0, %v1901
        %v1903 = vpop.f32.mrb[0].mxu0
        %1904 = vmatprep.mubr.bf16.mxu0 0
        %1905 = vmatmul.mubr.bf16.gmra.mrb[0].mxu0 %v1851
        %v1906 = vpop.f32.mrb[0].mxu0
        %v1907 = vadd.f32 0.0, %v1906
        %v1908 = vpop.f32.mrb[0].mxu0
        %v1909 = vpop.f32.mrb[0].mxu0
        %v1910 = vadd.f32 0.0, %v1909
        %v1911 = vpop.f32.mrb[0].mxu0
        %1912 = vmatprep.mubr.bf16.mxu0 0
        %1913 = vmatmul.mubr.bf16.gmra.mrb[0].mxu0 %v1854
        %v1914 = vpop.f32.mrb[0].mxu0
        %v1915 = vadd.f32 0.0, %v1914
        %v1916 = vpop.f32.mrb[0].mxu0
        %v1917 = vpop.f32.mrb[0].mxu0
        %v1918 = vadd.f32 0.0, %v1917
        %v1919 = vpop.f32.mrb[0].mxu0
        %1920 = vdwg.mxu0
        %v1921 = vadd.f32 %v1800, %v1891
        %v1922 = vadd.f32 %v1801, %v1894
        %v1923 = vadd.f32 %v1802, %v1899
        %v1924 = vadd.f32 %v1803, %v1902
        %v1925 = vadd.f32 %v1804, %v1907
        %v1926 = vadd.f32 %v1805, %v1910
        %v1927 = vadd.f32 %v1806, %v1915
        %v1928 = vadd.f32 %v1807, %v1918
        %1929 = vset.pattern.permute.xlu0 5
        %1930 = vperm.xlu0 %1929, %v649
        %v1931 = vpop.permute.xlu0 %1930
        %1933 = vset.pattern.permute.xlu0 5
        %1934 = vperm.xlu0 %1933, %v650
        %v1935 = vpop.permute.xlu0 %1934
        %1937 = vset.pattern.permute.xlu0 5
        %1938 = vperm.xlu0 %1937, %v651
        %v1939 = vpop.permute.xlu0 %1938
        %1941 = vset.pattern.permute.xlu0 5
        %1942 = vperm.xlu0 %1941, %v652
        %v1943 = vpop.permute.xlu0 %1942
        %1945 = vset.pattern.permute.xlu0 5
        %1946 = vperm.xlu0 %1945, %v653
        %v1947 = vpop.permute.xlu0 %1946
        %1949 = vset.pattern.permute.xlu0 5
        %1950 = vperm.xlu0 %1949, %v654
        %v1951 = vpop.permute.xlu0 %1950
        %1953 = vset.pattern.permute.xlu0 5
        %1954 = vperm.xlu0 %1953, %v655
        %v1955 = vpop.permute.xlu0 %1954
        %1957 = vset.pattern.permute.xlu0 5
        %1958 = vperm.xlu0 %1957, %v656
        %v1959 = vpop.permute.xlu0 %1958
        %v1961 = vmul.f32 %v1484, %v1931
        %v1962 = vmul.f32 %v1483, %v1935
        %v1963 = vmul.f32 %v1482, %v1939
        %v1964 = vmul.f32 %v1481, %v1943
        %v1965 = vmul.f32 %v1480, %v1947
        %v1966 = vmul.f32 %v1479, %v1951
        %v1967 = vmul.f32 %v1478, %v1955
        %v1968 = vmul.f32 %v1485, %v1959
        %v1969 = vpack.c.bf16 %v1962, %v1961
        %v1970 = vpack.c.bf16 %v1964, %v1963
        %v1971 = vpack.c.bf16 %v1966, %v1965
        %v1972 = vpack.c.bf16 %v1968, %v1967
        %v1973 = vld [vmem:[%s3 + $0xa0] sm:$0xf]
        %v1974 = vld [vmem:[%s3 + $0xa4] sm:$0xf]
        %v1975 = vld [vmem:[%s3 + $0xa8] sm:$0xf]
        %v1976 = vld [vmem:[%s3 + $0xac] sm:$0xf]
        %v1977 = vld [vmem:[%s3 + $0xb0] sm:$0xf]
        %v1978 = vld [vmem:[%s3 + $0xb4] sm:$0xf]
        %v1979 = vld [vmem:[%s3 + $0xb8] sm:$0xf]
        %v1980 = vld [vmem:[%s3 + $0xbc] sm:$0xf]
        %v1989 = vunpack.c.l.b16 %v1973
        %v1990 = vunpack.c.l.b16 %v1974
        %v1991 = vunpack.c.l.b16 %v1975
        %v1992 = vunpack.c.l.b16 %v1976
        %v1993 = vunpack.c.l.b16 %v1977
        %v1994 = vunpack.c.l.b16 %v1978
        %v1995 = vunpack.c.l.b16 %v1979
        %v1996 = vunpack.c.l.b16 %v1980
        %v1997 = vpack.c.b16 %v1990, %v1989
        %v1998 = vpack.c.b16 %v1992, %v1991
        %v1999 = vpack.c.b16 %v1994, %v1993
        %v2000 = vpack.c.b16 %v1996, %v1995
        %v2006 = vsel %vm665, %v1969, 0
        %v2009 = vsel %vm665, %v1970, 0
        %v2012 = vsel %vm665, %v1971, 0
        %v2015 = vsel %vm665, %v1972, 0
        %2017 = vmatprep.subr.bf16.mxu0 0
        %2018 = vmatpush1.bf16.msra.mxu0 %v1997
        %2019 = vmatprep.subr.bf16.mxu0 0
        %2020 = vmatpush1.bf16.msra.mxu0 %v1998
        %2021 = vmatprep.subr.bf16.mxu0 0
        %2022 = vmatpush1.bf16.msra.mxu0 %v1999
        %2023 = vmatprep.subr.bf16.mxu0 0
        %2024 = vmatpush1.bf16.msra.mxu0 %v2000
        %2025 = vmatprep.subr.bf16.mxu0 0
        %2026 = vmatpush1.bf16.msra.mxu0 0
        %2027 = vmatprep.subr.bf16.mxu0 0
        %2028 = vmatpush1.bf16.msra.mxu0 0
        %2029 = vmatprep.subr.bf16.mxu0 0
        %2030 = vmatpush1.bf16.msra.mxu0 0
        %2031 = vmatprep.subr.bf16.mxu0 0
        %2032 = vmatpush1.bf16.msra.mxu0 0
        %2033 = vmatprep.subr.bf16.mxu0 0
        %2034 = vmatpush1.bf16.msra.mxu0 0
        %2035 = vmatprep.subr.bf16.mxu0 0
        %2036 = vmatpush1.bf16.msra.mxu0 0
        %2037 = vmatprep.subr.bf16.mxu0 0
        %2038 = vmatpush1.bf16.msra.mxu0 0
        %2039 = vmatprep.subr.bf16.mxu0 0
        %2040 = vmatpush1.bf16.msra.mxu0 0
        %2041 = vmatprep.subr.bf16.mxu0 0
        %2042 = vmatpush1.bf16.msra.mxu0 0
        %2043 = vmatprep.subr.bf16.mxu0 0
        %2044 = vmatpush1.bf16.msra.mxu0 0
        %2045 = vmatprep.subr.bf16.mxu0 0
        %2046 = vmatpush1.bf16.msra.mxu0 0
        %2047 = vmatprep.subr.bf16.mxu0 0
        %2048 = vmatpush1.bf16.msra.mxu0 0
        %2049 = vmatprep.mubr.bf16.mxu0 0
        %2050 = vmatmul.mubr.bf16.gmra.mrb[0].mxu0 %v2006
        %v2051 = vpop.f32.mrb[0].mxu0
        %v2052 = vadd.f32 0.0, %v2051
        %v2053 = vpop.f32.mrb[0].mxu0
        %v2054 = vpop.f32.mrb[0].mxu0
        %v2055 = vadd.f32 0.0, %v2054
        %v2056 = vpop.f32.mrb[0].mxu0
        %2057 = vmatprep.mubr.bf16.mxu0 0
        %2058 = vmatmul.mubr.bf16.gmra.mrb[0].mxu0 %v2009
        %v2059 = vpop.f32.mrb[0].mxu0
        %v2060 = vadd.f32 0.0, %v2059
        %v2061 = vpop.f32.mrb[0].mxu0
        %v2062 = vpop.f32.mrb[0].mxu0
        %v2063 = vadd.f32 0.0, %v2062
        %v2064 = vpop.f32.mrb[0].mxu0
        %2065 = vmatprep.mubr.bf16.mxu0 0
        %2066 = vmatmul.mubr.bf16.gmra.mrb[0].mxu0 %v2012
        %v2067 = vpop.f32.mrb[0].mxu0
        %v2068 = vadd.f32 0.0, %v2067
        %v2069 = vpop.f32.mrb[0].mxu0
        %v2070 = vpop.f32.mrb[0].mxu0
        %v2071 = vadd.f32 0.0, %v2070
        %v2072 = vpop.f32.mrb[0].mxu0
        %2073 = vmatprep.mubr.bf16.mxu0 0
        %2074 = vmatmul.mubr.bf16.gmra.mrb[0].mxu0 %v2015
        %v2075 = vpop.f32.mrb[0].mxu0
        %v2076 = vadd.f32 0.0, %v2075
        %v2077 = vpop.f32.mrb[0].mxu0
        %v2078 = vpop.f32.mrb[0].mxu0
        %v2079 = vadd.f32 0.0, %v2078
        %v2080 = vpop.f32.mrb[0].mxu0
        %2081 = vdwg.mxu0
        %v2082 = vadd.f32 %v1921, %v2052
        %v2083 = vadd.f32 %v1922, %v2055
        %v2084 = vadd.f32 %v1923, %v2060
        %v2085 = vadd.f32 %v1924, %v2063
        %v2086 = vadd.f32 %v1925, %v2068
        %v2087 = vadd.f32 %v1926, %v2071
        %v2088 = vadd.f32 %v1927, %v2076
        %v2089 = vadd.f32 %v1928, %v2079
        %2090 = vset.pattern.permute.xlu0 6
        %2091 = vperm.xlu0 %2090, %v649
        %v2092 = vpop.permute.xlu0 %2091
        %2094 = vset.pattern.permute.xlu0 6
        %2095 = vperm.xlu0 %2094, %v650
        %v2096 = vpop.permute.xlu0 %2095
        %2098 = vset.pattern.permute.xlu0 6
        %2099 = vperm.xlu0 %2098, %v651
        %v2100 = vpop.permute.xlu0 %2099
        %2102 = vset.pattern.permute.xlu0 6
        %2103 = vperm.xlu0 %2102, %v652
        %v2104 = vpop.permute.xlu0 %2103
        %2106 = vset.pattern.permute.xlu0 6
        %2107 = vperm.xlu0 %2106, %v653
        %v2108 = vpop.permute.xlu0 %2107
        %2110 = vset.pattern.permute.xlu0 6
        %2111 = vperm.xlu0 %2110, %v654
        %v2112 = vpop.permute.xlu0 %2111
        %2114 = vset.pattern.permute.xlu0 6
        %2115 = vperm.xlu0 %2114, %v655
        %v2116 = vpop.permute.xlu0 %2115
        %2118 = vset.pattern.permute.xlu0 6
        %2119 = vperm.xlu0 %2118, %v656
        %v2120 = vpop.permute.xlu0 %2119
        %v2122 = vmul.f32 %v1153, %v2092
        %v2123 = vmul.f32 %v1152, %v2096
        %v2124 = vmul.f32 %v1151, %v2100
        %v2125 = vmul.f32 %v1150, %v2104
        %v2126 = vmul.f32 %v1149, %v2108
        %v2127 = vmul.f32 %v1148, %v2112
        %v2128 = vmul.f32 %v1147, %v2116
        %v2129 = vmul.f32 %v1154, %v2120
        %v2130 = vpack.c.bf16 %v2123, %v2122
        %v2131 = vpack.c.bf16 %v2125, %v2124
        %v2132 = vpack.c.bf16 %v2127, %v2126
        %v2133 = vpack.c.bf16 %v2129, %v2128
        %v2134 = vld [vmem:[%s3 + $0xc0] sm:$0xf]
        %v2135 = vld [vmem:[%s3 + $0xc4] sm:$0xf]
        %v2136 = vld [vmem:[%s3 + $0xc8] sm:$0xf]
        %v2137 = vld [vmem:[%s3 + $0xcc] sm:$0xf]
        %v2138 = vld [vmem:[%s3 + $0xd0] sm:$0xf]
        %v2139 = vld [vmem:[%s3 + $0xd4] sm:$0xf]
        %v2140 = vld [vmem:[%s3 + $0xd8] sm:$0xf]
        %v2141 = vld [vmem:[%s3 + $0xdc] sm:$0xf]
        %v2150 = vunpack.c.l.b16 %v2134
        %v2151 = vunpack.c.l.b16 %v2135
        %v2152 = vunpack.c.l.b16 %v2136
        %v2153 = vunpack.c.l.b16 %v2137
        %v2154 = vunpack.c.l.b16 %v2138
        %v2155 = vunpack.c.l.b16 %v2139
        %v2156 = vunpack.c.l.b16 %v2140
        %v2157 = vunpack.c.l.b16 %v2141
        %v2158 = vpack.c.b16 %v2151, %v2150
        %v2159 = vpack.c.b16 %v2153, %v2152
        %v2160 = vpack.c.b16 %v2155, %v2154
        %v2161 = vpack.c.b16 %v2157, %v2156
        %v2167 = vsel %vm665, %v2130, 0
        %v2170 = vsel %vm665, %v2131, 0
        %v2173 = vsel %vm665, %v2132, 0
        %v2176 = vsel %vm665, %v2133, 0
        %2178 = vmatprep.subr.bf16.mxu0 0
        %2179 = vmatpush1.bf16.msra.mxu0 %v2158
        %2180 = vmatprep.subr.bf16.mxu0 0
        %2181 = vmatpush1.bf16.msra.mxu0 %v2159
        %2182 = vmatprep.subr.bf16.mxu0 0
        %2183 = vmatpush1.bf16.msra.mxu0 %v2160
        %2184 = vmatprep.subr.bf16.mxu0 0
        %2185 = vmatpush1.bf16.msra.mxu0 %v2161
        %2186 = vmatprep.subr.bf16.mxu0 0
        %2187 = vmatpush1.bf16.msra.mxu0 0
        %2188 = vmatprep.subr.bf16.mxu0 0
        %2189 = vmatpush1.bf16.msra.mxu0 0
        %2190 = vmatprep.subr.bf16.mxu0 0
        %2191 = vmatpush1.bf16.msra.mxu0 0
        %2192 = vmatprep.subr.bf16.mxu0 0
        %2193 = vmatpush1.bf16.msra.mxu0 0
        %2194 = vmatprep.subr.bf16.mxu0 0
        %2195 = vmatpush1.bf16.msra.mxu0 0
        %2196 = vmatprep.subr.bf16.mxu0 0
        %2197 = vmatpush1.bf16.msra.mxu0 0
        %2198 = vmatprep.subr.bf16.mxu0 0
        %2199 = vmatpush1.bf16.msra.mxu0 0
        %2200 = vmatprep.subr.bf16.mxu0 0
        %2201 = vmatpush1.bf16.msra.mxu0 0
        %2202 = vmatprep.subr.bf16.mxu0 0
        %2203 = vmatpush1.bf16.msra.mxu0 0
        %2204 = vmatprep.subr.bf16.mxu0 0
        %2205 = vmatpush1.bf16.msra.mxu0 0
        %2206 = vmatprep.subr.bf16.mxu0 0
        %2207 = vmatpush1.bf16.msra.mxu0 0
        %2208 = vmatprep.subr.bf16.mxu0 0
        %2209 = vmatpush1.bf16.msra.mxu0 0
        %2210 = vmatprep.mubr.bf16.mxu0 0
        %2211 = vmatmul.mubr.bf16.gmra.mrb[0].mxu0 %v2167
        %v2212 = vpop.f32.mrb[0].mxu0
        %v2213 = vadd.f32 0.0, %v2212
        %v2214 = vpop.f32.mrb[0].mxu0
        %v2215 = vpop.f32.mrb[0].mxu0
        %v2216 = vadd.f32 0.0, %v2215
        %v2217 = vpop.f32.mrb[0].mxu0
        %2218 = vmatprep.mubr.bf16.mxu0 0
        %2219 = vmatmul.mubr.bf16.gmra.mrb[0].mxu0 %v2170
        %v2220 = vpop.f32.mrb[0].mxu0
        %v2221 = vadd.f32 0.0, %v2220
        %v2222 = vpop.f32.mrb[0].mxu0
        %v2223 = vpop.f32.mrb[0].mxu0
        %v2224 = vadd.f32 0.0, %v2223
        %v2225 = vpop.f32.mrb[0].mxu0
        %2226 = vmatprep.mubr.bf16.mxu0 0
        %2227 = vmatmul.mubr.bf16.gmra.mrb[0].mxu0 %v2173
        %v2228 = vpop.f32.mrb[0].mxu0
        %v2229 = vadd.f32 0.0, %v2228
        %v2230 = vpop.f32.mrb[0].mxu0
        %v2231 = vpop.f32.mrb[0].mxu0
        %v2232 = vadd.f32 0.0, %v2231
        %v2233 = vpop.f32.mrb[0].mxu0
        %2234 = vmatprep.mubr.bf16.mxu0 0
        %2235 = vmatmul.mubr.bf16.gmra.mrb[0].mxu0 %v2176
        %v2236 = vpop.f32.mrb[0].mxu0
        %v2237 = vadd.f32 0.0, %v2236
        %v2238 = vpop.f32.mrb[0].mxu0
        %v2239 = vpop.f32.mrb[0].mxu0
        %v2240 = vadd.f32 0.0, %v2239
        %v2241 = vpop.f32.mrb[0].mxu0
        %2242 = vdwg.mxu0
        %v2243 = vadd.f32 %v2082, %v2213
        %v2244 = vadd.f32 %v2083, %v2216
        %v2245 = vadd.f32 %v2084, %v2221
        %v2246 = vadd.f32 %v2085, %v2224
        %v2247 = vadd.f32 %v2086, %v2229
        %v2248 = vadd.f32 %v2087, %v2232
        %v2249 = vadd.f32 %v2088, %v2237
        %v2250 = vadd.f32 %v2089, %v2240
        %2251 = vset.pattern.permute.xlu0 7
        %2252 = vperm.xlu0 %2251, %v649
        %v2253 = vpop.permute.xlu0 %2252
        %2255 = vset.pattern.permute.xlu0 7
        %2256 = vperm.xlu0 %2255, %v650
        %v2257 = vpop.permute.xlu0 %2256
        %2259 = vset.pattern.permute.xlu0 7
        %2260 = vperm.xlu0 %2259, %v651
        %v2261 = vpop.permute.xlu0 %2260
        %2263 = vset.pattern.permute.xlu0 7
        %2264 = vperm.xlu0 %2263, %v652
        %v2265 = vpop.permute.xlu0 %2264
        %2267 = vset.pattern.permute.xlu0 7
        %2268 = vperm.xlu0 %2267, %v653
        %v2269 = vpop.permute.xlu0 %2268
        %2271 = vset.pattern.permute.xlu0 7
        %2272 = vperm.xlu0 %2271, %v654
        %v2273 = vpop.permute.xlu0 %2272
        %2275 = vset.pattern.permute.xlu0 7
        %2276 = vperm.xlu0 %2275, %v655
        %v2277 = vpop.permute.xlu0 %2276
        %2279 = vset.pattern.permute.xlu0 7
        %2280 = vperm.xlu0 %2279, %v656
        %v2281 = vpop.permute.xlu0 %2280
        %v2283 = vmul.f32 %v1129, %v2253
        %v2284 = vmul.f32 %v1130, %v2257
        %v2285 = vmul.f32 %v1131, %v2261
        %v2286 = vmul.f32 %v1132, %v2265
        %v2287 = vmul.f32 %v1133, %v2269
        %v2288 = vmul.f32 %v1134, %v2273
        %v2289 = vmul.f32 %v1135, %v2277
        %v2290 = vmul.f32 %v1128, %v2281
        %v2291 = vpack.c.bf16 %v2284, %v2283
        %v2292 = vpack.c.bf16 %v2286, %v2285
        %v2293 = vpack.c.bf16 %v2288, %v2287
        %v2294 = vpack.c.bf16 %v2290, %v2289
        %v2295 = vld [vmem:[%s3 + $0xe0] sm:$0xf]
        %v2296 = vld [vmem:[%s3 + $0xe4] sm:$0xf]
        %v2297 = vld [vmem:[%s3 + $0xe8] sm:$0xf]
        %v2298 = vld [vmem:[%s3 + $0xec] sm:$0xf]
        %v2299 = vld [vmem:[%s3 + $0xf0] sm:$0xf]
        %v2300 = vld [vmem:[%s3 + $0xf4] sm:$0xf]
        %v2301 = vld [vmem:[%s3 + $0xf8] sm:$0xf]
        %v2302 = vld [vmem:[%s3 + $0xfc] sm:$0xf]
        %v2311 = vunpack.c.l.b16 %v2295
        %v2312 = vunpack.c.l.b16 %v2296
        %v2313 = vunpack.c.l.b16 %v2297
        %v2314 = vunpack.c.l.b16 %v2298
        %v2315 = vunpack.c.l.b16 %v2299
        %v2316 = vunpack.c.l.b16 %v2300
        %v2317 = vunpack.c.l.b16 %v2301
        %v2318 = vunpack.c.l.b16 %v2302
        %v2319 = vpack.c.b16 %v2312, %v2311
        %v2320 = vpack.c.b16 %v2314, %v2313
        %v2321 = vpack.c.b16 %v2316, %v2315
        %v2322 = vpack.c.b16 %v2318, %v2317
        %v2328 = vsel %vm665, %v2291, 0
        %v2331 = vsel %vm665, %v2292, 0
        %v2334 = vsel %vm665, %v2293, 0
        %v2337 = vsel %vm665, %v2294, 0
        %2339 = vmatprep.subr.bf16.mxu0 0
        %2340 = vmatpush1.bf16.msra.mxu0 %v2319
        %2341 = vmatprep.subr.bf16.mxu0 0
        %2342 = vmatpush1.bf16.msra.mxu0 %v2320
        %2343 = vmatprep.subr.bf16.mxu0 0
        %2344 = vmatpush1.bf16.msra.mxu0 %v2321
        %2345 = vmatprep.subr.bf16.mxu0 0
        %2346 = vmatpush1.bf16.msra.mxu0 %v2322
        %2347 = vmatprep.subr.bf16.mxu0 0
        %2348 = vmatpush1.bf16.msra.mxu0 0
        %2349 = vmatprep.subr.bf16.mxu0 0
        %2350 = vmatpush1.bf16.msra.mxu0 0
        %2351 = vmatprep.subr.bf16.mxu0 0
        %2352 = vmatpush1.bf16.msra.mxu0 0
        %2353 = vmatprep.subr.bf16.mxu0 0
        %2354 = vmatpush1.bf16.msra.mxu0 0
        %2355 = vmatprep.subr.bf16.mxu0 0
        %2356 = vmatpush1.bf16.msra.mxu0 0
        %2357 = vmatprep.subr.bf16.mxu0 0
        %2358 = vmatpush1.bf16.msra.mxu0 0
        %2359 = vmatprep.subr.bf16.mxu0 0
        %2360 = vmatpush1.bf16.msra.mxu0 0
        %2361 = vmatprep.subr.bf16.mxu0 0
        %2362 = vmatpush1.bf16.msra.mxu0 0
        %2363 = vmatprep.subr.bf16.mxu0 0
        %2364 = vmatpush1.bf16.msra.mxu0 0
        %2365 = vmatprep.subr.bf16.mxu0 0
        %2366 = vmatpush1.bf16.msra.mxu0 0
        %2367 = vmatprep.subr.bf16.mxu0 0
        %2368 = vmatpush1.bf16.msra.mxu0 0
        %2369 = vmatprep.subr.bf16.mxu0 0
        %2370 = vmatpush1.bf16.msra.mxu0 0
        %2371 = vmatprep.mubr.bf16.mxu0 0
        %2372 = vmatmul.mubr.bf16.gmra.mrb[0].mxu0 %v2328
        %v2373 = vpop.f32.mrb[0].mxu0
        %v2374 = vadd.f32 0.0, %v2373
        %v2375 = vpop.f32.mrb[0].mxu0
        %v2376 = vpop.f32.mrb[0].mxu0
        %v2377 = vadd.f32 0.0, %v2376
        %v2378 = vpop.f32.mrb[0].mxu0
        %2379 = vmatprep.mubr.bf16.mxu0 0
        %2380 = vmatmul.mubr.bf16.gmra.mrb[0].mxu0 %v2331
        %v2381 = vpop.f32.mrb[0].mxu0
        %v2382 = vadd.f32 0.0, %v2381
        %v2383 = vpop.f32.mrb[0].mxu0
        %v2384 = vpop.f32.mrb[0].mxu0
        %v2385 = vadd.f32 0.0, %v2384
        %v2386 = vpop.f32.mrb[0].mxu0
        %2387 = vmatprep.mubr.bf16.mxu0 0
        %2388 = vmatmul.mubr.bf16.gmra.mrb[0].mxu0 %v2334
        %v2389 = vpop.f32.mrb[0].mxu0
        %v2390 = vadd.f32 0.0, %v2389
        %v2391 = vpop.f32.mrb[0].mxu0
        %v2392 = vpop.f32.mrb[0].mxu0
        %v2393 = vadd.f32 0.0, %v2392
        %v2394 = vpop.f32.mrb[0].mxu0
        %2395 = vmatprep.mubr.bf16.mxu0 0
        %2396 = vmatmul.mubr.bf16.gmra.mrb[0].mxu0 %v2337
        %v2397 = vpop.f32.mrb[0].mxu0
        %v2398 = vadd.f32 0.0, %v2397
        %v2399 = vpop.f32.mrb[0].mxu0
        %v2400 = vpop.f32.mrb[0].mxu0
        %v2401 = vadd.f32 0.0, %v2400
        %v2402 = vpop.f32.mrb[0].mxu0
        %2403 = vdwg.mxu0
        %v2404 = vadd.f32 %v2243, %v2374
        %v2405 = vadd.f32 %v2244, %v2377
        %v2406 = vadd.f32 %v2245, %v2382
        %v2407 = vadd.f32 %v2246, %v2385
        %v2408 = vadd.f32 %v2247, %v2390
        %v2409 = vadd.f32 %v2248, %v2393
        %v2410 = vadd.f32 %v2249, %v2398
        %v2411 = vadd.f32 %v2250, %v2401
        %2412 = vset.pattern.permute.xlu0 8
        %2413 = vperm.xlu0 %2412, %v649
        %v2414 = vpop.permute.xlu0 %2413
        %2416 = vset.pattern.permute.xlu0 8
        %2417 = vperm.xlu0 %2416, %v650
        %v2418 = vpop.permute.xlu0 %2417
        %2420 = vset.pattern.permute.xlu0 8
        %2421 = vperm.xlu0 %2420, %v651
        %v2422 = vpop.permute.xlu0 %2421
        %2424 = vset.pattern.permute.xlu0 8
        %2425 = vperm.xlu0 %2424, %v652
        %v2426 = vpop.permute.xlu0 %2425
        %2428 = vset.pattern.permute.xlu0 8
        %2429 = vperm.xlu0 %2428, %v653
        %v2430 = vpop.permute.xlu0 %2429
        %2432 = vset.pattern.permute.xlu0 8
        %2433 = vperm.xlu0 %2432, %v654
        %v2434 = vpop.permute.xlu0 %2433
        %2436 = vset.pattern.permute.xlu0 8
        %2437 = vperm.xlu0 %2436, %v655
        %v2438 = vpop.permute.xlu0 %2437
        %2440 = vset.pattern.permute.xlu0 8
        %2441 = vperm.xlu0 %2440, %v656
        %v2442 = vpop.permute.xlu0 %2441
        %v2444 = vmul.f32 %v1483, %v2414
        %v2445 = vmul.f32 %v1482, %v2418
        %v2446 = vmul.f32 %v1481, %v2422
        %v2447 = vmul.f32 %v1480, %v2426
        %v2448 = vmul.f32 %v1479, %v2430
        %v2449 = vmul.f32 %v1478, %v2434
        %v2450 = vmul.f32 %v1485, %v2438
        %v2451 = vmul.f32 %v1484, %v2442
        %v2452 = vpack.c.bf16 %v2445, %v2444
        %v2453 = vpack.c.bf16 %v2447, %v2446
        %v2454 = vpack.c.bf16 %v2449, %v2448
        %v2455 = vpack.c.bf16 %v2451, %v2450
        %v2456 = vld [vmem:[%s3 + $0x100] sm:$0xf]
        %v2457 = vld [vmem:[%s3 + $0x104] sm:$0xf]
        %v2458 = vld [vmem:[%s3 + $0x108] sm:$0xf]
        %v2459 = vld [vmem:[%s3 + $0x10c] sm:$0xf]
        %v2460 = vld [vmem:[%s3 + $0x110] sm:$0xf]
        %v2461 = vld [vmem:[%s3 + $0x114] sm:$0xf]
        %v2462 = vld [vmem:[%s3 + $0x118] sm:$0xf]
        %v2463 = vld [vmem:[%s3 + $0x11c] sm:$0xf]
        %v2472 = vunpack.c.l.b16 %v2456
        %v2473 = vunpack.c.l.b16 %v2457
        %v2474 = vunpack.c.l.b16 %v2458
        %v2475 = vunpack.c.l.b16 %v2459
        %v2476 = vunpack.c.l.b16 %v2460
        %v2477 = vunpack.c.l.b16 %v2461
        %v2478 = vunpack.c.l.b16 %v2462
        %v2479 = vunpack.c.l.b16 %v2463
        %v2480 = vpack.c.b16 %v2473, %v2472
        %v2481 = vpack.c.b16 %v2475, %v2474
        %v2482 = vpack.c.b16 %v2477, %v2476
        %v2483 = vpack.c.b16 %v2479, %v2478
        %v2489 = vsel %vm665, %v2452, 0
        %v2492 = vsel %vm665, %v2453, 0
        %v2495 = vsel %vm665, %v2454, 0
        %v2498 = vsel %vm665, %v2455, 0
        %2500 = vmatprep.subr.bf16.mxu0 0
        %2501 = vmatpush1.bf16.msra.mxu0 %v2480
        %2502 = vmatprep.subr.bf16.mxu0 0
        %2503 = vmatpush1.bf16.msra.mxu0 %v2481
        %2504 = vmatprep.subr.bf16.mxu0 0
        %2505 = vmatpush1.bf16.msra.mxu0 %v2482
        %2506 = vmatprep.subr.bf16.mxu0 0
        %2507 = vmatpush1.bf16.msra.mxu0 %v2483
        %2508 = vmatprep.subr.bf16.mxu0 0
        %2509 = vmatpush1.bf16.msra.mxu0 0
        %2510 = vmatprep.subr.bf16.mxu0 0
        %2511 = vmatpush1.bf16.msra.mxu0 0
        %2512 = vmatprep.subr.bf16.mxu0 0
        %2513 = vmatpush1.bf16.msra.mxu0 0
        %2514 = vmatprep.subr.bf16.mxu0 0
        %2515 = vmatpush1.bf16.msra.mxu0 0
        %2516 = vmatprep.subr.bf16.mxu0 0
        %2517 = vmatpush1.bf16.msra.mxu0 0
        %2518 = vmatprep.subr.bf16.mxu0 0
        %2519 = vmatpush1.bf16.msra.mxu0 0
        %2520 = vmatprep.subr.bf16.mxu0 0
        %2521 = vmatpush1.bf16.msra.mxu0 0
        %2522 = vmatprep.subr.bf16.mxu0 0
        %2523 = vmatpush1.bf16.msra.mxu0 0
        %2524 = vmatprep.subr.bf16.mxu0 0
        %2525 = vmatpush1.bf16.msra.mxu0 0
        %2526 = vmatprep.subr.bf16.mxu0 0
        %2527 = vmatpush1.bf16.msra.mxu0 0
        %2528 = vmatprep.subr.bf16.mxu0 0
        %2529 = vmatpush1.bf16.msra.mxu0 0
        %2530 = vmatprep.subr.bf16.mxu0 0
        %2531 = vmatpush1.bf16.msra.mxu0 0
        %2532 = vmatprep.mubr.bf16.mxu0 0
        %2533 = vmatmul.mubr.bf16.gmra.mrb[0].mxu0 %v2489
        %v2534 = vpop.f32.mrb[0].mxu0
        %v2535 = vadd.f32 0.0, %v2534
        %v2536 = vpop.f32.mrb[0].mxu0
        %v2537 = vpop.f32.mrb[0].mxu0
        %v2538 = vadd.f32 0.0, %v2537
        %v2539 = vpop.f32.mrb[0].mxu0
        %2540 = vmatprep.mubr.bf16.mxu0 0
        %2541 = vmatmul.mubr.bf16.gmra.mrb[0].mxu0 %v2492
        %v2542 = vpop.f32.mrb[0].mxu0
        %v2543 = vadd.f32 0.0, %v2542
        %v2544 = vpop.f32.mrb[0].mxu0
        %v2545 = vpop.f32.mrb[0].mxu0
        %v2546 = vadd.f32 0.0, %v2545
        %v2547 = vpop.f32.mrb[0].mxu0
        %2548 = vmatprep.mubr.bf16.mxu0 0
        %2549 = vmatmul.mubr.bf16.gmra.mrb[0].mxu0 %v2495
        %v2550 = vpop.f32.mrb[0].mxu0
        %v2551 = vadd.f32 0.0, %v2550
        %v2552 = vpop.f32.mrb[0].mxu0
        %v2553 = vpop.f32.mrb[0].mxu0
        %v2554 = vadd.f32 0.0, %v2553
        %v2555 = vpop.f32.mrb[0].mxu0
        %2556 = vmatprep.mubr.bf16.mxu0 0
        %2557 = vmatmul.mubr.bf16.gmra.mrb[0].mxu0 %v2498
        %v2558 = vpop.f32.mrb[0].mxu0
        %v2559 = vadd.f32 0.0, %v2558
        %v2560 = vpop.f32.mrb[0].mxu0
        %v2561 = vpop.f32.mrb[0].mxu0
        %v2562 = vadd.f32 0.0, %v2561
        %v2563 = vpop.f32.mrb[0].mxu0
        %2564 = vdwg.mxu0
        %v2565 = vadd.f32 %v2404, %v2535
        %v2566 = vadd.f32 %v2405, %v2538
        %v2567 = vadd.f32 %v2406, %v2543
        %v2568 = vadd.f32 %v2407, %v2546
        %v2569 = vadd.f32 %v2408, %v2551
        %v2570 = vadd.f32 %v2409, %v2554
        %v2571 = vadd.f32 %v2410, %v2559
        %v2572 = vadd.f32 %v2411, %v2562
        %v2573 = vld [vmem:[#allocation5] sm:$0x1]
        %v2575 = vlaneseq
        %v2576 = vshrl.u32 %v2575, 7
        %v2577 = vsub.s32 0, %v2576
        %v2578 = vrot.slane %v2573, %v2577
        %v2580 = vadd.f32 %v2565, %v2578
        %v2581 = vadd.f32 %v2566, %v2578
        %v2582 = vadd.f32 %v2567, %v2578
        %v2583 = vadd.f32 %v2568, %v2578
        %v2584 = vadd.f32 %v2569, %v2578
        %v2585 = vadd.f32 %v2570, %v2578
        %v2586 = vadd.f32 %v2571, %v2578
        %v2587 = vadd.f32 %v2572, %v2578
        %v2588 = vadd.f32 %v2580, %v2581
        %v2589 = vadd.f32 %v2588, %v2582
        %v2590 = vadd.f32 %v2589, %v2583
        %v2591 = vadd.f32 %v2590, %v2584
        %v2592 = vadd.f32 %v2591, %v2585
        %v2593 = vadd.f32 %v2592, %v2586
        %v2594 = vadd.f32 %v2593, %v2587
        %v2595 = vrot.slane %v2594, 4
        %v2596 = vadd.f32 %v2594, %v2595
        %v2597 = vrot.slane %v2596, 2
        %v2598 = vadd.f32 %v2596, %v2597
        %v2599 = vrot.slane %v2598, 1
        %v2600 = vadd.f32 %v2598, %v2599
        %v2601 = vmul.f32 %v2580, %v2580
        %v2602 = vmul.f32 %v2581, %v2581
        %v2603 = vmul.f32 %v2582, %v2582
        %v2604 = vmul.f32 %v2583, %v2583
        %v2605 = vmul.f32 %v2584, %v2584
        %v2606 = vmul.f32 %v2585, %v2585
        %v2607 = vmul.f32 %v2586, %v2586
        %v2608 = vmul.f32 %v2587, %v2587
        %v2609 = vadd.f32 %v2601, %v2602
        %v2610 = vadd.f32 %v2609, %v2603
        %v2611 = vadd.f32 %v2610, %v2604
        %v2612 = vadd.f32 %v2611, %v2605
        %v2613 = vadd.f32 %v2612, %v2606
        %v2614 = vadd.f32 %v2613, %v2607
        %v2615 = vadd.f32 %v2614, %v2608
        %v2616 = vrot.slane %v2615, 4
        %v2617 = vadd.f32 %v2615, %v2616
        %v2618 = vrot.slane %v2617, 2
        %v2619 = vadd.f32 %v2617, %v2618
        %v2620 = vrot.slane %v2619, 1
        %v2621 = vadd.f32 %v2619, %v2620
        %v2622 = vld [vmem:[%s11] sm:$0xff]
        %v2623 = vld [vmem:[%s11 + $0x8] sm:$0xff]
        %v2624 = vld [vmem:[%s11 + $0x10] sm:$0xff]
        %v2625 = vld [vmem:[%s11 + $0x18] sm:$0xff]
        %v2626 = vld [vmem:[%s11 + $0x20] sm:$0xff]
        %v2627 = vld [vmem:[%s11 + $0x28] sm:$0xff]
        %v2628 = vld [vmem:[%s11 + $0x30] sm:$0xff]
        %v2629 = vld [vmem:[%s11 + $0x38] sm:$0xff]
        %v2630 = vld [vmem:[%s11 + $0x40] sm:$0xff]
        %v2631 = vld [vmem:[%s11 + $0x48] sm:$0xff]
        %v2632 = vld [vmem:[%s11 + $0x50] sm:$0xff]
        %v2633 = vld [vmem:[%s11 + $0x58] sm:$0xff]
        %v2634 = vld [vmem:[%s11 + $0x60] sm:$0xff]
        %v2635 = vld [vmem:[%s11 + $0x68] sm:$0xff]
        %v2636 = vld [vmem:[%s11 + $0x70] sm:$0xff]
        %v2637 = vld [vmem:[%s11 + $0x78] sm:$0xff]
        %2638 = vmatprep.subr.mxu0 0.0
        %2639 = vmatpush1.msra.mxu0 %v2622
        %2640 = vmatprep.subr.mxu0 0.0
        %2641 = vmatpush1.msra.mxu0 %v2623
        %2642 = vmatprep.subr.mxu0 0.0
        %2643 = vmatpush1.msra.mxu0 %v2624
        %2644 = vmatprep.subr.mxu0 0.0
        %2645 = vmatpush1.msra.mxu0 %v2625
        %2646 = vmatprep.subr.mxu0 0.0
        %2647 = vmatpush1.msra.mxu0 %v2626
        %2648 = vmatprep.subr.mxu0 0.0
        %2649 = vmatpush1.msra.mxu0 %v2627
        %2650 = vmatprep.subr.mxu0 0.0
        %2651 = vmatpush1.msra.mxu0 %v2628
        %2652 = vmatprep.subr.mxu0 0.0
        %2653 = vmatpush1.msra.mxu0 %v2629
        %2654 = vmatprep.subr.mxu0 0.0
        %2655 = vmatpush1.msra.mxu0 %v2630
        %2656 = vmatprep.subr.mxu0 0.0
        %2657 = vmatpush1.msra.mxu0 %v2631
        %2658 = vmatprep.subr.mxu0 0.0
        %2659 = vmatpush1.msra.mxu0 %v2632
        %2660 = vmatprep.subr.mxu0 0.0
        %2661 = vmatpush1.msra.mxu0 %v2633
        %2662 = vmatprep.subr.mxu0 0.0
        %2663 = vmatpush1.msra.mxu0 %v2634
        %2664 = vmatprep.subr.mxu0 0.0
        %2665 = vmatpush1.msra.mxu0 %v2635
        %2666 = vmatprep.subr.mxu0 0.0
        %2667 = vmatpush1.msra.mxu0 %v2636
        %2668 = vmatprep.subr.mxu0 0.0
        %2669 = vmatpush1.msra.mxu0 %v2637
        %2670 = vmatprep.subr.mxu0 0.0
        %2671 = vmatpush1.msra.mxu0 0.0
        %2672 = vmatprep.subr.mxu0 0.0
        %2673 = vmatpush1.msra.mxu0 0.0
        %2674 = vmatprep.subr.mxu0 0.0
        %2675 = vmatpush1.msra.mxu0 0.0
        %2676 = vmatprep.subr.mxu0 0.0
        %2677 = vmatpush1.msra.mxu0 0.0
        %2678 = vmatprep.subr.mxu0 0.0
        %2679 = vmatpush1.msra.mxu0 0.0
        %2680 = vmatprep.subr.mxu0 0.0
        %2681 = vmatpush1.msra.mxu0 0.0
        %2682 = vmatprep.subr.mxu0 0.0
        %2683 = vmatpush1.msra.mxu0 0.0
        %2684 = vmatprep.subr.mxu0 0.0
        %2685 = vmatpush1.msra.mxu0 0.0
        %2686 = vmatprep.subr.mxu0 0.0
        %2687 = vmatpush1.msra.mxu0 0.0
        %2688 = vmatprep.subr.mxu0 0.0
        %2689 = vmatpush1.msra.mxu0 0.0
        %2690 = vmatprep.subr.mxu0 0.0
        %2691 = vmatpush1.msra.mxu0 0.0
        %2692 = vmatprep.subr.mxu0 0.0
        %2693 = vmatpush1.msra.mxu0 0.0
        %2694 = vmatprep.subr.mxu0 0.0
        %2695 = vmatpush1.msra.mxu0 0.0
        %2696 = vmatprep.subr.mxu0 0.0
        %2697 = vmatpush1.msra.mxu0 0.0
        %2698 = vmatprep.subr.mxu0 0.0
        %2699 = vmatpush1.msra.mxu0 0.0
        %2700 = vmatprep.subr.mxu0 0.0
        %2701 = vmatpush1.msra.mxu0 0.0
        %2702 = vmatprep.mubr.f32.mxu0 0.0
        %2703 = vmatmul.mubr.f32.gmra.mrb[0].mxu0 %v2600
        %v2704 = vpop.f32.mrb[0].mxu0
        %v2705 = vadd.f32 0.0, %v2704
        %v2706 = vpop.f32.mrb[0].mxu0
        %2707 = vdwg.mxu0
        %2708 = vmatprep.subr.mxu0 0.0
        %2709 = vmatpush1.msra.mxu0 %v2622
        %2710 = vmatprep.subr.mxu0 0.0
        %2711 = vmatpush1.msra.mxu0 %v2623
        %2712 = vmatprep.subr.mxu0 0.0
        %2713 = vmatpush1.msra.mxu0 %v2624
        %2714 = vmatprep.subr.mxu0 0.0
        %2715 = vmatpush1.msra.mxu0 %v2625
        %2716 = vmatprep.subr.mxu0 0.0
        %2717 = vmatpush1.msra.mxu0 %v2626
        %2718 = vmatprep.subr.mxu0 0.0
        %2719 = vmatpush1.msra.mxu0 %v2627
        %2720 = vmatprep.subr.mxu0 0.0
        %2721 = vmatpush1.msra.mxu0 %v2628
        %2722 = vmatprep.subr.mxu0 0.0
        %2723 = vmatpush1.msra.mxu0 %v2629
        %2724 = vmatprep.subr.mxu0 0.0
        %2725 = vmatpush1.msra.mxu0 %v2630
        %2726 = vmatprep.subr.mxu0 0.0
        %2727 = vmatpush1.msra.mxu0 %v2631
        %2728 = vmatprep.subr.mxu0 0.0
        %2729 = vmatpush1.msra.mxu0 %v2632
        %2730 = vmatprep.subr.mxu0 0.0
        %2731 = vmatpush1.msra.mxu0 %v2633
        %2732 = vmatprep.subr.mxu0 0.0
        %2733 = vmatpush1.msra.mxu0 %v2634
        %2734 = vmatprep.subr.mxu0 0.0
        %2735 = vmatpush1.msra.mxu0 %v2635
        %2736 = vmatprep.subr.mxu0 0.0
        %2737 = vmatpush1.msra.mxu0 %v2636
        %2738 = vmatprep.subr.mxu0 0.0
        %2739 = vmatpush1.msra.mxu0 %v2637
        %2740 = vmatprep.subr.mxu0 0.0
        %2741 = vmatpush1.msra.mxu0 0.0
        %2742 = vmatprep.subr.mxu0 0.0
        %2743 = vmatpush1.msra.mxu0 0.0
        %2744 = vmatprep.subr.mxu0 0.0
        %2745 = vmatpush1.msra.mxu0 0.0
        %2746 = vmatprep.subr.mxu0 0.0
        %2747 = vmatpush1.msra.mxu0 0.0
        %2748 = vmatprep.subr.mxu0 0.0
        %2749 = vmatpush1.msra.mxu0 0.0
        %2750 = vmatprep.subr.mxu0 0.0
        %2751 = vmatpush1.msra.mxu0 0.0
        %2752 = vmatprep.subr.mxu0 0.0
        %2753 = vmatpush1.msra.mxu0 0.0
        %2754 = vmatprep.subr.mxu0 0.0
        %2755 = vmatpush1.msra.mxu0 0.0
        %2756 = vmatprep.subr.mxu0 0.0
        %2757 = vmatpush1.msra.mxu0 0.0
        %2758 = vmatprep.subr.mxu0 0.0
        %2759 = vmatpush1.msra.mxu0 0.0
        %2760 = vmatprep.subr.mxu0 0.0
        %2761 = vmatpush1.msra.mxu0 0.0
        %2762 = vmatprep.subr.mxu0 0.0
        %2763 = vmatpush1.msra.mxu0 0.0
        %2764 = vmatprep.subr.mxu0 0.0
        %2765 = vmatpush1.msra.mxu0 0.0
        %2766 = vmatprep.subr.mxu0 0.0
        %2767 = vmatpush1.msra.mxu0 0.0
        %2768 = vmatprep.subr.mxu0 0.0
        %2769 = vmatpush1.msra.mxu0 0.0
        %2770 = vmatprep.subr.mxu0 0.0
        %2771 = vmatpush1.msra.mxu0 0.0
        %2772 = vmatprep.mubr.f32.mxu0 0.0
        %2773 = vmatmul.mubr.f32.gmra.mrb[0].mxu0 %v2621
        %v2774 = vpop.f32.mrb[0].mxu0
        %v2775 = vadd.f32 0.0, %v2774
        %v2776 = vpop.f32.mrb[0].mxu0
        %2777 = vdwg.mxu0
        %v2778 = vmul.f32 %v2705, %v2705
        %v2779 = vsub.f32 %v2775, %v2778
        %v2780 = vmax.f32 %v2779, 0.0
        %v2781 = vadd.f32 %v2780, 1e-05
        %v2782 = vrsqrt.pop %v2781
        %v2783 = vld [vmem:[#allocation14] sm:$0xff]
        %v2784 = vld [vmem:[#allocation14 + $0x8] sm:$0xff]
        %v2785 = vld [vmem:[#allocation14 + $0x10] sm:$0xff]
        %v2786 = vld [vmem:[#allocation14 + $0x18] sm:$0xff]
        %v2788 = vsel %vm879, %v2705, 0
        %2790 = vmatprep.subr.mxu0 0.0
        %2791 = vmatpush1.msra.mxu0 %v2783
        %2792 = vmatprep.subr.mxu0 0.0
        %2793 = vmatpush1.msra.mxu0 %v2784
        %2794 = vmatprep.subr.mxu0 0.0
        %2795 = vmatpush1.msra.mxu0 %v2785
        %2796 = vmatprep.subr.mxu0 0.0
        %2797 = vmatpush1.msra.mxu0 %v2786
        %2798 = vmatprep.subr.mxu0 0.0
        %2799 = vmatpush1.msra.mxu0 0.0
        %2800 = vmatprep.subr.mxu0 0.0
        %2801 = vmatpush1.msra.mxu0 0.0
        %2802 = vmatprep.subr.mxu0 0.0
        %2803 = vmatpush1.msra.mxu0 0.0
        %2804 = vmatprep.subr.mxu0 0.0
        %2805 = vmatpush1.msra.mxu0 0.0
        %2806 = vmatprep.subr.mxu0 0.0
        %2807 = vmatpush1.msra.mxu0 0.0
        %2808 = vmatprep.subr.mxu0 0.0
        %2809 = vmatpush1.msra.mxu0 0.0
        %2810 = vmatprep.subr.mxu0 0.0
        %2811 = vmatpush1.msra.mxu0 0.0
        %2812 = vmatprep.subr.mxu0 0.0
        %2813 = vmatpush1.msra.mxu0 0.0
        %2814 = vmatprep.subr.mxu0 0.0
        %2815 = vmatpush1.msra.mxu0 0.0
        %2816 = vmatprep.subr.mxu0 0.0
        %2817 = vmatpush1.msra.mxu0 0.0
        %2818 = vmatprep.subr.mxu0 0.0
        %2819 = vmatpush1.msra.mxu0 0.0
        %2820 = vmatprep.subr.mxu0 0.0
        %2821 = vmatpush1.msra.mxu0 0.0
        %2822 = vmatprep.subr.mxu0 0.0
        %2823 = vmatpush1.msra.mxu0 0.0
        %2824 = vmatprep.subr.mxu0 0.0
        %2825 = vmatpush1.msra.mxu0 0.0
        %2826 = vmatprep.subr.mxu0 0.0
        %2827 = vmatpush1.msra.mxu0 0.0
        %2828 = vmatprep.subr.mxu0 0.0
        %2829 = vmatpush1.msra.mxu0 0.0
        %2830 = vmatprep.subr.mxu0 0.0
        %2831 = vmatpush1.msra.mxu0 0.0
        %2832 = vmatprep.subr.mxu0 0.0
        %2833 = vmatpush1.msra.mxu0 0.0
        %2834 = vmatprep.subr.mxu0 0.0
        %2835 = vmatpush1.msra.mxu0 0.0
        %2836 = vmatprep.subr.mxu0 0.0
        %2837 = vmatpush1.msra.mxu0 0.0
        %2838 = vmatprep.subr.mxu0 0.0
        %2839 = vmatpush1.msra.mxu0 0.0
        %2840 = vmatprep.subr.mxu0 0.0
        %2841 = vmatpush1.msra.mxu0 0.0
        %2842 = vmatprep.subr.mxu0 0.0
        %2843 = vmatpush1.msra.mxu0 0.0
        %2844 = vmatprep.subr.mxu0 0.0
        %2845 = vmatpush1.msra.mxu0 0.0
        %2846 = vmatprep.subr.mxu0 0.0
        %2847 = vmatpush1.msra.mxu0 0.0
        %2848 = vmatprep.subr.mxu0 0.0
        %2849 = vmatpush1.msra.mxu0 0.0
        %2850 = vmatprep.subr.mxu0 0.0
        %2851 = vmatpush1.msra.mxu0 0.0
        %2852 = vmatprep.subr.mxu0 0.0
        %2853 = vmatpush1.msra.mxu0 0.0
        %2854 = vmatprep.mubr.f32.mxu0 0.0
        %2855 = vmatmul.mubr.f32.gmra.mrb[0].mxu0 %v2788
        %v2856 = vpop.f32.mrb[0].mxu0
        %v2857 = vadd.f32 0.0, %v2856
        %v2858 = vpop.f32.mrb[0].mxu0
        %2859 = vdwg.mxu0
        %v2861 = vsel %vm879, %v2782, 0
        %2863 = vmatprep.subr.mxu0 0.0
        %2864 = vmatpush1.msra.mxu0 %v2783
        %2865 = vmatprep.subr.mxu0 0.0
        %2866 = vmatpush1.msra.mxu0 %v2784
        %2867 = vmatprep.subr.mxu0 0.0
        %2868 = vmatpush1.msra.mxu0 %v2785
        %2869 = vmatprep.subr.mxu0 0.0
        %2870 = vmatpush1.msra.mxu0 %v2786
        %2871 = vmatprep.subr.mxu0 0.0
        %2872 = vmatpush1.msra.mxu0 0.0
        %2873 = vmatprep.subr.mxu0 0.0
        %2874 = vmatpush1.msra.mxu0 0.0
        %2875 = vmatprep.subr.mxu0 0.0
        %2876 = vmatpush1.msra.mxu0 0.0
        %2877 = vmatprep.subr.mxu0 0.0
        %2878 = vmatpush1.msra.mxu0 0.0
        %2879 = vmatprep.subr.mxu0 0.0
        %2880 = vmatpush1.msra.mxu0 0.0
        %2881 = vmatprep.subr.mxu0 0.0
        %2882 = vmatpush1.msra.mxu0 0.0
        %2883 = vmatprep.subr.mxu0 0.0
        %2884 = vmatpush1.msra.mxu0 0.0
        %2885 = vmatprep.subr.mxu0 0.0
        %2886 = vmatpush1.msra.mxu0 0.0
        %2887 = vmatprep.subr.mxu0 0.0
        %2888 = vmatpush1.msra.mxu0 0.0
        %2889 = vmatprep.subr.mxu0 0.0
        %2890 = vmatpush1.msra.mxu0 0.0
        %2891 = vmatprep.subr.mxu0 0.0
        %2892 = vmatpush1.msra.mxu0 0.0
        %2893 = vmatprep.subr.mxu0 0.0
        %2894 = vmatpush1.msra.mxu0 0.0
        %2895 = vmatprep.subr.mxu0 0.0
        %2896 = vmatpush1.msra.mxu0 0.0
        %2897 = vmatprep.subr.mxu0 0.0
        %2898 = vmatpush1.msra.mxu0 0.0
        %2899 = vmatprep.subr.mxu0 0.0
        %2900 = vmatpush1.msra.mxu0 0.0
        %2901 = vmatprep.subr.mxu0 0.0
        %2902 = vmatpush1.msra.mxu0 0.0
        %2903 = vmatprep.subr.mxu0 0.0
        %2904 = vmatpush1.msra.mxu0 0.0
        %2905 = vmatprep.subr.mxu0 0.0
        %2906 = vmatpush1.msra.mxu0 0.0
        %2907 = vmatprep.subr.mxu0 0.0
        %2908 = vmatpush1.msra.mxu0 0.0
        %2909 = vmatprep.subr.mxu0 0.0
        %2910 = vmatpush1.msra.mxu0 0.0
        %2911 = vmatprep.subr.mxu0 0.0
        %2912 = vmatpush1.msra.mxu0 0.0
        %2913 = vmatprep.subr.mxu0 0.0
        %2914 = vmatpush1.msra.mxu0 0.0
        %2915 = vmatprep.subr.mxu0 0.0
        %2916 = vmatpush1.msra.mxu0 0.0
        %2917 = vmatprep.subr.mxu0 0.0
        %2918 = vmatpush1.msra.mxu0 0.0
        %2919 = vmatprep.subr.mxu0 0.0
        %2920 = vmatpush1.msra.mxu0 0.0
        %2921 = vmatprep.subr.mxu0 0.0
        %2922 = vmatpush1.msra.mxu0 0.0
        %2923 = vmatprep.subr.mxu0 0.0
        %2924 = vmatpush1.msra.mxu0 0.0
        %2925 = vmatprep.subr.mxu0 0.0
        %2926 = vmatpush1.msra.mxu0 0.0
        %2927 = vmatprep.mubr.f32.mxu0 0.0
        %2928 = vmatmul.mubr.f32.gmra.mrb[0].mxu0 %v2861
        %v2929 = vpop.f32.mrb[0].mxu0
        %v2930 = vadd.f32 0.0, %v2929
        %v2931 = vpop.f32.mrb[0].mxu0
        %2932 = vdwg.mxu0
        %v2933 = vld [vmem:[#allocation7] sm:$0x1]
        %v2934 = vld [vmem:[#allocation8] sm:$0x1]
        %v2935 = vlaneseq
        %v2936 = vshrl.u32 %v2935, 7
        %v2937 = vsub.s32 0, %v2936
        %v2938 = vrot.slane %v2857, %v2937
        %v2939 = vsub.f32 %v2580, %v2938
        %v2940 = vsub.f32 %v2581, %v2938
        %v2941 = vsub.f32 %v2582, %v2938
        %v2942 = vsub.f32 %v2583, %v2938
        %v2943 = vsub.f32 %v2584, %v2938
        %v2944 = vsub.f32 %v2585, %v2938
        %v2945 = vsub.f32 %v2586, %v2938
        %v2946 = vsub.f32 %v2587, %v2938
        %v2947 = vlaneseq
        %v2948 = vshrl.u32 %v2947, 7
        %v2949 = vsub.s32 0, %v2948
        %v2950 = vrot.slane %v2930, %v2949
        %v2951 = vmul.f32 %v2939, %v2950
        %v2952 = vmul.f32 %v2940, %v2950
        %v2953 = vmul.f32 %v2941, %v2950
        %v2954 = vmul.f32 %v2942, %v2950
        %v2955 = vmul.f32 %v2943, %v2950
        %v2956 = vmul.f32 %v2944, %v2950
        %v2957 = vmul.f32 %v2945, %v2950
        %v2958 = vmul.f32 %v2946, %v2950
        %v2960 = vlaneseq
        %v2961 = vshrl.u32 %v2960, 7
        %v2962 = vsub.s32 0, %v2961
        %v2963 = vrot.slane %v2933, %v2962
        %v2965 = vmul.f32 %v2951, %v2963
        %v2966 = vmul.f32 %v2952, %v2963
        %v2967 = vmul.f32 %v2953, %v2963
        %v2968 = vmul.f32 %v2954, %v2963
        %v2969 = vmul.f32 %v2955, %v2963
        %v2970 = vmul.f32 %v2956, %v2963
        %v2971 = vmul.f32 %v2957, %v2963
        %v2972 = vmul.f32 %v2958, %v2963
        %v2974 = vlaneseq
        %v2975 = vshrl.u32 %v2974, 7
        %v2976 = vsub.s32 0, %v2975
        %v2977 = vrot.slane %v2934, %v2976
        %v2979 = vadd.f32 %v2965, %v2977
        %v2980 = vadd.f32 %v2966, %v2977
        %v2981 = vadd.f32 %v2967, %v2977
        %v2982 = vadd.f32 %v2968, %v2977
        %v2983 = vadd.f32 %v2969, %v2977
        %v2984 = vadd.f32 %v2970, %v2977
        %v2985 = vadd.f32 %v2971, %v2977
        %v2986 = vadd.f32 %v2972, %v2977
        %v2987 = vxor.u32 %v2979, 2147483648
        %v2988 = vxor.u32 %v2980, 2147483648
        %v2989 = vxor.u32 %v2981, 2147483648
        %v2990 = vxor.u32 %v2982, 2147483648
        %v2991 = vxor.u32 %v2983, 2147483648
        %v2992 = vxor.u32 %v2984, 2147483648
        %v2993 = vxor.u32 %v2985, 2147483648
        %v2994 = vxor.u32 %v2986, 2147483648
        %v2995 = vmul.f32 %v2987, 1.442695
        %v2996 = vpow.pop %v2995
        %v2997 = vmul.f32 %v2988, 1.442695
        %v2998 = vpow.pop %v2997
        %v2999 = vmul.f32 %v2989, 1.442695
        %v3000 = vpow.pop %v2999
        %v3001 = vmul.f32 %v2990, 1.442695
        %v3002 = vpow.pop %v3001
        %v3003 = vmul.f32 %v2991, 1.442695
        %v3004 = vpow.pop %v3003
        %v3005 = vmul.f32 %v2992, 1.442695
        %v3006 = vpow.pop %v3005
        %v3007 = vmul.f32 %v2993, 1.442695
        %v3008 = vpow.pop %v3007
        %v3009 = vmul.f32 %v2994, 1.442695
        %v3010 = vpow.pop %v3009
        %v3011 = vadd.f32 %v2996, 1.0
        %v3012 = vadd.f32 %v2998, 1.0
        %v3013 = vadd.f32 %v3000, 1.0
        %v3014 = vadd.f32 %v3002, 1.0
        %v3015 = vadd.f32 %v3004, 1.0
        %v3016 = vadd.f32 %v3006, 1.0
        %v3017 = vadd.f32 %v3008, 1.0
        %v3018 = vadd.f32 %v3010, 1.0
        %v3019 = vrcp.pop %v3011
        %v3020 = vmul.f32 1.0, %v3019
        %v3021 = vrcp.pop %v3012
        %v3022 = vmul.f32 1.0, %v3021
        %v3023 = vrcp.pop %v3013
        %v3024 = vmul.f32 1.0, %v3023
        %v3025 = vrcp.pop %v3014
        %v3026 = vmul.f32 1.0, %v3025
        %v3027 = vrcp.pop %v3015
        %v3028 = vmul.f32 1.0, %v3027
        %v3029 = vrcp.pop %v3016
        %v3030 = vmul.f32 1.0, %v3029
        %v3031 = vrcp.pop %v3017
        %v3032 = vmul.f32 1.0, %v3031
        %v3033 = vrcp.pop %v3018
        %v3034 = vmul.f32 1.0, %v3033
        %v3035 = vmul.f32 %v2979, %v3020
        %v3036 = vmul.f32 %v2980, %v3022
        %v3037 = vmul.f32 %v2981, %v3024
        %v3038 = vmul.f32 %v2982, %v3026
        %v3039 = vmul.f32 %v2983, %v3028
        %v3040 = vmul.f32 %v2984, %v3030
        %v3041 = vmul.f32 %v2985, %v3032
        %v3042 = vmul.f32 %v2986, %v3034
        %v3043 = vrot.slane %v3035, 7
        %v3044 = vrot.slane %v3036, 7
        %v3045 = vrot.slane %v3037, 7
        %v3046 = vrot.slane %v3038, 7
        %v3047 = vrot.slane %v3039, 7
        %v3048 = vrot.slane %v3040, 7
        %v3049 = vrot.slane %v3041, 7
        %v3050 = vrot.slane %v3042, 7
        %v3051 = vsel %vm1146, %v3049, %v3050
        %v3052 = vsel %vm1146, %v3048, %v3049
        %v3053 = vsel %vm1146, %v3047, %v3048
        %v3054 = vsel %vm1146, %v3046, %v3047
        %v3055 = vsel %vm1146, %v3045, %v3046
        %v3056 = vsel %vm1146, %v3044, %v3045
        %v3057 = vsel %vm1146, %v3043, %v3044
        %v3058 = vsel %vm1146, %v3050, %v3043
        %v3059 = vmul.f32 %v3051, %v1158
        %v3060 = vmul.f32 %v3058, %v1163
        %v3061 = vmul.f32 %v3057, %v1168
        %v3062 = vmul.f32 %v3056, %v1173
        %v3063 = vmul.f32 %v3055, %v1178
        %v3064 = vmul.f32 %v3054, %v1183
        %v3065 = vmul.f32 %v3053, %v1188
        %v3066 = vmul.f32 %v3052, %v1193
        %v3067 = vpack.c.bf16 %v3060, %v3059
        %v3068 = vpack.c.bf16 %v3062, %v3061
        %v3069 = vpack.c.bf16 %v3064, %v3063
        %v3070 = vpack.c.bf16 %v3066, %v3065
        %v3071 = vld [vmem:[#allocation10] sm:$0xf]
        %v3072 = vld [vmem:[#allocation10 + $0x4] sm:$0xf]
        %v3073 = vld [vmem:[#allocation10 + $0x8] sm:$0xf]
        %v3074 = vld [vmem:[#allocation10 + $0xc] sm:$0xf]
        %v3075 = vld [vmem:[#allocation10 + $0x10] sm:$0xf]
        %v3076 = vld [vmem:[#allocation10 + $0x14] sm:$0xf]
        %v3077 = vld [vmem:[#allocation10 + $0x18] sm:$0xf]
        %v3078 = vld [vmem:[#allocation10 + $0x1c] sm:$0xf]
        %v3079 = vld [vmem:[#allocation10 + $0x20] sm:$0xf]
        %v3080 = vld [vmem:[#allocation10 + $0x24] sm:$0xf]
        %v3081 = vld [vmem:[#allocation10 + $0x28] sm:$0xf]
        %v3082 = vld [vmem:[#allocation10 + $0x2c] sm:$0xf]
        %v3083 = vld [vmem:[#allocation10 + $0x30] sm:$0xf]
        %v3084 = vld [vmem:[#allocation10 + $0x34] sm:$0xf]
        %v3085 = vld [vmem:[#allocation10 + $0x38] sm:$0xf]
        %v3086 = vld [vmem:[#allocation10 + $0x3c] sm:$0xf]
        %v3087 = vmul.f32 %v3042, %v1217
        %v3088 = vmul.f32 %v3035, %v1221
        %v3089 = vmul.f32 %v3036, %v1225
        %v3090 = vmul.f32 %v3037, %v1229
        %v3091 = vmul.f32 %v3038, %v1233
        %v3092 = vmul.f32 %v3039, %v1237
        %v3093 = vmul.f32 %v3040, %v1241
        %v3094 = vmul.f32 %v3041, %v1245
        %v3095 = vpack.c.bf16 %v3088, %v3087
        %v3096 = vpack.c.bf16 %v3090, %v3089
        %v3097 = vpack.c.bf16 %v3092, %v3091
        %v3098 = vpack.c.bf16 %v3094, %v3093
        %v3099 = vld [vmem:[#allocation10 + $0x40] sm:$0xf]
        %v3100 = vld [vmem:[#allocation10 + $0x44] sm:$0xf]
        %v3101 = vld [vmem:[#allocation10 + $0x48] sm:$0xf]
        %v3102 = vld [vmem:[#allocation10 + $0x4c] sm:$0xf]
        %v3103 = vld [vmem:[#allocation10 + $0x50] sm:$0xf]
        %v3104 = vld [vmem:[#allocation10 + $0x54] sm:$0xf]
        %v3105 = vld [vmem:[#allocation10 + $0x58] sm:$0xf]
        %v3106 = vld [vmem:[#allocation10 + $0x5c] sm:$0xf]
        %v3107 = vld [vmem:[#allocation10 + $0x60] sm:$0xf]
        %v3108 = vld [vmem:[#allocation10 + $0x64] sm:$0xf]
        %v3109 = vld [vmem:[#allocation10 + $0x68] sm:$0xf]
        %v3110 = vld [vmem:[#allocation10 + $0x6c] sm:$0xf]
        %v3111 = vld [vmem:[#allocation10 + $0x70] sm:$0xf]
        %v3112 = vld [vmem:[#allocation10 + $0x74] sm:$0xf]
        %v3113 = vld [vmem:[#allocation10 + $0x78] sm:$0xf]
        %v3114 = vld [vmem:[#allocation10 + $0x7c] sm:$0xf]
        %v3131 = vunpack.c.l.b16 %v3099
        %v3132 = vunpack.c.l.b16 %v3100
        %v3133 = vunpack.c.l.b16 %v3101
        %v3134 = vunpack.c.l.b16 %v3102
        %v3135 = vunpack.c.l.b16 %v3103
        %v3136 = vunpack.c.l.b16 %v3104
        %v3137 = vunpack.c.l.b16 %v3105
        %v3138 = vunpack.c.l.b16 %v3106
        %v3139 = vunpack.c.l.b16 %v3107
        %v3140 = vunpack.c.l.b16 %v3108
        %v3141 = vunpack.c.l.b16 %v3109
        %v3142 = vunpack.c.l.b16 %v3110
        %v3143 = vunpack.c.l.b16 %v3111
        %v3144 = vunpack.c.l.b16 %v3112
        %v3145 = vunpack.c.l.b16 %v3113
        %v3146 = vunpack.c.l.b16 %v3114
        %v3147 = vpack.c.b16 %v3132, %v3131
        %v3148 = vpack.c.b16 %v3134, %v3133
        %v3149 = vpack.c.b16 %v3136, %v3135
        %v3150 = vpack.c.b16 %v3138, %v3137
        %v3151 = vpack.c.b16 %v3140, %v3139
        %v3152 = vpack.c.b16 %v3142, %v3141
        %v3153 = vpack.c.b16 %v3144, %v3143
        %v3154 = vpack.c.b16 %v3146, %v3145
        %3163 = vmatprep.subr.bf16.mxu0 0
        %3164 = vmatpush1.bf16.msra.mxu0 %v3147
        %3165 = vmatprep.subr.bf16.mxu0 0
        %3166 = vmatpush1.bf16.msra.mxu0 %v3148
        %3167 = vmatprep.subr.bf16.mxu0 0
        %3168 = vmatpush1.bf16.msra.mxu0 %v3149
        %3169 = vmatprep.subr.bf16.mxu0 0
        %3170 = vmatpush1.bf16.msra.mxu0 %v3150
        %3171 = vmatprep.subr.bf16.mxu0 0
        %3172 = vmatpush1.bf16.msra.mxu0 %v3151
        %3173 = vmatprep.subr.bf16.mxu0 0
        %3174 = vmatpush1.bf16.msra.mxu0 %v3152
        %3175 = vmatprep.subr.bf16.mxu0 0
        %3176 = vmatpush1.bf16.msra.mxu0 %v3153
        %3177 = vmatprep.subr.bf16.mxu0 0
        %3178 = vmatpush1.bf16.msra.mxu0 %v3154
        %3179 = vmatprep.subr.bf16.mxu0 0
        %3180 = vmatpush1.bf16.msra.mxu0 0
        %3181 = vmatprep.subr.bf16.mxu0 0
        %3182 = vmatpush1.bf16.msra.mxu0 0
        %3183 = vmatprep.subr.bf16.mxu0 0
        %3184 = vmatpush1.bf16.msra.mxu0 0
        %3185 = vmatprep.subr.bf16.mxu0 0
        %3186 = vmatpush1.bf16.msra.mxu0 0
        %3187 = vmatprep.subr.bf16.mxu0 0
        %3188 = vmatpush1.bf16.msra.mxu0 0
        %3189 = vmatprep.subr.bf16.mxu0 0
        %3190 = vmatpush1.bf16.msra.mxu0 0
        %3191 = vmatprep.subr.bf16.mxu0 0
        %3192 = vmatpush1.bf16.msra.mxu0 0
        %3193 = vmatprep.subr.bf16.mxu0 0
        %3194 = vmatpush1.bf16.msra.mxu0 0
        %3195 = vmatprep.mubr.bf16.mxu0 0
        %3196 = vmatmul.mubr.bf16.gmra.mrb[0].mxu0 %v3095
        %v3197 = vpop.f32.mrb[0].mxu0
        %v3198 = vadd.f32 0.0, %v3197
        %v3199 = vpop.f32.mrb[0].mxu0
        %v3200 = vpop.f32.mrb[0].mxu0
        %v3201 = vadd.f32 0.0, %v3200
        %v3202 = vpop.f32.mrb[0].mxu0
        %3203 = vmatprep.mubr.bf16.mxu0 0
        %3204 = vmatmul.mubr.bf16.gmra.mrb[0].mxu0 %v3096
        %v3205 = vpop.f32.mrb[0].mxu0
        %v3206 = vadd.f32 0.0, %v3205
        %v3207 = vpop.f32.mrb[0].mxu0
        %v3208 = vpop.f32.mrb[0].mxu0
        %v3209 = vadd.f32 0.0, %v3208
        %v3210 = vpop.f32.mrb[0].mxu0
        %3211 = vmatprep.mubr.bf16.mxu0 0
        %3212 = vmatmul.mubr.bf16.gmra.mrb[0].mxu0 %v3097
        %v3213 = vpop.f32.mrb[0].mxu0
        %v3214 = vadd.f32 0.0, %v3213
        %v3215 = vpop.f32.mrb[0].mxu0
        %v3216 = vpop.f32.mrb[0].mxu0
        %v3217 = vadd.f32 0.0, %v3216
        %v3218 = vpop.f32.mrb[0].mxu0
        %3219 = vmatprep.mubr.bf16.mxu0 0
        %3220 = vmatmul.mubr.bf16.gmra.mrb[0].mxu0 %v3098
        %v3221 = vpop.f32.mrb[0].mxu0
        %v3222 = vadd.f32 0.0, %v3221
        %v3223 = vpop.f32.mrb[0].mxu0
        %v3224 = vpop.f32.mrb[0].mxu0
        %v3225 = vadd.f32 0.0, %v3224
        %v3226 = vpop.f32.mrb[0].mxu0
        %3227 = vdwg.mxu0
        %v3244 = vunpack.c.l.b16 %v3071
        %v3245 = vunpack.c.l.b16 %v3072
        %v3246 = vunpack.c.l.b16 %v3073
        %v3247 = vunpack.c.l.b16 %v3074
        %v3248 = vunpack.c.l.b16 %v3075
        %v3249 = vunpack.c.l.b16 %v3076
        %v3250 = vunpack.c.l.b16 %v3077
        %v3251 = vunpack.c.l.b16 %v3078
        %v3252 = vunpack.c.l.b16 %v3079
        %v3253 = vunpack.c.l.b16 %v3080
        %v3254 = vunpack.c.l.b16 %v3081
        %v3255 = vunpack.c.l.b16 %v3082
        %v3256 = vunpack.c.l.b16 %v3083
        %v3257 = vunpack.c.l.b16 %v3084
        %v3258 = vunpack.c.l.b16 %v3085
        %v3259 = vunpack.c.l.b16 %v3086
        %v3260 = vpack.c.b16 %v3245, %v3244
        %v3261 = vpack.c.b16 %v3247, %v3246
        %v3262 = vpack.c.b16 %v3249, %v3248
        %v3263 = vpack.c.b16 %v3251, %v3250
        %v3264 = vpack.c.b16 %v3253, %v3252
        %v3265 = vpack.c.b16 %v3255, %v3254
        %v3266 = vpack.c.b16 %v3257, %v3256
        %v3267 = vpack.c.b16 %v3259, %v3258
        %3276 = vmatprep.subr.bf16.mxu0 0
        %3277 = vmatpush1.bf16.msra.mxu0 %v3260
        %3278 = vmatprep.subr.bf16.mxu0 0
        %3279 = vmatpush1.bf16.msra.mxu0 %v3261
        %3280 = vmatprep.subr.bf16.mxu0 0
        %3281 = vmatpush1.bf16.msra.mxu0 %v3262
        %3282 = vmatprep.subr.bf16.mxu0 0
        %3283 = vmatpush1.bf16.msra.mxu0 %v3263
        %3284 = vmatprep.subr.bf16.mxu0 0
        %3285 = vmatpush1.bf16.msra.mxu0 %v3264
        %3286 = vmatprep.subr.bf16.mxu0 0
        %3287 = vmatpush1.bf16.msra.mxu0 %v3265
        %3288 = vmatprep.subr.bf16.mxu0 0
        %3289 = vmatpush1.bf16.msra.mxu0 %v3266
        %3290 = vmatprep.subr.bf16.mxu0 0
        %3291 = vmatpush1.bf16.msra.mxu0 %v3267
        %3292 = vmatprep.subr.bf16.mxu0 0
        %3293 = vmatpush1.bf16.msra.mxu0 0
        %3294 = vmatprep.subr.bf16.mxu0 0
        %3295 = vmatpush1.bf16.msra.mxu0 0
        %3296 = vmatprep.subr.bf16.mxu0 0
        %3297 = vmatpush1.bf16.msra.mxu0 0
        %3298 = vmatprep.subr.bf16.mxu0 0
        %3299 = vmatpush1.bf16.msra.mxu0 0
        %3300 = vmatprep.subr.bf16.mxu0 0
        %3301 = vmatpush1.bf16.msra.mxu0 0
        %3302 = vmatprep.subr.bf16.mxu0 0
        %3303 = vmatpush1.bf16.msra.mxu0 0
        %3304 = vmatprep.subr.bf16.mxu0 0
        %3305 = vmatpush1.bf16.msra.mxu0 0
        %3306 = vmatprep.subr.bf16.mxu0 0
        %3307 = vmatpush1.bf16.msra.mxu0 0
        %3308 = vmatprep.mubr.bf16.mxu0 0
        %3309 = vmatmul.mubr.bf16.gmra.mrb[0].mxu0 %v3067
        %v3310 = vpop.f32.mrb[0].mxu0
        %v3311 = vadd.f32 %v3198, %v3310
        %v3312 = vpop.f32.mrb[0].mxu0
        %v3313 = vpop.f32.mrb[0].mxu0
        %v3314 = vadd.f32 %v3201, %v3313
        %v3315 = vpop.f32.mrb[0].mxu0
        %3316 = vmatprep.mubr.bf16.mxu0 0
        %3317 = vmatmul.mubr.bf16.gmra.mrb[0].mxu0 %v3068
        %v3318 = vpop.f32.mrb[0].mxu0
        %v3319 = vadd.f32 %v3206, %v3318
        %v3320 = vpop.f32.mrb[0].mxu0
        %v3321 = vpop.f32.mrb[0].mxu0
        %v3322 = vadd.f32 %v3209, %v3321
        %v3323 = vpop.f32.mrb[0].mxu0
        %3324 = vmatprep.mubr.bf16.mxu0 0
        %3325 = vmatmul.mubr.bf16.gmra.mrb[0].mxu0 %v3069
        %v3326 = vpop.f32.mrb[0].mxu0
        %v3327 = vadd.f32 %v3214, %v3326
        %v3328 = vpop.f32.mrb[0].mxu0
        %v3329 = vpop.f32.mrb[0].mxu0
        %v3330 = vadd.f32 %v3217, %v3329
        %v3331 = vpop.f32.mrb[0].mxu0
        %3332 = vmatprep.mubr.bf16.mxu0 0
        %3333 = vmatmul.mubr.bf16.gmra.mrb[0].mxu0 %v3070
        %v3334 = vpop.f32.mrb[0].mxu0
        %v3335 = vadd.f32 %v3222, %v3334
        %v3336 = vpop.f32.mrb[0].mxu0
        %v3337 = vpop.f32.mrb[0].mxu0
        %v3338 = vadd.f32 %v3225, %v3337
        %v3339 = vpop.f32.mrb[0].mxu0
        %3340 = vdwg.mxu0
        %v3341 = vrot.slane %v3035, 1
        %v3342 = vrot.slane %v3036, 1
        %v3343 = vrot.slane %v3037, 1
        %v3344 = vrot.slane %v3038, 1
        %v3345 = vrot.slane %v3039, 1
        %v3346 = vrot.slane %v3040, 1
        %v3347 = vrot.slane %v3041, 1
        %v3348 = vrot.slane %v3042, 1
        %v3349 = vsel %vm1477, %v3347, %v3348
        %v3350 = vsel %vm1477, %v3346, %v3347
        %v3351 = vsel %vm1477, %v3345, %v3346
        %v3352 = vsel %vm1477, %v3344, %v3345
        %v3353 = vsel %vm1477, %v3343, %v3344
        %v3354 = vsel %vm1477, %v3342, %v3343
        %v3355 = vsel %vm1477, %v3341, %v3342
        %v3356 = vsel %vm1477, %v3348, %v3341
        %v3357 = vmul.f32 %v3356, %v1488
        %v3358 = vmul.f32 %v3355, %v1492
        %v3359 = vmul.f32 %v3354, %v1496
        %v3360 = vmul.f32 %v3353, %v1500
        %v3361 = vmul.f32 %v3352, %v1504
        %v3362 = vmul.f32 %v3351, %v1508
        %v3363 = vmul.f32 %v3350, %v1512
        %v3364 = vmul.f32 %v3349, %v1516
        %v3365 = vpack.c.bf16 %v3358, %v3357
        %v3366 = vpack.c.bf16 %v3360, %v3359
        %v3367 = vpack.c.bf16 %v3362, %v3361
        %v3368 = vpack.c.bf16 %v3364, %v3363
        %v3369 = vld [vmem:[#allocation10 + $0x80] sm:$0xf]
        %v3370 = vld [vmem:[#allocation10 + $0x84] sm:$0xf]
        %v3371 = vld [vmem:[#allocation10 + $0x88] sm:$0xf]
        %v3372 = vld [vmem:[#allocation10 + $0x8c] sm:$0xf]
        %v3373 = vld [vmem:[#allocation10 + $0x90] sm:$0xf]
        %v3374 = vld [vmem:[#allocation10 + $0x94] sm:$0xf]
        %v3375 = vld [vmem:[#allocation10 + $0x98] sm:$0xf]
        %v3376 = vld [vmem:[#allocation10 + $0x9c] sm:$0xf]
        %v3377 = vld [vmem:[#allocation10 + $0xa0] sm:$0xf]
        %v3378 = vld [vmem:[#allocation10 + $0xa4] sm:$0xf]
        %v3379 = vld [vmem:[#allocation10 + $0xa8] sm:$0xf]
        %v3380 = vld [vmem:[#allocation10 + $0xac] sm:$0xf]
        %v3381 = vld [vmem:[#allocation10 + $0xb0] sm:$0xf]
        %v3382 = vld [vmem:[#allocation10 + $0xb4] sm:$0xf]
        %v3383 = vld [vmem:[#allocation10 + $0xb8] sm:$0xf]
        %v3384 = vld [vmem:[#allocation10 + $0xbc] sm:$0xf]
        %v3401 = vunpack.c.l.b16 %v3369
        %v3402 = vunpack.c.l.b16 %v3370
        %v3403 = vunpack.c.l.b16 %v3371
        %v3404 = vunpack.c.l.b16 %v3372
        %v3405 = vunpack.c.l.b16 %v3373
        %v3406 = vunpack.c.l.b16 %v3374
        %v3407 = vunpack.c.l.b16 %v3375
        %v3408 = vunpack.c.l.b16 %v3376
        %v3409 = vunpack.c.l.b16 %v3377
        %v3410 = vunpack.c.l.b16 %v3378
        %v3411 = vunpack.c.l.b16 %v3379
        %v3412 = vunpack.c.l.b16 %v3380
        %v3413 = vunpack.c.l.b16 %v3381
        %v3414 = vunpack.c.l.b16 %v3382
        %v3415 = vunpack.c.l.b16 %v3383
        %v3416 = vunpack.c.l.b16 %v3384
        %v3417 = vpack.c.b16 %v3402, %v3401
        %v3418 = vpack.c.b16 %v3404, %v3403
        %v3419 = vpack.c.b16 %v3406, %v3405
        %v3420 = vpack.c.b16 %v3408, %v3407
        %v3421 = vpack.c.b16 %v3410, %v3409
        %v3422 = vpack.c.b16 %v3412, %v3411
        %v3423 = vpack.c.b16 %v3414, %v3413
        %v3424 = vpack.c.b16 %v3416, %v3415
        %3433 = vmatprep.subr.bf16.mxu0 0
        %3434 = vmatpush1.bf16.msra.mxu0 %v3417
        %3435 = vmatprep.subr.bf16.mxu0 0
        %3436 = vmatpush1.bf16.msra.mxu0 %v3418
        %3437 = vmatprep.subr.bf16.mxu0 0
        %3438 = vmatpush1.bf16.msra.mxu0 %v3419
        %3439 = vmatprep.subr.bf16.mxu0 0
        %3440 = vmatpush1.bf16.msra.mxu0 %v3420
        %3441 = vmatprep.subr.bf16.mxu0 0
        %3442 = vmatpush1.bf16.msra.mxu0 %v3421
        %3443 = vmatprep.subr.bf16.mxu0 0
        %3444 = vmatpush1.bf16.msra.mxu0 %v3422
        %3445 = vmatprep.subr.bf16.mxu0 0
        %3446 = vmatpush1.bf16.msra.mxu0 %v3423
        %3447 = vmatprep.subr.bf16.mxu0 0
        %3448 = vmatpush1.bf16.msra.mxu0 %v3424
        %3449 = vmatprep.subr.bf16.mxu0 0
        %3450 = vmatpush1.bf16.msra.mxu0 0
        %3451 = vmatprep.subr.bf16.mxu0 0
        %3452 = vmatpush1.bf16.msra.mxu0 0
        %3453 = vmatprep.subr.bf16.mxu0 0
        %3454 = vmatpush1.bf16.msra.mxu0 0
        %3455 = vmatprep.subr.bf16.mxu0 0
        %3456 = vmatpush1.bf16.msra.mxu0 0
        %3457 = vmatprep.subr.bf16.mxu0 0
        %3458 = vmatpush1.bf16.msra.mxu0 0
        %3459 = vmatprep.subr.bf16.mxu0 0
        %3460 = vmatpush1.bf16.msra.mxu0 0
        %3461 = vmatprep.subr.bf16.mxu0 0
        %3462 = vmatpush1.bf16.msra.mxu0 0
        %3463 = vmatprep.subr.bf16.mxu0 0
        %3464 = vmatpush1.bf16.msra.mxu0 0
        %3465 = vmatprep.mubr.bf16.mxu0 0
        %3466 = vmatmul.mubr.bf16.gmra.mrb[0].mxu0 %v3365
        %v3467 = vpop.f32.mrb[0].mxu0
        %v3468 = vadd.f32 0.0, %v3467
        %v3469 = vpop.f32.mrb[0].mxu0
        %v3470 = vpop.f32.mrb[0].mxu0
        %v3471 = vadd.f32 0.0, %v3470
        %v3472 = vpop.f32.mrb[0].mxu0
        %3473 = vmatprep.mubr.bf16.mxu0 0
        %3474 = vmatmul.mubr.bf16.gmra.mrb[0].mxu0 %v3366
        %v3475 = vpop.f32.mrb[0].mxu0
        %v3476 = vadd.f32 0.0, %v3475
        %v3477 = vpop.f32.mrb[0].mxu0
        %v3478 = vpop.f32.mrb[0].mxu0
        %v3479 = vadd.f32 0.0, %v3478
        %v3480 = vpop.f32.mrb[0].mxu0
        %3481 = vmatprep.mubr.bf16.mxu0 0
        %3482 = vmatmul.mubr.bf16.gmra.mrb[0].mxu0 %v3367
        %v3483 = vpop.f32.mrb[0].mxu0
        %v3484 = vadd.f32 0.0, %v3483
        %v3485 = vpop.f32.mrb[0].mxu0
        %v3486 = vpop.f32.mrb[0].mxu0
        %v3487 = vadd.f32 0.0, %v3486
        %v3488 = vpop.f32.mrb[0].mxu0
        %3489 = vmatprep.mubr.bf16.mxu0 0
        %3490 = vmatmul.mubr.bf16.gmra.mrb[0].mxu0 %v3368
        %v3491 = vpop.f32.mrb[0].mxu0
        %v3492 = vadd.f32 0.0, %v3491
        %v3493 = vpop.f32.mrb[0].mxu0
        %v3494 = vpop.f32.mrb[0].mxu0
        %v3495 = vadd.f32 0.0, %v3494
        %v3496 = vpop.f32.mrb[0].mxu0
        %3497 = vdwg.mxu0
        %v3498 = vadd.f32 %v3311, %v3468
        %v3499 = vadd.f32 %v3314, %v3471
        %v3500 = vadd.f32 %v3319, %v3476
        %v3501 = vadd.f32 %v3322, %v3479
        %v3502 = vadd.f32 %v3327, %v3484
        %v3503 = vadd.f32 %v3330, %v3487
        %v3504 = vadd.f32 %v3335, %v3492
        %v3505 = vadd.f32 %v3338, %v3495
        %v3506 = vmul.f32 %v3058, %v1649
        %v3507 = vmul.f32 %v3057, %v1653
        %v3508 = vmul.f32 %v3056, %v1657
        %v3509 = vmul.f32 %v3055, %v1661
        %v3510 = vmul.f32 %v3054, %v1665
        %v3511 = vmul.f32 %v3053, %v1669
        %v3512 = vmul.f32 %v3052, %v1673
        %v3513 = vmul.f32 %v3051, %v1677
        %v3514 = vpack.c.bf16 %v3507, %v3506
        %v3515 = vpack.c.bf16 %v3509, %v3508
        %v3516 = vpack.c.bf16 %v3511, %v3510
        %v3517 = vpack.c.bf16 %v3513, %v3512
        %v3518 = vld [vmem:[#allocation10 + $0xc0] sm:$0xf]
        %v3519 = vld [vmem:[#allocation10 + $0xc4] sm:$0xf]
        %v3520 = vld [vmem:[#allocation10 + $0xc8] sm:$0xf]
        %v3521 = vld [vmem:[#allocation10 + $0xcc] sm:$0xf]
        %v3522 = vld [vmem:[#allocation10 + $0xd0] sm:$0xf]
        %v3523 = vld [vmem:[#allocation10 + $0xd4] sm:$0xf]
        %v3524 = vld [vmem:[#allocation10 + $0xd8] sm:$0xf]
        %v3525 = vld [vmem:[#allocation10 + $0xdc] sm:$0xf]
        %v3526 = vld [vmem:[#allocation10 + $0xe0] sm:$0xf]
        %v3527 = vld [vmem:[#allocation10 + $0xe4] sm:$0xf]
        %v3528 = vld [vmem:[#allocation10 + $0xe8] sm:$0xf]
        %v3529 = vld [vmem:[#allocation10 + $0xec] sm:$0xf]
        %v3530 = vld [vmem:[#allocation10 + $0xf0] sm:$0xf]
        %v3531 = vld [vmem:[#allocation10 + $0xf4] sm:$0xf]
        %v3532 = vld [vmem:[#allocation10 + $0xf8] sm:$0xf]
        %v3533 = vld [vmem:[#allocation10 + $0xfc] sm:$0xf]
        %v3550 = vunpack.c.l.b16 %v3518
        %v3551 = vunpack.c.l.b16 %v3519
        %v3552 = vunpack.c.l.b16 %v3520
        %v3553 = vunpack.c.l.b16 %v3521
        %v3554 = vunpack.c.l.b16 %v3522
        %v3555 = vunpack.c.l.b16 %v3523
        %v3556 = vunpack.c.l.b16 %v3524
        %v3557 = vunpack.c.l.b16 %v3525
        %v3558 = vunpack.c.l.b16 %v3526
        %v3559 = vunpack.c.l.b16 %v3527
        %v3560 = vunpack.c.l.b16 %v3528
        %v3561 = vunpack.c.l.b16 %v3529
        %v3562 = vunpack.c.l.b16 %v3530
        %v3563 = vunpack.c.l.b16 %v3531
        %v3564 = vunpack.c.l.b16 %v3532
        %v3565 = vunpack.c.l.b16 %v3533
        %v3566 = vpack.c.b16 %v3551, %v3550
        %v3567 = vpack.c.b16 %v3553, %v3552
        %v3568 = vpack.c.b16 %v3555, %v3554
        %v3569 = vpack.c.b16 %v3557, %v3556
        %v3570 = vpack.c.b16 %v3559, %v3558
        %v3571 = vpack.c.b16 %v3561, %v3560
        %v3572 = vpack.c.b16 %v3563, %v3562
        %v3573 = vpack.c.b16 %v3565, %v3564
        %3582 = vmatprep.subr.bf16.mxu0 0
        %3583 = vmatpush1.bf16.msra.mxu0 %v3566
        %3584 = vmatprep.subr.bf16.mxu0 0
        %3585 = vmatpush1.bf16.msra.mxu0 %v3567
        %3586 = vmatprep.subr.bf16.mxu0 0
        %3587 = vmatpush1.bf16.msra.mxu0 %v3568
        %3588 = vmatprep.subr.bf16.mxu0 0
        %3589 = vmatpush1.bf16.msra.mxu0 %v3569
        %3590 = vmatprep.subr.bf16.mxu0 0
        %3591 = vmatpush1.bf16.msra.mxu0 %v3570
        %3592 = vmatprep.subr.bf16.mxu0 0
        %3593 = vmatpush1.bf16.msra.mxu0 %v3571
        %3594 = vmatprep.subr.bf16.mxu0 0
        %3595 = vmatpush1.bf16.msra.mxu0 %v3572
        %3596 = vmatprep.subr.bf16.mxu0 0
        %3597 = vmatpush1.bf16.msra.mxu0 %v3573
        %3598 = vmatprep.subr.bf16.mxu0 0
        %3599 = vmatpush1.bf16.msra.mxu0 0
        %3600 = vmatprep.subr.bf16.mxu0 0
        %3601 = vmatpush1.bf16.msra.mxu0 0
        %3602 = vmatprep.subr.bf16.mxu0 0
        %3603 = vmatpush1.bf16.msra.mxu0 0
        %3604 = vmatprep.subr.bf16.mxu0 0
        %3605 = vmatpush1.bf16.msra.mxu0 0
        %3606 = vmatprep.subr.bf16.mxu0 0
        %3607 = vmatpush1.bf16.msra.mxu0 0
        %3608 = vmatprep.subr.bf16.mxu0 0
        %3609 = vmatpush1.bf16.msra.mxu0 0
        %3610 = vmatprep.subr.bf16.mxu0 0
        %3611 = vmatpush1.bf16.msra.mxu0 0
        %3612 = vmatprep.subr.bf16.mxu0 0
        %3613 = vmatpush1.bf16.msra.mxu0 0
        %3614 = vmatprep.mubr.bf16.mxu0 0
        %3615 = vmatmul.mubr.bf16.gmra.mrb[0].mxu0 %v3514
        %v3616 = vpop.f32.mrb[0].mxu0
        %v3617 = vadd.f32 0.0, %v3616
        %v3618 = vpop.f32.mrb[0].mxu0
        %v3619 = vpop.f32.mrb[0].mxu0
        %v3620 = vadd.f32 0.0, %v3619
        %v3621 = vpop.f32.mrb[0].mxu0
        %3622 = vmatprep.mubr.bf16.mxu0 0
        %3623 = vmatmul.mubr.bf16.gmra.mrb[0].mxu0 %v3515
        %v3624 = vpop.f32.mrb[0].mxu0
        %v3625 = vadd.f32 0.0, %v3624
        %v3626 = vpop.f32.mrb[0].mxu0
        %v3627 = vpop.f32.mrb[0].mxu0
        %v3628 = vadd.f32 0.0, %v3627
        %v3629 = vpop.f32.mrb[0].mxu0
        %3630 = vmatprep.mubr.bf16.mxu0 0
        %3631 = vmatmul.mubr.bf16.gmra.mrb[0].mxu0 %v3516
        %v3632 = vpop.f32.mrb[0].mxu0
        %v3633 = vadd.f32 0.0, %v3632
        %v3634 = vpop.f32.mrb[0].mxu0
        %v3635 = vpop.f32.mrb[0].mxu0
        %v3636 = vadd.f32 0.0, %v3635
        %v3637 = vpop.f32.mrb[0].mxu0
        %3638 = vmatprep.mubr.bf16.mxu0 0
        %3639 = vmatmul.mubr.bf16.gmra.mrb[0].mxu0 %v3517
        %v3640 = vpop.f32.mrb[0].mxu0
        %v3641 = vadd.f32 0.0, %v3640
        %v3642 = vpop.f32.mrb[0].mxu0
        %v3643 = vpop.f32.mrb[0].mxu0
        %v3644 = vadd.f32 0.0, %v3643
        %v3645 = vpop.f32.mrb[0].mxu0
        %3646 = vdwg.mxu0
        %v3647 = vadd.f32 %v3498, %v3617
        %v3648 = vadd.f32 %v3499, %v3620
        %v3649 = vadd.f32 %v3500, %v3625
        %v3650 = vadd.f32 %v3501, %v3628
        %v3651 = vadd.f32 %v3502, %v3633
        %v3652 = vadd.f32 %v3503, %v3636
        %v3653 = vadd.f32 %v3504, %v3641
        %v3654 = vadd.f32 %v3505, %v3644
        %v3655 = vpack.c.bf16 %v3036, %v3035
        %v3656 = vpack.c.bf16 %v3038, %v3037
        %v3657 = vpack.c.bf16 %v3040, %v3039
        %v3658 = vpack.c.bf16 %v3042, %v3041
        %v3659 = vld [vmem:[#allocation10 + $0x100] sm:$0xf]
        %v3660 = vld [vmem:[#allocation10 + $0x104] sm:$0xf]
        %v3661 = vld [vmem:[#allocation10 + $0x108] sm:$0xf]
        %v3662 = vld [vmem:[#allocation10 + $0x10c] sm:$0xf]
        %v3663 = vld [vmem:[#allocation10 + $0x110] sm:$0xf]
        %v3664 = vld [vmem:[#allocation10 + $0x114] sm:$0xf]
        %v3665 = vld [vmem:[#allocation10 + $0x118] sm:$0xf]
        %v3666 = vld [vmem:[#allocation10 + $0x11c] sm:$0xf]
        %v3667 = vld [vmem:[#allocation10 + $0x120] sm:$0xf]
        %v3668 = vld [vmem:[#allocation10 + $0x124] sm:$0xf]
        %v3669 = vld [vmem:[#allocation10 + $0x128] sm:$0xf]
        %v3670 = vld [vmem:[#allocation10 + $0x12c] sm:$0xf]
        %v3671 = vld [vmem:[#allocation10 + $0x130] sm:$0xf]
        %v3672 = vld [vmem:[#allocation10 + $0x134] sm:$0xf]
        %v3673 = vld [vmem:[#allocation10 + $0x138] sm:$0xf]
        %v3674 = vld [vmem:[#allocation10 + $0x13c] sm:$0xf]
        %v3691 = vunpack.c.l.b16 %v3659
        %v3692 = vunpack.c.l.b16 %v3660
        %v3693 = vunpack.c.l.b16 %v3661
        %v3694 = vunpack.c.l.b16 %v3662
        %v3695 = vunpack.c.l.b16 %v3663
        %v3696 = vunpack.c.l.b16 %v3664
        %v3697 = vunpack.c.l.b16 %v3665
        %v3698 = vunpack.c.l.b16 %v3666
        %v3699 = vunpack.c.l.b16 %v3667
        %v3700 = vunpack.c.l.b16 %v3668
        %v3701 = vunpack.c.l.b16 %v3669
        %v3702 = vunpack.c.l.b16 %v3670
        %v3703 = vunpack.c.l.b16 %v3671
        %v3704 = vunpack.c.l.b16 %v3672
        %v3705 = vunpack.c.l.b16 %v3673
        %v3706 = vunpack.c.l.b16 %v3674
        %v3707 = vpack.c.b16 %v3692, %v3691
        %v3708 = vpack.c.b16 %v3694, %v3693
        %v3709 = vpack.c.b16 %v3696, %v3695
        %v3710 = vpack.c.b16 %v3698, %v3697
        %v3711 = vpack.c.b16 %v3700, %v3699
        %v3712 = vpack.c.b16 %v3702, %v3701
        %v3713 = vpack.c.b16 %v3704, %v3703
        %v3714 = vpack.c.b16 %v3706, %v3705
        %3723 = vmatprep.subr.bf16.mxu0 0
        %3724 = vmatpush1.bf16.msra.mxu0 %v3707
        %3725 = vmatprep.subr.bf16.mxu0 0
        %3726 = vmatpush1.bf16.msra.mxu0 %v3708
        %3727 = vmatprep.subr.bf16.mxu0 0
        %3728 = vmatpush1.bf16.msra.mxu0 %v3709
        %3729 = vmatprep.subr.bf16.mxu0 0
        %3730 = vmatpush1.bf16.msra.mxu0 %v3710
        %3731 = vmatprep.subr.bf16.mxu0 0
        %3732 = vmatpush1.bf16.msra.mxu0 %v3711
        %3733 = vmatprep.subr.bf16.mxu0 0
        %3734 = vmatpush1.bf16.msra.mxu0 %v3712
        %3735 = vmatprep.subr.bf16.mxu0 0
        %3736 = vmatpush1.bf16.msra.mxu0 %v3713
        %3737 = vmatprep.subr.bf16.mxu0 0
        %3738 = vmatpush1.bf16.msra.mxu0 %v3714
        %3739 = vmatprep.subr.bf16.mxu0 0
        %3740 = vmatpush1.bf16.msra.mxu0 0
        %3741 = vmatprep.subr.bf16.mxu0 0
        %3742 = vmatpush1.bf16.msra.mxu0 0
        %3743 = vmatprep.subr.bf16.mxu0 0
        %3744 = vmatpush1.bf16.msra.mxu0 0
        %3745 = vmatprep.subr.bf16.mxu0 0
        %3746 = vmatpush1.bf16.msra.mxu0 0
        %3747 = vmatprep.subr.bf16.mxu0 0
        %3748 = vmatpush1.bf16.msra.mxu0 0
        %3749 = vmatprep.subr.bf16.mxu0 0
        %3750 = vmatpush1.bf16.msra.mxu0 0
        %3751 = vmatprep.subr.bf16.mxu0 0
        %3752 = vmatpush1.bf16.msra.mxu0 0
        %3753 = vmatprep.subr.bf16.mxu0 0
        %3754 = vmatpush1.bf16.msra.mxu0 0
        %3755 = vmatprep.mubr.bf16.mxu0 0
        %3756 = vmatmul.mubr.bf16.gmra.mrb[0].mxu0 %v3655
        %v3757 = vpop.f32.mrb[0].mxu0
        %v3758 = vadd.f32 0.0, %v3757
        %v3759 = vpop.f32.mrb[0].mxu0
        %v3760 = vpop.f32.mrb[0].mxu0
        %v3761 = vadd.f32 0.0, %v3760
        %v3762 = vpop.f32.mrb[0].mxu0
        %3763 = vmatprep.mubr.bf16.mxu0 0
        %3764 = vmatmul.mubr.bf16.gmra.mrb[0].mxu0 %v3656
        %v3765 = vpop.f32.mrb[0].mxu0
        %v3766 = vadd.f32 0.0, %v3765
        %v3767 = vpop.f32.mrb[0].mxu0
        %v3768 = vpop.f32.mrb[0].mxu0
        %v3769 = vadd.f32 0.0, %v3768
        %v3770 = vpop.f32.mrb[0].mxu0
        %3771 = vmatprep.mubr.bf16.mxu0 0
        %3772 = vmatmul.mubr.bf16.gmra.mrb[0].mxu0 %v3657
        %v3773 = vpop.f32.mrb[0].mxu0
        %v3774 = vadd.f32 0.0, %v3773
        %v3775 = vpop.f32.mrb[0].mxu0
        %v3776 = vpop.f32.mrb[0].mxu0
        %v3777 = vadd.f32 0.0, %v3776
        %v3778 = vpop.f32.mrb[0].mxu0
        %3779 = vmatprep.mubr.bf16.mxu0 0
        %3780 = vmatmul.mubr.bf16.gmra.mrb[0].mxu0 %v3658
        %v3781 = vpop.f32.mrb[0].mxu0
        %v3782 = vadd.f32 0.0, %v3781
        %v3783 = vpop.f32.mrb[0].mxu0
        %v3784 = vpop.f32.mrb[0].mxu0
        %v3785 = vadd.f32 0.0, %v3784
        %v3786 = vpop.f32.mrb[0].mxu0
        %3787 = vdwg.mxu0
        %v3788 = vadd.f32 %v3647, %v3758
        %v3789 = vadd.f32 %v3648, %v3761
        %v3790 = vadd.f32 %v3649, %v3766
        %v3791 = vadd.f32 %v3650, %v3769
        %v3792 = vadd.f32 %v3651, %v3774
        %v3793 = vadd.f32 %v3652, %v3777
        %v3794 = vadd.f32 %v3653, %v3782
        %v3795 = vadd.f32 %v3654, %v3785
        %v3796 = vmul.f32 %v3355, %v1931
        %v3797 = vmul.f32 %v3354, %v1935
        %v3798 = vmul.f32 %v3353, %v1939
        %v3799 = vmul.f32 %v3352, %v1943
        %v3800 = vmul.f32 %v3351, %v1947
        %v3801 = vmul.f32 %v3350, %v1951
        %v3802 = vmul.f32 %v3349, %v1955
        %v3803 = vmul.f32 %v3356, %v1959
        %v3804 = vpack.c.bf16 %v3797, %v3796
        %v3805 = vpack.c.bf16 %v3799, %v3798
        %v3806 = vpack.c.bf16 %v3801, %v3800
        %v3807 = vpack.c.bf16 %v3803, %v3802
        %v3808 = vld [vmem:[#allocation10 + $0x140] sm:$0xf]
        %v3809 = vld [vmem:[#allocation10 + $0x144] sm:$0xf]
        %v3810 = vld [vmem:[#allocation10 + $0x148] sm:$0xf]
        %v3811 = vld [vmem:[#allocation10 + $0x14c] sm:$0xf]
        %v3812 = vld [vmem:[#allocation10 + $0x150] sm:$0xf]
        %v3813 = vld [vmem:[#allocation10 + $0x154] sm:$0xf]
        %v3814 = vld [vmem:[#allocation10 + $0x158] sm:$0xf]
        %v3815 = vld [vmem:[#allocation10 + $0x15c] sm:$0xf]
        %v3816 = vld [vmem:[#allocation10 + $0x160] sm:$0xf]
        %v3817 = vld [vmem:[#allocation10 + $0x164] sm:$0xf]
        %v3818 = vld [vmem:[#allocation10 + $0x168] sm:$0xf]
        %v3819 = vld [vmem:[#allocation10 + $0x16c] sm:$0xf]
        %v3820 = vld [vmem:[#allocation10 + $0x170] sm:$0xf]
        %v3821 = vld [vmem:[#allocation10 + $0x174] sm:$0xf]
        %v3822 = vld [vmem:[#allocation10 + $0x178] sm:$0xf]
        %v3823 = vld [vmem:[#allocation10 + $0x17c] sm:$0xf]
        %v3840 = vunpack.c.l.b16 %v3808
        %v3841 = vunpack.c.l.b16 %v3809
        %v3842 = vunpack.c.l.b16 %v3810
        %v3843 = vunpack.c.l.b16 %v3811
        %v3844 = vunpack.c.l.b16 %v3812
        %v3845 = vunpack.c.l.b16 %v3813
        %v3846 = vunpack.c.l.b16 %v3814
        %v3847 = vunpack.c.l.b16 %v3815
        %v3848 = vunpack.c.l.b16 %v3816
        %v3849 = vunpack.c.l.b16 %v3817
        %v3850 = vunpack.c.l.b16 %v3818
        %v3851 = vunpack.c.l.b16 %v3819
        %v3852 = vunpack.c.l.b16 %v3820
        %v3853 = vunpack.c.l.b16 %v3821
        %v3854 = vunpack.c.l.b16 %v3822
        %v3855 = vunpack.c.l.b16 %v3823
        %v3856 = vpack.c.b16 %v3841, %v3840
        %v3857 = vpack.c.b16 %v3843, %v3842
        %v3858 = vpack.c.b16 %v3845, %v3844
        %v3859 = vpack.c.b16 %v3847, %v3846
        %v3860 = vpack.c.b16 %v3849, %v3848
        %v3861 = vpack.c.b16 %v3851, %v3850
        %v3862 = vpack.c.b16 %v3853, %v3852
        %v3863 = vpack.c.b16 %v3855, %v3854
        %3872 = vmatprep.subr.bf16.mxu0 0
        %3873 = vmatpush1.bf16.msra.mxu0 %v3856
        %3874 = vmatprep.subr.bf16.mxu0 0
        %3875 = vmatpush1.bf16.msra.mxu0 %v3857
        %3876 = vmatprep.subr.bf16.mxu0 0
        %3877 = vmatpush1.bf16.msra.mxu0 %v3858
        %3878 = vmatprep.subr.bf16.mxu0 0
        %3879 = vmatpush1.bf16.msra.mxu0 %v3859
        %3880 = vmatprep.subr.bf16.mxu0 0
        %3881 = vmatpush1.bf16.msra.mxu0 %v3860
        %3882 = vmatprep.subr.bf16.mxu0 0
        %3883 = vmatpush1.bf16.msra.mxu0 %v3861
        %3884 = vmatprep.subr.bf16.mxu0 0
        %3885 = vmatpush1.bf16.msra.mxu0 %v3862
        %3886 = vmatprep.subr.bf16.mxu0 0
        %3887 = vmatpush1.bf16.msra.mxu0 %v3863
        %3888 = vmatprep.subr.bf16.mxu0 0
        %3889 = vmatpush1.bf16.msra.mxu0 0
        %3890 = vmatprep.subr.bf16.mxu0 0
        %3891 = vmatpush1.bf16.msra.mxu0 0
        %3892 = vmatprep.subr.bf16.mxu0 0
        %3893 = vmatpush1.bf16.msra.mxu0 0
        %3894 = vmatprep.subr.bf16.mxu0 0
        %3895 = vmatpush1.bf16.msra.mxu0 0
        %3896 = vmatprep.subr.bf16.mxu0 0
        %3897 = vmatpush1.bf16.msra.mxu0 0
        %3898 = vmatprep.subr.bf16.mxu0 0
        %3899 = vmatpush1.bf16.msra.mxu0 0
        %3900 = vmatprep.subr.bf16.mxu0 0
        %3901 = vmatpush1.bf16.msra.mxu0 0
        %3902 = vmatprep.subr.bf16.mxu0 0
        %3903 = vmatpush1.bf16.msra.mxu0 0
        %3904 = vmatprep.mubr.bf16.mxu0 0
        %3905 = vmatmul.mubr.bf16.gmra.mrb[0].mxu0 %v3804
        %v3906 = vpop.f32.mrb[0].mxu0
        %v3907 = vadd.f32 0.0, %v3906
        %v3908 = vpop.f32.mrb[0].mxu0
        %v3909 = vpop.f32.mrb[0].mxu0
        %v3910 = vadd.f32 0.0, %v3909
        %v3911 = vpop.f32.mrb[0].mxu0
        %3912 = vmatprep.mubr.bf16.mxu0 0
        %3913 = vmatmul.mubr.bf16.gmra.mrb[0].mxu0 %v3805
        %v3914 = vpop.f32.mrb[0].mxu0
        %v3915 = vadd.f32 0.0, %v3914
        %v3916 = vpop.f32.mrb[0].mxu0
        %v3917 = vpop.f32.mrb[0].mxu0
        %v3918 = vadd.f32 0.0, %v3917
        %v3919 = vpop.f32.mrb[0].mxu0
        %3920 = vmatprep.mubr.bf16.mxu0 0
        %3921 = vmatmul.mubr.bf16.gmra.mrb[0].mxu0 %v3806
        %v3922 = vpop.f32.mrb[0].mxu0
        %v3923 = vadd.f32 0.0, %v3922
        %v3924 = vpop.f32.mrb[0].mxu0
        %v3925 = vpop.f32.mrb[0].mxu0
        %v3926 = vadd.f32 0.0, %v3925
        %v3927 = vpop.f32.mrb[0].mxu0
        %3928 = vmatprep.mubr.bf16.mxu0 0
        %3929 = vmatmul.mubr.bf16.gmra.mrb[0].mxu0 %v3807
        %v3930 = vpop.f32.mrb[0].mxu0
        %v3931 = vadd.f32 0.0, %v3930
        %v3932 = vpop.f32.mrb[0].mxu0
        %v3933 = vpop.f32.mrb[0].mxu0
        %v3934 = vadd.f32 0.0, %v3933
        %v3935 = vpop.f32.mrb[0].mxu0
        %3936 = vdwg.mxu0
        %v3937 = vadd.f32 %v3788, %v3907
        %v3938 = vadd.f32 %v3789, %v3910
        %v3939 = vadd.f32 %v3790, %v3915
        %v3940 = vadd.f32 %v3791, %v3918
        %v3941 = vadd.f32 %v3792, %v3923
        %v3942 = vadd.f32 %v3793, %v3926
        %v3943 = vadd.f32 %v3794, %v3931
        %v3944 = vadd.f32 %v3795, %v3934
        %v3945 = vmul.f32 %v3057, %v2092
        %v3946 = vmul.f32 %v3056, %v2096
        %v3947 = vmul.f32 %v3055, %v2100
        %v3948 = vmul.f32 %v3054, %v2104
        %v3949 = vmul.f32 %v3053, %v2108
        %v3950 = vmul.f32 %v3052, %v2112
        %v3951 = vmul.f32 %v3051, %v2116
        %v3952 = vmul.f32 %v3058, %v2120
        %v3953 = vpack.c.bf16 %v3946, %v3945
        %v3954 = vpack.c.bf16 %v3948, %v3947
        %v3955 = vpack.c.bf16 %v3950, %v3949
        %v3956 = vpack.c.bf16 %v3952, %v3951
        %v3957 = vld [vmem:[#allocation10 + $0x180] sm:$0xf]
        %v3958 = vld [vmem:[#allocation10 + $0x184] sm:$0xf]
        %v3959 = vld [vmem:[#allocation10 + $0x188] sm:$0xf]
        %v3960 = vld [vmem:[#allocation10 + $0x18c] sm:$0xf]
        %v3961 = vld [vmem:[#allocation10 + $0x190] sm:$0xf]
        %v3962 = vld [vmem:[#allocation10 + $0x194] sm:$0xf]
        %v3963 = vld [vmem:[#allocation10 + $0x198] sm:$0xf]
        %v3964 = vld [vmem:[#allocation10 + $0x19c] sm:$0xf]
        %v3965 = vld [vmem:[#allocation10 + $0x1a0] sm:$0xf]
        %v3966 = vld [vmem:[#allocation10 + $0x1a4] sm:$0xf]
        %v3967 = vld [vmem:[#allocation10 + $0x1a8] sm:$0xf]
        %v3968 = vld [vmem:[#allocation10 + $0x1ac] sm:$0xf]
        %v3969 = vld [vmem:[#allocation10 + $0x1b0] sm:$0xf]
        %v3970 = vld [vmem:[#allocation10 + $0x1b4] sm:$0xf]
        %v3971 = vld [vmem:[#allocation10 + $0x1b8] sm:$0xf]
        %v3972 = vld [vmem:[#allocation10 + $0x1bc] sm:$0xf]
        %v3989 = vunpack.c.l.b16 %v3957
        %v3990 = vunpack.c.l.b16 %v3958
        %v3991 = vunpack.c.l.b16 %v3959
        %v3992 = vunpack.c.l.b16 %v3960
        %v3993 = vunpack.c.l.b16 %v3961
        %v3994 = vunpack.c.l.b16 %v3962
        %v3995 = vunpack.c.l.b16 %v3963
        %v3996 = vunpack.c.l.b16 %v3964
        %v3997 = vunpack.c.l.b16 %v3965
        %v3998 = vunpack.c.l.b16 %v3966
        %v3999 = vunpack.c.l.b16 %v3967
        %v4000 = vunpack.c.l.b16 %v3968
        %v4001 = vunpack.c.l.b16 %v3969
        %v4002 = vunpack.c.l.b16 %v3970
        %v4003 = vunpack.c.l.b16 %v3971
        %v4004 = vunpack.c.l.b16 %v3972
        %v4005 = vpack.c.b16 %v3990, %v3989
        %v4006 = vpack.c.b16 %v3992, %v3991
        %v4007 = vpack.c.b16 %v3994, %v3993
        %v4008 = vpack.c.b16 %v3996, %v3995
        %v4009 = vpack.c.b16 %v3998, %v3997
        %v4010 = vpack.c.b16 %v4000, %v3999
        %v4011 = vpack.c.b16 %v4002, %v4001
        %v4012 = vpack.c.b16 %v4004, %v4003
        %4021 = vmatprep.subr.bf16.mxu0 0
        %4022 = vmatpush1.bf16.msra.mxu0 %v4005
        %4023 = vmatprep.subr.bf16.mxu0 0
        %4024 = vmatpush1.bf16.msra.mxu0 %v4006
        %4025 = vmatprep.subr.bf16.mxu0 0
        %4026 = vmatpush1.bf16.msra.mxu0 %v4007
        %4027 = vmatprep.subr.bf16.mxu0 0
        %4028 = vmatpush1.bf16.msra.mxu0 %v4008
        %4029 = vmatprep.subr.bf16.mxu0 0
        %4030 = vmatpush1.bf16.msra.mxu0 %v4009
        %4031 = vmatprep.subr.bf16.mxu0 0
        %4032 = vmatpush1.bf16.msra.mxu0 %v4010
        %4033 = vmatprep.subr.bf16.mxu0 0
        %4034 = vmatpush1.bf16.msra.mxu0 %v4011
        %4035 = vmatprep.subr.bf16.mxu0 0
        %4036 = vmatpush1.bf16.msra.mxu0 %v4012
        %4037 = vmatprep.subr.bf16.mxu0 0
        %4038 = vmatpush1.bf16.msra.mxu0 0
        %4039 = vmatprep.subr.bf16.mxu0 0
        %4040 = vmatpush1.bf16.msra.mxu0 0
        %4041 = vmatprep.subr.bf16.mxu0 0
        %4042 = vmatpush1.bf16.msra.mxu0 0
        %4043 = vmatprep.subr.bf16.mxu0 0
        %4044 = vmatpush1.bf16.msra.mxu0 0
        %4045 = vmatprep.subr.bf16.mxu0 0
        %4046 = vmatpush1.bf16.msra.mxu0 0
        %4047 = vmatprep.subr.bf16.mxu0 0
        %4048 = vmatpush1.bf16.msra.mxu0 0
        %4049 = vmatprep.subr.bf16.mxu0 0
        %4050 = vmatpush1.bf16.msra.mxu0 0
        %4051 = vmatprep.subr.bf16.mxu0 0
        %4052 = vmatpush1.bf16.msra.mxu0 0
        %4053 = vmatprep.mubr.bf16.mxu0 0
        %4054 = vmatmul.mubr.bf16.gmra.mrb[0].mxu0 %v3953
        %v4055 = vpop.f32.mrb[0].mxu0
        %v4056 = vadd.f32 0.0, %v4055
        %v4057 = vpop.f32.mrb[0].mxu0
        %v4058 = vpop.f32.mrb[0].mxu0
        %v4059 = vadd.f32 0.0, %v4058
        %v4060 = vpop.f32.mrb[0].mxu0
        %4061 = vmatprep.mubr.bf16.mxu0 0
        %4062 = vmatmul.mubr.bf16.gmra.mrb[0].mxu0 %v3954
        %v4063 = vpop.f32.mrb[0].mxu0
        %v4064 = vadd.f32 0.0, %v4063
        %v4065 = vpop.f32.mrb[0].mxu0
        %v4066 = vpop.f32.mrb[0].mxu0
        %v4067 = vadd.f32 0.0, %v4066
        %v4068 = vpop.f32.mrb[0].mxu0
        %4069 = vmatprep.mubr.bf16.mxu0 0
        %4070 = vmatmul.mubr.bf16.gmra.mrb[0].mxu0 %v3955
        %v4071 = vpop.f32.mrb[0].mxu0
        %v4072 = vadd.f32 0.0, %v4071
        %v4073 = vpop.f32.mrb[0].mxu0
        %v4074 = vpop.f32.mrb[0].mxu0
        %v4075 = vadd.f32 0.0, %v4074
        %v4076 = vpop.f32.mrb[0].mxu0
        %4077 = vmatprep.mubr.bf16.mxu0 0
        %4078 = vmatmul.mubr.bf16.gmra.mrb[0].mxu0 %v3956
        %v4079 = vpop.f32.mrb[0].mxu0
        %v4080 = vadd.f32 0.0, %v4079
        %v4081 = vpop.f32.mrb[0].mxu0
        %v4082 = vpop.f32.mrb[0].mxu0
        %v4083 = vadd.f32 0.0, %v4082
        %v4084 = vpop.f32.mrb[0].mxu0
        %4085 = vdwg.mxu0
        %v4086 = vadd.f32 %v3937, %v4056
        %v4087 = vadd.f32 %v3938, %v4059
        %v4088 = vadd.f32 %v3939, %v4064
        %v4089 = vadd.f32 %v3940, %v4067
        %v4090 = vadd.f32 %v3941, %v4072
        %v4091 = vadd.f32 %v3942, %v4075
        %v4092 = vadd.f32 %v3943, %v4080
        %v4093 = vadd.f32 %v3944, %v4083
        %v4094 = vmul.f32 %v3036, %v2253
        %v4095 = vmul.f32 %v3037, %v2257
        %v4096 = vmul.f32 %v3038, %v2261
        %v4097 = vmul.f32 %v3039, %v2265
        %v4098 = vmul.f32 %v3040, %v2269
        %v4099 = vmul.f32 %v3041, %v2273
        %v4100 = vmul.f32 %v3042, %v2277
        %v4101 = vmul.f32 %v3035, %v2281
        %v4102 = vpack.c.bf16 %v4095, %v4094
        %v4103 = vpack.c.bf16 %v4097, %v4096
        %v4104 = vpack.c.bf16 %v4099, %v4098
        %v4105 = vpack.c.bf16 %v4101, %v4100
        %v4106 = vld [vmem:[#allocation10 + $0x1c0] sm:$0xf]
        %v4107 = vld [vmem:[#allocation10 + $0x1c4] sm:$0xf]
        %v4108 = vld [vmem:[#allocation10 + $0x1c8] sm:$0xf]
        %v4109 = vld [vmem:[#allocation10 + $0x1cc] sm:$0xf]
        %v4110 = vld [vmem:[#allocation10 + $0x1d0] sm:$0xf]
        %v4111 = vld [vmem:[#allocation10 + $0x1d4] sm:$0xf]
        %v4112 = vld [vmem:[#allocation10 + $0x1d8] sm:$0xf]
        %v4113 = vld [vmem:[#allocation10 + $0x1dc] sm:$0xf]
        %v4114 = vld [vmem:[#allocation10 + $0x1e0] sm:$0xf]
        %v4115 = vld [vmem:[#allocation10 + $0x1e4] sm:$0xf]
        %v4116 = vld [vmem:[#allocation10 + $0x1e8] sm:$0xf]
        %v4117 = vld [vmem:[#allocation10 + $0x1ec] sm:$0xf]
        %v4118 = vld [vmem:[#allocation10 + $0x1f0] sm:$0xf]
        %v4119 = vld [vmem:[#allocation10 + $0x1f4] sm:$0xf]
        %v4120 = vld [vmem:[#allocation10 + $0x1f8] sm:$0xf]
        %v4121 = vld [vmem:[#allocation10 + $0x1fc] sm:$0xf]
        %v4138 = vunpack.c.l.b16 %v4106
        %v4139 = vunpack.c.l.b16 %v4107
        %v4140 = vunpack.c.l.b16 %v4108
        %v4141 = vunpack.c.l.b16 %v4109
        %v4142 = vunpack.c.l.b16 %v4110
        %v4143 = vunpack.c.l.b16 %v4111
        %v4144 = vunpack.c.l.b16 %v4112
        %v4145 = vunpack.c.l.b16 %v4113
        %v4146 = vunpack.c.l.b16 %v4114
        %v4147 = vunpack.c.l.b16 %v4115
        %v4148 = vunpack.c.l.b16 %v4116
        %v4149 = vunpack.c.l.b16 %v4117
        %v4150 = vunpack.c.l.b16 %v4118
        %v4151 = vunpack.c.l.b16 %v4119
        %v4152 = vunpack.c.l.b16 %v4120
        %v4153 = vunpack.c.l.b16 %v4121
        %v4154 = vpack.c.b16 %v4139, %v4138
        %v4155 = vpack.c.b16 %v4141, %v4140
        %v4156 = vpack.c.b16 %v4143, %v4142
        %v4157 = vpack.c.b16 %v4145, %v4144
        %v4158 = vpack.c.b16 %v4147, %v4146
        %v4159 = vpack.c.b16 %v4149, %v4148
        %v4160 = vpack.c.b16 %v4151, %v4150
        %v4161 = vpack.c.b16 %v4153, %v4152
        %4170 = vmatprep.subr.bf16.mxu0 0
        %4171 = vmatpush1.bf16.msra.mxu0 %v4154
        %4172 = vmatprep.subr.bf16.mxu0 0
        %4173 = vmatpush1.bf16.msra.mxu0 %v4155
        %4174 = vmatprep.subr.bf16.mxu0 0
        %4175 = vmatpush1.bf16.msra.mxu0 %v4156
        %4176 = vmatprep.subr.bf16.mxu0 0
        %4177 = vmatpush1.bf16.msra.mxu0 %v4157
        %4178 = vmatprep.subr.bf16.mxu0 0
        %4179 = vmatpush1.bf16.msra.mxu0 %v4158
        %4180 = vmatprep.subr.bf16.mxu0 0
        %4181 = vmatpush1.bf16.msra.mxu0 %v4159
        %4182 = vmatprep.subr.bf16.mxu0 0
        %4183 = vmatpush1.bf16.msra.mxu0 %v4160
        %4184 = vmatprep.subr.bf16.mxu0 0
        %4185 = vmatpush1.bf16.msra.mxu0 %v4161
        %4186 = vmatprep.subr.bf16.mxu0 0
        %4187 = vmatpush1.bf16.msra.mxu0 0
        %4188 = vmatprep.subr.bf16.mxu0 0
        %4189 = vmatpush1.bf16.msra.mxu0 0
        %4190 = vmatprep.subr.bf16.mxu0 0
        %4191 = vmatpush1.bf16.msra.mxu0 0
        %4192 = vmatprep.subr.bf16.mxu0 0
        %4193 = vmatpush1.bf16.msra.mxu0 0
        %4194 = vmatprep.subr.bf16.mxu0 0
        %4195 = vmatpush1.bf16.msra.mxu0 0
        %4196 = vmatprep.subr.bf16.mxu0 0
        %4197 = vmatpush1.bf16.msra.mxu0 0
        %4198 = vmatprep.subr.bf16.mxu0 0
        %4199 = vmatpush1.bf16.msra.mxu0 0
        %4200 = vmatprep.subr.bf16.mxu0 0
        %4201 = vmatpush1.bf16.msra.mxu0 0
        %4202 = vmatprep.mubr.bf16.mxu0 0
        %4203 = vmatmul.mubr.bf16.gmra.mrb[0].mxu0 %v4102
        %v4204 = vpop.f32.mrb[0].mxu0
        %v4205 = vadd.f32 0.0, %v4204
        %v4206 = vpop.f32.mrb[0].mxu0
        %v4207 = vpop.f32.mrb[0].mxu0
        %v4208 = vadd.f32 0.0, %v4207
        %v4209 = vpop.f32.mrb[0].mxu0
        %4210 = vmatprep.mubr.bf16.mxu0 0
        %4211 = vmatmul.mubr.bf16.gmra.mrb[0].mxu0 %v4103
        %v4212 = vpop.f32.mrb[0].mxu0
        %v4213 = vadd.f32 0.0, %v4212
        %v4214 = vpop.f32.mrb[0].mxu0
        %v4215 = vpop.f32.mrb[0].mxu0
        %v4216 = vadd.f32 0.0, %v4215
        %v4217 = vpop.f32.mrb[0].mxu0
        %4218 = vmatprep.mubr.bf16.mxu0 0
        %4219 = vmatmul.mubr.bf16.gmra.mrb[0].mxu0 %v4104
        %v4220 = vpop.f32.mrb[0].mxu0
        %v4221 = vadd.f32 0.0, %v4220
        %v4222 = vpop.f32.mrb[0].mxu0
        %v4223 = vpop.f32.mrb[0].mxu0
        %v4224 = vadd.f32 0.0, %v4223
        %v4225 = vpop.f32.mrb[0].mxu0
        %4226 = vmatprep.mubr.bf16.mxu0 0
        %4227 = vmatmul.mubr.bf16.gmra.mrb[0].mxu0 %v4105
        %v4228 = vpop.f32.mrb[0].mxu0
        %v4229 = vadd.f32 0.0, %v4228
        %v4230 = vpop.f32.mrb[0].mxu0
        %v4231 = vpop.f32.mrb[0].mxu0
        %v4232 = vadd.f32 0.0, %v4231
        %v4233 = vpop.f32.mrb[0].mxu0
        %4234 = vdwg.mxu0
        %v4235 = vadd.f32 %v4086, %v4205
        %v4236 = vadd.f32 %v4087, %v4208
        %v4237 = vadd.f32 %v4088, %v4213
        %v4238 = vadd.f32 %v4089, %v4216
        %v4239 = vadd.f32 %v4090, %v4221
        %v4240 = vadd.f32 %v4091, %v4224
        %v4241 = vadd.f32 %v4092, %v4229
        %v4242 = vadd.f32 %v4093, %v4232
        %v4243 = vmul.f32 %v3354, %v2414
        %v4244 = vmul.f32 %v3353, %v2418
        %v4245 = vmul.f32 %v3352, %v2422
        %v4246 = vmul.f32 %v3351, %v2426
        %v4247 = vmul.f32 %v3350, %v2430
        %v4248 = vmul.f32 %v3349, %v2434
        %v4249 = vmul.f32 %v3356, %v2438
        %v4250 = vmul.f32 %v3355, %v2442
        %v4251 = vpack.c.bf16 %v4244, %v4243
        %v4252 = vpack.c.bf16 %v4246, %v4245
        %v4253 = vpack.c.bf16 %v4248, %v4247
        %v4254 = vpack.c.bf16 %v4250, %v4249
        %v4255 = vld [vmem:[#allocation10 + $0x200] sm:$0xf]
        %v4256 = vld [vmem:[#allocation10 + $0x204] sm:$0xf]
        %v4257 = vld [vmem:[#allocation10 + $0x208] sm:$0xf]
        %v4258 = vld [vmem:[#allocation10 + $0x20c] sm:$0xf]
        %v4259 = vld [vmem:[#allocation10 + $0x210] sm:$0xf]
        %v4260 = vld [vmem:[#allocation10 + $0x214] sm:$0xf]
        %v4261 = vld [vmem:[#allocation10 + $0x218] sm:$0xf]
        %v4262 = vld [vmem:[#allocation10 + $0x21c] sm:$0xf]
        %v4263 = vld [vmem:[#allocation10 + $0x220] sm:$0xf]
        %v4264 = vld [vmem:[#allocation10 + $0x224] sm:$0xf]
        %v4265 = vld [vmem:[#allocation10 + $0x228] sm:$0xf]
        %v4266 = vld [vmem:[#allocation10 + $0x22c] sm:$0xf]
        %v4267 = vld [vmem:[#allocation10 + $0x230] sm:$0xf]
        %v4268 = vld [vmem:[#allocation10 + $0x234] sm:$0xf]
        %v4269 = vld [vmem:[#allocation10 + $0x238] sm:$0xf]
        %v4270 = vld [vmem:[#allocation10 + $0x23c] sm:$0xf]
        %v4287 = vunpack.c.l.b16 %v4255
        %v4288 = vunpack.c.l.b16 %v4256
        %v4289 = vunpack.c.l.b16 %v4257
        %v4290 = vunpack.c.l.b16 %v4258
        %v4291 = vunpack.c.l.b16 %v4259
        %v4292 = vunpack.c.l.b16 %v4260
        %v4293 = vunpack.c.l.b16 %v4261
        %v4294 = vunpack.c.l.b16 %v4262
        %v4295 = vunpack.c.l.b16 %v4263
        %v4296 = vunpack.c.l.b16 %v4264
        %v4297 = vunpack.c.l.b16 %v4265
        %v4298 = vunpack.c.l.b16 %v4266
        %v4299 = vunpack.c.l.b16 %v4267
        %v4300 = vunpack.c.l.b16 %v4268
        %v4301 = vunpack.c.l.b16 %v4269
        %v4302 = vunpack.c.l.b16 %v4270
        %v4303 = vpack.c.b16 %v4288, %v4287
        %v4304 = vpack.c.b16 %v4290, %v4289
        %v4305 = vpack.c.b16 %v4292, %v4291
        %v4306 = vpack.c.b16 %v4294, %v4293
        %v4307 = vpack.c.b16 %v4296, %v4295
        %v4308 = vpack.c.b16 %v4298, %v4297
        %v4309 = vpack.c.b16 %v4300, %v4299
        %v4310 = vpack.c.b16 %v4302, %v4301
        %4319 = vmatprep.subr.bf16.mxu0 0
        %4320 = vmatpush1.bf16.msra.mxu0 %v4303
        %4321 = vmatprep.subr.bf16.mxu0 0
        %4322 = vmatpush1.bf16.msra.mxu0 %v4304
        %4323 = vmatprep.subr.bf16.mxu0 0
        %4324 = vmatpush1.bf16.msra.mxu0 %v4305
        %4325 = vmatprep.subr.bf16.mxu0 0
        %4326 = vmatpush1.bf16.msra.mxu0 %v4306
        %4327 = vmatprep.subr.bf16.mxu0 0
        %4328 = vmatpush1.bf16.msra.mxu0 %v4307
        %4329 = vmatprep.subr.bf16.mxu0 0
        %4330 = vmatpush1.bf16.msra.mxu0 %v4308
        %4331 = vmatprep.subr.bf16.mxu0 0
        %4332 = vmatpush1.bf16.msra.mxu0 %v4309
        %4333 = vmatprep.subr.bf16.mxu0 0
        %4334 = vmatpush1.bf16.msra.mxu0 %v4310
        %4335 = vmatprep.subr.bf16.mxu0 0
        %4336 = vmatpush1.bf16.msra.mxu0 0
        %4337 = vmatprep.subr.bf16.mxu0 0
        %4338 = vmatpush1.bf16.msra.mxu0 0
        %4339 = vmatprep.subr.bf16.mxu0 0
        %4340 = vmatpush1.bf16.msra.mxu0 0
        %4341 = vmatprep.subr.bf16.mxu0 0
        %4342 = vmatpush1.bf16.msra.mxu0 0
        %4343 = vmatprep.subr.bf16.mxu0 0
        %4344 = vmatpush1.bf16.msra.mxu0 0
        %4345 = vmatprep.subr.bf16.mxu0 0
        %4346 = vmatpush1.bf16.msra.mxu0 0
        %4347 = vmatprep.subr.bf16.mxu0 0
        %4348 = vmatpush1.bf16.msra.mxu0 0
        %4349 = vmatprep.subr.bf16.mxu0 0
        %4350 = vmatpush1.bf16.msra.mxu0 0
        %4351 = vmatprep.mubr.bf16.mxu0 0
        %4352 = vmatmul.mubr.bf16.gmra.mrb[0].mxu0 %v4251
        %v4353 = vpop.f32.mrb[0].mxu0
        %v4354 = vadd.f32 0.0, %v4353
        %v4355 = vpop.f32.mrb[0].mxu0
        %v4356 = vpop.f32.mrb[0].mxu0
        %v4357 = vadd.f32 0.0, %v4356
        %v4358 = vpop.f32.mrb[0].mxu0
        %4359 = vmatprep.mubr.bf16.mxu0 0
        %4360 = vmatmul.mubr.bf16.gmra.mrb[0].mxu0 %v4252
        %v4361 = vpop.f32.mrb[0].mxu0
        %v4362 = vadd.f32 0.0, %v4361
        %v4363 = vpop.f32.mrb[0].mxu0
        %v4364 = vpop.f32.mrb[0].mxu0
        %v4365 = vadd.f32 0.0, %v4364
        %v4366 = vpop.f32.mrb[0].mxu0
        %4367 = vmatprep.mubr.bf16.mxu0 0
        %4368 = vmatmul.mubr.bf16.gmra.mrb[0].mxu0 %v4253
        %v4369 = vpop.f32.mrb[0].mxu0
        %v4370 = vadd.f32 0.0, %v4369
        %v4371 = vpop.f32.mrb[0].mxu0
        %v4372 = vpop.f32.mrb[0].mxu0
        %v4373 = vadd.f32 0.0, %v4372
        %v4374 = vpop.f32.mrb[0].mxu0
        %4375 = vmatprep.mubr.bf16.mxu0 0
        %4376 = vmatmul.mubr.bf16.gmra.mrb[0].mxu0 %v4254
        %v4377 = vpop.f32.mrb[0].mxu0
        %v4378 = vadd.f32 0.0, %v4377
        %v4379 = vpop.f32.mrb[0].mxu0
        %v4380 = vpop.f32.mrb[0].mxu0
        %v4381 = vadd.f32 0.0, %v4380
        %v4382 = vpop.f32.mrb[0].mxu0
        %4383 = vdwg.mxu0
        %v4384 = vadd.f32 %v4235, %v4354
        %v4385 = vadd.f32 %v4236, %v4357
        %v4386 = vadd.f32 %v4237, %v4362
        %v4387 = vadd.f32 %v4238, %v4365
        %v4388 = vadd.f32 %v4239, %v4370
        %v4389 = vadd.f32 %v4240, %v4373
        %v4390 = vadd.f32 %v4241, %v4378
        %v4391 = vadd.f32 %v4242, %v4381
        %v4392 = vld [vmem:[#allocation11] sm:$0x1]
        %v4394 = vlaneseq
        %v4395 = vshrl.u32 %v4394, 7
        %v4396 = vsub.s32 0, %v4395
        %v4397 = vrot.slane %v4392, %v4396
        %v4399 = vadd.f32 %v4384, %v4397
        %v4400 = vadd.f32 %v4385, %v4397
        %v4401 = vadd.f32 %v4386, %v4397
        %v4402 = vadd.f32 %v4387, %v4397
        %v4403 = vadd.f32 %v4388, %v4397
        %v4404 = vadd.f32 %v4389, %v4397
        %v4405 = vadd.f32 %v4390, %v4397
        %v4406 = vadd.f32 %v4391, %v4397
        %v4407 = vpack.c.bf16 %v658, %v657
        %v4408 = vpack.c.bf16 %v660, %v659
        %v4409 = vpack.c.bf16 %v662, %v661
        %v4410 = vpack.c.bf16 %v664, %v663
        %v4411 = vld [vmem:[#allocation16] sm:$0xf]
        %v4412 = vld [vmem:[#allocation16 + $0x4] sm:$0xf]
        %v4413 = vld [vmem:[#allocation16 + $0x8] sm:$0xf]
        %v4414 = vld [vmem:[#allocation16 + $0xc] sm:$0xf]
        %v4415 = vld [vmem:[#allocation16 + $0x10] sm:$0xf]
        %v4416 = vld [vmem:[#allocation16 + $0x14] sm:$0xf]
        %v4417 = vld [vmem:[#allocation16 + $0x18] sm:$0xf]
        %v4418 = vld [vmem:[#allocation16 + $0x1c] sm:$0xf]
        %v4419 = vld [vmem:[%s15] sm:$0x1]
        %v4421 = vlaneseq
        %v4422 = vshrl.u32 %v4421, 7
        %v4423 = vsub.s32 0, %v4422
        %v4424 = vrot.slane %v4419, %v4423
        %v4434 = vunpack.c.l.b16 %v4411
        %v4435 = vunpack.c.l.b16 %v4412
        %v4436 = vunpack.c.l.b16 %v4413
        %v4437 = vunpack.c.l.b16 %v4414
        %v4438 = vunpack.c.l.b16 %v4415
        %v4439 = vunpack.c.l.b16 %v4416
        %v4440 = vunpack.c.l.b16 %v4417
        %v4441 = vunpack.c.l.b16 %v4418
        %v4442 = vpack.c.b16 %v4435, %v4434
        %v4443 = vpack.c.b16 %v4437, %v4436
        %v4444 = vpack.c.b16 %v4439, %v4438
        %v4445 = vpack.c.b16 %v4441, %v4440
        %v4451 = vsel %vm665, %v4407, 0
        %v4454 = vsel %vm665, %v4408, 0
        %v4457 = vsel %vm665, %v4409, 0
        %v4460 = vsel %vm665, %v4410, 0
        %4462 = vmatprep.subr.bf16.mxu0 0
        %4463 = vmatpush1.bf16.msra.mxu0 %v4442
        %4464 = vmatprep.subr.bf16.mxu0 0
        %4465 = vmatpush1.bf16.msra.mxu0 %v4443
        %4466 = vmatprep.subr.bf16.mxu0 0
        %4467 = vmatpush1.bf16.msra.mxu0 %v4444
        %4468 = vmatprep.subr.bf16.mxu0 0
        %4469 = vmatpush1.bf16.msra.mxu0 %v4445
        %4470 = vmatprep.subr.bf16.mxu0 0
        %4471 = vmatpush1.bf16.msra.mxu0 0
        %4472 = vmatprep.subr.bf16.mxu0 0
        %4473 = vmatpush1.bf16.msra.mxu0 0
        %4474 = vmatprep.subr.bf16.mxu0 0
        %4475 = vmatpush1.bf16.msra.mxu0 0
        %4476 = vmatprep.subr.bf16.mxu0 0
        %4477 = vmatpush1.bf16.msra.mxu0 0
        %4478 = vmatprep.subr.bf16.mxu0 0
        %4479 = vmatpush1.bf16.msra.mxu0 0
        %4480 = vmatprep.subr.bf16.mxu0 0
        %4481 = vmatpush1.bf16.msra.mxu0 0
        %4482 = vmatprep.subr.bf16.mxu0 0
        %4483 = vmatpush1.bf16.msra.mxu0 0
        %4484 = vmatprep.subr.bf16.mxu0 0
        %4485 = vmatpush1.bf16.msra.mxu0 0
        %4486 = vmatprep.subr.bf16.mxu0 0
        %4487 = vmatpush1.bf16.msra.mxu0 0
        %4488 = vmatprep.subr.bf16.mxu0 0
        %4489 = vmatpush1.bf16.msra.mxu0 0
        %4490 = vmatprep.subr.bf16.mxu0 0
        %4491 = vmatpush1.bf16.msra.mxu0 0
        %4492 = vmatprep.subr.bf16.mxu0 0
        %4493 = vmatpush1.bf16.msra.mxu0 0
        %4494 = vmatprep.mubr.bf16.mxu0 0
        %4495 = vmatmul.mubr.bf16.gmra.mrb[0].mxu0 %v4451
        %v4496 = vpop.f32.mrb[0].mxu0
        %v4497 = vadd.f32 %v4424, %v4496
        %v4498 = vpop.f32.mrb[0].mxu0
        %v4499 = vpop.f32.mrb[0].mxu0
        %v4500 = vadd.f32 %v4424, %v4499
        %v4501 = vpop.f32.mrb[0].mxu0
        %4502 = vmatprep.mubr.bf16.mxu0 0
        %4503 = vmatmul.mubr.bf16.gmra.mrb[0].mxu0 %v4454
        %v4504 = vpop.f32.mrb[0].mxu0
        %v4505 = vadd.f32 %v4424, %v4504
        %v4506 = vpop.f32.mrb[0].mxu0
        %v4507 = vpop.f32.mrb[0].mxu0
        %v4508 = vadd.f32 %v4424, %v4507
        %v4509 = vpop.f32.mrb[0].mxu0
        %4510 = vmatprep.mubr.bf16.mxu0 0
        %4511 = vmatmul.mubr.bf16.gmra.mrb[0].mxu0 %v4457
        %v4512 = vpop.f32.mrb[0].mxu0
        %v4513 = vadd.f32 %v4424, %v4512
        %v4514 = vpop.f32.mrb[0].mxu0
        %v4515 = vpop.f32.mrb[0].mxu0
        %v4516 = vadd.f32 %v4424, %v4515
        %v4517 = vpop.f32.mrb[0].mxu0
        %4518 = vmatprep.mubr.bf16.mxu0 0
        %4519 = vmatmul.mubr.bf16.gmra.mrb[0].mxu0 %v4460
        %v4520 = vpop.f32.mrb[0].mxu0
        %v4521 = vadd.f32 %v4424, %v4520
        %v4522 = vpop.f32.mrb[0].mxu0
        %v4523 = vpop.f32.mrb[0].mxu0
        %v4524 = vadd.f32 %v4424, %v4523
        %v4525 = vpop.f32.mrb[0].mxu0
        %4526 = vdwg.mxu0
        %v4527 = vadd.f32 %v4399, %v4497
        %v4528 = vadd.f32 %v4400, %v4500
        %v4529 = vadd.f32 %v4401, %v4505
        %v4530 = vadd.f32 %v4402, %v4508
        %v4531 = vadd.f32 %v4403, %v4513
        %v4532 = vadd.f32 %v4404, %v4516
        %v4533 = vadd.f32 %v4405, %v4521
        %v4534 = vadd.f32 %v4406, %v4524
        %4535 = vst [vmem:[%s647] sm:$0xff] %v4527
        %4536 = vst [vmem:[%s647 + $0x8] sm:$0xff] %v4528
        %4537 = vst [vmem:[%s647 + $0x10] sm:$0xff] %v4529
        %4538 = vst [vmem:[%s647 + $0x18] sm:$0xff] %v4530
        %4539 = vst [vmem:[%s647 + $0x20] sm:$0xff] %v4531
        %4540 = vst [vmem:[%s647 + $0x28] sm:$0xff] %v4532
        %4541 = vst [vmem:[%s647 + $0x30] sm:$0xff] %v4533
        %4542 = vst [vmem:[%s647 + $0x38] sm:$0xff] %v4534
        %s4543 = sand.u32 %s386, 1
        %s4544 = scalar_lea.sflag [#allocation4], %s4543
        %s4545 = sand.u32 %s386, 1
        %s4546 = smul.addr %s4545, 64
        %s4547 = scalar_lea.vmem [#allocation17], %s4546
        // Predicated region
        $region121: #{tpu_custom_call.1} parent=83 // pred_check
          %p4548 = pneg %p396
        $region122: #{tpu_custom_call.1} parent=83 // pred_check_branch
          %4550 = sbr.rel (%p4548) target = $region124
        $region123: #{tpu_custom_call.1} parent=83 // pred_region
          %s4552 = ssub.s32 1024, 1024
          %4553 = vsyncadd %s4544, %s4552
          %s4554 = smul.addr %s37, 8
          %s4555 = smul.addr %s4554, 128
          %s4556 = scalar_lea.hbm %s16, %s4555
          %s4557 = sshll.u32 %s4547, 4
          %s4558 = int_to_ptr.vmem [resolvable:$true] %s4557
          %4563 = dma.vmem_to_hbm [thread:$0]  %s4558, 1024, %s4556, %s4544, 128, 128, 8
        $region124: #{tpu_custom_call.1} parent=83 // pred_fallthru
          _
      $region84: #{tpu_custom_call.1} parent=5 // pred_fallthru
        _
      %p4564 = scmp.le.s32.totalorder 2, %s32
      // Predicated region
      $region125: #{tpu_custom_call.1} parent=5 // pred_check
        %p4565 = pneg %p4564
      $region126: #{tpu_custom_call.1} parent=5 // pred_check_branch
        %4567 = sbr.rel (%p4565) target = $region128
      $region127: #{tpu_custom_call.1} parent=5 // pred_region
        %s4568 = ssub.s32 %s32, 2
        // Predicated region
        $region129: #{tpu_custom_call.1} parent=127 // pred_check
          %p4569 = pneg %p402
        $region130: #{tpu_custom_call.1} parent=127 // pred_check_branch
          %4571 = sbr.rel (%p4569) target = $region132
        $region131: #{tpu_custom_call.1} parent=127 // pred_region
          %s4572 = sand.u32 %s387, 1
          %s4573 = scalar_lea.sflag [#allocation4], %s4572
          %s4574 = sand.u32 %s387, 1
          %s4575 = smul.addr %s4574, 64
          %s4576 = scalar_lea.vmem [#allocation17], %s4575
          %4577 = dma.done %s4573, 1024
        $region132: #{tpu_custom_call.1} parent=127 // pred_fallthru
          _
      $region128: #{tpu_custom_call.1} parent=5 // pred_fallthru
        _
    $region6: #{tpu_custom_call.1} parent=1 // loop_footer
      %s36 = sadd.s32 1, %s32
    $region7: #{tpu_custom_call.1} parent=1 // loop_footer_branch
      %31 = sbr.rel target = $region3
    $region8: #{tpu_custom_call.1} parent=1 // loop_exit
      _
    %4578 = vsyncpa [#allocation3], 1
    %s4579 = scalar_lea.sflag [#allocation3], 1
    %4580 = vsyncpa %s4579, 1
    %4581 = vsyncpa [#allocation6], 1
    %4582 = vsyncpa [#allocation9], 1
    %4583 = vsyncpa [#allocation12], 1
    %4584 = vsyncpa [#allocation15], 1
    %4585 = vsyncpa [#allocation4], 1
    %s4586 = scalar_lea.sflag [#allocation4], 1
    %4587 = vsyncpa %s4586, 1

</llo_original>
